<compile_context>
chip_gen: v6e
topology: v6e:2x2x1
jax: 0.10.0
libtpu: 0.0.40
codegen_flags: <defaults>
</compile_context>

<pallas_src>
import math

import jax
import jax.numpy as jnp
from jax.experimental import pallas as pl
from jax.experimental.pallas import tpu as pltpu

N_EMBD = 512
N_HEAD = 8
HEAD_DIM = N_EMBD // N_HEAD
LN_EPS = 1e-5
VOCAB_SIZE = 50304
BLOCK_SIZE = 512
N_LAYER = 8   # spec value; demo below uses fewer layers for speed


# --------------------------------------------------------------------------- #
# Chip-aware configuration (graceful, conservative fallback).
# --------------------------------------------------------------------------- #
def _device_kind():
    try:
        return jax.devices()[0].device_kind.lower()
    except Exception:
        return ""


_KIND = _device_kind()
_BIG_VMEM = any(tag in _KIND for tag in ("v5", "v6"))   # v5e/v5p/v6e: 128 MiB VMEM
VMEM_LIMIT = (96 << 20) if _BIG_VMEM else (48 << 20)    # v7x has only 64 MiB physical
TARGET_ROWS = 1024 if _BIG_VMEM else 512                # M = bblk*T target per grid step


def _const_spec(shape):
    """BlockSpec for a grid-invariant (weight/bias) block: single-buffered if supported."""
    idx_map = lambda b: (0,) * len(shape)
    try:
        return pl.BlockSpec(shape, idx_map, pipeline_mode=pl.Buffered(1))
    except (TypeError, AttributeError):
        # Older jax without pipeline_mode / Buffered: fall back to default buffering.
        return pl.BlockSpec(shape, idx_map)


# --------------------------------------------------------------------------- #
# Pallas kernel: one transformer block over a (BBLK, T, E) tile of the batch.
# --------------------------------------------------------------------------- #
def block_kernel(x_ref,
                 ln1_w_ref, ln1_b_ref,
                 wqkv_ref, bqkv_ref,
                 wo_ref, bo_ref,
                 ln2_w_ref, ln2_b_ref,
                 w1_ref, b1_ref,
                 w2_ref, b2_ref,
                 o_ref):
    bblk, T, E = x_ref.shape
    M = bblk * T
    x = x_ref[...].astype(jnp.float32).reshape(M, E)             # (M, E) fp32 residual

    # ---- LayerNorm 1 (fp32) ----
    mu = jnp.mean(x, axis=-1, keepdims=True)
    var = jnp.mean((x - mu) ** 2, axis=-1, keepdims=True)
    x_ln = (x - mu) * jax.lax.rsqrt(var + LN_EPS) * ln1_w_ref[0] + ln1_b_ref[0]

    # ---- Fused QKV projection (bf16 operands, fp32 accumulate) ----
    qkv = jnp.dot(x_ln.astype(jnp.bfloat16), wqkv_ref[...],
                  preferred_element_type=jnp.float32) + bqkv_ref[0]

    # ---- Multi-head causal attention ----
    scale = 1.0 / math.sqrt(HEAD_DIM)
    qb = (qkv[:, 0 * E:1 * E] * scale).astype(jnp.bfloat16).reshape(bblk, T, E)
    kb = qkv[:, 1 * E:2 * E].astype(jnp.bfloat16).reshape(bblk, T, E)
    vb = qkv[:, 2 * E:3 * E].astype(jnp.bfloat16).reshape(bblk, T, E)

    # Additive causal bias built & broadcast ONCE (no per-head broadcast+select).
    row_ids = jax.lax.broadcasted_iota(jnp.int32, (T, T), 0)
    col_ids = jax.lax.broadcasted_iota(jnp.int32, (T, T), 1)
    causal_bias = jnp.where(col_ids <= row_ids, 0.0, -1e30).astype(jnp.float32)
    causal_bias = jnp.broadcast_to(causal_bias[None, :, :], (bblk, T, T))

    ctx_heads = []
    for h in range(N_HEAD):
        lo = h * HEAD_DIM
        qh = qb[:, :, lo:lo + HEAD_DIM]                          # (bblk, T, D) bf16
        kh = kb[:, :, lo:lo + HEAD_DIM]
        vh = vb[:, :, lo:lo + HEAD_DIM]
        s = jnp.einsum('bqd,bkd->bqk', qh, kh,
                       preferred_element_type=jnp.float32)       # (bblk, T, T) fp32
        s = s + causal_bias                                      # single vadd mask
        s = s - jnp.max(s, axis=-1, keepdims=True)
        p = jnp.exp(s)
        p = p * pl.reciprocal(jnp.sum(p, axis=-1, keepdims=True), approx=True)
        ctx = jnp.einsum('bqk,bkd->bqd', p.astype(jnp.bfloat16), vh,
                         preferred_element_type=jnp.float32)     # (bblk, T, D) fp32
        ctx_heads.append(ctx.astype(jnp.bfloat16))               # head offsets are x64 lanes

    # Single full-depth out-projection: (M, 512) @ (512, 512) bf16, fp32 accumulate.
    ctx_all = jnp.concatenate(ctx_heads, axis=-1).reshape(M, E)  # (M, E) bf16
    attn = jnp.dot(ctx_all, wo_ref[...],
                   preferred_element_type=jnp.float32) + bo_ref[0]

    x1 = x + attn                                                # residual 1 (fp32)

    # ---- LayerNorm 2 (fp32) ----
    mu2 = jnp.mean(x1, axis=-1, keepdims=True)
    var2 = jnp.mean((x1 - mu2) ** 2, axis=-1, keepdims=True)
    x_ln2 = (x1 - mu2) * jax.lax.rsqrt(var2 + LN_EPS) * ln2_w_ref[0] + ln2_b_ref[0]

    # ---- FFN: Linear(E,4E) -> ReLU -> Linear(4E,E), bf16 matmuls ----
    h1 = jnp.dot(x_ln2.astype(jnp.bfloat16), w1_ref[...],
                 preferred_element_type=jnp.float32) + b1_ref[0]
    h1 = jnp.maximum(h1, 0.0)
    ff = jnp.dot(h1.astype(jnp.bfloat16), w2_ref[...],
                 preferred_element_type=jnp.float32) + b2_ref[0]

    o_ref[...] = (x1 + ff).reshape(bblk, T, E).astype(o_ref.dtype)


def _pick_batch_block(B, T, target_rows):
    """How many batch rows to fold per grid step (M = bblk*T ~ target_rows),
    preferring a grid of >= 2 (ideally even) steps so both v7x TensorCores get work."""
    bblk = max(1, min(B, -(-target_rows // T)))   # ceil(target/T), capped at B
    while B % bblk:
        bblk -= 1
    while bblk > 1 and (B // bblk < 2 or (B // bblk) % 2 == 1):
        bblk -= 1
        while B % bblk:
            bblk -= 1
    return bblk


def transformer_block(x, params):
    """x: (B, T, E) float32 or bfloat16. Returns (B, T, E) bfloat16."""
    B, T, E = x.shape
    H4 = 4 * E
    bblk = _pick_batch_block(B, T, TARGET_ROWS)

    bf16 = jnp.bfloat16
    # Pre-transpose + cast weights so the kernel does (M,K)@(K,N) bf16 matmuls.
    wqkv_t = params["in_proj_weight"].T.astype(bf16)   # (E, 3E)
    wo_t = params["out_proj_weight"].T.astype(bf16)    # (E, E)
    w1_t = params["ffn_w1"].T.astype(bf16)             # (E, 4E)
    w2_t = params["ffn_w2"].T.astype(bf16)             # (4E, E)

    def row(v):  # 1D params as fp32 (1, N) rows
        return v.reshape(1, -1).astype(jnp.float32)

    return pl.pallas_call(
        block_kernel,
        out_shape=jax.ShapeDtypeStruct((B, T, E), bf16),   # bf16 residual stream between layers
        grid=(B // bblk,),
        in_specs=[
            pl.BlockSpec((bblk, T, E), lambda b: (b, 0, 0)),   # x tile (double-buffered)
            _const_spec((1, E)), _const_spec((1, E)),          # ln1 w, b
            _const_spec((E, 3 * E)), _const_spec((1, 3 * E)),  # in_proj W^T (bf16), b
            _const_spec((E, E)), _const_spec((1, E)),          # out_proj W^T (bf16), b
            _const_spec((1, E)), _const_spec((1, E)),          # ln2 w, b
            _const_spec((E, H4)), _const_spec((1, H4)),        # ffn w1^T (bf16), b1
            _const_spec((H4, E)), _const_spec((1, E)),         # ffn w2^T (bf16), b2
        ],
        out_specs=pl.BlockSpec((bblk, T, E), lambda b: (b, 0, 0)),
        compiler_params=pltpu.CompilerParams(
            dimension_semantics=("parallel",),
            vmem_limit_bytes=VMEM_LIMIT,
        ),
    )(x.astype(bf16),
      row(params["ln1_w"]), row(params["ln1_b"]),
      wqkv_t, row(params["in_proj_bias"]),
      wo_t, row(params["out_proj_bias"]),
      row(params["ln2_w"]), row(params["ln2_b"]),
      w1_t, row(params["ffn_b1"]),
      w2_t, row(params["ffn_b2"]))


# --------------------------------------------------------------------------- #
# Full GPTLanguageModel forward (Pallas block kernel inside, rest plain JAX).
# Embedding gather, final LayerNorm, tied lm_head (bf16 operands) and CE loss are XLA.
# --------------------------------------------------------------------------- #
def _layer_norm(z, w, b):
    mu = jnp.mean(z, axis=-1, keepdims=True)
    var = jnp.mean((z - mu) ** 2, axis=-1, keepdims=True)
    return (z - mu) * jax.lax.rsqrt(var + LN_EPS) * w + b


def _cross_entropy(logits, targets):
    logits2 = logits.reshape(-1, logits.shape[-1])
    tgt = targets.reshape(-1)
    logp = jax.nn.log_softmax(logits2, axis=-1)
    return -jnp.mean(jnp.take_along_axis(logp, tgt[:, None], axis=-1))


def gpt_forward(idx, params, targets=None):
    """idx: (B, T) int32 token ids. Returns (logits, loss)."""
    T = idx.shape[1]
    x = jnp.take(params["tok_emb"], idx, axis=0) + params["pos_emb"][:T]
    for bp in params["blocks"]:
        x = transformer_block(x, bp)            # bf16 residual stream between layers
    x = _layer_norm(x.astype(jnp.float32), params["lnf_w"], params["lnf_b"])
    # Weight-tied lm_head (no bias): bf16 operands, fp32 accumulation on the MXU.
    logits = jnp.einsum("bte,ve->btv",
                        x.astype(jnp.bfloat16),
                        params["tok_emb"].astype(jnp.bfloat16),
                        preferred_element_type=jnp.float32)
    if targets is None:
        return logits, None
    return logits, _cross_entropy(logits, targets)


# --------------------------------------------------------------------------- #
# Pure-JAX references (eval-mode PyTorch semantics, fp32 throughout).
# --------------------------------------------------------------------------- #
def block_reference(x, params):
    B, T, E = x.shape
    x_ln = _layer_norm(x, params["ln1_w"], params["ln1_b"])
    qkv = x_ln @ params["in_proj_weight"].T + params["in_proj_bias"]
    q, k, v = jnp.split(qkv, 3, axis=-1)

    def heads(z):  # (B, T, E) -> (B, H, T, D)
        return z.reshape(B, T, N_HEAD, HEAD_DIM).transpose(0, 2, 1, 3)

    qh, kh, vh = heads(q), heads(k), heads(v)
    s = jnp.einsum("bhtd,bhsd->bhts", qh, kh) / math.sqrt(HEAD_DIM)
    mask = jnp.triu(jnp.full((T, T), -jnp.inf), k=1)
    p = jax.nn.softmax(s + mask, axis=-1)
    attn = jnp.einsum("bhts,bhsd->bhtd", p, vh).transpose(0, 2, 1, 3).reshape(B, T, E)
    attn = attn @ params["out_proj_weight"].T + params["out_proj_bias"]

    x1 = x + attn
    x_ln2 = _layer_norm(x1, params["ln2_w"], params["ln2_b"])
    h1 = jnp.maximum(x_ln2 @ params["ffn_w1"].T + params["ffn_b1"], 0.0)
    ff = h1 @ params["ffn_w2"].T + params["ffn_b2"]
    return x1 + ff


def gpt_reference(idx, params, targets=None):
    T = idx.shape[1]
    x = jnp.take(params["tok_emb"], idx, axis=0) + params["pos_emb"][:T]
    for bp in params["blocks"]:
        x = block_reference(x, bp)
    x = _layer_norm(x, params["lnf_w"], params["lnf_b"])
    logits = x @ params["tok_emb"].T
    if targets is None:
        return logits, None
    return logits, _cross_entropy(logits, targets)


# --------------------------------------------------------------------------- #
# Parameter init (std=0.02 normals, as in the PyTorch module).
# --------------------------------------------------------------------------- #
def init_block_params(key, n_embd=N_EMBD):
    ks = jax.random.split(key, 6)
    std = 0.02
    return {
        "ln1_w": jnp.ones((n_embd,), jnp.float32),
        "ln1_b": jnp.zeros((n_embd,), jnp.float32),
        "in_proj_weight": std * jax.random.normal(ks[0], (3 * n_embd, n_embd), jnp.float32),
        "in_proj_bias": std * jax.random.normal(ks[1], (3 * n_embd,), jnp.float32),
        "out_proj_weight": std * jax.random.normal(ks[2], (n_embd, n_embd), jnp.float32),
        "out_proj_bias": jnp.zeros((n_embd,), jnp.float32),
        "ln2_w": jnp.ones((n_embd,), jnp.float32),
        "ln2_b": jnp.zeros((n_embd,), jnp.float32),
        "ffn_w1": std * jax.random.normal(ks[3], (4 * n_embd, n_embd), jnp.float32),
        "ffn_b1": jnp.zeros((4 * n_embd,), jnp.float32),
        "ffn_w2": std * jax.random.normal(ks[4], (n_embd, 4 * n_embd), jnp.float32),
        "ffn_b2": jnp.zeros((n_embd,), jnp.float32),
    }


def init_gpt_params(key, n_layer):
    ks = jax.random.split(key, n_layer + 2)
    std = 0.02
    return {
        "tok_emb": std * jax.random.normal(ks[0], (VOCAB_SIZE, N_EMBD), jnp.float32),
        "pos_emb": std * jax.random.normal(ks[1], (BLOCK_SIZE, N_EMBD), jnp.float32),
        "blocks": [init_block_params(ks[2 + i]) for i in range(n_layer)],
        "lnf_w": jnp.ones((N_EMBD,), jnp.float32),
        "lnf_b": jnp.zeros((N_EMBD,), jnp.float32),
    }


if __name__ == "__main__":
    key = jax.random.PRNGKey(0)
    k_x, k_bp, k_gp, k_idx, k_tgt = jax.random.split(key, 5)

    # ---- 1) Block kernel vs pure-JAX reference ----
    B, T = 2, 8
    x = jax.random.normal(k_x, (B, T, N_EMBD), jnp.float32)
    bparams = init_block_params(k_bp)

    out = jax.block_until_ready(jax.jit(transformer_block)(x, bparams))
    ref = block_reference(x, bparams)
    assert out.shape == (B, T, N_EMBD)
    # bf16 matmul operands / bf16 block I/O (fp32 accumulation & LN/softmax) ->
    # loose but bug-catching tolerance.
    assert jnp.allclose(out.astype(jnp.float32), ref, rtol=1e-1, atol=1e-1), \
        float(jnp.max(jnp.abs(out.astype(jnp.float32) - ref)))

    # ---- 2) Full GPT forward (embeddings -> blocks -> final LN -> tied lm_head -> loss) ----
    n_layer_demo = 2   # spec uses n_layer=8; reduced for a quick demo
    gparams = init_gpt_params(k_gp, n_layer=n_layer_demo)
    idx = jax.random.randint(k_idx, (B, T), 0, VOCAB_SIZE)
    targets = jax.random.randint(k_tgt, (B, T), 0, VOCAB_SIZE)

    logits, loss = jax.block_until_ready(jax.jit(gpt_forward)(idx, gparams, targets))
    logits_ref, loss_ref = gpt_reference(idx, gparams, targets)
    assert logits.shape == (B, T, VOCAB_SIZE)
    assert jnp.allclose(logits, logits_ref, rtol=2e-1, atol=2e-1), \
        float(jnp.max(jnp.abs(logits - logits_ref)))
    assert abs(float(loss) - float(loss_ref)) < 1e-1, (float(loss), float(loss_ref))

    print("KERNEL_OK")
</pallas_src>

<mosaic_0001>
module attributes {stable_mosaic.version = 11 : i64} {
  func.func @block_kernel(%arg0: i32, %arg1: memref<1x8x512xbf16, #tpu.memory_space<vmem>>, %arg2: memref<1x512xf32, #tpu.memory_space<vmem>>, %arg3: memref<1x512xf32, #tpu.memory_space<vmem>>, %arg4: memref<512x1536xbf16, #tpu.memory_space<vmem>>, %arg5: memref<1x1536xf32, #tpu.memory_space<vmem>>, %arg6: memref<512x512xbf16, #tpu.memory_space<vmem>>, %arg7: memref<1x512xf32, #tpu.memory_space<vmem>>, %arg8: memref<1x512xf32, #tpu.memory_space<vmem>>, %arg9: memref<1x512xf32, #tpu.memory_space<vmem>>, %arg10: memref<512x2048xbf16, #tpu.memory_space<vmem>>, %arg11: memref<1x2048xf32, #tpu.memory_space<vmem>>, %arg12: memref<2048x512xbf16, #tpu.memory_space<vmem>>, %arg13: memref<1x512xf32, #tpu.memory_space<vmem>>, %arg14: memref<1x8x512xbf16, #tpu.memory_space<vmem>>) attributes {dimension_semantics = [#tpu.dimension_semantics<parallel>], iteration_bounds = array<i64: 2>, scalar_prefetch = 0 : i64, scratch_operands = 0 : i64, tpu.core_type = #tpu.core_type<tc>, window_params = [{transform_indices = @transform_0, window_bounds = array<i64: 1, 8, 512>}, {pipeline_mode = #tpu.pipeline_mode<synchronous>, transform_indices = @transform_1, window_bounds = array<i64: 1, 512>}, {pipeline_mode = #tpu.pipeline_mode<synchronous>, transform_indices = @transform_2, window_bounds = array<i64: 1, 512>}, {pipeline_mode = #tpu.pipeline_mode<synchronous>, transform_indices = @transform_3, window_bounds = array<i64: 512, 1536>}, {pipeline_mode = #tpu.pipeline_mode<synchronous>, transform_indices = @transform_4, window_bounds = array<i64: 1, 1536>}, {pipeline_mode = #tpu.pipeline_mode<synchronous>, transform_indices = @transform_5, window_bounds = array<i64: 512, 512>}, {pipeline_mode = #tpu.pipeline_mode<synchronous>, transform_indices = @transform_6, window_bounds = array<i64: 1, 512>}, {pipeline_mode = #tpu.pipeline_mode<synchronous>, transform_indices = @transform_7, window_bounds = array<i64: 1, 512>}, {pipeline_mode = #tpu.pipeline_mode<synchronous>, transform_indices = @transform_8, window_bounds = array<i64: 1, 512>}, {pipeline_mode = #tpu.pipeline_mode<synchronous>, transform_indices = @transform_9, window_bounds = array<i64: 512, 2048>}, {pipeline_mode = #tpu.pipeline_mode<synchronous>, transform_indices = @transform_10, window_bounds = array<i64: 1, 2048>}, {pipeline_mode = #tpu.pipeline_mode<synchronous>, transform_indices = @transform_11, window_bounds = array<i64: 2048, 512>}, {pipeline_mode = #tpu.pipeline_mode<synchronous>, transform_indices = @transform_12, window_bounds = array<i64: 1, 512>}, {transform_indices = @transform_13, window_bounds = array<i64: 1, 8, 512>}]} {
    %c0 = arith.constant 0 : index
    %c0_0 = arith.constant 0 : index
    %c0_1 = arith.constant 0 : index
    %0 = vector.load %arg1[%c0, %c0_0, %c0_1] : memref<1x8x512xbf16, #tpu.memory_space<vmem>>, vector<1x8x512xbf16>
    %1 = arith.extf %0 : vector<1x8x512xbf16> to vector<1x8x512xf32>
    %2 = vector.shape_cast %1 : vector<1x8x512xf32> to vector<8x512xf32>
    %cst = arith.constant dense<0.000000e+00> : vector<8xf32>
    %3 = vector.multi_reduction <add>, %2, %cst [1] : vector<8x512xf32> to vector<8xf32>
    %4 = vector.shape_cast %3 : vector<8xf32> to vector<8x1xf32>
    %cst_2 = arith.constant 5.120000e+02 : f32
    %5 = vector.broadcast %cst_2 : f32 to vector<8x1xf32>
    %6 = arith.divf %4, %5 : vector<8x1xf32>
    %7 = vector.broadcast %6 : vector<8x1xf32> to vector<8x512xf32>
    %8 = arith.subf %2, %7 : vector<8x512xf32>
    %9 = arith.mulf %8, %8 : vector<8x512xf32>
    %cst_3 = arith.constant dense<0.000000e+00> : vector<8xf32>
    %10 = vector.multi_reduction <add>, %9, %cst_3 [1] : vector<8x512xf32> to vector<8xf32>
    %11 = vector.shape_cast %10 : vector<8xf32> to vector<8x1xf32>
    %cst_4 = arith.constant 5.120000e+02 : f32
    %12 = vector.broadcast %cst_4 : f32 to vector<8x1xf32>
    %13 = arith.divf %11, %12 : vector<8x1xf32>
    %14 = vector.broadcast %6 : vector<8x1xf32> to vector<8x512xf32>
    %15 = arith.subf %2, %14 : vector<8x512xf32>
    %cst_5 = arith.constant 9.99999974E-6 : f32
    %16 = vector.broadcast %cst_5 : f32 to vector<8x1xf32>
    %17 = arith.addf %13, %16 : vector<8x1xf32>
    %18 = math.rsqrt %17 : vector<8x1xf32>
    %19 = vector.broadcast %18 : vector<8x1xf32> to vector<8x512xf32>
    %20 = arith.mulf %15, %19 : vector<8x512xf32>
    %c0_6 = arith.constant 0 : index
    %c0_7 = arith.constant 0 : index
    %21 = vector.load %arg2[%c0_6, %c0_7] : memref<1x512xf32, #tpu.memory_space<vmem>>, vector<1x512xf32>
    %22 = vector.shape_cast %21 : vector<1x512xf32> to vector<512xf32>
    %23 = vector.shape_cast %22 : vector<512xf32> to vector<1x512xf32>
    %24 = vector.broadcast %23 : vector<1x512xf32> to vector<8x512xf32>
    %25 = arith.mulf %20, %24 : vector<8x512xf32>
    %c0_8 = arith.constant 0 : index
    %c0_9 = arith.constant 0 : index
    %26 = vector.load %arg3[%c0_8, %c0_9] : memref<1x512xf32, #tpu.memory_space<vmem>>, vector<1x512xf32>
    %27 = vector.shape_cast %26 : vector<1x512xf32> to vector<512xf32>
    %28 = vector.shape_cast %27 : vector<512xf32> to vector<1x512xf32>
    %29 = vector.broadcast %28 : vector<1x512xf32> to vector<8x512xf32>
    %30 = arith.addf %25, %29 : vector<8x512xf32>
    %31 = arith.truncf %30 : vector<8x512xf32> to vector<8x512xbf16>
    %c0_10 = arith.constant 0 : index
    %c0_11 = arith.constant 0 : index
    %32 = vector.load %arg4[%c0_10, %c0_11] : memref<512x1536xbf16, #tpu.memory_space<vmem>>, vector<512x1536xbf16>
    %cst_12 = arith.constant dense<0.000000e+00> : vector<8x1536xf32>
    %33 = tpu.matmul %31, %32, %cst_12 {dimension_numbers = #tpu.dot_dimension_numbers<[1], [0], [0], [1], [0, 0, 1, 1], [], []>} : vector<8x512xbf16>, vector<512x1536xbf16>, vector<8x1536xf32> -> vector<8x1536xf32>
    %c0_13 = arith.constant 0 : index
    %c0_14 = arith.constant 0 : index
    %34 = vector.load %arg5[%c0_13, %c0_14] : memref<1x1536xf32, #tpu.memory_space<vmem>>, vector<1x1536xf32>
    %35 = vector.shape_cast %34 : vector<1x1536xf32> to vector<1536xf32>
    %36 = vector.shape_cast %35 : vector<1536xf32> to vector<1x1536xf32>
    %37 = vector.broadcast %36 : vector<1x1536xf32> to vector<8x1536xf32>
    %38 = arith.addf %33, %37 : vector<8x1536xf32>
    %39 = vector.extract_strided_slice %38 {offsets = [0, 0], sizes = [8, 512], strides = [1, 1]} : vector<8x1536xf32> to vector<8x512xf32>
    %cst_15 = arith.constant 1.250000e-01 : f32
    %40 = vector.broadcast %cst_15 : f32 to vector<8x512xf32>
    %41 = arith.mulf %39, %40 : vector<8x512xf32>
    %42 = arith.truncf %41 : vector<8x512xf32> to vector<8x512xbf16>
    %43 = vector.shape_cast %42 : vector<8x512xbf16> to vector<1x8x512xbf16>
    %44 = vector.extract_strided_slice %38 {offsets = [0, 512], sizes = [8, 512], strides = [1, 1]} : vector<8x1536xf32> to vector<8x512xf32>
    %45 = arith.truncf %44 : vector<8x512xf32> to vector<8x512xbf16>
    %46 = vector.shape_cast %45 : vector<8x512xbf16> to vector<1x8x512xbf16>
    %47 = vector.extract_strided_slice %38 {offsets = [0, 1024], sizes = [8, 512], strides = [1, 1]} : vector<8x1536xf32> to vector<8x512xf32>
    %48 = arith.truncf %47 : vector<8x512xf32> to vector<8x512xbf16>
    %49 = vector.shape_cast %48 : vector<8x512xbf16> to vector<1x8x512xbf16>
    %50 = tpu.iota {dimensions = array<i32: 0>} : vector<8x8xi32>
    %51 = tpu.iota {dimensions = array<i32: 1>} : vector<8x8xi32>
    %52 = arith.cmpi sle, %51, %50 : vector<8x8xi32>
    %cst_16 = arith.constant 0.000000e+00 : f32
    %cst_17 = arith.constant -1.000000e+30 : f32
    %53 = vector.broadcast %cst_16 : f32 to vector<8x8xf32>
    %54 = vector.broadcast %cst_17 : f32 to vector<8x8xf32>
    %55 = arith.select %52, %53, %54 : vector<8x8xi1>, vector<8x8xf32>
    %56 = vector.shape_cast %55 : vector<8x8xf32> to vector<1x8x8xf32>
    %57 = vector.extract_strided_slice %43 {offsets = [0, 0, 0], sizes = [1, 8, 64], strides = [1, 1, 1]} : vector<1x8x512xbf16> to vector<1x8x64xbf16>
    %58 = vector.extract_strided_slice %46 {offsets = [0, 0, 0], sizes = [1, 8, 64], strides = [1, 1, 1]} : vector<1x8x512xbf16> to vector<1x8x64xbf16>
    %59 = vector.extract_strided_slice %49 {offsets = [0, 0, 0], sizes = [1, 8, 64], strides = [1, 1, 1]} : vector<1x8x512xbf16> to vector<1x8x64xbf16>
    "tpu.trace_start"() <{level = 10 : i32, message = "bqd,bkd->bqk"}> : () -> ()
    %cst_18 = arith.constant dense<0.000000e+00> : vector<1x8x8xf32>
    %60 = tpu.matmul %57, %58, %cst_18 {dimension_numbers = #tpu.dot_dimension_numbers<[2], [2], [1], [1], [0, 0, 0, 1, 1, 1], [0], [0]>} : vector<1x8x64xbf16>, vector<1x8x64xbf16>, vector<1x8x8xf32> -> vector<1x8x8xf32>
    "tpu.trace_stop"() : () -> ()
    %61 = arith.addf %60, %56 : vector<1x8x8xf32>
    %cst_19 = arith.constant dense<0xFF800000> : vector<1x8xf32>
    %62 = vector.multi_reduction <maximumf>, %61, %cst_19 [2] : vector<1x8x8xf32> to vector<1x8xf32>
    %63 = vector.shape_cast %62 : vector<1x8xf32> to vector<1x8x1xf32>
    %64 = vector.broadcast %63 : vector<1x8x1xf32> to vector<1x8x8xf32>
    %65 = arith.subf %61, %64 : vector<1x8x8xf32>
    %66 = math.exp %65 : vector<1x8x8xf32>
    %cst_20 = arith.constant dense<0.000000e+00> : vector<1x8xf32>
    %67 = vector.multi_reduction <add>, %66, %cst_20 [2] : vector<1x8x8xf32> to vector<1x8xf32>
    %68 = vector.shape_cast %67 : vector<1x8xf32> to vector<1x8x1xf32>
    %69 = tpu.reciprocal %68 {approx = true} : vector<1x8x1xf32> -> vector<1x8x1xf32>
    %70 = vector.broadcast %69 : vector<1x8x1xf32> to vector<1x8x8xf32>
    %71 = arith.mulf %66, %70 : vector<1x8x8xf32>
    %72 = arith.truncf %71 : vector<1x8x8xf32> to vector<1x8x8xbf16>
    "tpu.trace_start"() <{level = 10 : i32, message = "bqk,bkd->bqd"}> : () -> ()
    %cst_21 = arith.constant dense<0.000000e+00> : vector<1x8x64xf32>
    %73 = tpu.matmul %72, %59, %cst_21 {dimension_numbers = #tpu.dot_dimension_numbers<[2], [1], [1], [2], [0, 0, 0, 1, 1, 2], [0], [0]>} : vector<1x8x8xbf16>, vector<1x8x64xbf16>, vector<1x8x64xf32> -> vector<1x8x64xf32>
    "tpu.trace_stop"() : () -> ()
    %74 = arith.truncf %73 : vector<1x8x64xf32> to vector<1x8x64xbf16>
    %75 = vector.extract_strided_slice %43 {offsets = [0, 0, 64], sizes = [1, 8, 64], strides = [1, 1, 1]} : vector<1x8x512xbf16> to vector<1x8x64xbf16>
    %76 = vector.extract_strided_slice %46 {offsets = [0, 0, 64], sizes = [1, 8, 64], strides = [1, 1, 1]} : vector<1x8x512xbf16> to vector<1x8x64xbf16>
    %77 = vector.extract_strided_slice %49 {offsets = [0, 0, 64], sizes = [1, 8, 64], strides = [1, 1, 1]} : vector<1x8x512xbf16> to vector<1x8x64xbf16>
    "tpu.trace_start"() <{level = 10 : i32, message = "bqd,bkd->bqk"}> : () -> ()
    %cst_22 = arith.constant dense<0.000000e+00> : vector<1x8x8xf32>
    %78 = tpu.matmul %75, %76, %cst_22 {dimension_numbers = #tpu.dot_dimension_numbers<[2], [2], [1], [1], [0, 0, 0, 1, 1, 1], [0], [0]>} : vector<1x8x64xbf16>, vector<1x8x64xbf16>, vector<1x8x8xf32> -> vector<1x8x8xf32>
    "tpu.trace_stop"() : () -> ()
    %79 = arith.addf %78, %56 : vector<1x8x8xf32>
    %cst_23 = arith.constant dense<0xFF800000> : vector<1x8xf32>
    %80 = vector.multi_reduction <maximumf>, %79, %cst_23 [2] : vector<1x8x8xf32> to vector<1x8xf32>
    %81 = vector.shape_cast %80 : vector<1x8xf32> to vector<1x8x1xf32>
    %82 = vector.broadcast %81 : vector<1x8x1xf32> to vector<1x8x8xf32>
    %83 = arith.subf %79, %82 : vector<1x8x8xf32>
    %84 = math.exp %83 : vector<1x8x8xf32>
    %cst_24 = arith.constant dense<0.000000e+00> : vector<1x8xf32>
    %85 = vector.multi_reduction <add>, %84, %cst_24 [2] : vector<1x8x8xf32> to vector<1x8xf32>
    %86 = vector.shape_cast %85 : vector<1x8xf32> to vector<1x8x1xf32>
    %87 = tpu.reciprocal %86 {approx = true} : vector<1x8x1xf32> -> vector<1x8x1xf32>
    %88 = vector.broadcast %87 : vector<1x8x1xf32> to vector<1x8x8xf32>
    %89 = arith.mulf %84, %88 : vector<1x8x8xf32>
    %90 = arith.truncf %89 : vector<1x8x8xf32> to vector<1x8x8xbf16>
    "tpu.trace_start"() <{level = 10 : i32, message = "bqk,bkd->bqd"}> : () -> ()
    %cst_25 = arith.constant dense<0.000000e+00> : vector<1x8x64xf32>
    %91 = tpu.matmul %90, %77, %cst_25 {dimension_numbers = #tpu.dot_dimension_numbers<[2], [1], [1], [2], [0, 0, 0, 1, 1, 2], [0], [0]>} : vector<1x8x8xbf16>, vector<1x8x64xbf16>, vector<1x8x64xf32> -> vector<1x8x64xf32>
    "tpu.trace_stop"() : () -> ()
    %92 = arith.truncf %91 : vector<1x8x64xf32> to vector<1x8x64xbf16>
    %93 = vector.extract_strided_slice %43 {offsets = [0, 0, 128], sizes = [1, 8, 64], strides = [1, 1, 1]} : vector<1x8x512xbf16> to vector<1x8x64xbf16>
    %94 = vector.extract_strided_slice %46 {offsets = [0, 0, 128], sizes = [1, 8, 64], strides = [1, 1, 1]} : vector<1x8x512xbf16> to vector<1x8x64xbf16>
    %95 = vector.extract_strided_slice %49 {offsets = [0, 0, 128], sizes = [1, 8, 64], strides = [1, 1, 1]} : vector<1x8x512xbf16> to vector<1x8x64xbf16>
    "tpu.trace_start"() <{level = 10 : i32, message = "bqd,bkd->bqk"}> : () -> ()
    %cst_26 = arith.constant dense<0.000000e+00> : vector<1x8x8xf32>
    %96 = tpu.matmul %93, %94, %cst_26 {dimension_numbers = #tpu.dot_dimension_numbers<[2], [2], [1], [1], [0, 0, 0, 1, 1, 1], [0], [0]>} : vector<1x8x64xbf16>, vector<1x8x64xbf16>, vector<1x8x8xf32> -> vector<1x8x8xf32>
    "tpu.trace_stop"() : () -> ()
    %97 = arith.addf %96, %56 : vector<1x8x8xf32>
    %cst_27 = arith.constant dense<0xFF800000> : vector<1x8xf32>
    %98 = vector.multi_reduction <maximumf>, %97, %cst_27 [2] : vector<1x8x8xf32> to vector<1x8xf32>
    %99 = vector.shape_cast %98 : vector<1x8xf32> to vector<1x8x1xf32>
    %100 = vector.broadcast %99 : vector<1x8x1xf32> to vector<1x8x8xf32>
    %101 = arith.subf %97, %100 : vector<1x8x8xf32>
    %102 = math.exp %101 : vector<1x8x8xf32>
    %cst_28 = arith.constant dense<0.000000e+00> : vector<1x8xf32>
    %103 = vector.multi_reduction <add>, %102, %cst_28 [2] : vector<1x8x8xf32> to vector<1x8xf32>
    %104 = vector.shape_cast %103 : vector<1x8xf32> to vector<1x8x1xf32>
    %105 = tpu.reciprocal %104 {approx = true} : vector<1x8x1xf32> -> vector<1x8x1xf32>
    %106 = vector.broadcast %105 : vector<1x8x1xf32> to vector<1x8x8xf32>
    %107 = arith.mulf %102, %106 : vector<1x8x8xf32>
    %108 = arith.truncf %107 : vector<1x8x8xf32> to vector<1x8x8xbf16>
    "tpu.trace_start"() <{level = 10 : i32, message = "bqk,bkd->bqd"}> : () -> ()
    %cst_29 = arith.constant dense<0.000000e+00> : vector<1x8x64xf32>
    %109 = tpu.matmul %108, %95, %cst_29 {dimension_numbers = #tpu.dot_dimension_numbers<[2], [1], [1], [2], [0, 0, 0, 1, 1, 2], [0], [0]>} : vector<1x8x8xbf16>, vector<1x8x64xbf16>, vector<1x8x64xf32> -> vector<1x8x64xf32>
    "tpu.trace_stop"() : () -> ()
    %110 = arith.truncf %109 : vector<1x8x64xf32> to vector<1x8x64xbf16>
    %111 = vector.extract_strided_slice %43 {offsets = [0, 0, 192], sizes = [1, 8, 64], strides = [1, 1, 1]} : vector<1x8x512xbf16> to vector<1x8x64xbf16>
    %112 = vector.extract_strided_slice %46 {offsets = [0, 0, 192], sizes = [1, 8, 64], strides = [1, 1, 1]} : vector<1x8x512xbf16> to vector<1x8x64xbf16>
    %113 = vector.extract_strided_slice %49 {offsets = [0, 0, 192], sizes = [1, 8, 64], strides = [1, 1, 1]} : vector<1x8x512xbf16> to vector<1x8x64xbf16>
    "tpu.trace_start"() <{level = 10 : i32, message = "bqd,bkd->bqk"}> : () -> ()
    %cst_30 = arith.constant dense<0.000000e+00> : vector<1x8x8xf32>
    %114 = tpu.matmul %111, %112, %cst_30 {dimension_numbers = #tpu.dot_dimension_numbers<[2], [2], [1], [1], [0, 0, 0, 1, 1, 1], [0], [0]>} : vector<1x8x64xbf16>, vector<1x8x64xbf16>, vector<1x8x8xf32> -> vector<1x8x8xf32>
    "tpu.trace_stop"() : () -> ()
    %115 = arith.addf %114, %56 : vector<1x8x8xf32>
    %cst_31 = arith.constant dense<0xFF800000> : vector<1x8xf32>
    %116 = vector.multi_reduction <maximumf>, %115, %cst_31 [2] : vector<1x8x8xf32> to vector<1x8xf32>
    %117 = vector.shape_cast %116 : vector<1x8xf32> to vector<1x8x1xf32>
    %118 = vector.broadcast %117 : vector<1x8x1xf32> to vector<1x8x8xf32>
    %119 = arith.subf %115, %118 : vector<1x8x8xf32>
    %120 = math.exp %119 : vector<1x8x8xf32>
    %cst_32 = arith.constant dense<0.000000e+00> : vector<1x8xf32>
    %121 = vector.multi_reduction <add>, %120, %cst_32 [2] : vector<1x8x8xf32> to vector<1x8xf32>
    %122 = vector.shape_cast %121 : vector<1x8xf32> to vector<1x8x1xf32>
    %123 = tpu.reciprocal %122 {approx = true} : vector<1x8x1xf32> -> vector<1x8x1xf32>
    %124 = vector.broadcast %123 : vector<1x8x1xf32> to vector<1x8x8xf32>
    %125 = arith.mulf %120, %124 : vector<1x8x8xf32>
    %126 = arith.truncf %125 : vector<1x8x8xf32> to vector<1x8x8xbf16>
    "tpu.trace_start"() <{level = 10 : i32, message = "bqk,bkd->bqd"}> : () -> ()
    %cst_33 = arith.constant dense<0.000000e+00> : vector<1x8x64xf32>
    %127 = tpu.matmul %126, %113, %cst_33 {dimension_numbers = #tpu.dot_dimension_numbers<[2], [1], [1], [2], [0, 0, 0, 1, 1, 2], [0], [0]>} : vector<1x8x8xbf16>, vector<1x8x64xbf16>, vector<1x8x64xf32> -> vector<1x8x64xf32>
    "tpu.trace_stop"() : () -> ()
    %128 = arith.truncf %127 : vector<1x8x64xf32> to vector<1x8x64xbf16>
    %129 = vector.extract_strided_slice %43 {offsets = [0, 0, 256], sizes = [1, 8, 64], strides = [1, 1, 1]} : vector<1x8x512xbf16> to vector<1x8x64xbf16>
    %130 = vector.extract_strided_slice %46 {offsets = [0, 0, 256], sizes = [1, 8, 64], strides = [1, 1, 1]} : vector<1x8x512xbf16> to vector<1x8x64xbf16>
    %131 = vector.extract_strided_slice %49 {offsets = [0, 0, 256], sizes = [1, 8, 64], strides = [1, 1, 1]} : vector<1x8x512xbf16> to vector<1x8x64xbf16>
    "tpu.trace_start"() <{level = 10 : i32, message = "bqd,bkd->bqk"}> : () -> ()
    %cst_34 = arith.constant dense<0.000000e+00> : vector<1x8x8xf32>
    %132 = tpu.matmul %129, %130, %cst_34 {dimension_numbers = #tpu.dot_dimension_numbers<[2], [2], [1], [1], [0, 0, 0, 1, 1, 1], [0], [0]>} : vector<1x8x64xbf16>, vector<1x8x64xbf16>, vector<1x8x8xf32> -> vector<1x8x8xf32>
    "tpu.trace_stop"() : () -> ()
    %133 = arith.addf %132, %56 : vector<1x8x8xf32>
    %cst_35 = arith.constant dense<0xFF800000> : vector<1x8xf32>
    %134 = vector.multi_reduction <maximumf>, %133, %cst_35 [2] : vector<1x8x8xf32> to vector<1x8xf32>
    %135 = vector.shape_cast %134 : vector<1x8xf32> to vector<1x8x1xf32>
    %136 = vector.broadcast %135 : vector<1x8x1xf32> to vector<1x8x8xf32>
    %137 = arith.subf %133, %136 : vector<1x8x8xf32>
    %138 = math.exp %137 : vector<1x8x8xf32>
    %cst_36 = arith.constant dense<0.000000e+00> : vector<1x8xf32>
    %139 = vector.multi_reduction <add>, %138, %cst_36 [2] : vector<1x8x8xf32> to vector<1x8xf32>
    %140 = vector.shape_cast %139 : vector<1x8xf32> to vector<1x8x1xf32>
    %141 = tpu.reciprocal %140 {approx = true} : vector<1x8x1xf32> -> vector<1x8x1xf32>
    %142 = vector.broadcast %141 : vector<1x8x1xf32> to vector<1x8x8xf32>
    %143 = arith.mulf %138, %142 : vector<1x8x8xf32>
    %144 = arith.truncf %143 : vector<1x8x8xf32> to vector<1x8x8xbf16>
    "tpu.trace_start"() <{level = 10 : i32, message = "bqk,bkd->bqd"}> : () -> ()
    %cst_37 = arith.constant dense<0.000000e+00> : vector<1x8x64xf32>
    %145 = tpu.matmul %144, %131, %cst_37 {dimension_numbers = #tpu.dot_dimension_numbers<[2], [1], [1], [2], [0, 0, 0, 1, 1, 2], [0], [0]>} : vector<1x8x8xbf16>, vector<1x8x64xbf16>, vector<1x8x64xf32> -> vector<1x8x64xf32>
    "tpu.trace_stop"() : () -> ()
    %146 = arith.truncf %145 : vector<1x8x64xf32> to vector<1x8x64xbf16>
    %147 = vector.extract_strided_slice %43 {offsets = [0, 0, 320], sizes = [1, 8, 64], strides = [1, 1, 1]} : vector<1x8x512xbf16> to vector<1x8x64xbf16>
    %148 = vector.extract_strided_slice %46 {offsets = [0, 0, 320], sizes = [1, 8, 64], strides = [1, 1, 1]} : vector<1x8x512xbf16> to vector<1x8x64xbf16>
    %149 = vector.extract_strided_slice %49 {offsets = [0, 0, 320], sizes = [1, 8, 64], strides = [1, 1, 1]} : vector<1x8x512xbf16> to vector<1x8x64xbf16>
    "tpu.trace_start"() <{level = 10 : i32, message = "bqd,bkd->bqk"}> : () -> ()
    %cst_38 = arith.constant dense<0.000000e+00> : vector<1x8x8xf32>
    %150 = tpu.matmul %147, %148, %cst_38 {dimension_numbers = #tpu.dot_dimension_numbers<[2], [2], [1], [1], [0, 0, 0, 1, 1, 1], [0], [0]>} : vector<1x8x64xbf16>, vector<1x8x64xbf16>, vector<1x8x8xf32> -> vector<1x8x8xf32>
    "tpu.trace_stop"() : () -> ()
    %151 = arith.addf %150, %56 : vector<1x8x8xf32>
    %cst_39 = arith.constant dense<0xFF800000> : vector<1x8xf32>
    %152 = vector.multi_reduction <maximumf>, %151, %cst_39 [2] : vector<1x8x8xf32> to vector<1x8xf32>
    %153 = vector.shape_cast %152 : vector<1x8xf32> to vector<1x8x1xf32>
    %154 = vector.broadcast %153 : vector<1x8x1xf32> to vector<1x8x8xf32>
    %155 = arith.subf %151, %154 : vector<1x8x8xf32>
    %156 = math.exp %155 : vector<1x8x8xf32>
    %cst_40 = arith.constant dense<0.000000e+00> : vector<1x8xf32>
    %157 = vector.multi_reduction <add>, %156, %cst_40 [2] : vector<1x8x8xf32> to vector<1x8xf32>
    %158 = vector.shape_cast %157 : vector<1x8xf32> to vector<1x8x1xf32>
    %159 = tpu.reciprocal %158 {approx = true} : vector<1x8x1xf32> -> vector<1x8x1xf32>
    %160 = vector.broadcast %159 : vector<1x8x1xf32> to vector<1x8x8xf32>
    %161 = arith.mulf %156, %160 : vector<1x8x8xf32>
    %162 = arith.truncf %161 : vector<1x8x8xf32> to vector<1x8x8xbf16>
    "tpu.trace_start"() <{level = 10 : i32, message = "bqk,bkd->bqd"}> : () -> ()
    %cst_41 = arith.constant dense<0.000000e+00> : vector<1x8x64xf32>
    %163 = tpu.matmul %162, %149, %cst_41 {dimension_numbers = #tpu.dot_dimension_numbers<[2], [1], [1], [2], [0, 0, 0, 1, 1, 2], [0], [0]>} : vector<1x8x8xbf16>, vector<1x8x64xbf16>, vector<1x8x64xf32> -> vector<1x8x64xf32>
    "tpu.trace_stop"() : () -> ()
    %164 = arith.truncf %163 : vector<1x8x64xf32> to vector<1x8x64xbf16>
    %165 = vector.extract_strided_slice %43 {offsets = [0, 0, 384], sizes = [1, 8, 64], strides = [1, 1, 1]} : vector<1x8x512xbf16> to vector<1x8x64xbf16>
    %166 = vector.extract_strided_slice %46 {offsets = [0, 0, 384], sizes = [1, 8, 64], strides = [1, 1, 1]} : vector<1x8x512xbf16> to vector<1x8x64xbf16>
    %167 = vector.extract_strided_slice %49 {offsets = [0, 0, 384], sizes = [1, 8, 64], strides = [1, 1, 1]} : vector<1x8x512xbf16> to vector<1x8x64xbf16>
    "tpu.trace_start"() <{level = 10 : i32, message = "bqd,bkd->bqk"}> : () -> ()
    %cst_42 = arith.constant dense<0.000000e+00> : vector<1x8x8xf32>
    %168 = tpu.matmul %165, %166, %cst_42 {dimension_numbers = #tpu.dot_dimension_numbers<[2], [2], [1], [1], [0, 0, 0, 1, 1, 1], [0], [0]>} : vector<1x8x64xbf16>, vector<1x8x64xbf16>, vector<1x8x8xf32> -> vector<1x8x8xf32>
    "tpu.trace_stop"() : () -> ()
    %169 = arith.addf %168, %56 : vector<1x8x8xf32>
    %cst_43 = arith.constant dense<0xFF800000> : vector<1x8xf32>
    %170 = vector.multi_reduction <maximumf>, %169, %cst_43 [2] : vector<1x8x8xf32> to vector<1x8xf32>
    %171 = vector.shape_cast %170 : vector<1x8xf32> to vector<1x8x1xf32>
    %172 = vector.broadcast %171 : vector<1x8x1xf32> to vector<1x8x8xf32>
    %173 = arith.subf %169, %172 : vector<1x8x8xf32>
    %174 = math.exp %173 : vector<1x8x8xf32>
    %cst_44 = arith.constant dense<0.000000e+00> : vector<1x8xf32>
    %175 = vector.multi_reduction <add>, %174, %cst_44 [2] : vector<1x8x8xf32> to vector<1x8xf32>
    %176 = vector.shape_cast %175 : vector<1x8xf32> to vector<1x8x1xf32>
    %177 = tpu.reciprocal %176 {approx = true} : vector<1x8x1xf32> -> vector<1x8x1xf32>
    %178 = vector.broadcast %177 : vector<1x8x1xf32> to vector<1x8x8xf32>
    %179 = arith.mulf %174, %178 : vector<1x8x8xf32>
    %180 = arith.truncf %179 : vector<1x8x8xf32> to vector<1x8x8xbf16>
    "tpu.trace_start"() <{level = 10 : i32, message = "bqk,bkd->bqd"}> : () -> ()
    %cst_45 = arith.constant dense<0.000000e+00> : vector<1x8x64xf32>
    %181 = tpu.matmul %180, %167, %cst_45 {dimension_numbers = #tpu.dot_dimension_numbers<[2], [1], [1], [2], [0, 0, 0, 1, 1, 2], [0], [0]>} : vector<1x8x8xbf16>, vector<1x8x64xbf16>, vector<1x8x64xf32> -> vector<1x8x64xf32>
    "tpu.trace_stop"() : () -> ()
    %182 = arith.truncf %181 : vector<1x8x64xf32> to vector<1x8x64xbf16>
    %183 = vector.extract_strided_slice %43 {offsets = [0, 0, 448], sizes = [1, 8, 64], strides = [1, 1, 1]} : vector<1x8x512xbf16> to vector<1x8x64xbf16>
    %184 = vector.extract_strided_slice %46 {offsets = [0, 0, 448], sizes = [1, 8, 64], strides = [1, 1, 1]} : vector<1x8x512xbf16> to vector<1x8x64xbf16>
    %185 = vector.extract_strided_slice %49 {offsets = [0, 0, 448], sizes = [1, 8, 64], strides = [1, 1, 1]} : vector<1x8x512xbf16> to vector<1x8x64xbf16>
    "tpu.trace_start"() <{level = 10 : i32, message = "bqd,bkd->bqk"}> : () -> ()
    %cst_46 = arith.constant dense<0.000000e+00> : vector<1x8x8xf32>
    %186 = tpu.matmul %183, %184, %cst_46 {dimension_numbers = #tpu.dot_dimension_numbers<[2], [2], [1], [1], [0, 0, 0, 1, 1, 1], [0], [0]>} : vector<1x8x64xbf16>, vector<1x8x64xbf16>, vector<1x8x8xf32> -> vector<1x8x8xf32>
    "tpu.trace_stop"() : () -> ()
    %187 = arith.addf %186, %56 : vector<1x8x8xf32>
    %cst_47 = arith.constant dense<0xFF800000> : vector<1x8xf32>
    %188 = vector.multi_reduction <maximumf>, %187, %cst_47 [2] : vector<1x8x8xf32> to vector<1x8xf32>
    %189 = vector.shape_cast %188 : vector<1x8xf32> to vector<1x8x1xf32>
    %190 = vector.broadcast %189 : vector<1x8x1xf32> to vector<1x8x8xf32>
    %191 = arith.subf %187, %190 : vector<1x8x8xf32>
    %192 = math.exp %191 : vector<1x8x8xf32>
    %cst_48 = arith.constant dense<0.000000e+00> : vector<1x8xf32>
    %193 = vector.multi_reduction <add>, %192, %cst_48 [2] : vector<1x8x8xf32> to vector<1x8xf32>
    %194 = vector.shape_cast %193 : vector<1x8xf32> to vector<1x8x1xf32>
    %195 = tpu.reciprocal %194 {approx = true} : vector<1x8x1xf32> -> vector<1x8x1xf32>
    %196 = vector.broadcast %195 : vector<1x8x1xf32> to vector<1x8x8xf32>
    %197 = arith.mulf %192, %196 : vector<1x8x8xf32>
    %198 = arith.truncf %197 : vector<1x8x8xf32> to vector<1x8x8xbf16>
    "tpu.trace_start"() <{level = 10 : i32, message = "bqk,bkd->bqd"}> : () -> ()
    %cst_49 = arith.constant dense<0.000000e+00> : vector<1x8x64xf32>
    %199 = tpu.matmul %198, %185, %cst_49 {dimension_numbers = #tpu.dot_dimension_numbers<[2], [1], [1], [2], [0, 0, 0, 1, 1, 2], [0], [0]>} : vector<1x8x8xbf16>, vector<1x8x64xbf16>, vector<1x8x64xf32> -> vector<1x8x64xf32>
    "tpu.trace_stop"() : () -> ()
    %200 = arith.truncf %199 : vector<1x8x64xf32> to vector<1x8x64xbf16>
    %201 = tpu.concatenate %74, %92, %110, %128, %146, %164, %182, %200 in 2 : vector<1x8x64xbf16>, vector<1x8x64xbf16>, vector<1x8x64xbf16>, vector<1x8x64xbf16>, vector<1x8x64xbf16>, vector<1x8x64xbf16>, vector<1x8x64xbf16>, vector<1x8x64xbf16> -> vector<1x8x512xbf16>
    %202 = vector.shape_cast %201 : vector<1x8x512xbf16> to vector<8x512xbf16>
    %c0_50 = arith.constant 0 : index
    %c0_51 = arith.constant 0 : index
    %203 = vector.load %arg6[%c0_50, %c0_51] : memref<512x512xbf16, #tpu.memory_space<vmem>>, vector<512x512xbf16>
    %cst_52 = arith.constant dense<0.000000e+00> : vector<8x512xf32>
    %204 = tpu.matmul %202, %203, %cst_52 {dimension_numbers = #tpu.dot_dimension_numbers<[1], [0], [0], [1], [0, 0, 1, 1], [], []>} : vector<8x512xbf16>, vector<512x512xbf16>, vector<8x512xf32> -> vector<8x512xf32>
    %c0_53 = arith.constant 0 : index
    %c0_54 = arith.constant 0 : index
    %205 = vector.load %arg7[%c0_53, %c0_54] : memref<1x512xf32, #tpu.memory_space<vmem>>, vector<1x512xf32>
    %206 = vector.shape_cast %205 : vector<1x512xf32> to vector<512xf32>
    %207 = vector.shape_cast %206 : vector<512xf32> to vector<1x512xf32>
    %208 = vector.broadcast %207 : vector<1x512xf32> to vector<8x512xf32>
    %209 = arith.addf %204, %208 : vector<8x512xf32>
    %210 = arith.addf %2, %209 : vector<8x512xf32>
    %cst_55 = arith.constant dense<0.000000e+00> : vector<8xf32>
    %211 = vector.multi_reduction <add>, %210, %cst_55 [1] : vector<8x512xf32> to vector<8xf32>
    %212 = vector.shape_cast %211 : vector<8xf32> to vector<8x1xf32>
    %cst_56 = arith.constant 5.120000e+02 : f32
    %213 = vector.broadcast %cst_56 : f32 to vector<8x1xf32>
    %214 = arith.divf %212, %213 : vector<8x1xf32>
    %215 = vector.broadcast %214 : vector<8x1xf32> to vector<8x512xf32>
    %216 = arith.subf %210, %215 : vector<8x512xf32>
    %217 = arith.mulf %216, %216 : vector<8x512xf32>
    %cst_57 = arith.constant dense<0.000000e+00> : vector<8xf32>
    %218 = vector.multi_reduction <add>, %217, %cst_57 [1] : vector<8x512xf32> to vector<8xf32>
    %219 = vector.shape_cast %218 : vector<8xf32> to vector<8x1xf32>
    %cst_58 = arith.constant 5.120000e+02 : f32
    %220 = vector.broadcast %cst_58 : f32 to vector<8x1xf32>
    %221 = arith.divf %219, %220 : vector<8x1xf32>
    %222 = vector.broadcast %214 : vector<8x1xf32> to vector<8x512xf32>
    %223 = arith.subf %210, %222 : vector<8x512xf32>
    %cst_59 = arith.constant 9.99999974E-6 : f32
    %224 = vector.broadcast %cst_59 : f32 to vector<8x1xf32>
    %225 = arith.addf %221, %224 : vector<8x1xf32>
    %226 = math.rsqrt %225 : vector<8x1xf32>
    %227 = vector.broadcast %226 : vector<8x1xf32> to vector<8x512xf32>
    %228 = arith.mulf %223, %227 : vector<8x512xf32>
    %c0_60 = arith.constant 0 : index
    %c0_61 = arith.constant 0 : index
    %229 = vector.load %arg8[%c0_60, %c0_61] : memref<1x512xf32, #tpu.memory_space<vmem>>, vector<1x512xf32>
    %230 = vector.shape_cast %229 : vector<1x512xf32> to vector<512xf32>
    %231 = vector.shape_cast %230 : vector<512xf32> to vector<1x512xf32>
    %232 = vector.broadcast %231 : vector<1x512xf32> to vector<8x512xf32>
    %233 = arith.mulf %228, %232 : vector<8x512xf32>
    %c0_62 = arith.constant 0 : index
    %c0_63 = arith.constant 0 : index
    %234 = vector.load %arg9[%c0_62, %c0_63] : memref<1x512xf32, #tpu.memory_space<vmem>>, vector<1x512xf32>
    %235 = vector.shape_cast %234 : vector<1x512xf32> to vector<512xf32>
    %236 = vector.shape_cast %235 : vector<512xf32> to vector<1x512xf32>
    %237 = vector.broadcast %236 : vector<1x512xf32> to vector<8x512xf32>
    %238 = arith.addf %233, %237 : vector<8x512xf32>
    %239 = arith.truncf %238 : vector<8x512xf32> to vector<8x512xbf16>
    %c0_64 = arith.constant 0 : index
    %c0_65 = arith.constant 0 : index
    %240 = vector.load %arg10[%c0_64, %c0_65] : memref<512x2048xbf16, #tpu.memory_space<vmem>>, vector<512x2048xbf16>
    %cst_66 = arith.constant dense<0.000000e+00> : vector<8x2048xf32>
    %241 = tpu.matmul %239, %240, %cst_66 {dimension_numbers = #tpu.dot_dimension_numbers<[1], [0], [0], [1], [0, 0, 1, 1], [], []>} : vector<8x512xbf16>, vector<512x2048xbf16>, vector<8x2048xf32> -> vector<8x2048xf32>
    %c0_67 = arith.constant 0 : index
    %c0_68 = arith.constant 0 : index
    %242 = vector.load %arg11[%c0_67, %c0_68] : memref<1x2048xf32, #tpu.memory_space<vmem>>, vector<1x2048xf32>
    %243 = vector.shape_cast %242 : vector<1x2048xf32> to vector<2048xf32>
    %244 = vector.shape_cast %243 : vector<2048xf32> to vector<1x2048xf32>
    %245 = vector.broadcast %244 : vector<1x2048xf32> to vector<8x2048xf32>
    %246 = arith.addf %241, %245 : vector<8x2048xf32>
    %cst_69 = arith.constant 0.000000e+00 : f32
    %247 = vector.broadcast %cst_69 : f32 to vector<8x2048xf32>
    %248 = arith.maximumf %246, %247 : vector<8x2048xf32>
    %249 = arith.truncf %248 : vector<8x2048xf32> to vector<8x2048xbf16>
    %c0_70 = arith.constant 0 : index
    %c0_71 = arith.constant 0 : index
    %250 = vector.load %arg12[%c0_70, %c0_71] : memref<2048x512xbf16, #tpu.memory_space<vmem>>, vector<2048x512xbf16>
    %cst_72 = arith.constant dense<0.000000e+00> : vector<8x512xf32>
    %251 = tpu.matmul %249, %250, %cst_72 {dimension_numbers = #tpu.dot_dimension_numbers<[1], [0], [0], [1], [0, 0, 1, 1], [], []>} : vector<8x2048xbf16>, vector<2048x512xbf16>, vector<8x512xf32> -> vector<8x512xf32>
    %c0_73 = arith.constant 0 : index
    %c0_74 = arith.constant 0 : index
    %252 = vector.load %arg13[%c0_73, %c0_74] : memref<1x512xf32, #tpu.memory_space<vmem>>, vector<1x512xf32>
    %253 = vector.shape_cast %252 : vector<1x512xf32> to vector<512xf32>
    %254 = vector.shape_cast %253 : vector<512xf32> to vector<1x512xf32>
    %255 = vector.broadcast %254 : vector<1x512xf32> to vector<8x512xf32>
    %256 = arith.addf %251, %255 : vector<8x512xf32>
    %257 = arith.addf %210, %256 : vector<8x512xf32>
    %258 = vector.shape_cast %257 : vector<8x512xf32> to vector<1x8x512xf32>
    %259 = arith.truncf %258 : vector<1x8x512xf32> to vector<1x8x512xbf16>
    %c0_75 = arith.constant 0 : index
    %c0_76 = arith.constant 0 : index
    %c0_77 = arith.constant 0 : index
    %260 = vector.load %arg14[%c0_75, %c0_76, %c0_77] : memref<1x8x512xbf16, #tpu.memory_space<vmem>>, vector<1x8x512xbf16>
    tpu.vector_store %arg14[%c0_75, %c0_76, %c0_77], %259 {strides = array<i32>} : memref<1x8x512xbf16, #tpu.memory_space<vmem>>, vector<1x8x512xbf16>,
    return
  }
  func.func @transform_0(%arg0: i32) -> (i32, i32, i32) {
    %c0_i32 = arith.constant 0 : i32
    %c0_i32_0 = arith.constant 0 : i32
    %c0_i32_1 = arith.constant 0 : i32
    return %arg0, %c0_i32, %c0_i32_0 : i32, i32, i32
  }
  func.func @transform_1(%arg0: i32) -> (i32, i32) {
    %c0_i32 = arith.constant 0 : i32
    %c0_i32_0 = arith.constant 0 : i32
    %c0_i32_1 = arith.constant 0 : i32
    return %c0_i32, %c0_i32_0 : i32, i32
  }
  func.func @transform_2(%arg0: i32) -> (i32, i32) {
    %c0_i32 = arith.constant 0 : i32
    %c0_i32_0 = arith.constant 0 : i32
    %c0_i32_1 = arith.constant 0 : i32
    return %c0_i32, %c0_i32_0 : i32, i32
  }
  func.func @transform_3(%arg0: i32) -> (i32, i32) {
    %c0_i32 = arith.constant 0 : i32
    %c0_i32_0 = arith.constant 0 : i32
    %c0_i32_1 = arith.constant 0 : i32
    return %c0_i32, %c0_i32_0 : i32, i32
  }
  func.func @transform_4(%arg0: i32) -> (i32, i32) {
    %c0_i32 = arith.constant 0 : i32
    %c0_i32_0 = arith.constant 0 : i32
    %c0_i32_1 = arith.constant 0 : i32
    return %c0_i32, %c0_i32_0 : i32, i32
  }
  func.func @transform_5(%arg0: i32) -> (i32, i32) {
    %c0_i32 = arith.constant 0 : i32
    %c0_i32_0 = arith.constant 0 : i32
    %c0_i32_1 = arith.constant 0 : i32
    return %c0_i32, %c0_i32_0 : i32, i32
  }
  func.func @transform_6(%arg0: i32) -> (i32, i32) {
    %c0_i32 = arith.constant 0 : i32
    %c0_i32_0 = arith.constant 0 : i32
    %c0_i32_1 = arith.constant 0 : i32
    return %c0_i32, %c0_i32_0 : i32, i32
  }
  func.func @transform_7(%arg0: i32) -> (i32, i32) {
    %c0_i32 = arith.constant 0 : i32
    %c0_i32_0 = arith.constant 0 : i32
    %c0_i32_1 = arith.constant 0 : i32
    return %c0_i32, %c0_i32_0 : i32, i32
  }
  func.func @transform_8(%arg0: i32) -> (i32, i32) {
    %c0_i32 = arith.constant 0 : i32
    %c0_i32_0 = arith.constant 0 : i32
    %c0_i32_1 = arith.constant 0 : i32
    return %c0_i32, %c0_i32_0 : i32, i32
  }
  func.func @transform_9(%arg0: i32) -> (i32, i32) {
    %c0_i32 = arith.constant 0 : i32
    %c0_i32_0 = arith.constant 0 : i32
    %c0_i32_1 = arith.constant 0 : i32
    return %c0_i32, %c0_i32_0 : i32, i32
  }
  func.func @transform_10(%arg0: i32) -> (i32, i32) {
    %c0_i32 = arith.constant 0 : i32
    %c0_i32_0 = arith.constant 0 : i32
    %c0_i32_1 = arith.constant 0 : i32
    return %c0_i32, %c0_i32_0 : i32, i32
  }
  func.func @transform_11(%arg0: i32) -> (i32, i32) {
    %c0_i32 = arith.constant 0 : i32
    %c0_i32_0 = arith.constant 0 : i32
    %c0_i32_1 = arith.constant 0 : i32
    return %c0_i32, %c0_i32_0 : i32, i32
  }
  func.func @transform_12(%arg0: i32) -> (i32, i32) {
    %c0_i32 = arith.constant 0 : i32
    %c0_i32_0 = arith.constant 0 : i32
    %c0_i32_1 = arith.constant 0 : i32
    return %c0_i32, %c0_i32_0 : i32, i32
  }
  func.func @transform_13(%arg0: i32) -> (i32, i32, i32) {
    %c0_i32 = arith.constant 0 : i32
    %c0_i32_0 = arith.constant 0 : i32
    %c0_i32_1 = arith.constant 0 : i32
    return %arg0, %c0_i32, %c0_i32_0 : i32, i32, i32
  }
}

</mosaic_0001>

<llo_original>
// kernel: transformer_block.1
$region0: #{transformer_block.1}
  #allocation0 [shape = 'u32[]', space=smem, size = 0x4, offset = 0x4, fixed_abs, tag = 'smem constant byte address 0x4 - core index']
  #allocation1 [shape = 'u32[144,128]{1,0:T(1,128)}', space=vmem, size = 0x12000, scoped, tag = 'internal scratch']
  %s0 = inlined_call_operand.vmem [shape: bf16[2,8,512], index: 0, kind: input, shape index: {}]
  %s1 = inlined_call_operand.vmem [shape: f32[1,512], index: 1, kind: input, shape index: {}]
  %s2 = inlined_call_operand.vmem [shape: f32[1,512], index: 2, kind: input, shape index: {}]
  %s3 = inlined_call_operand.vmem [shape: bf16[512,1536], index: 3, kind: input, shape index: {}]
  %s4 = inlined_call_operand.vmem [shape: f32[1,1536], index: 4, kind: input, shape index: {}]
  %s5 = inlined_call_operand.vmem [shape: bf16[512,512], index: 5, kind: input, shape index: {}]
  %s6 = inlined_call_operand.vmem [shape: f32[1,512], index: 6, kind: input, shape index: {}]
  %s7 = inlined_call_operand.vmem [shape: f32[1,512], index: 7, kind: input, shape index: {}]
  %s8 = inlined_call_operand.vmem [shape: f32[1,512], index: 8, kind: input, shape index: {}]
  %s9 = inlined_call_operand.vmem [shape: bf16[512,2048], index: 9, kind: input, shape index: {}]
  %s10 = inlined_call_operand.vmem [shape: f32[1,2048], index: 10, kind: input, shape index: {}]
  %s11 = inlined_call_operand.vmem [shape: bf16[2048,512], index: 11, kind: input, shape index: {}]
  %s12 = inlined_call_operand.vmem [shape: f32[1,512], index: 12, kind: input, shape index: {}]
  %s13 = inlined_call_operand.hbm [shape: bf16[2,8,512], index: 13, kind: output, shape index: {}]
  %s14 = sld [smem:[#allocation0]]
  $region85: #{transformer_block.1} parent=0
    _
  %s16 = ssub.s32 1, %s14
  %s17 = scalar_select 0, %s16, %s14
  $region1: #{transformer_block.1} parent=0
    #allocation2 [shape = 'u8[16384]{0}', space=vmem, size = 0x4000, scoped, tag = 'output window, operand 0']
    #allocation3 [shape = 's32[2]{0}', space=sflag, size = 0x8, scoped, tag = 'scoped memory for transformer_block.1']
    %18 = vsyncpa [#allocation3], 0
    %s19 = scalar_lea.sflag [#allocation3], 1
    %20 = vsyncpa %s19, 0
    loop: start=0, step=1, limit=4
    $region2: #{transformer_block.1} parent=1 // loop_pre_header
      _
    $region3: #{transformer_block.1} parent=1 // loop_header
      %s22 = sphi 0, %s26
      %p23 = scmp.ge.s32.totalorder %s22, 4
      %s32 = sphi 0, %s34
      %s35 = sphi 0, %s32
      %s36 = sphi 0, %s35
      %s52 = sphi 0, %s36
      %s56 = sphi 0, %s56
      %s58 = sphi 0, %s56
      %s59 = sphi 0, %s58
      %s73 = sphi 0, %s59
      %s77 = sphi 0, %s77
      %s79 = sphi 0, %s77
      %s80 = sphi 0, %s79
      %s94 = sphi 0, %s80
      %s98 = sphi 0, %s98
      %s100 = sphi 0, %s98
      %s101 = sphi 0, %s100
      %s115 = sphi 0, %s101
      %s119 = sphi 0, %s119
      %s121 = sphi 0, %s119
      %s122 = sphi 0, %s121
      %s136 = sphi 0, %s122
      %s140 = sphi 0, %s140
      %s142 = sphi 0, %s140
      %s143 = sphi 0, %s142
      %s157 = sphi 0, %s143
      %s161 = sphi 0, %s161
      %s163 = sphi 0, %s161
      %s164 = sphi 0, %s163
      %s178 = sphi 0, %s164
      %s182 = sphi 0, %s182
      %s184 = sphi 0, %s182
      %s185 = sphi 0, %s184
      %s199 = sphi 0, %s185
      %s203 = sphi 0, %s203
      %s205 = sphi 0, %s203
      %s206 = sphi 0, %s205
      %s220 = sphi 0, %s206
      %s224 = sphi 0, %s224
      %s226 = sphi 0, %s224
      %s227 = sphi 0, %s226
      %s241 = sphi 0, %s227
      %s245 = sphi 0, %s245
      %s247 = sphi 0, %s245
      %s248 = sphi 0, %s247
      %s262 = sphi 0, %s248
      %s266 = sphi 0, %s266
      %s268 = sphi 0, %s266
      %s269 = sphi 0, %s268
      %s283 = sphi 0, %s269
      %s287 = sphi 0, %s287
      %s289 = sphi 0, %s287
      %s290 = sphi 0, %s289
      %s304 = sphi 0, %s290
      %s310 = sphi 0, %s312
      %s313 = sphi 0, %s310
      %s314 = sphi 0, %s313
      %s330 = sphi 0, %s314
    $region4: #{transformer_block.1} parent=1 // loop_header_branch
      %25 = sbr.rel (%p23) target = $region8
    $region5: #{transformer_block.1} parent=1 // loop_body
      %s27 = ssub.s32 %s22, 1
      %s28 = ssub.s32 %s22, 2
      %s29 = sadd.s32 %s22, 1
      %s30 = ssub.s32 %s22, %s29
      %p31 = scmp.eq.s32.totalorder %s30, 0
      %s33 = sadd.s32 %s32, 1
      %s34 = scalar_select %p31, %s32, %s33
      %p37 = pneg %p31
      %p38 = scmp.eq.s32.totalorder %s22, 1
      %p39 = por %p37, %p38
      %p40 = scmp.ne.s32.totalorder %s32, %s35
      %p41 = scmp.eq.s32.totalorder %s22, 0
      %p42 = por %p40, %p41
      %p43 = scmp.ne.s32.totalorder %s32, %s35
      %p44 = scmp.eq.s32.totalorder %s27, 1
      %p45 = por %p43, %p44
      %p46 = scmp.ne.s32.totalorder %s35, %s36
      %p47 = scmp.eq.s32.totalorder %s27, 0
      %p48 = por %p46, %p47
      %p49 = scmp.ne.s32.totalorder %s35, %s36
      %p50 = scmp.eq.s32.totalorder %s28, 1
      %p51 = por %p49, %p50
      %p53 = scmp.ne.s32.totalorder %s36, %s52
      %p54 = scmp.eq.s32.totalorder %s28, 0
      %p55 = por %p53, %p54
      %s57 = sadd.s32 %s56, 1
      %p60 = scmp.eq.s32.totalorder %s22, 1
      %p61 = scmp.ne.s32.totalorder %s56, %s58
      %p62 = scmp.eq.s32.totalorder %s22, 0
      %p63 = por %p61, %p62
      %p64 = scmp.ne.s32.totalorder %s56, %s58
      %p65 = scmp.eq.s32.totalorder %s27, 1
      %p66 = por %p64, %p65
      %p67 = scmp.ne.s32.totalorder %s58, %s59
      %p68 = scmp.eq.s32.totalorder %s27, 0
      %p69 = por %p67, %p68
      %p70 = scmp.ne.s32.totalorder %s58, %s59
      %p71 = scmp.eq.s32.totalorder %s28, 1
      %p72 = por %p70, %p71
      %p74 = scmp.ne.s32.totalorder %s59, %s73
      %p75 = scmp.eq.s32.totalorder %s28, 0
      %p76 = por %p74, %p75
      %s78 = sadd.s32 %s77, 1
      %p81 = scmp.eq.s32.totalorder %s22, 1
      %p82 = scmp.ne.s32.totalorder %s77, %s79
      %p83 = scmp.eq.s32.totalorder %s22, 0
      %p84 = por %p82, %p83
      %p85 = scmp.ne.s32.totalorder %s77, %s79
      %p86 = scmp.eq.s32.totalorder %s27, 1
      %p87 = por %p85, %p86
      %p88 = scmp.ne.s32.totalorder %s79, %s80
      %p89 = scmp.eq.s32.totalorder %s27, 0
      %p90 = por %p88, %p89
      %p91 = scmp.ne.s32.totalorder %s79, %s80
      %p92 = scmp.eq.s32.totalorder %s28, 1
      %p93 = por %p91, %p92
      %p95 = scmp.ne.s32.totalorder %s80, %s94
      %p96 = scmp.eq.s32.totalorder %s28, 0
      %p97 = por %p95, %p96
      %s99 = sadd.s32 %s98, 1
      %p102 = scmp.eq.s32.totalorder %s22, 1
      %p103 = scmp.ne.s32.totalorder %s98, %s100
      %p104 = scmp.eq.s32.totalorder %s22, 0
      %p105 = por %p103, %p104
      %p106 = scmp.ne.s32.totalorder %s98, %s100
      %p107 = scmp.eq.s32.totalorder %s27, 1
      %p108 = por %p106, %p107
      %p109 = scmp.ne.s32.totalorder %s100, %s101
      %p110 = scmp.eq.s32.totalorder %s27, 0
      %p111 = por %p109, %p110
      %p112 = scmp.ne.s32.totalorder %s100, %s101
      %p113 = scmp.eq.s32.totalorder %s28, 1
      %p114 = por %p112, %p113
      %p116 = scmp.ne.s32.totalorder %s101, %s115
      %p117 = scmp.eq.s32.totalorder %s28, 0
      %p118 = por %p116, %p117
      %s120 = sadd.s32 %s119, 1
      %p123 = scmp.eq.s32.totalorder %s22, 1
      %p124 = scmp.ne.s32.totalorder %s119, %s121
      %p125 = scmp.eq.s32.totalorder %s22, 0
      %p126 = por %p124, %p125
      %p127 = scmp.ne.s32.totalorder %s119, %s121
      %p128 = scmp.eq.s32.totalorder %s27, 1
      %p129 = por %p127, %p128
      %p130 = scmp.ne.s32.totalorder %s121, %s122
      %p131 = scmp.eq.s32.totalorder %s27, 0
      %p132 = por %p130, %p131
      %p133 = scmp.ne.s32.totalorder %s121, %s122
      %p134 = scmp.eq.s32.totalorder %s28, 1
      %p135 = por %p133, %p134
      %p137 = scmp.ne.s32.totalorder %s122, %s136
      %p138 = scmp.eq.s32.totalorder %s28, 0
      %p139 = por %p137, %p138
      %s141 = sadd.s32 %s140, 1
      %p144 = scmp.eq.s32.totalorder %s22, 1
      %p145 = scmp.ne.s32.totalorder %s140, %s142
      %p146 = scmp.eq.s32.totalorder %s22, 0
      %p147 = por %p145, %p146
      %p148 = scmp.ne.s32.totalorder %s140, %s142
      %p149 = scmp.eq.s32.totalorder %s27, 1
      %p150 = por %p148, %p149
      %p151 = scmp.ne.s32.totalorder %s142, %s143
      %p152 = scmp.eq.s32.totalorder %s27, 0
      %p153 = por %p151, %p152
      %p154 = scmp.ne.s32.totalorder %s142, %s143
      %p155 = scmp.eq.s32.totalorder %s28, 1
      %p156 = por %p154, %p155
      %p158 = scmp.ne.s32.totalorder %s143, %s157
      %p159 = scmp.eq.s32.totalorder %s28, 0
      %p160 = por %p158, %p159
      %s162 = sadd.s32 %s161, 1
      %p165 = scmp.eq.s32.totalorder %s22, 1
      %p166 = scmp.ne.s32.totalorder %s161, %s163
      %p167 = scmp.eq.s32.totalorder %s22, 0
      %p168 = por %p166, %p167
      %p169 = scmp.ne.s32.totalorder %s161, %s163
      %p170 = scmp.eq.s32.totalorder %s27, 1
      %p171 = por %p169, %p170
      %p172 = scmp.ne.s32.totalorder %s163, %s164
      %p173 = scmp.eq.s32.totalorder %s27, 0
      %p174 = por %p172, %p173
      %p175 = scmp.ne.s32.totalorder %s163, %s164
      %p176 = scmp.eq.s32.totalorder %s28, 1
      %p177 = por %p175, %p176
      %p179 = scmp.ne.s32.totalorder %s164, %s178
      %p180 = scmp.eq.s32.totalorder %s28, 0
      %p181 = por %p179, %p180
      %s183 = sadd.s32 %s182, 1
      %p186 = scmp.eq.s32.totalorder %s22, 1
      %p187 = scmp.ne.s32.totalorder %s182, %s184
      %p188 = scmp.eq.s32.totalorder %s22, 0
      %p189 = por %p187, %p188
      %p190 = scmp.ne.s32.totalorder %s182, %s184
      %p191 = scmp.eq.s32.totalorder %s27, 1
      %p192 = por %p190, %p191
      %p193 = scmp.ne.s32.totalorder %s184, %s185
      %p194 = scmp.eq.s32.totalorder %s27, 0
      %p195 = por %p193, %p194
      %p196 = scmp.ne.s32.totalorder %s184, %s185
      %p197 = scmp.eq.s32.totalorder %s28, 1
      %p198 = por %p196, %p197
      %p200 = scmp.ne.s32.totalorder %s185, %s199
      %p201 = scmp.eq.s32.totalorder %s28, 0
      %p202 = por %p200, %p201
      %s204 = sadd.s32 %s203, 1
      %p207 = scmp.eq.s32.totalorder %s22, 1
      %p208 = scmp.ne.s32.totalorder %s203, %s205
      %p209 = scmp.eq.s32.totalorder %s22, 0
      %p210 = por %p208, %p209
      %p211 = scmp.ne.s32.totalorder %s203, %s205
      %p212 = scmp.eq.s32.totalorder %s27, 1
      %p213 = por %p211, %p212
      %p214 = scmp.ne.s32.totalorder %s205, %s206
      %p215 = scmp.eq.s32.totalorder %s27, 0
      %p216 = por %p214, %p215
      %p217 = scmp.ne.s32.totalorder %s205, %s206
      %p218 = scmp.eq.s32.totalorder %s28, 1
      %p219 = por %p217, %p218
      %p221 = scmp.ne.s32.totalorder %s206, %s220
      %p222 = scmp.eq.s32.totalorder %s28, 0
      %p223 = por %p221, %p222
      %s225 = sadd.s32 %s224, 1
      %p228 = scmp.eq.s32.totalorder %s22, 1
      %p229 = scmp.ne.s32.totalorder %s224, %s226
      %p230 = scmp.eq.s32.totalorder %s22, 0
      %p231 = por %p229, %p230
      %p232 = scmp.ne.s32.totalorder %s224, %s226
      %p233 = scmp.eq.s32.totalorder %s27, 1
      %p234 = por %p232, %p233
      %p235 = scmp.ne.s32.totalorder %s226, %s227
      %p236 = scmp.eq.s32.totalorder %s27, 0
      %p237 = por %p235, %p236
      %p238 = scmp.ne.s32.totalorder %s226, %s227
      %p239 = scmp.eq.s32.totalorder %s28, 1
      %p240 = por %p238, %p239
      %p242 = scmp.ne.s32.totalorder %s227, %s241
      %p243 = scmp.eq.s32.totalorder %s28, 0
      %p244 = por %p242, %p243
      %s246 = sadd.s32 %s245, 1
      %p249 = scmp.eq.s32.totalorder %s22, 1
      %p250 = scmp.ne.s32.totalorder %s245, %s247
      %p251 = scmp.eq.s32.totalorder %s22, 0
      %p252 = por %p250, %p251
      %p253 = scmp.ne.s32.totalorder %s245, %s247
      %p254 = scmp.eq.s32.totalorder %s27, 1
      %p255 = por %p253, %p254
      %p256 = scmp.ne.s32.totalorder %s247, %s248
      %p257 = scmp.eq.s32.totalorder %s27, 0
      %p258 = por %p256, %p257
      %p259 = scmp.ne.s32.totalorder %s247, %s248
      %p260 = scmp.eq.s32.totalorder %s28, 1
      %p261 = por %p259, %p260
      %p263 = scmp.ne.s32.totalorder %s248, %s262
      %p264 = scmp.eq.s32.totalorder %s28, 0
      %p265 = por %p263, %p264
      %s267 = sadd.s32 %s266, 1
      %p270 = scmp.eq.s32.totalorder %s22, 1
      %p271 = scmp.ne.s32.totalorder %s266, %s268
      %p272 = scmp.eq.s32.totalorder %s22, 0
      %p273 = por %p271, %p272
      %p274 = scmp.ne.s32.totalorder %s266, %s268
      %p275 = scmp.eq.s32.totalorder %s27, 1
      %p276 = por %p274, %p275
      %p277 = scmp.ne.s32.totalorder %s268, %s269
      %p278 = scmp.eq.s32.totalorder %s27, 0
      %p279 = por %p277, %p278
      %p280 = scmp.ne.s32.totalorder %s268, %s269
      %p281 = scmp.eq.s32.totalorder %s28, 1
      %p282 = por %p280, %p281
      %p284 = scmp.ne.s32.totalorder %s269, %s283
      %p285 = scmp.eq.s32.totalorder %s28, 0
      %p286 = por %p284, %p285
      %s288 = sadd.s32 %s287, 1
      %p291 = scmp.eq.s32.totalorder %s22, 1
      %p292 = scmp.ne.s32.totalorder %s287, %s289
      %p293 = scmp.eq.s32.totalorder %s22, 0
      %p294 = por %p292, %p293
      %p295 = scmp.ne.s32.totalorder %s287, %s289
      %p296 = scmp.eq.s32.totalorder %s27, 1
      %p297 = por %p295, %p296
      %p298 = scmp.ne.s32.totalorder %s289, %s290
      %p299 = scmp.eq.s32.totalorder %s27, 0
      %p300 = por %p298, %p299
      %p301 = scmp.ne.s32.totalorder %s289, %s290
      %p302 = scmp.eq.s32.totalorder %s28, 1
      %p303 = por %p301, %p302
      %p305 = scmp.ne.s32.totalorder %s290, %s304
      %p306 = scmp.eq.s32.totalorder %s28, 0
      %p307 = por %p305, %p306
      %s308 = ssub.s32 %s22, %s29
      %p309 = scmp.eq.s32.totalorder %s308, 0
      %s311 = sadd.s32 %s310, 1
      %s312 = scalar_select %p309, %s310, %s311
      %p315 = pneg %p309
      %p316 = scmp.eq.s32.totalorder %s22, 1
      %p317 = por %p315, %p316
      %p318 = scmp.ne.s32.totalorder %s310, %s313
      %p319 = scmp.eq.s32.totalorder %s22, 0
      %p320 = por %p318, %p319
      %p321 = scmp.ne.s32.totalorder %s310, %s313
      %p322 = scmp.eq.s32.totalorder %s27, 1
      %p323 = por %p321, %p322
      %p324 = scmp.ne.s32.totalorder %s313, %s314
      %p325 = scmp.eq.s32.totalorder %s27, 0
      %p326 = por %p324, %p325
      %p327 = scmp.ne.s32.totalorder %s313, %s314
      %p328 = scmp.eq.s32.totalorder %s28, 1
      %p329 = por %p327, %p328
      %p331 = scmp.ne.s32.totalorder %s314, %s330
      %p332 = scmp.eq.s32.totalorder %s28, 0
      %p333 = por %p331, %p332
      %p334 = scmp.le.s32.totalorder 1, %s22
      %p335 = scmp.lt.s32.totalorder %s22, 3
      %p336 = pnand %p334, %p335
      %p337 = pneg %p336
      // Predicated region
      $region9: #{transformer_block.1} parent=5 // pred_check
        _
      $region10: #{transformer_block.1} parent=5 // pred_check_branch
        %339 = sbr.rel (%p336) target = $region12
      $region11: #{transformer_block.1} parent=5 // pred_region
        %s340 = ssub.s32 %s22, 1
        // Predicated region
        $region13: #{transformer_block.1} parent=11 // pred_check
          %p341 = pneg %p69
        $region14: #{transformer_block.1} parent=11 // pred_check_branch
          %343 = sbr.rel (%p341) target = $region16
        $region15: #{transformer_block.1} parent=11 // pred_region
          _
        $region16: #{transformer_block.1} parent=11 // pred_fallthru
          _
        // Predicated region
        $region17: #{transformer_block.1} parent=11 // pred_check
          %p344 = pneg %p90
        $region18: #{transformer_block.1} parent=11 // pred_check_branch
          %346 = sbr.rel (%p344) target = $region20
        $region19: #{transformer_block.1} parent=11 // pred_region
          _
        $region20: #{transformer_block.1} parent=11 // pred_fallthru
          _
        // Predicated region
        $region21: #{transformer_block.1} parent=11 // pred_check
          %p347 = pneg %p111
        $region22: #{transformer_block.1} parent=11 // pred_check_branch
          %349 = sbr.rel (%p347) target = $region24
        $region23: #{transformer_block.1} parent=11 // pred_region
          _
        $region24: #{transformer_block.1} parent=11 // pred_fallthru
          _
        // Predicated region
        $region25: #{transformer_block.1} parent=11 // pred_check
          %p350 = pneg %p132
        $region26: #{transformer_block.1} parent=11 // pred_check_branch
          %352 = sbr.rel (%p350) target = $region28
        $region27: #{transformer_block.1} parent=11 // pred_region
          _
        $region28: #{transformer_block.1} parent=11 // pred_fallthru
          _
        // Predicated region
        $region29: #{transformer_block.1} parent=11 // pred_check
          %p353 = pneg %p153
        $region30: #{transformer_block.1} parent=11 // pred_check_branch
          %355 = sbr.rel (%p353) target = $region32
        $region31: #{transformer_block.1} parent=11 // pred_region
          _
        $region32: #{transformer_block.1} parent=11 // pred_fallthru
          _
        // Predicated region
        $region33: #{transformer_block.1} parent=11 // pred_check
          %p356 = pneg %p174
        $region34: #{transformer_block.1} parent=11 // pred_check_branch
          %358 = sbr.rel (%p356) target = $region36
        $region35: #{transformer_block.1} parent=11 // pred_region
          _
        $region36: #{transformer_block.1} parent=11 // pred_fallthru
          _
        // Predicated region
        $region37: #{transformer_block.1} parent=11 // pred_check
          %p359 = pneg %p195
        $region38: #{transformer_block.1} parent=11 // pred_check_branch
          %361 = sbr.rel (%p359) target = $region40
        $region39: #{transformer_block.1} parent=11 // pred_region
          _
        $region40: #{transformer_block.1} parent=11 // pred_fallthru
          _
        // Predicated region
        $region41: #{transformer_block.1} parent=11 // pred_check
          %p362 = pneg %p216
        $region42: #{transformer_block.1} parent=11 // pred_check_branch
          %364 = sbr.rel (%p362) target = $region44
        $region43: #{transformer_block.1} parent=11 // pred_region
          _
        $region44: #{transformer_block.1} parent=11 // pred_fallthru
          _
        // Predicated region
        $region45: #{transformer_block.1} parent=11 // pred_check
          %p365 = pneg %p237
        $region46: #{transformer_block.1} parent=11 // pred_check_branch
          %367 = sbr.rel (%p365) target = $region48
        $region47: #{transformer_block.1} parent=11 // pred_region
          _
        $region48: #{transformer_block.1} parent=11 // pred_fallthru
          _
        // Predicated region
        $region49: #{transformer_block.1} parent=11 // pred_check
          %p368 = pneg %p258
        $region50: #{transformer_block.1} parent=11 // pred_check_branch
          %370 = sbr.rel (%p368) target = $region52
        $region51: #{transformer_block.1} parent=11 // pred_region
          _
        $region52: #{transformer_block.1} parent=11 // pred_fallthru
          _
        // Predicated region
        $region53: #{transformer_block.1} parent=11 // pred_check
          %p371 = pneg %p279
        $region54: #{transformer_block.1} parent=11 // pred_check_branch
          %373 = sbr.rel (%p371) target = $region56
        $region55: #{transformer_block.1} parent=11 // pred_region
          _
        $region56: #{transformer_block.1} parent=11 // pred_fallthru
          _
        // Predicated region
        $region57: #{transformer_block.1} parent=11 // pred_check
          %p374 = pneg %p300
        $region58: #{transformer_block.1} parent=11 // pred_check_branch
          %376 = sbr.rel (%p374) target = $region60
        $region59: #{transformer_block.1} parent=11 // pred_region
          _
        $region60: #{transformer_block.1} parent=11 // pred_fallthru
          _
      $region12: #{transformer_block.1} parent=5 // pred_fallthru
        _
      %p377 = scmp.lt.s32.totalorder %s22, 2
      // Predicated region
      $region61: #{transformer_block.1} parent=5 // pred_check
        %p378 = pneg %p377
      $region62: #{transformer_block.1} parent=5 // pred_check_branch
        %380 = sbr.rel (%p378) target = $region64
      $region63: #{transformer_block.1} parent=5 // pred_region
        // Predicated region
        $region65: #{transformer_block.1} parent=63 // pred_check
          %p381 = pneg %p42
        $region66: #{transformer_block.1} parent=63 // pred_check_branch
          %383 = sbr.rel (%p381) target = $region68
        $region67: #{transformer_block.1} parent=63 // pred_region
          %p384 = scmp.lt.s32.totalorder %s22, 1
          %s385 = scalar_select %p384, %s22, 1
          %s386 = smul.addr %s385, 4
          %s387 = smul.addr %s386, 4
          %s388 = scalar_lea.vmem %s0, %s387
        $region68: #{transformer_block.1} parent=63 // pred_fallthru
          _
      $region64: #{transformer_block.1} parent=5 // pred_fallthru
        _
      %p389 = scmp.le.s32.totalorder 1, %s22
      %p390 = scmp.lt.s32.totalorder %s22, 3
      %p391 = pnand %p389, %p390
      %p392 = pneg %p391
      // Predicated region
      $region69: #{transformer_block.1} parent=5 // pred_check
        _
      $region70: #{transformer_block.1} parent=5 // pred_check_branch
        %394 = sbr.rel (%p391) target = $region72
      $region71: #{transformer_block.1} parent=5 // pred_region
        %s395 = ssub.s32 %s22, 1
        %p396 = scmp.lt.s32.totalorder %s27, 1
        %s397 = scalar_select %p396, %s27, 1
        %s398 = smul.addr %s397, 4
        %s399 = smul.addr %s398, 4
        %s400 = scalar_lea.vmem %s0, %s399
        %p401 = pneg %p48
        %p402 = pneg %p45
        %p403 = pneg %p69
        %p404 = pneg %p66
        %p405 = pneg %p90
        %p406 = pneg %p87
        %p407 = pneg %p111
        %p408 = pneg %p108
        %p409 = pneg %p132
        %p410 = pneg %p129
        %p411 = pneg %p153
        %p412 = pneg %p150
        %p413 = pneg %p174
        %p414 = pneg %p171
        %p415 = pneg %p195
        %p416 = pneg %p192
        %p417 = pneg %p216
        %p418 = pneg %p213
        %p419 = pneg %p237
        %p420 = pneg %p234
        %p421 = pneg %p258
        %p422 = pneg %p255
        %p423 = pneg %p279
        %p424 = pneg %p276
        %p425 = pneg %p300
        %p426 = pneg %p297
        %p427 = pneg %p326
        %p428 = pneg %p323
        %s429 = sand.u32 %s313, 1
        %s430 = scalar_lea.sflag [#allocation3], %s429
        %s431 = sand.u32 %s313, 1
        %s432 = smul.addr %s431, 16
        %s433 = scalar_lea.vmem [#allocation2], %s432
        %p434 = scmp.lt.s32.totalorder %s27, 1
        %s435 = scalar_select %p434, %s27, 1
        %s436 = smul.addr %s435, 4
        %s437 = smul.addr %s436, 4
        %s438 = scalar_lea.vmem %s0, %s437
        %v440 = vld [vmem:[%s438] sm:$0xff]
        %v441 = vld [vmem:[%s438 + $0x8] sm:$0xff]
        %v442 = vunpack.c.l.bf16 %v440
        %v443 = vunpack.c.h.bf16 %v440
        %v444 = vunpack.c.l.bf16 %v441
        %v445 = vunpack.c.h.bf16 %v441
        %v446 = vadd.f32 %v442, %v443
        %v447 = vadd.f32 %v446, %v444
        %v448 = vadd.f32 %v447, %v445
        %449 = vadd.xlane.f32.xlu0 %v448
        %v450 = vpop.xlane.xlu0 %449
        %v451 = vrcp.pop 512.0
        %v452 = vmul.f32 %v450, %v451
        %v453 = vsub.f32 %v442, %v452
        %v454 = vsub.f32 %v443, %v452
        %v455 = vsub.f32 %v444, %v452
        %v456 = vsub.f32 %v445, %v452
        %v457 = vmul.f32 %v453, %v453
        %v458 = vmul.f32 %v454, %v454
        %v459 = vmul.f32 %v455, %v455
        %v460 = vmul.f32 %v456, %v456
        %v461 = vadd.f32 %v457, %v458
        %v462 = vadd.f32 %v461, %v459
        %v463 = vadd.f32 %v462, %v460
        %464 = vadd.xlane.f32.xlu0 %v463
        %v465 = vpop.xlane.xlu0 %464
        %v466 = vmul.f32 %v465, %v451
        %v467 = vadd.f32 %v466, 1e-05
        %v468 = vrsqrt.pop %v467
        %v469 = vmul.f32 %v453, %v468
        %v470 = vmul.f32 %v454, %v468
        %v471 = vmul.f32 %v455, %v468
        %v472 = vmul.f32 %v456, %v468
        %v473 = vld [vmem:[%s1] sm:$0xf]
        %v475 = vlaneseq
        %v476 = vshrl.u32 %v475, 7
        %v477 = vsub.s32 0, %v476
        %v478 = vrot.slane %v473, %v477
        %v479 = vlaneseq
        %v480 = vshrl.u32 %v479, 7
        %v481 = vsub.s32 1, %v480
        %v482 = vrot.slane %v473, %v481
        %v483 = vlaneseq
        %v484 = vshrl.u32 %v483, 7
        %v485 = vsub.s32 2, %v484
        %v486 = vrot.slane %v473, %v485
        %v487 = vlaneseq
        %v488 = vshrl.u32 %v487, 7
        %v489 = vsub.s32 3, %v488
        %v490 = vrot.slane %v473, %v489
        %v495 = vmul.f32 %v469, %v478
        %v496 = vmul.f32 %v470, %v482
        %v497 = vmul.f32 %v471, %v486
        %v498 = vmul.f32 %v472, %v490
        %v499 = vld [vmem:[%s2] sm:$0xf]
        %v501 = vlaneseq
        %v502 = vshrl.u32 %v501, 7
        %v503 = vsub.s32 0, %v502
        %v504 = vrot.slane %v499, %v503
        %v505 = vlaneseq
        %v506 = vshrl.u32 %v505, 7
        %v507 = vsub.s32 1, %v506
        %v508 = vrot.slane %v499, %v507
        %v509 = vlaneseq
        %v510 = vshrl.u32 %v509, 7
        %v511 = vsub.s32 2, %v510
        %v512 = vrot.slane %v499, %v511
        %v513 = vlaneseq
        %v514 = vshrl.u32 %v513, 7
        %v515 = vsub.s32 3, %v514
        %v516 = vrot.slane %v499, %v515
        %v521 = vadd.f32 %v495, %v504
        %v522 = vadd.f32 %v496, %v508
        %v523 = vadd.f32 %v497, %v512
        %v524 = vadd.f32 %v498, %v516
        %v525 = vpack.c.bf16 %v521, %v521
        %v526 = vpack.c.bf16 %v522, %v522
        %v527 = vpack.c.bf16 %v523, %v523
        %v528 = vpack.c.bf16 %v524, %v524
        %v529 = vld [vmem:[%s3] sm:$0xff]
        %v530 = vld [vmem:[%s3 + $0x8] sm:$0xff]
        %v531 = vld [vmem:[%s3 + $0x10] sm:$0xff]
        %v532 = vld [vmem:[%s3 + $0x18] sm:$0xff]
        %v533 = vld [vmem:[%s3 + $0x20] sm:$0xff]
        %v534 = vld [vmem:[%s3 + $0x28] sm:$0xff]
        %v535 = vld [vmem:[%s3 + $0x30] sm:$0xff]
        %v536 = vld [vmem:[%s3 + $0x38] sm:$0xff]
        %v537 = vld [vmem:[%s3 + $0x40] sm:$0xff]
        %v538 = vld [vmem:[%s3 + $0x48] sm:$0xff]
        %v539 = vld [vmem:[%s3 + $0x50] sm:$0xff]
        %v540 = vld [vmem:[%s3 + $0x58] sm:$0xff]
        %v541 = vld [vmem:[%s3 + $0x60] sm:$0xff]
        %v542 = vld [vmem:[%s3 + $0x68] sm:$0xff]
        %v543 = vld [vmem:[%s3 + $0x70] sm:$0xff]
        %v544 = vld [vmem:[%s3 + $0x78] sm:$0xff]
        %v545 = vld [vmem:[%s3 + $0x80] sm:$0xff]
        %v546 = vld [vmem:[%s3 + $0x88] sm:$0xff]
        %v547 = vld [vmem:[%s3 + $0x90] sm:$0xff]
        %v548 = vld [vmem:[%s3 + $0x98] sm:$0xff]
        %v549 = vld [vmem:[%s3 + $0xa0] sm:$0xff]
        %v550 = vld [vmem:[%s3 + $0xa8] sm:$0xff]
        %v551 = vld [vmem:[%s3 + $0xb0] sm:$0xff]
        %v552 = vld [vmem:[%s3 + $0xb8] sm:$0xff]
        %v553 = vld [vmem:[%s3 + $0xc0] sm:$0xff]
        %v554 = vld [vmem:[%s3 + $0xc8] sm:$0xff]
        %v555 = vld [vmem:[%s3 + $0xd0] sm:$0xff]
        %v556 = vld [vmem:[%s3 + $0xd8] sm:$0xff]
        %v557 = vld [vmem:[%s3 + $0xe0] sm:$0xff]
        %v558 = vld [vmem:[%s3 + $0xe8] sm:$0xff]
        %v559 = vld [vmem:[%s3 + $0xf0] sm:$0xff]
        %v560 = vld [vmem:[%s3 + $0xf8] sm:$0xff]
        %v561 = vld [vmem:[%s3 + $0x100] sm:$0xff]
        %v562 = vld [vmem:[%s3 + $0x108] sm:$0xff]
        %v563 = vld [vmem:[%s3 + $0x110] sm:$0xff]
        %v564 = vld [vmem:[%s3 + $0x118] sm:$0xff]
        %v565 = vld [vmem:[%s3 + $0x120] sm:$0xff]
        %v566 = vld [vmem:[%s3 + $0x128] sm:$0xff]
        %v567 = vld [vmem:[%s3 + $0x130] sm:$0xff]
        %v568 = vld [vmem:[%s3 + $0x138] sm:$0xff]
        %v569 = vld [vmem:[%s3 + $0x140] sm:$0xff]
        %v570 = vld [vmem:[%s3 + $0x148] sm:$0xff]
        %v571 = vld [vmem:[%s3 + $0x150] sm:$0xff]
        %v572 = vld [vmem:[%s3 + $0x158] sm:$0xff]
        %v573 = vld [vmem:[%s3 + $0x160] sm:$0xff]
        %v574 = vld [vmem:[%s3 + $0x168] sm:$0xff]
        %v575 = vld [vmem:[%s3 + $0x170] sm:$0xff]
        %v576 = vld [vmem:[%s3 + $0x178] sm:$0xff]
        %v577 = vld [vmem:[%s3 + $0x180] sm:$0xff]
        %v578 = vld [vmem:[%s3 + $0x188] sm:$0xff]
        %v579 = vld [vmem:[%s3 + $0x190] sm:$0xff]
        %v580 = vld [vmem:[%s3 + $0x198] sm:$0xff]
        %v581 = vld [vmem:[%s3 + $0x1a0] sm:$0xff]
        %v582 = vld [vmem:[%s3 + $0x1a8] sm:$0xff]
        %v583 = vld [vmem:[%s3 + $0x1b0] sm:$0xff]
        %v584 = vld [vmem:[%s3 + $0x1b8] sm:$0xff]
        %v585 = vld [vmem:[%s3 + $0x1c0] sm:$0xff]
        %v586 = vld [vmem:[%s3 + $0x1c8] sm:$0xff]
        %v587 = vld [vmem:[%s3 + $0x1d0] sm:$0xff]
        %v588 = vld [vmem:[%s3 + $0x1d8] sm:$0xff]
        %v589 = vld [vmem:[%s3 + $0x1e0] sm:$0xff]
        %v590 = vld [vmem:[%s3 + $0x1e8] sm:$0xff]
        %v591 = vld [vmem:[%s3 + $0x1f0] sm:$0xff]
        %v592 = vld [vmem:[%s3 + $0x1f8] sm:$0xff]
        %v593 = vld [vmem:[%s3 + $0x200] sm:$0xff]
        %v594 = vld [vmem:[%s3 + $0x208] sm:$0xff]
        %v595 = vld [vmem:[%s3 + $0x210] sm:$0xff]
        %v596 = vld [vmem:[%s3 + $0x218] sm:$0xff]
        %v597 = vld [vmem:[%s3 + $0x220] sm:$0xff]
        %v598 = vld [vmem:[%s3 + $0x228] sm:$0xff]
        %v599 = vld [vmem:[%s3 + $0x230] sm:$0xff]
        %v600 = vld [vmem:[%s3 + $0x238] sm:$0xff]
        %v601 = vld [vmem:[%s3 + $0x240] sm:$0xff]
        %v602 = vld [vmem:[%s3 + $0x248] sm:$0xff]
        %v603 = vld [vmem:[%s3 + $0x250] sm:$0xff]
        %v604 = vld [vmem:[%s3 + $0x258] sm:$0xff]
        %v605 = vld [vmem:[%s3 + $0x260] sm:$0xff]
        %v606 = vld [vmem:[%s3 + $0x268] sm:$0xff]
        %v607 = vld [vmem:[%s3 + $0x270] sm:$0xff]
        %v608 = vld [vmem:[%s3 + $0x278] sm:$0xff]
        %v609 = vld [vmem:[%s3 + $0x280] sm:$0xff]
        %v610 = vld [vmem:[%s3 + $0x288] sm:$0xff]
        %v611 = vld [vmem:[%s3 + $0x290] sm:$0xff]
        %v612 = vld [vmem:[%s3 + $0x298] sm:$0xff]
        %v613 = vld [vmem:[%s3 + $0x2a0] sm:$0xff]
        %v614 = vld [vmem:[%s3 + $0x2a8] sm:$0xff]
        %v615 = vld [vmem:[%s3 + $0x2b0] sm:$0xff]
        %v616 = vld [vmem:[%s3 + $0x2b8] sm:$0xff]
        %v617 = vld [vmem:[%s3 + $0x2c0] sm:$0xff]
        %v618 = vld [vmem:[%s3 + $0x2c8] sm:$0xff]
        %v619 = vld [vmem:[%s3 + $0x2d0] sm:$0xff]
        %v620 = vld [vmem:[%s3 + $0x2d8] sm:$0xff]
        %v621 = vld [vmem:[%s3 + $0x2e0] sm:$0xff]
        %v622 = vld [vmem:[%s3 + $0x2e8] sm:$0xff]
        %v623 = vld [vmem:[%s3 + $0x2f0] sm:$0xff]
        %v624 = vld [vmem:[%s3 + $0x2f8] sm:$0xff]
        %v625 = vld [vmem:[%s3 + $0x300] sm:$0xff]
        %v626 = vld [vmem:[%s3 + $0x308] sm:$0xff]
        %v627 = vld [vmem:[%s3 + $0x310] sm:$0xff]
        %v628 = vld [vmem:[%s3 + $0x318] sm:$0xff]
        %v629 = vld [vmem:[%s3 + $0x320] sm:$0xff]
        %v630 = vld [vmem:[%s3 + $0x328] sm:$0xff]
        %v631 = vld [vmem:[%s3 + $0x330] sm:$0xff]
        %v632 = vld [vmem:[%s3 + $0x338] sm:$0xff]
        %v633 = vld [vmem:[%s3 + $0x340] sm:$0xff]
        %v634 = vld [vmem:[%s3 + $0x348] sm:$0xff]
        %v635 = vld [vmem:[%s3 + $0x350] sm:$0xff]
        %v636 = vld [vmem:[%s3 + $0x358] sm:$0xff]
        %v637 = vld [vmem:[%s3 + $0x360] sm:$0xff]
        %v638 = vld [vmem:[%s3 + $0x368] sm:$0xff]
        %v639 = vld [vmem:[%s3 + $0x370] sm:$0xff]
        %v640 = vld [vmem:[%s3 + $0x378] sm:$0xff]
        %v641 = vld [vmem:[%s3 + $0x380] sm:$0xff]
        %v642 = vld [vmem:[%s3 + $0x388] sm:$0xff]
        %v643 = vld [vmem:[%s3 + $0x390] sm:$0xff]
        %v644 = vld [vmem:[%s3 + $0x398] sm:$0xff]
        %v645 = vld [vmem:[%s3 + $0x3a0] sm:$0xff]
        %v646 = vld [vmem:[%s3 + $0x3a8] sm:$0xff]
        %v647 = vld [vmem:[%s3 + $0x3b0] sm:$0xff]
        %v648 = vld [vmem:[%s3 + $0x3b8] sm:$0xff]
        %v649 = vld [vmem:[%s3 + $0x3c0] sm:$0xff]
        %v650 = vld [vmem:[%s3 + $0x3c8] sm:$0xff]
        %v651 = vld [vmem:[%s3 + $0x3d0] sm:$0xff]
        %v652 = vld [vmem:[%s3 + $0x3d8] sm:$0xff]
        %v653 = vld [vmem:[%s3 + $0x3e0] sm:$0xff]
        %v654 = vld [vmem:[%s3 + $0x3e8] sm:$0xff]
        %v655 = vld [vmem:[%s3 + $0x3f0] sm:$0xff]
        %v656 = vld [vmem:[%s3 + $0x3f8] sm:$0xff]
        %v657 = vld [vmem:[%s3 + $0x400] sm:$0xff]
        %v658 = vld [vmem:[%s3 + $0x408] sm:$0xff]
        %v659 = vld [vmem:[%s3 + $0x410] sm:$0xff]
        %v660 = vld [vmem:[%s3 + $0x418] sm:$0xff]
        %v661 = vld [vmem:[%s3 + $0x420] sm:$0xff]
        %v662 = vld [vmem:[%s3 + $0x428] sm:$0xff]
        %v663 = vld [vmem:[%s3 + $0x430] sm:$0xff]
        %v664 = vld [vmem:[%s3 + $0x438] sm:$0xff]
        %v665 = vld [vmem:[%s3 + $0x440] sm:$0xff]
        %v666 = vld [vmem:[%s3 + $0x448] sm:$0xff]
        %v667 = vld [vmem:[%s3 + $0x450] sm:$0xff]
        %v668 = vld [vmem:[%s3 + $0x458] sm:$0xff]
        %v669 = vld [vmem:[%s3 + $0x460] sm:$0xff]
        %v670 = vld [vmem:[%s3 + $0x468] sm:$0xff]
        %v671 = vld [vmem:[%s3 + $0x470] sm:$0xff]
        %v672 = vld [vmem:[%s3 + $0x478] sm:$0xff]
        %v673 = vld [vmem:[%s3 + $0x480] sm:$0xff]
        %v674 = vld [vmem:[%s3 + $0x488] sm:$0xff]
        %v675 = vld [vmem:[%s3 + $0x490] sm:$0xff]
        %v676 = vld [vmem:[%s3 + $0x498] sm:$0xff]
        %v677 = vld [vmem:[%s3 + $0x4a0] sm:$0xff]
        %v678 = vld [vmem:[%s3 + $0x4a8] sm:$0xff]
        %v679 = vld [vmem:[%s3 + $0x4b0] sm:$0xff]
        %v680 = vld [vmem:[%s3 + $0x4b8] sm:$0xff]
        %v681 = vld [vmem:[%s3 + $0x4c0] sm:$0xff]
        %v682 = vld [vmem:[%s3 + $0x4c8] sm:$0xff]
        %v683 = vld [vmem:[%s3 + $0x4d0] sm:$0xff]
        %v684 = vld [vmem:[%s3 + $0x4d8] sm:$0xff]
        %v685 = vld [vmem:[%s3 + $0x4e0] sm:$0xff]
        %v686 = vld [vmem:[%s3 + $0x4e8] sm:$0xff]
        %v687 = vld [vmem:[%s3 + $0x4f0] sm:$0xff]
        %v688 = vld [vmem:[%s3 + $0x4f8] sm:$0xff]
        %v689 = vld [vmem:[%s3 + $0x500] sm:$0xff]
        %v690 = vld [vmem:[%s3 + $0x508] sm:$0xff]
        %v691 = vld [vmem:[%s3 + $0x510] sm:$0xff]
        %v692 = vld [vmem:[%s3 + $0x518] sm:$0xff]
        %v693 = vld [vmem:[%s3 + $0x520] sm:$0xff]
        %v694 = vld [vmem:[%s3 + $0x528] sm:$0xff]
        %v695 = vld [vmem:[%s3 + $0x530] sm:$0xff]
        %v696 = vld [vmem:[%s3 + $0x538] sm:$0xff]
        %v697 = vld [vmem:[%s3 + $0x540] sm:$0xff]
        %v698 = vld [vmem:[%s3 + $0x548] sm:$0xff]
        %v699 = vld [vmem:[%s3 + $0x550] sm:$0xff]
        %v700 = vld [vmem:[%s3 + $0x558] sm:$0xff]
        %v701 = vld [vmem:[%s3 + $0x560] sm:$0xff]
        %v702 = vld [vmem:[%s3 + $0x568] sm:$0xff]
        %v703 = vld [vmem:[%s3 + $0x570] sm:$0xff]
        %v704 = vld [vmem:[%s3 + $0x578] sm:$0xff]
        %v705 = vld [vmem:[%s3 + $0x580] sm:$0xff]
        %v706 = vld [vmem:[%s3 + $0x588] sm:$0xff]
        %v707 = vld [vmem:[%s3 + $0x590] sm:$0xff]
        %v708 = vld [vmem:[%s3 + $0x598] sm:$0xff]
        %v709 = vld [vmem:[%s3 + $0x5a0] sm:$0xff]
        %v710 = vld [vmem:[%s3 + $0x5a8] sm:$0xff]
        %v711 = vld [vmem:[%s3 + $0x5b0] sm:$0xff]
        %v712 = vld [vmem:[%s3 + $0x5b8] sm:$0xff]
        %v713 = vld [vmem:[%s3 + $0x5c0] sm:$0xff]
        %v714 = vld [vmem:[%s3 + $0x5c8] sm:$0xff]
        %v715 = vld [vmem:[%s3 + $0x5d0] sm:$0xff]
        %v716 = vld [vmem:[%s3 + $0x5d8] sm:$0xff]
        %v717 = vld [vmem:[%s3 + $0x5e0] sm:$0xff]
        %v718 = vld [vmem:[%s3 + $0x5e8] sm:$0xff]
        %v719 = vld [vmem:[%s3 + $0x5f0] sm:$0xff]
        %v720 = vld [vmem:[%s3 + $0x5f8] sm:$0xff]
        %v721 = vld [vmem:[%s3 + $0x600] sm:$0xff]
        %v722 = vld [vmem:[%s3 + $0x608] sm:$0xff]
        %v723 = vld [vmem:[%s3 + $0x610] sm:$0xff]
        %v724 = vld [vmem:[%s3 + $0x618] sm:$0xff]
        %v725 = vld [vmem:[%s3 + $0x620] sm:$0xff]
        %v726 = vld [vmem:[%s3 + $0x628] sm:$0xff]
        %v727 = vld [vmem:[%s3 + $0x630] sm:$0xff]
        %v728 = vld [vmem:[%s3 + $0x638] sm:$0xff]
        %v729 = vld [vmem:[%s3 + $0x640] sm:$0xff]
        %v730 = vld [vmem:[%s3 + $0x648] sm:$0xff]
        %v731 = vld [vmem:[%s3 + $0x650] sm:$0xff]
        %v732 = vld [vmem:[%s3 + $0x658] sm:$0xff]
        %v733 = vld [vmem:[%s3 + $0x660] sm:$0xff]
        %v734 = vld [vmem:[%s3 + $0x668] sm:$0xff]
        %v735 = vld [vmem:[%s3 + $0x670] sm:$0xff]
        %v736 = vld [vmem:[%s3 + $0x678] sm:$0xff]
        %v737 = vld [vmem:[%s3 + $0x680] sm:$0xff]
        %v738 = vld [vmem:[%s3 + $0x688] sm:$0xff]
        %v739 = vld [vmem:[%s3 + $0x690] sm:$0xff]
        %v740 = vld [vmem:[%s3 + $0x698] sm:$0xff]
        %v741 = vld [vmem:[%s3 + $0x6a0] sm:$0xff]
        %v742 = vld [vmem:[%s3 + $0x6a8] sm:$0xff]
        %v743 = vld [vmem:[%s3 + $0x6b0] sm:$0xff]
        %v744 = vld [vmem:[%s3 + $0x6b8] sm:$0xff]
        %v745 = vld [vmem:[%s3 + $0x6c0] sm:$0xff]
        %v746 = vld [vmem:[%s3 + $0x6c8] sm:$0xff]
        %v747 = vld [vmem:[%s3 + $0x6d0] sm:$0xff]
        %v748 = vld [vmem:[%s3 + $0x6d8] sm:$0xff]
        %v749 = vld [vmem:[%s3 + $0x6e0] sm:$0xff]
        %v750 = vld [vmem:[%s3 + $0x6e8] sm:$0xff]
        %v751 = vld [vmem:[%s3 + $0x6f0] sm:$0xff]
        %v752 = vld [vmem:[%s3 + $0x6f8] sm:$0xff]
        %v753 = vld [vmem:[%s3 + $0x700] sm:$0xff]
        %v754 = vld [vmem:[%s3 + $0x708] sm:$0xff]
        %v755 = vld [vmem:[%s3 + $0x710] sm:$0xff]
        %v756 = vld [vmem:[%s3 + $0x718] sm:$0xff]
        %v757 = vld [vmem:[%s3 + $0x720] sm:$0xff]
        %v758 = vld [vmem:[%s3 + $0x728] sm:$0xff]
        %v759 = vld [vmem:[%s3 + $0x730] sm:$0xff]
        %v760 = vld [vmem:[%s3 + $0x738] sm:$0xff]
        %v761 = vld [vmem:[%s3 + $0x740] sm:$0xff]
        %v762 = vld [vmem:[%s3 + $0x748] sm:$0xff]
        %v763 = vld [vmem:[%s3 + $0x750] sm:$0xff]
        %v764 = vld [vmem:[%s3 + $0x758] sm:$0xff]
        %v765 = vld [vmem:[%s3 + $0x760] sm:$0xff]
        %v766 = vld [vmem:[%s3 + $0x768] sm:$0xff]
        %v767 = vld [vmem:[%s3 + $0x770] sm:$0xff]
        %v768 = vld [vmem:[%s3 + $0x778] sm:$0xff]
        %v769 = vld [vmem:[%s3 + $0x780] sm:$0xff]
        %v770 = vld [vmem:[%s3 + $0x788] sm:$0xff]
        %v771 = vld [vmem:[%s3 + $0x790] sm:$0xff]
        %v772 = vld [vmem:[%s3 + $0x798] sm:$0xff]
        %v773 = vld [vmem:[%s3 + $0x7a0] sm:$0xff]
        %v774 = vld [vmem:[%s3 + $0x7a8] sm:$0xff]
        %v775 = vld [vmem:[%s3 + $0x7b0] sm:$0xff]
        %v776 = vld [vmem:[%s3 + $0x7b8] sm:$0xff]
        %v777 = vld [vmem:[%s3 + $0x7c0] sm:$0xff]
        %v778 = vld [vmem:[%s3 + $0x7c8] sm:$0xff]
        %v779 = vld [vmem:[%s3 + $0x7d0] sm:$0xff]
        %v780 = vld [vmem:[%s3 + $0x7d8] sm:$0xff]
        %v781 = vld [vmem:[%s3 + $0x7e0] sm:$0xff]
        %v782 = vld [vmem:[%s3 + $0x7e8] sm:$0xff]
        %v783 = vld [vmem:[%s3 + $0x7f0] sm:$0xff]
        %v784 = vld [vmem:[%s3 + $0x7f8] sm:$0xff]
        %v785 = vld [vmem:[%s3 + $0x800] sm:$0xff]
        %v786 = vld [vmem:[%s3 + $0x808] sm:$0xff]
        %v787 = vld [vmem:[%s3 + $0x810] sm:$0xff]
        %v788 = vld [vmem:[%s3 + $0x818] sm:$0xff]
        %v789 = vld [vmem:[%s3 + $0x820] sm:$0xff]
        %v790 = vld [vmem:[%s3 + $0x828] sm:$0xff]
        %v791 = vld [vmem:[%s3 + $0x830] sm:$0xff]
        %v792 = vld [vmem:[%s3 + $0x838] sm:$0xff]
        %v793 = vld [vmem:[%s3 + $0x840] sm:$0xff]
        %v794 = vld [vmem:[%s3 + $0x848] sm:$0xff]
        %v795 = vld [vmem:[%s3 + $0x850] sm:$0xff]
        %v796 = vld [vmem:[%s3 + $0x858] sm:$0xff]
        %v797 = vld [vmem:[%s3 + $0x860] sm:$0xff]
        %v798 = vld [vmem:[%s3 + $0x868] sm:$0xff]
        %v799 = vld [vmem:[%s3 + $0x870] sm:$0xff]
        %v800 = vld [vmem:[%s3 + $0x878] sm:$0xff]
        %v801 = vld [vmem:[%s3 + $0x880] sm:$0xff]
        %v802 = vld [vmem:[%s3 + $0x888] sm:$0xff]
        %v803 = vld [vmem:[%s3 + $0x890] sm:$0xff]
        %v804 = vld [vmem:[%s3 + $0x898] sm:$0xff]
        %v805 = vld [vmem:[%s3 + $0x8a0] sm:$0xff]
        %v806 = vld [vmem:[%s3 + $0x8a8] sm:$0xff]
        %v807 = vld [vmem:[%s3 + $0x8b0] sm:$0xff]
        %v808 = vld [vmem:[%s3 + $0x8b8] sm:$0xff]
        %v809 = vld [vmem:[%s3 + $0x8c0] sm:$0xff]
        %v810 = vld [vmem:[%s3 + $0x8c8] sm:$0xff]
        %v811 = vld [vmem:[%s3 + $0x8d0] sm:$0xff]
        %v812 = vld [vmem:[%s3 + $0x8d8] sm:$0xff]
        %v813 = vld [vmem:[%s3 + $0x8e0] sm:$0xff]
        %v814 = vld [vmem:[%s3 + $0x8e8] sm:$0xff]
        %v815 = vld [vmem:[%s3 + $0x8f0] sm:$0xff]
        %v816 = vld [vmem:[%s3 + $0x8f8] sm:$0xff]
        %v817 = vld [vmem:[%s3 + $0x900] sm:$0xff]
        %v818 = vld [vmem:[%s3 + $0x908] sm:$0xff]
        %v819 = vld [vmem:[%s3 + $0x910] sm:$0xff]
        %v820 = vld [vmem:[%s3 + $0x918] sm:$0xff]
        %v821 = vld [vmem:[%s3 + $0x920] sm:$0xff]
        %v822 = vld [vmem:[%s3 + $0x928] sm:$0xff]
        %v823 = vld [vmem:[%s3 + $0x930] sm:$0xff]
        %v824 = vld [vmem:[%s3 + $0x938] sm:$0xff]
        %v825 = vld [vmem:[%s3 + $0x940] sm:$0xff]
        %v826 = vld [vmem:[%s3 + $0x948] sm:$0xff]
        %v827 = vld [vmem:[%s3 + $0x950] sm:$0xff]
        %v828 = vld [vmem:[%s3 + $0x958] sm:$0xff]
        %v829 = vld [vmem:[%s3 + $0x960] sm:$0xff]
        %v830 = vld [vmem:[%s3 + $0x968] sm:$0xff]
        %v831 = vld [vmem:[%s3 + $0x970] sm:$0xff]
        %v832 = vld [vmem:[%s3 + $0x978] sm:$0xff]
        %v833 = vld [vmem:[%s3 + $0x980] sm:$0xff]
        %v834 = vld [vmem:[%s3 + $0x988] sm:$0xff]
        %v835 = vld [vmem:[%s3 + $0x990] sm:$0xff]
        %v836 = vld [vmem:[%s3 + $0x998] sm:$0xff]
        %v837 = vld [vmem:[%s3 + $0x9a0] sm:$0xff]
        %v838 = vld [vmem:[%s3 + $0x9a8] sm:$0xff]
        %v839 = vld [vmem:[%s3 + $0x9b0] sm:$0xff]
        %v840 = vld [vmem:[%s3 + $0x9b8] sm:$0xff]
        %v841 = vld [vmem:[%s3 + $0x9c0] sm:$0xff]
        %v842 = vld [vmem:[%s3 + $0x9c8] sm:$0xff]
        %v843 = vld [vmem:[%s3 + $0x9d0] sm:$0xff]
        %v844 = vld [vmem:[%s3 + $0x9d8] sm:$0xff]
        %v845 = vld [vmem:[%s3 + $0x9e0] sm:$0xff]
        %v846 = vld [vmem:[%s3 + $0x9e8] sm:$0xff]
        %v847 = vld [vmem:[%s3 + $0x9f0] sm:$0xff]
        %v848 = vld [vmem:[%s3 + $0x9f8] sm:$0xff]
        %v849 = vld [vmem:[%s3 + $0xa00] sm:$0xff]
        %v850 = vld [vmem:[%s3 + $0xa08] sm:$0xff]
        %v851 = vld [vmem:[%s3 + $0xa10] sm:$0xff]
        %v852 = vld [vmem:[%s3 + $0xa18] sm:$0xff]
        %v853 = vld [vmem:[%s3 + $0xa20] sm:$0xff]
        %v854 = vld [vmem:[%s3 + $0xa28] sm:$0xff]
        %v855 = vld [vmem:[%s3 + $0xa30] sm:$0xff]
        %v856 = vld [vmem:[%s3 + $0xa38] sm:$0xff]
        %v857 = vld [vmem:[%s3 + $0xa40] sm:$0xff]
        %v858 = vld [vmem:[%s3 + $0xa48] sm:$0xff]
        %v859 = vld [vmem:[%s3 + $0xa50] sm:$0xff]
        %v860 = vld [vmem:[%s3 + $0xa58] sm:$0xff]
        %v861 = vld [vmem:[%s3 + $0xa60] sm:$0xff]
        %v862 = vld [vmem:[%s3 + $0xa68] sm:$0xff]
        %v863 = vld [vmem:[%s3 + $0xa70] sm:$0xff]
        %v864 = vld [vmem:[%s3 + $0xa78] sm:$0xff]
        %v865 = vld [vmem:[%s3 + $0xa80] sm:$0xff]
        %v866 = vld [vmem:[%s3 + $0xa88] sm:$0xff]
        %v867 = vld [vmem:[%s3 + $0xa90] sm:$0xff]
        %v868 = vld [vmem:[%s3 + $0xa98] sm:$0xff]
        %v869 = vld [vmem:[%s3 + $0xaa0] sm:$0xff]
        %v870 = vld [vmem:[%s3 + $0xaa8] sm:$0xff]
        %v871 = vld [vmem:[%s3 + $0xab0] sm:$0xff]
        %v872 = vld [vmem:[%s3 + $0xab8] sm:$0xff]
        %v873 = vld [vmem:[%s3 + $0xac0] sm:$0xff]
        %v874 = vld [vmem:[%s3 + $0xac8] sm:$0xff]
        %v875 = vld [vmem:[%s3 + $0xad0] sm:$0xff]
        %v876 = vld [vmem:[%s3 + $0xad8] sm:$0xff]
        %v877 = vld [vmem:[%s3 + $0xae0] sm:$0xff]
        %v878 = vld [vmem:[%s3 + $0xae8] sm:$0xff]
        %v879 = vld [vmem:[%s3 + $0xaf0] sm:$0xff]
        %v880 = vld [vmem:[%s3 + $0xaf8] sm:$0xff]
        %v881 = vld [vmem:[%s3 + $0xb00] sm:$0xff]
        %v882 = vld [vmem:[%s3 + $0xb08] sm:$0xff]
        %v883 = vld [vmem:[%s3 + $0xb10] sm:$0xff]
        %v884 = vld [vmem:[%s3 + $0xb18] sm:$0xff]
        %v885 = vld [vmem:[%s3 + $0xb20] sm:$0xff]
        %v886 = vld [vmem:[%s3 + $0xb28] sm:$0xff]
        %v887 = vld [vmem:[%s3 + $0xb30] sm:$0xff]
        %v888 = vld [vmem:[%s3 + $0xb38] sm:$0xff]
        %v889 = vld [vmem:[%s3 + $0xb40] sm:$0xff]
        %v890 = vld [vmem:[%s3 + $0xb48] sm:$0xff]
        %v891 = vld [vmem:[%s3 + $0xb50] sm:$0xff]
        %v892 = vld [vmem:[%s3 + $0xb58] sm:$0xff]
        %v893 = vld [vmem:[%s3 + $0xb60] sm:$0xff]
        %v894 = vld [vmem:[%s3 + $0xb68] sm:$0xff]
        %v895 = vld [vmem:[%s3 + $0xb70] sm:$0xff]
        %v896 = vld [vmem:[%s3 + $0xb78] sm:$0xff]
        %v897 = vld [vmem:[%s3 + $0xb80] sm:$0xff]
        %v898 = vld [vmem:[%s3 + $0xb88] sm:$0xff]
        %v899 = vld [vmem:[%s3 + $0xb90] sm:$0xff]
        %v900 = vld [vmem:[%s3 + $0xb98] sm:$0xff]
        %v901 = vld [vmem:[%s3 + $0xba0] sm:$0xff]
        %v902 = vld [vmem:[%s3 + $0xba8] sm:$0xff]
        %v903 = vld [vmem:[%s3 + $0xbb0] sm:$0xff]
        %v904 = vld [vmem:[%s3 + $0xbb8] sm:$0xff]
        %v905 = vld [vmem:[%s3 + $0xbc0] sm:$0xff]
        %v906 = vld [vmem:[%s3 + $0xbc8] sm:$0xff]
        %v907 = vld [vmem:[%s3 + $0xbd0] sm:$0xff]
        %v908 = vld [vmem:[%s3 + $0xbd8] sm:$0xff]
        %v909 = vld [vmem:[%s3 + $0xbe0] sm:$0xff]
        %v910 = vld [vmem:[%s3 + $0xbe8] sm:$0xff]
        %v911 = vld [vmem:[%s3 + $0xbf0] sm:$0xff]
        %v912 = vld [vmem:[%s3 + $0xbf8] sm:$0xff]
        %v913 = vld [vmem:[%s4] sm:$0xff]
        %v914 = vld [vmem:[%s4 + $0x8] sm:$0xf]
        %v917 = vlaneseq
        %v918 = vshrl.u32 %v917, 7
        %v919 = vsub.s32 0, %v918
        %v920 = vrot.slane %v913, %v919
        %v921 = vlaneseq
        %v922 = vshrl.u32 %v921, 7
        %v923 = vsub.s32 1, %v922
        %v924 = vrot.slane %v913, %v923
        %v925 = vlaneseq
        %v926 = vshrl.u32 %v925, 7
        %v927 = vsub.s32 2, %v926
        %v928 = vrot.slane %v913, %v927
        %v929 = vlaneseq
        %v930 = vshrl.u32 %v929, 7
        %v931 = vsub.s32 3, %v930
        %v932 = vrot.slane %v913, %v931
        %v933 = vlaneseq
        %v934 = vshrl.u32 %v933, 7
        %v935 = vsub.s32 4, %v934
        %v936 = vrot.slane %v913, %v935
        %v937 = vlaneseq
        %v938 = vshrl.u32 %v937, 7
        %v939 = vsub.s32 5, %v938
        %v940 = vrot.slane %v913, %v939
        %v941 = vlaneseq
        %v942 = vshrl.u32 %v941, 7
        %v943 = vsub.s32 6, %v942
        %v944 = vrot.slane %v913, %v943
        %v945 = vlaneseq
        %v946 = vshrl.u32 %v945, 7
        %v947 = vsub.s32 7, %v946
        %v948 = vrot.slane %v913, %v947
        %v949 = vlaneseq
        %v950 = vshrl.u32 %v949, 7
        %v951 = vsub.s32 0, %v950
        %v952 = vrot.slane %v914, %v951
        %v953 = vlaneseq
        %v954 = vshrl.u32 %v953, 7
        %v955 = vsub.s32 1, %v954
        %v956 = vrot.slane %v914, %v955
        %v957 = vlaneseq
        %v958 = vshrl.u32 %v957, 7
        %v959 = vsub.s32 2, %v958
        %v960 = vrot.slane %v914, %v959
        %v961 = vlaneseq
        %v962 = vshrl.u32 %v961, 7
        %v963 = vsub.s32 3, %v962
        %v964 = vrot.slane %v914, %v963
        %v1361 = vunpack.c.l.b16 %v529
        %v1362 = vunpack.c.h.b16 %v529
        %v1363 = vunpack.c.l.b16 %v530
        %v1364 = vunpack.c.h.b16 %v530
        %v1365 = vunpack.c.l.b16 %v531
        %v1366 = vunpack.c.h.b16 %v531
        %v1367 = vunpack.c.l.b16 %v532
        %v1368 = vunpack.c.h.b16 %v532
        %v1369 = vunpack.c.l.b16 %v533
        %v1370 = vunpack.c.h.b16 %v533
        %v1371 = vunpack.c.l.b16 %v534
        %v1372 = vunpack.c.h.b16 %v534
        %v1373 = vunpack.c.l.b16 %v535
        %v1374 = vunpack.c.h.b16 %v535
        %v1375 = vunpack.c.l.b16 %v536
        %v1376 = vunpack.c.h.b16 %v536
        %v1377 = vunpack.c.l.b16 %v537
        %v1378 = vunpack.c.h.b16 %v537
        %v1379 = vunpack.c.l.b16 %v538
        %v1380 = vunpack.c.h.b16 %v538
        %v1381 = vunpack.c.l.b16 %v539
        %v1382 = vunpack.c.h.b16 %v539
        %v1383 = vunpack.c.l.b16 %v540
        %v1384 = vunpack.c.h.b16 %v540
        %v1385 = vunpack.c.l.b16 %v541
        %v1386 = vunpack.c.h.b16 %v541
        %v1387 = vunpack.c.l.b16 %v542
        %v1388 = vunpack.c.h.b16 %v542
        %v1389 = vunpack.c.l.b16 %v543
        %v1390 = vunpack.c.h.b16 %v543
        %v1391 = vunpack.c.l.b16 %v544
        %v1392 = vunpack.c.h.b16 %v544
        %v1393 = vunpack.c.l.b16 %v545
        %v1394 = vunpack.c.h.b16 %v545
        %v1395 = vunpack.c.l.b16 %v546
        %v1396 = vunpack.c.h.b16 %v546
        %v1397 = vunpack.c.l.b16 %v547
        %v1398 = vunpack.c.h.b16 %v547
        %v1399 = vunpack.c.l.b16 %v548
        %v1400 = vunpack.c.h.b16 %v548
        %v1401 = vunpack.c.l.b16 %v549
        %v1402 = vunpack.c.h.b16 %v549
        %v1403 = vunpack.c.l.b16 %v550
        %v1404 = vunpack.c.h.b16 %v550
        %v1405 = vunpack.c.l.b16 %v551
        %v1406 = vunpack.c.h.b16 %v551
        %v1407 = vunpack.c.l.b16 %v552
        %v1408 = vunpack.c.h.b16 %v552
        %v1409 = vunpack.c.l.b16 %v553
        %v1410 = vunpack.c.h.b16 %v553
        %v1411 = vunpack.c.l.b16 %v554
        %v1412 = vunpack.c.h.b16 %v554
        %v1413 = vunpack.c.l.b16 %v555
        %v1414 = vunpack.c.h.b16 %v555
        %v1415 = vunpack.c.l.b16 %v556
        %v1416 = vunpack.c.h.b16 %v556
        %v1417 = vunpack.c.l.b16 %v557
        %v1418 = vunpack.c.h.b16 %v557
        %v1419 = vunpack.c.l.b16 %v558
        %v1420 = vunpack.c.h.b16 %v558
        %v1421 = vunpack.c.l.b16 %v559
        %v1422 = vunpack.c.h.b16 %v559
        %v1423 = vunpack.c.l.b16 %v560
        %v1424 = vunpack.c.h.b16 %v560
        %v1425 = vunpack.c.l.b16 %v561
        %v1426 = vunpack.c.h.b16 %v561
        %v1427 = vunpack.c.l.b16 %v562
        %v1428 = vunpack.c.h.b16 %v562
        %v1429 = vunpack.c.l.b16 %v563
        %v1430 = vunpack.c.h.b16 %v563
        %v1431 = vunpack.c.l.b16 %v564
        %v1432 = vunpack.c.h.b16 %v564
        %v1433 = vunpack.c.l.b16 %v565
        %v1434 = vunpack.c.h.b16 %v565
        %v1435 = vunpack.c.l.b16 %v566
        %v1436 = vunpack.c.h.b16 %v566
        %v1437 = vunpack.c.l.b16 %v567
        %v1438 = vunpack.c.h.b16 %v567
        %v1439 = vunpack.c.l.b16 %v568
        %v1440 = vunpack.c.h.b16 %v568
        %v1441 = vunpack.c.l.b16 %v569
        %v1442 = vunpack.c.h.b16 %v569
        %v1443 = vunpack.c.l.b16 %v570
        %v1444 = vunpack.c.h.b16 %v570
        %v1445 = vunpack.c.l.b16 %v571
        %v1446 = vunpack.c.h.b16 %v571
        %v1447 = vunpack.c.l.b16 %v572
        %v1448 = vunpack.c.h.b16 %v572
        %v1449 = vunpack.c.l.b16 %v573
        %v1450 = vunpack.c.h.b16 %v573
        %v1451 = vunpack.c.l.b16 %v574
        %v1452 = vunpack.c.h.b16 %v574
        %v1453 = vunpack.c.l.b16 %v575
        %v1454 = vunpack.c.h.b16 %v575
        %v1455 = vunpack.c.l.b16 %v576
        %v1456 = vunpack.c.h.b16 %v576
        %v1457 = vunpack.c.l.b16 %v577
        %v1458 = vunpack.c.h.b16 %v577
        %v1459 = vunpack.c.l.b16 %v578
        %v1460 = vunpack.c.h.b16 %v578
        %v1461 = vunpack.c.l.b16 %v579
        %v1462 = vunpack.c.h.b16 %v579
        %v1463 = vunpack.c.l.b16 %v580
        %v1464 = vunpack.c.h.b16 %v580
        %v1465 = vunpack.c.l.b16 %v581
        %v1466 = vunpack.c.h.b16 %v581
        %v1467 = vunpack.c.l.b16 %v582
        %v1468 = vunpack.c.h.b16 %v582
        %v1469 = vunpack.c.l.b16 %v583
        %v1470 = vunpack.c.h.b16 %v583
        %v1471 = vunpack.c.l.b16 %v584
        %v1472 = vunpack.c.h.b16 %v584
        %v1473 = vunpack.c.l.b16 %v585
        %v1474 = vunpack.c.h.b16 %v585
        %v1475 = vunpack.c.l.b16 %v586
        %v1476 = vunpack.c.h.b16 %v586
        %v1477 = vunpack.c.l.b16 %v587
        %v1478 = vunpack.c.h.b16 %v587
        %v1479 = vunpack.c.l.b16 %v588
        %v1480 = vunpack.c.h.b16 %v588
        %v1481 = vunpack.c.l.b16 %v589
        %v1482 = vunpack.c.h.b16 %v589
        %v1483 = vunpack.c.l.b16 %v590
        %v1484 = vunpack.c.h.b16 %v590
        %v1485 = vunpack.c.l.b16 %v591
        %v1486 = vunpack.c.h.b16 %v591
        %v1487 = vunpack.c.l.b16 %v592
        %v1488 = vunpack.c.h.b16 %v592
        %v1489 = vunpack.c.l.b16 %v593
        %v1490 = vunpack.c.h.b16 %v593
        %v1491 = vunpack.c.l.b16 %v594
        %v1492 = vunpack.c.h.b16 %v594
        %v1493 = vunpack.c.l.b16 %v595
        %v1494 = vunpack.c.h.b16 %v595
        %v1495 = vunpack.c.l.b16 %v596
        %v1496 = vunpack.c.h.b16 %v596
        %v1497 = vunpack.c.l.b16 %v597
        %v1498 = vunpack.c.h.b16 %v597
        %v1499 = vunpack.c.l.b16 %v598
        %v1500 = vunpack.c.h.b16 %v598
        %v1501 = vunpack.c.l.b16 %v599
        %v1502 = vunpack.c.h.b16 %v599
        %v1503 = vunpack.c.l.b16 %v600
        %v1504 = vunpack.c.h.b16 %v600
        %v1505 = vunpack.c.l.b16 %v601
        %v1506 = vunpack.c.h.b16 %v601
        %v1507 = vunpack.c.l.b16 %v602
        %v1508 = vunpack.c.h.b16 %v602
        %v1509 = vunpack.c.l.b16 %v603
        %v1510 = vunpack.c.h.b16 %v603
        %v1511 = vunpack.c.l.b16 %v604
        %v1512 = vunpack.c.h.b16 %v604
        %v1513 = vunpack.c.l.b16 %v605
        %v1514 = vunpack.c.h.b16 %v605
        %v1515 = vunpack.c.l.b16 %v606
        %v1516 = vunpack.c.h.b16 %v606
        %v1517 = vunpack.c.l.b16 %v607
        %v1518 = vunpack.c.h.b16 %v607
        %v1519 = vunpack.c.l.b16 %v608
        %v1520 = vunpack.c.h.b16 %v608
        %v1521 = vunpack.c.l.b16 %v609
        %v1522 = vunpack.c.h.b16 %v609
        %v1523 = vunpack.c.l.b16 %v610
        %v1524 = vunpack.c.h.b16 %v610
        %v1525 = vunpack.c.l.b16 %v611
        %v1526 = vunpack.c.h.b16 %v611
        %v1527 = vunpack.c.l.b16 %v612
        %v1528 = vunpack.c.h.b16 %v612
        %v1529 = vunpack.c.l.b16 %v613
        %v1530 = vunpack.c.h.b16 %v613
        %v1531 = vunpack.c.l.b16 %v614
        %v1532 = vunpack.c.h.b16 %v614
        %v1533 = vunpack.c.l.b16 %v615
        %v1534 = vunpack.c.h.b16 %v615
        %v1535 = vunpack.c.l.b16 %v616
        %v1536 = vunpack.c.h.b16 %v616
        %v1537 = vunpack.c.l.b16 %v617
        %v1538 = vunpack.c.h.b16 %v617
        %v1539 = vunpack.c.l.b16 %v618
        %v1540 = vunpack.c.h.b16 %v618
        %v1541 = vunpack.c.l.b16 %v619
        %v1542 = vunpack.c.h.b16 %v619
        %v1543 = vunpack.c.l.b16 %v620
        %v1544 = vunpack.c.h.b16 %v620
        %v1545 = vunpack.c.l.b16 %v621
        %v1546 = vunpack.c.h.b16 %v621
        %v1547 = vunpack.c.l.b16 %v622
        %v1548 = vunpack.c.h.b16 %v622
        %v1549 = vunpack.c.l.b16 %v623
        %v1550 = vunpack.c.h.b16 %v623
        %v1551 = vunpack.c.l.b16 %v624
        %v1552 = vunpack.c.h.b16 %v624
        %v1553 = vunpack.c.l.b16 %v625
        %v1554 = vunpack.c.h.b16 %v625
        %v1555 = vunpack.c.l.b16 %v626
        %v1556 = vunpack.c.h.b16 %v626
        %v1557 = vunpack.c.l.b16 %v627
        %v1558 = vunpack.c.h.b16 %v627
        %v1559 = vunpack.c.l.b16 %v628
        %v1560 = vunpack.c.h.b16 %v628
        %v1561 = vunpack.c.l.b16 %v629
        %v1562 = vunpack.c.h.b16 %v629
        %v1563 = vunpack.c.l.b16 %v630
        %v1564 = vunpack.c.h.b16 %v630
        %v1565 = vunpack.c.l.b16 %v631
        %v1566 = vunpack.c.h.b16 %v631
        %v1567 = vunpack.c.l.b16 %v632
        %v1568 = vunpack.c.h.b16 %v632
        %v1569 = vunpack.c.l.b16 %v633
        %v1570 = vunpack.c.h.b16 %v633
        %v1571 = vunpack.c.l.b16 %v634
        %v1572 = vunpack.c.h.b16 %v634
        %v1573 = vunpack.c.l.b16 %v635
        %v1574 = vunpack.c.h.b16 %v635
        %v1575 = vunpack.c.l.b16 %v636
        %v1576 = vunpack.c.h.b16 %v636
        %v1577 = vunpack.c.l.b16 %v637
        %v1578 = vunpack.c.h.b16 %v637
        %v1579 = vunpack.c.l.b16 %v638
        %v1580 = vunpack.c.h.b16 %v638
        %v1581 = vunpack.c.l.b16 %v639
        %v1582 = vunpack.c.h.b16 %v639
        %v1583 = vunpack.c.l.b16 %v640
        %v1584 = vunpack.c.h.b16 %v640
        %v1585 = vunpack.c.l.b16 %v641
        %v1586 = vunpack.c.h.b16 %v641
        %v1587 = vunpack.c.l.b16 %v642
        %v1588 = vunpack.c.h.b16 %v642
        %v1589 = vunpack.c.l.b16 %v643
        %v1590 = vunpack.c.h.b16 %v643
        %v1591 = vunpack.c.l.b16 %v644
        %v1592 = vunpack.c.h.b16 %v644
        %v1593 = vunpack.c.l.b16 %v645
        %v1594 = vunpack.c.h.b16 %v645
        %v1595 = vunpack.c.l.b16 %v646
        %v1596 = vunpack.c.h.b16 %v646
        %v1597 = vunpack.c.l.b16 %v647
        %v1598 = vunpack.c.h.b16 %v647
        %v1599 = vunpack.c.l.b16 %v648
        %v1600 = vunpack.c.h.b16 %v648
        %v1601 = vunpack.c.l.b16 %v649
        %v1602 = vunpack.c.h.b16 %v649
        %v1603 = vunpack.c.l.b16 %v650
        %v1604 = vunpack.c.h.b16 %v650
        %v1605 = vunpack.c.l.b16 %v651
        %v1606 = vunpack.c.h.b16 %v651
        %v1607 = vunpack.c.l.b16 %v652
        %v1608 = vunpack.c.h.b16 %v652
        %v1609 = vunpack.c.l.b16 %v653
        %v1610 = vunpack.c.h.b16 %v653
        %v1611 = vunpack.c.l.b16 %v654
        %v1612 = vunpack.c.h.b16 %v654
        %v1613 = vunpack.c.l.b16 %v655
        %v1614 = vunpack.c.h.b16 %v655
        %v1615 = vunpack.c.l.b16 %v656
        %v1616 = vunpack.c.h.b16 %v656
        %v1617 = vunpack.c.l.b16 %v657
        %v1618 = vunpack.c.h.b16 %v657
        %v1619 = vunpack.c.l.b16 %v658
        %v1620 = vunpack.c.h.b16 %v658
        %v1621 = vunpack.c.l.b16 %v659
        %v1622 = vunpack.c.h.b16 %v659
        %v1623 = vunpack.c.l.b16 %v660
        %v1624 = vunpack.c.h.b16 %v660
        %v1625 = vunpack.c.l.b16 %v661
        %v1626 = vunpack.c.h.b16 %v661
        %v1627 = vunpack.c.l.b16 %v662
        %v1628 = vunpack.c.h.b16 %v662
        %v1629 = vunpack.c.l.b16 %v663
        %v1630 = vunpack.c.h.b16 %v663
        %v1631 = vunpack.c.l.b16 %v664
        %v1632 = vunpack.c.h.b16 %v664
        %v1633 = vunpack.c.l.b16 %v665
        %v1634 = vunpack.c.h.b16 %v665
        %v1635 = vunpack.c.l.b16 %v666
        %v1636 = vunpack.c.h.b16 %v666
        %v1637 = vunpack.c.l.b16 %v667
        %v1638 = vunpack.c.h.b16 %v667
        %v1639 = vunpack.c.l.b16 %v668
        %v1640 = vunpack.c.h.b16 %v668
        %v1641 = vunpack.c.l.b16 %v669
        %v1642 = vunpack.c.h.b16 %v669
        %v1643 = vunpack.c.l.b16 %v670
        %v1644 = vunpack.c.h.b16 %v670
        %v1645 = vunpack.c.l.b16 %v671
        %v1646 = vunpack.c.h.b16 %v671
        %v1647 = vunpack.c.l.b16 %v672
        %v1648 = vunpack.c.h.b16 %v672
        %v1649 = vunpack.c.l.b16 %v673
        %v1650 = vunpack.c.h.b16 %v673
        %v1651 = vunpack.c.l.b16 %v674
        %v1652 = vunpack.c.h.b16 %v674
        %v1653 = vunpack.c.l.b16 %v675
        %v1654 = vunpack.c.h.b16 %v675
        %v1655 = vunpack.c.l.b16 %v676
        %v1656 = vunpack.c.h.b16 %v676
        %v1657 = vunpack.c.l.b16 %v677
        %v1658 = vunpack.c.h.b16 %v677
        %v1659 = vunpack.c.l.b16 %v678
        %v1660 = vunpack.c.h.b16 %v678
        %v1661 = vunpack.c.l.b16 %v679
        %v1662 = vunpack.c.h.b16 %v679
        %v1663 = vunpack.c.l.b16 %v680
        %v1664 = vunpack.c.h.b16 %v680
        %v1665 = vunpack.c.l.b16 %v681
        %v1666 = vunpack.c.h.b16 %v681
        %v1667 = vunpack.c.l.b16 %v682
        %v1668 = vunpack.c.h.b16 %v682
        %v1669 = vunpack.c.l.b16 %v683
        %v1670 = vunpack.c.h.b16 %v683
        %v1671 = vunpack.c.l.b16 %v684
        %v1672 = vunpack.c.h.b16 %v684
        %v1673 = vunpack.c.l.b16 %v685
        %v1674 = vunpack.c.h.b16 %v685
        %v1675 = vunpack.c.l.b16 %v686
        %v1676 = vunpack.c.h.b16 %v686
        %v1677 = vunpack.c.l.b16 %v687
        %v1678 = vunpack.c.h.b16 %v687
        %v1679 = vunpack.c.l.b16 %v688
        %v1680 = vunpack.c.h.b16 %v688
        %v1681 = vunpack.c.l.b16 %v689
        %v1682 = vunpack.c.h.b16 %v689
        %v1683 = vunpack.c.l.b16 %v690
        %v1684 = vunpack.c.h.b16 %v690
        %v1685 = vunpack.c.l.b16 %v691
        %v1686 = vunpack.c.h.b16 %v691
        %v1687 = vunpack.c.l.b16 %v692
        %v1688 = vunpack.c.h.b16 %v692
        %v1689 = vunpack.c.l.b16 %v693
        %v1690 = vunpack.c.h.b16 %v693
        %v1691 = vunpack.c.l.b16 %v694
        %v1692 = vunpack.c.h.b16 %v694
        %v1693 = vunpack.c.l.b16 %v695
        %v1694 = vunpack.c.h.b16 %v695
        %v1695 = vunpack.c.l.b16 %v696
        %v1696 = vunpack.c.h.b16 %v696
        %v1697 = vunpack.c.l.b16 %v697
        %v1698 = vunpack.c.h.b16 %v697
        %v1699 = vunpack.c.l.b16 %v698
        %v1700 = vunpack.c.h.b16 %v698
        %v1701 = vunpack.c.l.b16 %v699
        %v1702 = vunpack.c.h.b16 %v699
        %v1703 = vunpack.c.l.b16 %v700
        %v1704 = vunpack.c.h.b16 %v700
        %v1705 = vunpack.c.l.b16 %v701
        %v1706 = vunpack.c.h.b16 %v701
        %v1707 = vunpack.c.l.b16 %v702
        %v1708 = vunpack.c.h.b16 %v702
        %v1709 = vunpack.c.l.b16 %v703
        %v1710 = vunpack.c.h.b16 %v703
        %v1711 = vunpack.c.l.b16 %v704
        %v1712 = vunpack.c.h.b16 %v704
        %v1713 = vunpack.c.l.b16 %v705
        %v1714 = vunpack.c.h.b16 %v705
        %v1715 = vunpack.c.l.b16 %v706
        %v1716 = vunpack.c.h.b16 %v706
        %v1717 = vunpack.c.l.b16 %v707
        %v1718 = vunpack.c.h.b16 %v707
        %v1719 = vunpack.c.l.b16 %v708
        %v1720 = vunpack.c.h.b16 %v708
        %v1721 = vunpack.c.l.b16 %v709
        %v1722 = vunpack.c.h.b16 %v709
        %v1723 = vunpack.c.l.b16 %v710
        %v1724 = vunpack.c.h.b16 %v710
        %v1725 = vunpack.c.l.b16 %v711
        %v1726 = vunpack.c.h.b16 %v711
        %v1727 = vunpack.c.l.b16 %v712
        %v1728 = vunpack.c.h.b16 %v712
        %v1729 = vunpack.c.l.b16 %v713
        %v1730 = vunpack.c.h.b16 %v713
        %v1731 = vunpack.c.l.b16 %v714
        %v1732 = vunpack.c.h.b16 %v714
        %v1733 = vunpack.c.l.b16 %v715
        %v1734 = vunpack.c.h.b16 %v715
        %v1735 = vunpack.c.l.b16 %v716
        %v1736 = vunpack.c.h.b16 %v716
        %v1737 = vunpack.c.l.b16 %v717
        %v1738 = vunpack.c.h.b16 %v717
        %v1739 = vunpack.c.l.b16 %v718
        %v1740 = vunpack.c.h.b16 %v718
        %v1741 = vunpack.c.l.b16 %v719
        %v1742 = vunpack.c.h.b16 %v719
        %v1743 = vunpack.c.l.b16 %v720
        %v1744 = vunpack.c.h.b16 %v720
        %v1745 = vunpack.c.l.b16 %v721
        %v1746 = vunpack.c.h.b16 %v721
        %v1747 = vunpack.c.l.b16 %v722
        %v1748 = vunpack.c.h.b16 %v722
        %v1749 = vunpack.c.l.b16 %v723
        %v1750 = vunpack.c.h.b16 %v723
        %v1751 = vunpack.c.l.b16 %v724
        %v1752 = vunpack.c.h.b16 %v724
        %v1753 = vunpack.c.l.b16 %v725
        %v1754 = vunpack.c.h.b16 %v725
        %v1755 = vunpack.c.l.b16 %v726
        %v1756 = vunpack.c.h.b16 %v726
        %v1757 = vunpack.c.l.b16 %v727
        %v1758 = vunpack.c.h.b16 %v727
        %v1759 = vunpack.c.l.b16 %v728
        %v1760 = vunpack.c.h.b16 %v728
        %v1761 = vunpack.c.l.b16 %v729
        %v1762 = vunpack.c.h.b16 %v729
        %v1763 = vunpack.c.l.b16 %v730
        %v1764 = vunpack.c.h.b16 %v730
        %v1765 = vunpack.c.l.b16 %v731
        %v1766 = vunpack.c.h.b16 %v731
        %v1767 = vunpack.c.l.b16 %v732
        %v1768 = vunpack.c.h.b16 %v732
        %v1769 = vunpack.c.l.b16 %v733
        %v1770 = vunpack.c.h.b16 %v733
        %v1771 = vunpack.c.l.b16 %v734
        %v1772 = vunpack.c.h.b16 %v734
        %v1773 = vunpack.c.l.b16 %v735
        %v1774 = vunpack.c.h.b16 %v735
        %v1775 = vunpack.c.l.b16 %v736
        %v1776 = vunpack.c.h.b16 %v736
        %v1777 = vunpack.c.l.b16 %v737
        %v1778 = vunpack.c.h.b16 %v737
        %v1779 = vunpack.c.l.b16 %v738
        %v1780 = vunpack.c.h.b16 %v738
        %v1781 = vunpack.c.l.b16 %v739
        %v1782 = vunpack.c.h.b16 %v739
        %v1783 = vunpack.c.l.b16 %v740
        %v1784 = vunpack.c.h.b16 %v740
        %v1785 = vunpack.c.l.b16 %v741
        %v1786 = vunpack.c.h.b16 %v741
        %v1787 = vunpack.c.l.b16 %v742
        %v1788 = vunpack.c.h.b16 %v742
        %v1789 = vunpack.c.l.b16 %v743
        %v1790 = vunpack.c.h.b16 %v743
        %v1791 = vunpack.c.l.b16 %v744
        %v1792 = vunpack.c.h.b16 %v744
        %v1793 = vunpack.c.l.b16 %v745
        %v1794 = vunpack.c.h.b16 %v745
        %v1795 = vunpack.c.l.b16 %v746
        %v1796 = vunpack.c.h.b16 %v746
        %v1797 = vunpack.c.l.b16 %v747
        %v1798 = vunpack.c.h.b16 %v747
        %v1799 = vunpack.c.l.b16 %v748
        %v1800 = vunpack.c.h.b16 %v748
        %v1801 = vunpack.c.l.b16 %v749
        %v1802 = vunpack.c.h.b16 %v749
        %v1803 = vunpack.c.l.b16 %v750
        %v1804 = vunpack.c.h.b16 %v750
        %v1805 = vunpack.c.l.b16 %v751
        %v1806 = vunpack.c.h.b16 %v751
        %v1807 = vunpack.c.l.b16 %v752
        %v1808 = vunpack.c.h.b16 %v752
        %v1809 = vunpack.c.l.b16 %v753
        %v1810 = vunpack.c.h.b16 %v753
        %v1811 = vunpack.c.l.b16 %v754
        %v1812 = vunpack.c.h.b16 %v754
        %v1813 = vunpack.c.l.b16 %v755
        %v1814 = vunpack.c.h.b16 %v755
        %v1815 = vunpack.c.l.b16 %v756
        %v1816 = vunpack.c.h.b16 %v756
        %v1817 = vunpack.c.l.b16 %v757
        %v1818 = vunpack.c.h.b16 %v757
        %v1819 = vunpack.c.l.b16 %v758
        %v1820 = vunpack.c.h.b16 %v758
        %v1821 = vunpack.c.l.b16 %v759
        %v1822 = vunpack.c.h.b16 %v759
        %v1823 = vunpack.c.l.b16 %v760
        %v1824 = vunpack.c.h.b16 %v760
        %v1825 = vunpack.c.l.b16 %v761
        %v1826 = vunpack.c.h.b16 %v761
        %v1827 = vunpack.c.l.b16 %v762
        %v1828 = vunpack.c.h.b16 %v762
        %v1829 = vunpack.c.l.b16 %v763
        %v1830 = vunpack.c.h.b16 %v763
        %v1831 = vunpack.c.l.b16 %v764
        %v1832 = vunpack.c.h.b16 %v764
        %v1833 = vunpack.c.l.b16 %v765
        %v1834 = vunpack.c.h.b16 %v765
        %v1835 = vunpack.c.l.b16 %v766
        %v1836 = vunpack.c.h.b16 %v766
        %v1837 = vunpack.c.l.b16 %v767
        %v1838 = vunpack.c.h.b16 %v767
        %v1839 = vunpack.c.l.b16 %v768
        %v1840 = vunpack.c.h.b16 %v768
        %v1841 = vunpack.c.l.b16 %v769
        %v1842 = vunpack.c.h.b16 %v769
        %v1843 = vunpack.c.l.b16 %v770
        %v1844 = vunpack.c.h.b16 %v770
        %v1845 = vunpack.c.l.b16 %v771
        %v1846 = vunpack.c.h.b16 %v771
        %v1847 = vunpack.c.l.b16 %v772
        %v1848 = vunpack.c.h.b16 %v772
        %v1849 = vunpack.c.l.b16 %v773
        %v1850 = vunpack.c.h.b16 %v773
        %v1851 = vunpack.c.l.b16 %v774
        %v1852 = vunpack.c.h.b16 %v774
        %v1853 = vunpack.c.l.b16 %v775
        %v1854 = vunpack.c.h.b16 %v775
        %v1855 = vunpack.c.l.b16 %v776
        %v1856 = vunpack.c.h.b16 %v776
        %v1857 = vunpack.c.l.b16 %v777
        %v1858 = vunpack.c.h.b16 %v777
        %v1859 = vunpack.c.l.b16 %v778
        %v1860 = vunpack.c.h.b16 %v778
        %v1861 = vunpack.c.l.b16 %v779
        %v1862 = vunpack.c.h.b16 %v779
        %v1863 = vunpack.c.l.b16 %v780
        %v1864 = vunpack.c.h.b16 %v780
        %v1865 = vunpack.c.l.b16 %v781
        %v1866 = vunpack.c.h.b16 %v781
        %v1867 = vunpack.c.l.b16 %v782
        %v1868 = vunpack.c.h.b16 %v782
        %v1869 = vunpack.c.l.b16 %v783
        %v1870 = vunpack.c.h.b16 %v783
        %v1871 = vunpack.c.l.b16 %v784
        %v1872 = vunpack.c.h.b16 %v784
        %v1873 = vunpack.c.l.b16 %v785
        %v1874 = vunpack.c.h.b16 %v785
        %v1875 = vunpack.c.l.b16 %v786
        %v1876 = vunpack.c.h.b16 %v786
        %v1877 = vunpack.c.l.b16 %v787
        %v1878 = vunpack.c.h.b16 %v787
        %v1879 = vunpack.c.l.b16 %v788
        %v1880 = vunpack.c.h.b16 %v788
        %v1881 = vunpack.c.l.b16 %v789
        %v1882 = vunpack.c.h.b16 %v789
        %v1883 = vunpack.c.l.b16 %v790
        %v1884 = vunpack.c.h.b16 %v790
        %v1885 = vunpack.c.l.b16 %v791
        %v1886 = vunpack.c.h.b16 %v791
        %v1887 = vunpack.c.l.b16 %v792
        %v1888 = vunpack.c.h.b16 %v792
        %v1889 = vunpack.c.l.b16 %v793
        %v1890 = vunpack.c.h.b16 %v793
        %v1891 = vunpack.c.l.b16 %v794
        %v1892 = vunpack.c.h.b16 %v794
        %v1893 = vunpack.c.l.b16 %v795
        %v1894 = vunpack.c.h.b16 %v795
        %v1895 = vunpack.c.l.b16 %v796
        %v1896 = vunpack.c.h.b16 %v796
        %v1897 = vunpack.c.l.b16 %v797
        %v1898 = vunpack.c.h.b16 %v797
        %v1899 = vunpack.c.l.b16 %v798
        %v1900 = vunpack.c.h.b16 %v798
        %v1901 = vunpack.c.l.b16 %v799
        %v1902 = vunpack.c.h.b16 %v799
        %v1903 = vunpack.c.l.b16 %v800
        %v1904 = vunpack.c.h.b16 %v800
        %v1905 = vunpack.c.l.b16 %v801
        %v1906 = vunpack.c.h.b16 %v801
        %v1907 = vunpack.c.l.b16 %v802
        %v1908 = vunpack.c.h.b16 %v802
        %v1909 = vunpack.c.l.b16 %v803
        %v1910 = vunpack.c.h.b16 %v803
        %v1911 = vunpack.c.l.b16 %v804
        %v1912 = vunpack.c.h.b16 %v804
        %v1913 = vunpack.c.l.b16 %v805
        %v1914 = vunpack.c.h.b16 %v805
        %v1915 = vunpack.c.l.b16 %v806
        %v1916 = vunpack.c.h.b16 %v806
        %v1917 = vunpack.c.l.b16 %v807
        %v1918 = vunpack.c.h.b16 %v807
        %v1919 = vunpack.c.l.b16 %v808
        %v1920 = vunpack.c.h.b16 %v808
        %v1921 = vunpack.c.l.b16 %v809
        %v1922 = vunpack.c.h.b16 %v809
        %v1923 = vunpack.c.l.b16 %v810
        %v1924 = vunpack.c.h.b16 %v810
        %v1925 = vunpack.c.l.b16 %v811
        %v1926 = vunpack.c.h.b16 %v811
        %v1927 = vunpack.c.l.b16 %v812
        %v1928 = vunpack.c.h.b16 %v812
        %v1929 = vunpack.c.l.b16 %v813
        %v1930 = vunpack.c.h.b16 %v813
        %v1931 = vunpack.c.l.b16 %v814
        %v1932 = vunpack.c.h.b16 %v814
        %v1933 = vunpack.c.l.b16 %v815
        %v1934 = vunpack.c.h.b16 %v815
        %v1935 = vunpack.c.l.b16 %v816
        %v1936 = vunpack.c.h.b16 %v816
        %v1937 = vunpack.c.l.b16 %v817
        %v1938 = vunpack.c.h.b16 %v817
        %v1939 = vunpack.c.l.b16 %v818
        %v1940 = vunpack.c.h.b16 %v818
        %v1941 = vunpack.c.l.b16 %v819
        %v1942 = vunpack.c.h.b16 %v819
        %v1943 = vunpack.c.l.b16 %v820
        %v1944 = vunpack.c.h.b16 %v820
        %v1945 = vunpack.c.l.b16 %v821
        %v1946 = vunpack.c.h.b16 %v821
        %v1947 = vunpack.c.l.b16 %v822
        %v1948 = vunpack.c.h.b16 %v822
        %v1949 = vunpack.c.l.b16 %v823
        %v1950 = vunpack.c.h.b16 %v823
        %v1951 = vunpack.c.l.b16 %v824
        %v1952 = vunpack.c.h.b16 %v824
        %v1953 = vunpack.c.l.b16 %v825
        %v1954 = vunpack.c.h.b16 %v825
        %v1955 = vunpack.c.l.b16 %v826
        %v1956 = vunpack.c.h.b16 %v826
        %v1957 = vunpack.c.l.b16 %v827
        %v1958 = vunpack.c.h.b16 %v827
        %v1959 = vunpack.c.l.b16 %v828
        %v1960 = vunpack.c.h.b16 %v828
        %v1961 = vunpack.c.l.b16 %v829
        %v1962 = vunpack.c.h.b16 %v829
        %v1963 = vunpack.c.l.b16 %v830
        %v1964 = vunpack.c.h.b16 %v830
        %v1965 = vunpack.c.l.b16 %v831
        %v1966 = vunpack.c.h.b16 %v831
        %v1967 = vunpack.c.l.b16 %v832
        %v1968 = vunpack.c.h.b16 %v832
        %v1969 = vunpack.c.l.b16 %v833
        %v1970 = vunpack.c.h.b16 %v833
        %v1971 = vunpack.c.l.b16 %v834
        %v1972 = vunpack.c.h.b16 %v834
        %v1973 = vunpack.c.l.b16 %v835
        %v1974 = vunpack.c.h.b16 %v835
        %v1975 = vunpack.c.l.b16 %v836
        %v1976 = vunpack.c.h.b16 %v836
        %v1977 = vunpack.c.l.b16 %v837
        %v1978 = vunpack.c.h.b16 %v837
        %v1979 = vunpack.c.l.b16 %v838
        %v1980 = vunpack.c.h.b16 %v838
        %v1981 = vunpack.c.l.b16 %v839
        %v1982 = vunpack.c.h.b16 %v839
        %v1983 = vunpack.c.l.b16 %v840
        %v1984 = vunpack.c.h.b16 %v840
        %v1985 = vunpack.c.l.b16 %v841
        %v1986 = vunpack.c.h.b16 %v841
        %v1987 = vunpack.c.l.b16 %v842
        %v1988 = vunpack.c.h.b16 %v842
        %v1989 = vunpack.c.l.b16 %v843
        %v1990 = vunpack.c.h.b16 %v843
        %v1991 = vunpack.c.l.b16 %v844
        %v1992 = vunpack.c.h.b16 %v844
        %v1993 = vunpack.c.l.b16 %v845
        %v1994 = vunpack.c.h.b16 %v845
        %v1995 = vunpack.c.l.b16 %v846
        %v1996 = vunpack.c.h.b16 %v846
        %v1997 = vunpack.c.l.b16 %v847
        %v1998 = vunpack.c.h.b16 %v847
        %v1999 = vunpack.c.l.b16 %v848
        %v2000 = vunpack.c.h.b16 %v848
        %v2001 = vunpack.c.l.b16 %v849
        %v2002 = vunpack.c.h.b16 %v849
        %v2003 = vunpack.c.l.b16 %v850
        %v2004 = vunpack.c.h.b16 %v850
        %v2005 = vunpack.c.l.b16 %v851
        %v2006 = vunpack.c.h.b16 %v851
        %v2007 = vunpack.c.l.b16 %v852
        %v2008 = vunpack.c.h.b16 %v852
        %v2009 = vunpack.c.l.b16 %v853
        %v2010 = vunpack.c.h.b16 %v853
        %v2011 = vunpack.c.l.b16 %v854
        %v2012 = vunpack.c.h.b16 %v854
        %v2013 = vunpack.c.l.b16 %v855
        %v2014 = vunpack.c.h.b16 %v855
        %v2015 = vunpack.c.l.b16 %v856
        %v2016 = vunpack.c.h.b16 %v856
        %v2017 = vunpack.c.l.b16 %v857
        %v2018 = vunpack.c.h.b16 %v857
        %v2019 = vunpack.c.l.b16 %v858
        %v2020 = vunpack.c.h.b16 %v858
        %v2021 = vunpack.c.l.b16 %v859
        %v2022 = vunpack.c.h.b16 %v859
        %v2023 = vunpack.c.l.b16 %v860
        %v2024 = vunpack.c.h.b16 %v860
        %v2025 = vunpack.c.l.b16 %v861
        %v2026 = vunpack.c.h.b16 %v861
        %v2027 = vunpack.c.l.b16 %v862
        %v2028 = vunpack.c.h.b16 %v862
        %v2029 = vunpack.c.l.b16 %v863
        %v2030 = vunpack.c.h.b16 %v863
        %v2031 = vunpack.c.l.b16 %v864
        %v2032 = vunpack.c.h.b16 %v864
        %v2033 = vunpack.c.l.b16 %v865
        %v2034 = vunpack.c.h.b16 %v865
        %v2035 = vunpack.c.l.b16 %v866
        %v2036 = vunpack.c.h.b16 %v866
        %v2037 = vunpack.c.l.b16 %v867
        %v2038 = vunpack.c.h.b16 %v867
        %v2039 = vunpack.c.l.b16 %v868
        %v2040 = vunpack.c.h.b16 %v868
        %v2041 = vunpack.c.l.b16 %v869
        %v2042 = vunpack.c.h.b16 %v869
        %v2043 = vunpack.c.l.b16 %v870
        %v2044 = vunpack.c.h.b16 %v870
        %v2045 = vunpack.c.l.b16 %v871
        %v2046 = vunpack.c.h.b16 %v871
        %v2047 = vunpack.c.l.b16 %v872
        %v2048 = vunpack.c.h.b16 %v872
        %v2049 = vunpack.c.l.b16 %v873
        %v2050 = vunpack.c.h.b16 %v873
        %v2051 = vunpack.c.l.b16 %v874
        %v2052 = vunpack.c.h.b16 %v874
        %v2053 = vunpack.c.l.b16 %v875
        %v2054 = vunpack.c.h.b16 %v875
        %v2055 = vunpack.c.l.b16 %v876
        %v2056 = vunpack.c.h.b16 %v876
        %v2057 = vunpack.c.l.b16 %v877
        %v2058 = vunpack.c.h.b16 %v877
        %v2059 = vunpack.c.l.b16 %v878
        %v2060 = vunpack.c.h.b16 %v878
        %v2061 = vunpack.c.l.b16 %v879
        %v2062 = vunpack.c.h.b16 %v879
        %v2063 = vunpack.c.l.b16 %v880
        %v2064 = vunpack.c.h.b16 %v880
        %v2065 = vunpack.c.l.b16 %v881
        %v2066 = vunpack.c.h.b16 %v881
        %v2067 = vunpack.c.l.b16 %v882
        %v2068 = vunpack.c.h.b16 %v882
        %v2069 = vunpack.c.l.b16 %v883
        %v2070 = vunpack.c.h.b16 %v883
        %v2071 = vunpack.c.l.b16 %v884
        %v2072 = vunpack.c.h.b16 %v884
        %v2073 = vunpack.c.l.b16 %v885
        %v2074 = vunpack.c.h.b16 %v885
        %v2075 = vunpack.c.l.b16 %v886
        %v2076 = vunpack.c.h.b16 %v886
        %v2077 = vunpack.c.l.b16 %v887
        %v2078 = vunpack.c.h.b16 %v887
        %v2079 = vunpack.c.l.b16 %v888
        %v2080 = vunpack.c.h.b16 %v888
        %v2081 = vunpack.c.l.b16 %v889
        %v2082 = vunpack.c.h.b16 %v889
        %v2083 = vunpack.c.l.b16 %v890
        %v2084 = vunpack.c.h.b16 %v890
        %v2085 = vunpack.c.l.b16 %v891
        %v2086 = vunpack.c.h.b16 %v891
        %v2087 = vunpack.c.l.b16 %v892
        %v2088 = vunpack.c.h.b16 %v892
        %v2089 = vunpack.c.l.b16 %v893
        %v2090 = vunpack.c.h.b16 %v893
        %v2091 = vunpack.c.l.b16 %v894
        %v2092 = vunpack.c.h.b16 %v894
        %v2093 = vunpack.c.l.b16 %v895
        %v2094 = vunpack.c.h.b16 %v895
        %v2095 = vunpack.c.l.b16 %v896
        %v2096 = vunpack.c.h.b16 %v896
        %v2097 = vunpack.c.l.b16 %v897
        %v2098 = vunpack.c.h.b16 %v897
        %v2099 = vunpack.c.l.b16 %v898
        %v2100 = vunpack.c.h.b16 %v898
        %v2101 = vunpack.c.l.b16 %v899
        %v2102 = vunpack.c.h.b16 %v899
        %v2103 = vunpack.c.l.b16 %v900
        %v2104 = vunpack.c.h.b16 %v900
        %v2105 = vunpack.c.l.b16 %v901
        %v2106 = vunpack.c.h.b16 %v901
        %v2107 = vunpack.c.l.b16 %v902
        %v2108 = vunpack.c.h.b16 %v902
        %v2109 = vunpack.c.l.b16 %v903
        %v2110 = vunpack.c.h.b16 %v903
        %v2111 = vunpack.c.l.b16 %v904
        %v2112 = vunpack.c.h.b16 %v904
        %v2113 = vunpack.c.l.b16 %v905
        %v2114 = vunpack.c.h.b16 %v905
        %v2115 = vunpack.c.l.b16 %v906
        %v2116 = vunpack.c.h.b16 %v906
        %v2117 = vunpack.c.l.b16 %v907
        %v2118 = vunpack.c.h.b16 %v907
        %v2119 = vunpack.c.l.b16 %v908
        %v2120 = vunpack.c.h.b16 %v908
        %v2121 = vunpack.c.l.b16 %v909
        %v2122 = vunpack.c.h.b16 %v909
        %v2123 = vunpack.c.l.b16 %v910
        %v2124 = vunpack.c.h.b16 %v910
        %v2125 = vunpack.c.l.b16 %v911
        %v2126 = vunpack.c.h.b16 %v911
        %v2127 = vunpack.c.l.b16 %v912
        %v2128 = vunpack.c.h.b16 %v912
        %v2129 = vpack.c.b16 %v1373, %v1361
        %v2130 = vpack.c.b16 %v1374, %v1362
        %v2131 = vpack.c.b16 %v1375, %v1363
        %v2132 = vpack.c.b16 %v1376, %v1364
        %v2133 = vpack.c.b16 %v1377, %v1365
        %v2134 = vpack.c.b16 %v1378, %v1366
        %v2135 = vpack.c.b16 %v1379, %v1367
        %v2136 = vpack.c.b16 %v1380, %v1368
        %v2137 = vpack.c.b16 %v1381, %v1369
        %v2138 = vpack.c.b16 %v1382, %v1370
        %v2139 = vpack.c.b16 %v1383, %v1371
        %v2140 = vpack.c.b16 %v1384, %v1372
        %v2141 = vpack.c.b16 %v1397, %v1385
        %v2142 = vpack.c.b16 %v1398, %v1386
        %v2143 = vpack.c.b16 %v1399, %v1387
        %v2144 = vpack.c.b16 %v1400, %v1388
        %v2145 = vpack.c.b16 %v1401, %v1389
        %v2146 = vpack.c.b16 %v1402, %v1390
        %v2147 = vpack.c.b16 %v1403, %v1391
        %v2148 = vpack.c.b16 %v1404, %v1392
        %v2149 = vpack.c.b16 %v1405, %v1393
        %v2150 = vpack.c.b16 %v1406, %v1394
        %v2151 = vpack.c.b16 %v1407, %v1395
        %v2152 = vpack.c.b16 %v1408, %v1396
        %v2153 = vpack.c.b16 %v1421, %v1409
        %v2154 = vpack.c.b16 %v1422, %v1410
        %v2155 = vpack.c.b16 %v1423, %v1411
        %v2156 = vpack.c.b16 %v1424, %v1412
        %v2157 = vpack.c.b16 %v1425, %v1413
        %v2158 = vpack.c.b16 %v1426, %v1414
        %v2159 = vpack.c.b16 %v1427, %v1415
        %v2160 = vpack.c.b16 %v1428, %v1416
        %v2161 = vpack.c.b16 %v1429, %v1417
        %v2162 = vpack.c.b16 %v1430, %v1418
        %v2163 = vpack.c.b16 %v1431, %v1419
        %v2164 = vpack.c.b16 %v1432, %v1420
        %v2165 = vpack.c.b16 %v1445, %v1433
        %v2166 = vpack.c.b16 %v1446, %v1434
        %v2167 = vpack.c.b16 %v1447, %v1435
        %v2168 = vpack.c.b16 %v1448, %v1436
        %v2169 = vpack.c.b16 %v1449, %v1437
        %v2170 = vpack.c.b16 %v1450, %v1438
        %v2171 = vpack.c.b16 %v1451, %v1439
        %v2172 = vpack.c.b16 %v1452, %v1440
        %v2173 = vpack.c.b16 %v1453, %v1441
        %v2174 = vpack.c.b16 %v1454, %v1442
        %v2175 = vpack.c.b16 %v1455, %v1443
        %v2176 = vpack.c.b16 %v1456, %v1444
        %v2177 = vpack.c.b16 %v1469, %v1457
        %v2178 = vpack.c.b16 %v1470, %v1458
        %v2179 = vpack.c.b16 %v1471, %v1459
        %v2180 = vpack.c.b16 %v1472, %v1460
        %v2181 = vpack.c.b16 %v1473, %v1461
        %v2182 = vpack.c.b16 %v1474, %v1462
        %v2183 = vpack.c.b16 %v1475, %v1463
        %v2184 = vpack.c.b16 %v1476, %v1464
        %v2185 = vpack.c.b16 %v1477, %v1465
        %v2186 = vpack.c.b16 %v1478, %v1466
        %v2187 = vpack.c.b16 %v1479, %v1467
        %v2188 = vpack.c.b16 %v1480, %v1468
        %v2189 = vpack.c.b16 %v1493, %v1481
        %v2190 = vpack.c.b16 %v1494, %v1482
        %v2191 = vpack.c.b16 %v1495, %v1483
        %v2192 = vpack.c.b16 %v1496, %v1484
        %v2193 = vpack.c.b16 %v1497, %v1485
        %v2194 = vpack.c.b16 %v1498, %v1486
        %v2195 = vpack.c.b16 %v1499, %v1487
        %v2196 = vpack.c.b16 %v1500, %v1488
        %v2197 = vpack.c.b16 %v1501, %v1489
        %v2198 = vpack.c.b16 %v1502, %v1490
        %v2199 = vpack.c.b16 %v1503, %v1491
        %v2200 = vpack.c.b16 %v1504, %v1492
        %v2201 = vpack.c.b16 %v1517, %v1505
        %v2202 = vpack.c.b16 %v1518, %v1506
        %v2203 = vpack.c.b16 %v1519, %v1507
        %v2204 = vpack.c.b16 %v1520, %v1508
        %v2205 = vpack.c.b16 %v1521, %v1509
        %v2206 = vpack.c.b16 %v1522, %v1510
        %v2207 = vpack.c.b16 %v1523, %v1511
        %v2208 = vpack.c.b16 %v1524, %v1512
        %v2209 = vpack.c.b16 %v1525, %v1513
        %v2210 = vpack.c.b16 %v1526, %v1514
        %v2211 = vpack.c.b16 %v1527, %v1515
        %v2212 = vpack.c.b16 %v1528, %v1516
        %v2213 = vpack.c.b16 %v1541, %v1529
        %v2214 = vpack.c.b16 %v1542, %v1530
        %v2215 = vpack.c.b16 %v1543, %v1531
        %v2216 = vpack.c.b16 %v1544, %v1532
        %v2217 = vpack.c.b16 %v1545, %v1533
        %v2218 = vpack.c.b16 %v1546, %v1534
        %v2219 = vpack.c.b16 %v1547, %v1535
        %v2220 = vpack.c.b16 %v1548, %v1536
        %v2221 = vpack.c.b16 %v1549, %v1537
        %v2222 = vpack.c.b16 %v1550, %v1538
        %v2223 = vpack.c.b16 %v1551, %v1539
        %v2224 = vpack.c.b16 %v1552, %v1540
        %v2225 = vpack.c.b16 %v1565, %v1553
        %v2226 = vpack.c.b16 %v1566, %v1554
        %v2227 = vpack.c.b16 %v1567, %v1555
        %v2228 = vpack.c.b16 %v1568, %v1556
        %v2229 = vpack.c.b16 %v1569, %v1557
        %v2230 = vpack.c.b16 %v1570, %v1558
        %v2231 = vpack.c.b16 %v1571, %v1559
        %v2232 = vpack.c.b16 %v1572, %v1560
        %v2233 = vpack.c.b16 %v1573, %v1561
        %v2234 = vpack.c.b16 %v1574, %v1562
        %v2235 = vpack.c.b16 %v1575, %v1563
        %v2236 = vpack.c.b16 %v1576, %v1564
        %v2237 = vpack.c.b16 %v1589, %v1577
        %v2238 = vpack.c.b16 %v1590, %v1578
        %v2239 = vpack.c.b16 %v1591, %v1579
        %v2240 = vpack.c.b16 %v1592, %v1580
        %v2241 = vpack.c.b16 %v1593, %v1581
        %v2242 = vpack.c.b16 %v1594, %v1582
        %v2243 = vpack.c.b16 %v1595, %v1583
        %v2244 = vpack.c.b16 %v1596, %v1584
        %v2245 = vpack.c.b16 %v1597, %v1585
        %v2246 = vpack.c.b16 %v1598, %v1586
        %v2247 = vpack.c.b16 %v1599, %v1587
        %v2248 = vpack.c.b16 %v1600, %v1588
        %v2249 = vpack.c.b16 %v1613, %v1601
        %v2250 = vpack.c.b16 %v1614, %v1602
        %v2251 = vpack.c.b16 %v1615, %v1603
        %v2252 = vpack.c.b16 %v1616, %v1604
        %v2253 = vpack.c.b16 %v1617, %v1605
        %v2254 = vpack.c.b16 %v1618, %v1606
        %v2255 = vpack.c.b16 %v1619, %v1607
        %v2256 = vpack.c.b16 %v1620, %v1608
        %v2257 = vpack.c.b16 %v1621, %v1609
        %v2258 = vpack.c.b16 %v1622, %v1610
        %v2259 = vpack.c.b16 %v1623, %v1611
        %v2260 = vpack.c.b16 %v1624, %v1612
        %v2261 = vpack.c.b16 %v1637, %v1625
        %v2262 = vpack.c.b16 %v1638, %v1626
        %v2263 = vpack.c.b16 %v1639, %v1627
        %v2264 = vpack.c.b16 %v1640, %v1628
        %v2265 = vpack.c.b16 %v1641, %v1629
        %v2266 = vpack.c.b16 %v1642, %v1630
        %v2267 = vpack.c.b16 %v1643, %v1631
        %v2268 = vpack.c.b16 %v1644, %v1632
        %v2269 = vpack.c.b16 %v1645, %v1633
        %v2270 = vpack.c.b16 %v1646, %v1634
        %v2271 = vpack.c.b16 %v1647, %v1635
        %v2272 = vpack.c.b16 %v1648, %v1636
        %v2273 = vpack.c.b16 %v1661, %v1649
        %v2274 = vpack.c.b16 %v1662, %v1650
        %v2275 = vpack.c.b16 %v1663, %v1651
        %v2276 = vpack.c.b16 %v1664, %v1652
        %v2277 = vpack.c.b16 %v1665, %v1653
        %v2278 = vpack.c.b16 %v1666, %v1654
        %v2279 = vpack.c.b16 %v1667, %v1655
        %v2280 = vpack.c.b16 %v1668, %v1656
        %v2281 = vpack.c.b16 %v1669, %v1657
        %v2282 = vpack.c.b16 %v1670, %v1658
        %v2283 = vpack.c.b16 %v1671, %v1659
        %v2284 = vpack.c.b16 %v1672, %v1660
        %v2285 = vpack.c.b16 %v1685, %v1673
        %v2286 = vpack.c.b16 %v1686, %v1674
        %v2287 = vpack.c.b16 %v1687, %v1675
        %v2288 = vpack.c.b16 %v1688, %v1676
        %v2289 = vpack.c.b16 %v1689, %v1677
        %v2290 = vpack.c.b16 %v1690, %v1678
        %v2291 = vpack.c.b16 %v1691, %v1679
        %v2292 = vpack.c.b16 %v1692, %v1680
        %v2293 = vpack.c.b16 %v1693, %v1681
        %v2294 = vpack.c.b16 %v1694, %v1682
        %v2295 = vpack.c.b16 %v1695, %v1683
        %v2296 = vpack.c.b16 %v1696, %v1684
        %v2297 = vpack.c.b16 %v1709, %v1697
        %v2298 = vpack.c.b16 %v1710, %v1698
        %v2299 = vpack.c.b16 %v1711, %v1699
        %v2300 = vpack.c.b16 %v1712, %v1700
        %v2301 = vpack.c.b16 %v1713, %v1701
        %v2302 = vpack.c.b16 %v1714, %v1702
        %v2303 = vpack.c.b16 %v1715, %v1703
        %v2304 = vpack.c.b16 %v1716, %v1704
        %v2305 = vpack.c.b16 %v1717, %v1705
        %v2306 = vpack.c.b16 %v1718, %v1706
        %v2307 = vpack.c.b16 %v1719, %v1707
        %v2308 = vpack.c.b16 %v1720, %v1708
        %v2309 = vpack.c.b16 %v1733, %v1721
        %v2310 = vpack.c.b16 %v1734, %v1722
        %v2311 = vpack.c.b16 %v1735, %v1723
        %v2312 = vpack.c.b16 %v1736, %v1724
        %v2313 = vpack.c.b16 %v1737, %v1725
        %v2314 = vpack.c.b16 %v1738, %v1726
        %v2315 = vpack.c.b16 %v1739, %v1727
        %v2316 = vpack.c.b16 %v1740, %v1728
        %v2317 = vpack.c.b16 %v1741, %v1729
        %v2318 = vpack.c.b16 %v1742, %v1730
        %v2319 = vpack.c.b16 %v1743, %v1731
        %v2320 = vpack.c.b16 %v1744, %v1732
        %v2321 = vpack.c.b16 %v1757, %v1745
        %v2322 = vpack.c.b16 %v1758, %v1746
        %v2323 = vpack.c.b16 %v1759, %v1747
        %v2324 = vpack.c.b16 %v1760, %v1748
        %v2325 = vpack.c.b16 %v1761, %v1749
        %v2326 = vpack.c.b16 %v1762, %v1750
        %v2327 = vpack.c.b16 %v1763, %v1751
        %v2328 = vpack.c.b16 %v1764, %v1752
        %v2329 = vpack.c.b16 %v1765, %v1753
        %v2330 = vpack.c.b16 %v1766, %v1754
        %v2331 = vpack.c.b16 %v1767, %v1755
        %v2332 = vpack.c.b16 %v1768, %v1756
        %v2333 = vpack.c.b16 %v1781, %v1769
        %v2334 = vpack.c.b16 %v1782, %v1770
        %v2335 = vpack.c.b16 %v1783, %v1771
        %v2336 = vpack.c.b16 %v1784, %v1772
        %v2337 = vpack.c.b16 %v1785, %v1773
        %v2338 = vpack.c.b16 %v1786, %v1774
        %v2339 = vpack.c.b16 %v1787, %v1775
        %v2340 = vpack.c.b16 %v1788, %v1776
        %v2341 = vpack.c.b16 %v1789, %v1777
        %v2342 = vpack.c.b16 %v1790, %v1778
        %v2343 = vpack.c.b16 %v1791, %v1779
        %v2344 = vpack.c.b16 %v1792, %v1780
        %v2345 = vpack.c.b16 %v1805, %v1793
        %v2346 = vpack.c.b16 %v1806, %v1794
        %v2347 = vpack.c.b16 %v1807, %v1795
        %v2348 = vpack.c.b16 %v1808, %v1796
        %v2349 = vpack.c.b16 %v1809, %v1797
        %v2350 = vpack.c.b16 %v1810, %v1798
        %v2351 = vpack.c.b16 %v1811, %v1799
        %v2352 = vpack.c.b16 %v1812, %v1800
        %v2353 = vpack.c.b16 %v1813, %v1801
        %v2354 = vpack.c.b16 %v1814, %v1802
        %v2355 = vpack.c.b16 %v1815, %v1803
        %v2356 = vpack.c.b16 %v1816, %v1804
        %v2357 = vpack.c.b16 %v1829, %v1817
        %v2358 = vpack.c.b16 %v1830, %v1818
        %v2359 = vpack.c.b16 %v1831, %v1819
        %v2360 = vpack.c.b16 %v1832, %v1820
        %v2361 = vpack.c.b16 %v1833, %v1821
        %v2362 = vpack.c.b16 %v1834, %v1822
        %v2363 = vpack.c.b16 %v1835, %v1823
        %v2364 = vpack.c.b16 %v1836, %v1824
        %v2365 = vpack.c.b16 %v1837, %v1825
        %v2366 = vpack.c.b16 %v1838, %v1826
        %v2367 = vpack.c.b16 %v1839, %v1827
        %v2368 = vpack.c.b16 %v1840, %v1828
        %v2369 = vpack.c.b16 %v1853, %v1841
        %v2370 = vpack.c.b16 %v1854, %v1842
        %v2371 = vpack.c.b16 %v1855, %v1843
        %v2372 = vpack.c.b16 %v1856, %v1844
        %v2373 = vpack.c.b16 %v1857, %v1845
        %v2374 = vpack.c.b16 %v1858, %v1846
        %v2375 = vpack.c.b16 %v1859, %v1847
        %v2376 = vpack.c.b16 %v1860, %v1848
        %v2377 = vpack.c.b16 %v1861, %v1849
        %v2378 = vpack.c.b16 %v1862, %v1850
        %v2379 = vpack.c.b16 %v1863, %v1851
        %v2380 = vpack.c.b16 %v1864, %v1852
        %v2381 = vpack.c.b16 %v1877, %v1865
        %v2382 = vpack.c.b16 %v1878, %v1866
        %v2383 = vpack.c.b16 %v1879, %v1867
        %v2384 = vpack.c.b16 %v1880, %v1868
        %v2385 = vpack.c.b16 %v1881, %v1869
        %v2386 = vpack.c.b16 %v1882, %v1870
        %v2387 = vpack.c.b16 %v1883, %v1871
        %v2388 = vpack.c.b16 %v1884, %v1872
        %v2389 = vpack.c.b16 %v1885, %v1873
        %v2390 = vpack.c.b16 %v1886, %v1874
        %v2391 = vpack.c.b16 %v1887, %v1875
        %v2392 = vpack.c.b16 %v1888, %v1876
        %v2393 = vpack.c.b16 %v1901, %v1889
        %v2394 = vpack.c.b16 %v1902, %v1890
        %v2395 = vpack.c.b16 %v1903, %v1891
        %v2396 = vpack.c.b16 %v1904, %v1892
        %v2397 = vpack.c.b16 %v1905, %v1893
        %v2398 = vpack.c.b16 %v1906, %v1894
        %v2399 = vpack.c.b16 %v1907, %v1895
        %v2400 = vpack.c.b16 %v1908, %v1896
        %v2401 = vpack.c.b16 %v1909, %v1897
        %v2402 = vpack.c.b16 %v1910, %v1898
        %v2403 = vpack.c.b16 %v1911, %v1899
        %v2404 = vpack.c.b16 %v1912, %v1900
        %v2405 = vpack.c.b16 %v1925, %v1913
        %v2406 = vpack.c.b16 %v1926, %v1914
        %v2407 = vpack.c.b16 %v1927, %v1915
        %v2408 = vpack.c.b16 %v1928, %v1916
        %v2409 = vpack.c.b16 %v1929, %v1917
        %v2410 = vpack.c.b16 %v1930, %v1918
        %v2411 = vpack.c.b16 %v1931, %v1919
        %v2412 = vpack.c.b16 %v1932, %v1920
        %v2413 = vpack.c.b16 %v1933, %v1921
        %v2414 = vpack.c.b16 %v1934, %v1922
        %v2415 = vpack.c.b16 %v1935, %v1923
        %v2416 = vpack.c.b16 %v1936, %v1924
        %v2417 = vpack.c.b16 %v1949, %v1937
        %v2418 = vpack.c.b16 %v1950, %v1938
        %v2419 = vpack.c.b16 %v1951, %v1939
        %v2420 = vpack.c.b16 %v1952, %v1940
        %v2421 = vpack.c.b16 %v1953, %v1941
        %v2422 = vpack.c.b16 %v1954, %v1942
        %v2423 = vpack.c.b16 %v1955, %v1943
        %v2424 = vpack.c.b16 %v1956, %v1944
        %v2425 = vpack.c.b16 %v1957, %v1945
        %v2426 = vpack.c.b16 %v1958, %v1946
        %v2427 = vpack.c.b16 %v1959, %v1947
        %v2428 = vpack.c.b16 %v1960, %v1948
        %v2429 = vpack.c.b16 %v1973, %v1961
        %v2430 = vpack.c.b16 %v1974, %v1962
        %v2431 = vpack.c.b16 %v1975, %v1963
        %v2432 = vpack.c.b16 %v1976, %v1964
        %v2433 = vpack.c.b16 %v1977, %v1965
        %v2434 = vpack.c.b16 %v1978, %v1966
        %v2435 = vpack.c.b16 %v1979, %v1967
        %v2436 = vpack.c.b16 %v1980, %v1968
        %v2437 = vpack.c.b16 %v1981, %v1969
        %v2438 = vpack.c.b16 %v1982, %v1970
        %v2439 = vpack.c.b16 %v1983, %v1971
        %v2440 = vpack.c.b16 %v1984, %v1972
        %v2441 = vpack.c.b16 %v1997, %v1985
        %v2442 = vpack.c.b16 %v1998, %v1986
        %v2443 = vpack.c.b16 %v1999, %v1987
        %v2444 = vpack.c.b16 %v2000, %v1988
        %v2445 = vpack.c.b16 %v2001, %v1989
        %v2446 = vpack.c.b16 %v2002, %v1990
        %v2447 = vpack.c.b16 %v2003, %v1991
        %v2448 = vpack.c.b16 %v2004, %v1992
        %v2449 = vpack.c.b16 %v2005, %v1993
        %v2450 = vpack.c.b16 %v2006, %v1994
        %v2451 = vpack.c.b16 %v2007, %v1995
        %v2452 = vpack.c.b16 %v2008, %v1996
        %v2453 = vpack.c.b16 %v2021, %v2009
        %v2454 = vpack.c.b16 %v2022, %v2010
        %v2455 = vpack.c.b16 %v2023, %v2011
        %v2456 = vpack.c.b16 %v2024, %v2012
        %v2457 = vpack.c.b16 %v2025, %v2013
        %v2458 = vpack.c.b16 %v2026, %v2014
        %v2459 = vpack.c.b16 %v2027, %v2015
        %v2460 = vpack.c.b16 %v2028, %v2016
        %v2461 = vpack.c.b16 %v2029, %v2017
        %v2462 = vpack.c.b16 %v2030, %v2018
        %v2463 = vpack.c.b16 %v2031, %v2019
        %v2464 = vpack.c.b16 %v2032, %v2020
        %v2465 = vpack.c.b16 %v2045, %v2033
        %v2466 = vpack.c.b16 %v2046, %v2034
        %v2467 = vpack.c.b16 %v2047, %v2035
        %v2468 = vpack.c.b16 %v2048, %v2036
        %v2469 = vpack.c.b16 %v2049, %v2037
        %v2470 = vpack.c.b16 %v2050, %v2038
        %v2471 = vpack.c.b16 %v2051, %v2039
        %v2472 = vpack.c.b16 %v2052, %v2040
        %v2473 = vpack.c.b16 %v2053, %v2041
        %v2474 = vpack.c.b16 %v2054, %v2042
        %v2475 = vpack.c.b16 %v2055, %v2043
        %v2476 = vpack.c.b16 %v2056, %v2044
        %v2477 = vpack.c.b16 %v2069, %v2057
        %v2478 = vpack.c.b16 %v2070, %v2058
        %v2479 = vpack.c.b16 %v2071, %v2059
        %v2480 = vpack.c.b16 %v2072, %v2060
        %v2481 = vpack.c.b16 %v2073, %v2061
        %v2482 = vpack.c.b16 %v2074, %v2062
        %v2483 = vpack.c.b16 %v2075, %v2063
        %v2484 = vpack.c.b16 %v2076, %v2064
        %v2485 = vpack.c.b16 %v2077, %v2065
        %v2486 = vpack.c.b16 %v2078, %v2066
        %v2487 = vpack.c.b16 %v2079, %v2067
        %v2488 = vpack.c.b16 %v2080, %v2068
        %v2489 = vpack.c.b16 %v2093, %v2081
        %v2490 = vpack.c.b16 %v2094, %v2082
        %v2491 = vpack.c.b16 %v2095, %v2083
        %v2492 = vpack.c.b16 %v2096, %v2084
        %v2493 = vpack.c.b16 %v2097, %v2085
        %v2494 = vpack.c.b16 %v2098, %v2086
        %v2495 = vpack.c.b16 %v2099, %v2087
        %v2496 = vpack.c.b16 %v2100, %v2088
        %v2497 = vpack.c.b16 %v2101, %v2089
        %v2498 = vpack.c.b16 %v2102, %v2090
        %v2499 = vpack.c.b16 %v2103, %v2091
        %v2500 = vpack.c.b16 %v2104, %v2092
        %v2501 = vpack.c.b16 %v2117, %v2105
        %v2502 = vpack.c.b16 %v2118, %v2106
        %v2503 = vpack.c.b16 %v2119, %v2107
        %v2504 = vpack.c.b16 %v2120, %v2108
        %v2505 = vpack.c.b16 %v2121, %v2109
        %v2506 = vpack.c.b16 %v2122, %v2110
        %v2507 = vpack.c.b16 %v2123, %v2111
        %v2508 = vpack.c.b16 %v2124, %v2112
        %v2509 = vpack.c.b16 %v2125, %v2113
        %v2510 = vpack.c.b16 %v2126, %v2114
        %v2511 = vpack.c.b16 %v2127, %v2115
        %v2512 = vpack.c.b16 %v2128, %v2116
        %2897 = vmatprep.subr.bf16.mxu0 %v2214
        %2898 = vmatpush1.bf16.msra.mxu0 %v2213
        %2899 = vmatprep.subr.bf16.mxu0 %v2202
        %2900 = vmatpush1.bf16.msra.mxu0 %v2201
        %2901 = vmatprep.subr.bf16.mxu0 %v2190
        %2902 = vmatpush1.bf16.msra.mxu0 %v2189
        %2903 = vmatprep.subr.bf16.mxu0 %v2178
        %2904 = vmatpush1.bf16.msra.mxu0 %v2177
        %2905 = vmatprep.subr.bf16.mxu0 %v2166
        %2906 = vmatpush1.bf16.msra.mxu0 %v2165
        %2907 = vmatprep.subr.bf16.mxu0 %v2154
        %2908 = vmatpush1.bf16.msra.mxu0 %v2153
        %2909 = vmatprep.subr.bf16.mxu0 %v2142
        %2910 = vmatpush1.bf16.msra.mxu0 %v2141
        %2911 = vmatprep.subr.bf16.mxu0 %v2130
        %2912 = vmatpush1.bf16.msra.mxu0 %v2129
        %2913 = vmatprep.subr.bf16.mxu0 %v2310
        %2914 = vmatpush2.bf16.msra.mxu0 %v2309
        %2915 = vmatprep.subr.bf16.mxu0 %v2298
        %2916 = vmatpush2.bf16.msra.mxu0 %v2297
        %2917 = vmatprep.subr.bf16.mxu0 %v2286
        %2918 = vmatpush2.bf16.msra.mxu0 %v2285
        %2919 = vmatprep.subr.bf16.mxu0 %v2274
        %2920 = vmatpush2.bf16.msra.mxu0 %v2273
        %2921 = vmatprep.subr.bf16.mxu0 %v2262
        %2922 = vmatpush2.bf16.msra.mxu0 %v2261
        %2923 = vmatprep.subr.bf16.mxu0 %v2250
        %2924 = vmatpush2.bf16.msra.mxu0 %v2249
        %2925 = vmatprep.subr.bf16.mxu0 %v2238
        %2926 = vmatpush2.bf16.msra.mxu0 %v2237
        %2927 = vmatprep.subr.bf16.mxu0 %v2226
        %2928 = vmatpush2.bf16.msra.mxu0 %v2225
        %2929 = vmatprep.mubr.bf16.mxu0 %v526
        %2930 = vmatmul.mubr.bf16.gmra.mxu0 %v525
        %v2931 = vpop.f32.mrf.mxu0
        %v2932 = vadd.f32 %v920, %v2931
        %v2933 = vpop.f32.mrf.mxu0
        %v2934 = vadd.f32 %v924, %v2933
        %v2935 = vpop.f32.mrf.mxu0
        %v2936 = vpop.f32.mrf.mxu0
        %2937 = vdwg.mxu0
        %2938 = vmatprep.subr.bf16.mxu0 %v2406
        %2939 = vmatpush1.bf16.msra.mxu0 %v2405
        %2940 = vmatprep.subr.bf16.mxu0 %v2394
        %2941 = vmatpush1.bf16.msra.mxu0 %v2393
        %2942 = vmatprep.subr.bf16.mxu0 %v2382
        %2943 = vmatpush1.bf16.msra.mxu0 %v2381
        %2944 = vmatprep.subr.bf16.mxu0 %v2370
        %2945 = vmatpush1.bf16.msra.mxu0 %v2369
        %2946 = vmatprep.subr.bf16.mxu0 %v2358
        %2947 = vmatpush1.bf16.msra.mxu0 %v2357
        %2948 = vmatprep.subr.bf16.mxu0 %v2346
        %2949 = vmatpush1.bf16.msra.mxu0 %v2345
        %2950 = vmatprep.subr.bf16.mxu0 %v2334
        %2951 = vmatpush1.bf16.msra.mxu0 %v2333
        %2952 = vmatprep.subr.bf16.mxu0 %v2322
        %2953 = vmatpush1.bf16.msra.mxu0 %v2321
        %2954 = vmatprep.subr.bf16.mxu0 %v2502
        %2955 = vmatpush2.bf16.msra.mxu0 %v2501
        %2956 = vmatprep.subr.bf16.mxu0 %v2490
        %2957 = vmatpush2.bf16.msra.mxu0 %v2489
        %2958 = vmatprep.subr.bf16.mxu0 %v2478
        %2959 = vmatpush2.bf16.msra.mxu0 %v2477
        %2960 = vmatprep.subr.bf16.mxu0 %v2466
        %2961 = vmatpush2.bf16.msra.mxu0 %v2465
        %2962 = vmatprep.subr.bf16.mxu0 %v2454
        %2963 = vmatpush2.bf16.msra.mxu0 %v2453
        %2964 = vmatprep.subr.bf16.mxu0 %v2442
        %2965 = vmatpush2.bf16.msra.mxu0 %v2441
        %2966 = vmatprep.subr.bf16.mxu0 %v2430
        %2967 = vmatpush2.bf16.msra.mxu0 %v2429
        %2968 = vmatprep.subr.bf16.mxu0 %v2418
        %2969 = vmatpush2.bf16.msra.mxu0 %v2417
        %2970 = vmatprep.mubr.bf16.mxu0 %v528
        %2971 = vmatmul.mubr.bf16.gmra.mxu0 %v527
        %v2972 = vpop.f32.mrf.mxu0
        %v2973 = vadd.f32 %v2932, %v2972
        %v2974 = vpop.f32.mrf.mxu0
        %v2975 = vadd.f32 %v2934, %v2974
        %v2976 = vpop.f32.mrf.mxu0
        %v2977 = vpop.f32.mrf.mxu0
        %2978 = vdwg.mxu0
        %2979 = vmatprep.subr.bf16.mxu0 %v2216
        %2980 = vmatpush1.bf16.msra.mxu0 %v2215
        %2981 = vmatprep.subr.bf16.mxu0 %v2204
        %2982 = vmatpush1.bf16.msra.mxu0 %v2203
        %2983 = vmatprep.subr.bf16.mxu0 %v2192
        %2984 = vmatpush1.bf16.msra.mxu0 %v2191
        %2985 = vmatprep.subr.bf16.mxu0 %v2180
        %2986 = vmatpush1.bf16.msra.mxu0 %v2179
        %2987 = vmatprep.subr.bf16.mxu0 %v2168
        %2988 = vmatpush1.bf16.msra.mxu0 %v2167
        %2989 = vmatprep.subr.bf16.mxu0 %v2156
        %2990 = vmatpush1.bf16.msra.mxu0 %v2155
        %2991 = vmatprep.subr.bf16.mxu0 %v2144
        %2992 = vmatpush1.bf16.msra.mxu0 %v2143
        %2993 = vmatprep.subr.bf16.mxu0 %v2132
        %2994 = vmatpush1.bf16.msra.mxu0 %v2131
        %2995 = vmatprep.subr.bf16.mxu0 %v2312
        %2996 = vmatpush2.bf16.msra.mxu0 %v2311
        %2997 = vmatprep.subr.bf16.mxu0 %v2300
        %2998 = vmatpush2.bf16.msra.mxu0 %v2299
        %2999 = vmatprep.subr.bf16.mxu0 %v2288
        %3000 = vmatpush2.bf16.msra.mxu0 %v2287
        %3001 = vmatprep.subr.bf16.mxu0 %v2276
        %3002 = vmatpush2.bf16.msra.mxu0 %v2275
        %3003 = vmatprep.subr.bf16.mxu0 %v2264
        %3004 = vmatpush2.bf16.msra.mxu0 %v2263
        %3005 = vmatprep.subr.bf16.mxu0 %v2252
        %3006 = vmatpush2.bf16.msra.mxu0 %v2251
        %3007 = vmatprep.subr.bf16.mxu0 %v2240
        %3008 = vmatpush2.bf16.msra.mxu0 %v2239
        %3009 = vmatprep.subr.bf16.mxu0 %v2228
        %3010 = vmatpush2.bf16.msra.mxu0 %v2227
        %3011 = vmatprep.mubr.bf16.mxu0 %v526
        %3012 = vmatmul.mubr.bf16.gmra.mxu0 %v525
        %v3013 = vpop.f32.mrf.mxu0
        %v3014 = vadd.f32 %v928, %v3013
        %v3015 = vpop.f32.mrf.mxu0
        %v3016 = vadd.f32 %v932, %v3015
        %v3017 = vpop.f32.mrf.mxu0
        %v3018 = vpop.f32.mrf.mxu0
        %3019 = vdwg.mxu0
        %3020 = vmatprep.subr.bf16.mxu0 %v2408
        %3021 = vmatpush1.bf16.msra.mxu0 %v2407
        %3022 = vmatprep.subr.bf16.mxu0 %v2396
        %3023 = vmatpush1.bf16.msra.mxu0 %v2395
        %3024 = vmatprep.subr.bf16.mxu0 %v2384
        %3025 = vmatpush1.bf16.msra.mxu0 %v2383
        %3026 = vmatprep.subr.bf16.mxu0 %v2372
        %3027 = vmatpush1.bf16.msra.mxu0 %v2371
        %3028 = vmatprep.subr.bf16.mxu0 %v2360
        %3029 = vmatpush1.bf16.msra.mxu0 %v2359
        %3030 = vmatprep.subr.bf16.mxu0 %v2348
        %3031 = vmatpush1.bf16.msra.mxu0 %v2347
        %3032 = vmatprep.subr.bf16.mxu0 %v2336
        %3033 = vmatpush1.bf16.msra.mxu0 %v2335
        %3034 = vmatprep.subr.bf16.mxu0 %v2324
        %3035 = vmatpush1.bf16.msra.mxu0 %v2323
        %3036 = vmatprep.subr.bf16.mxu0 %v2504
        %3037 = vmatpush2.bf16.msra.mxu0 %v2503
        %3038 = vmatprep.subr.bf16.mxu0 %v2492
        %3039 = vmatpush2.bf16.msra.mxu0 %v2491
        %3040 = vmatprep.subr.bf16.mxu0 %v2480
        %3041 = vmatpush2.bf16.msra.mxu0 %v2479
        %3042 = vmatprep.subr.bf16.mxu0 %v2468
        %3043 = vmatpush2.bf16.msra.mxu0 %v2467
        %3044 = vmatprep.subr.bf16.mxu0 %v2456
        %3045 = vmatpush2.bf16.msra.mxu0 %v2455
        %3046 = vmatprep.subr.bf16.mxu0 %v2444
        %3047 = vmatpush2.bf16.msra.mxu0 %v2443
        %3048 = vmatprep.subr.bf16.mxu0 %v2432
        %3049 = vmatpush2.bf16.msra.mxu0 %v2431
        %3050 = vmatprep.subr.bf16.mxu0 %v2420
        %3051 = vmatpush2.bf16.msra.mxu0 %v2419
        %3052 = vmatprep.mubr.bf16.mxu0 %v528
        %3053 = vmatmul.mubr.bf16.gmra.mxu0 %v527
        %v3054 = vpop.f32.mrf.mxu0
        %v3055 = vadd.f32 %v3014, %v3054
        %v3056 = vpop.f32.mrf.mxu0
        %v3057 = vadd.f32 %v3016, %v3056
        %v3058 = vpop.f32.mrf.mxu0
        %v3059 = vpop.f32.mrf.mxu0
        %3060 = vdwg.mxu0
        %3061 = vmatprep.subr.bf16.mxu0 %v2218
        %3062 = vmatpush1.bf16.msra.mxu0 %v2217
        %3063 = vmatprep.subr.bf16.mxu0 %v2206
        %3064 = vmatpush1.bf16.msra.mxu0 %v2205
        %3065 = vmatprep.subr.bf16.mxu0 %v2194
        %3066 = vmatpush1.bf16.msra.mxu0 %v2193
        %3067 = vmatprep.subr.bf16.mxu0 %v2182
        %3068 = vmatpush1.bf16.msra.mxu0 %v2181
        %3069 = vmatprep.subr.bf16.mxu0 %v2170
        %3070 = vmatpush1.bf16.msra.mxu0 %v2169
        %3071 = vmatprep.subr.bf16.mxu0 %v2158
        %3072 = vmatpush1.bf16.msra.mxu0 %v2157
        %3073 = vmatprep.subr.bf16.mxu0 %v2146
        %3074 = vmatpush1.bf16.msra.mxu0 %v2145
        %3075 = vmatprep.subr.bf16.mxu0 %v2134
        %3076 = vmatpush1.bf16.msra.mxu0 %v2133
        %3077 = vmatprep.subr.bf16.mxu0 %v2314
        %3078 = vmatpush2.bf16.msra.mxu0 %v2313
        %3079 = vmatprep.subr.bf16.mxu0 %v2302
        %3080 = vmatpush2.bf16.msra.mxu0 %v2301
        %3081 = vmatprep.subr.bf16.mxu0 %v2290
        %3082 = vmatpush2.bf16.msra.mxu0 %v2289
        %3083 = vmatprep.subr.bf16.mxu0 %v2278
        %3084 = vmatpush2.bf16.msra.mxu0 %v2277
        %3085 = vmatprep.subr.bf16.mxu0 %v2266
        %3086 = vmatpush2.bf16.msra.mxu0 %v2265
        %3087 = vmatprep.subr.bf16.mxu0 %v2254
        %3088 = vmatpush2.bf16.msra.mxu0 %v2253
        %3089 = vmatprep.subr.bf16.mxu0 %v2242
        %3090 = vmatpush2.bf16.msra.mxu0 %v2241
        %3091 = vmatprep.subr.bf16.mxu0 %v2230
        %3092 = vmatpush2.bf16.msra.mxu0 %v2229
        %3093 = vmatprep.mubr.bf16.mxu0 %v526
        %3094 = vmatmul.mubr.bf16.gmra.mxu0 %v525
        %v3095 = vpop.f32.mrf.mxu0
        %v3096 = vadd.f32 %v936, %v3095
        %v3097 = vpop.f32.mrf.mxu0
        %v3098 = vadd.f32 %v940, %v3097
        %v3099 = vpop.f32.mrf.mxu0
        %v3100 = vpop.f32.mrf.mxu0
        %3101 = vdwg.mxu0
        %3102 = vmatprep.subr.bf16.mxu0 %v2410
        %3103 = vmatpush1.bf16.msra.mxu0 %v2409
        %3104 = vmatprep.subr.bf16.mxu0 %v2398
        %3105 = vmatpush1.bf16.msra.mxu0 %v2397
        %3106 = vmatprep.subr.bf16.mxu0 %v2386
        %3107 = vmatpush1.bf16.msra.mxu0 %v2385
        %3108 = vmatprep.subr.bf16.mxu0 %v2374
        %3109 = vmatpush1.bf16.msra.mxu0 %v2373
        %3110 = vmatprep.subr.bf16.mxu0 %v2362
        %3111 = vmatpush1.bf16.msra.mxu0 %v2361
        %3112 = vmatprep.subr.bf16.mxu0 %v2350
        %3113 = vmatpush1.bf16.msra.mxu0 %v2349
        %3114 = vmatprep.subr.bf16.mxu0 %v2338
        %3115 = vmatpush1.bf16.msra.mxu0 %v2337
        %3116 = vmatprep.subr.bf16.mxu0 %v2326
        %3117 = vmatpush1.bf16.msra.mxu0 %v2325
        %3118 = vmatprep.subr.bf16.mxu0 %v2506
        %3119 = vmatpush2.bf16.msra.mxu0 %v2505
        %3120 = vmatprep.subr.bf16.mxu0 %v2494
        %3121 = vmatpush2.bf16.msra.mxu0 %v2493
        %3122 = vmatprep.subr.bf16.mxu0 %v2482
        %3123 = vmatpush2.bf16.msra.mxu0 %v2481
        %3124 = vmatprep.subr.bf16.mxu0 %v2470
        %3125 = vmatpush2.bf16.msra.mxu0 %v2469
        %3126 = vmatprep.subr.bf16.mxu0 %v2458
        %3127 = vmatpush2.bf16.msra.mxu0 %v2457
        %3128 = vmatprep.subr.bf16.mxu0 %v2446
        %3129 = vmatpush2.bf16.msra.mxu0 %v2445
        %3130 = vmatprep.subr.bf16.mxu0 %v2434
        %3131 = vmatpush2.bf16.msra.mxu0 %v2433
        %3132 = vmatprep.subr.bf16.mxu0 %v2422
        %3133 = vmatpush2.bf16.msra.mxu0 %v2421
        %3134 = vmatprep.mubr.bf16.mxu0 %v528
        %3135 = vmatmul.mubr.bf16.gmra.mxu0 %v527
        %v3136 = vpop.f32.mrf.mxu0
        %v3137 = vadd.f32 %v3096, %v3136
        %v3138 = vpop.f32.mrf.mxu0
        %v3139 = vadd.f32 %v3098, %v3138
        %v3140 = vpop.f32.mrf.mxu0
        %v3141 = vpop.f32.mrf.mxu0
        %3142 = vdwg.mxu0
        %3143 = vmatprep.subr.bf16.mxu0 %v2220
        %3144 = vmatpush1.bf16.msra.mxu0 %v2219
        %3145 = vmatprep.subr.bf16.mxu0 %v2208
        %3146 = vmatpush1.bf16.msra.mxu0 %v2207
        %3147 = vmatprep.subr.bf16.mxu0 %v2196
        %3148 = vmatpush1.bf16.msra.mxu0 %v2195
        %3149 = vmatprep.subr.bf16.mxu0 %v2184
        %3150 = vmatpush1.bf16.msra.mxu0 %v2183
        %3151 = vmatprep.subr.bf16.mxu0 %v2172
        %3152 = vmatpush1.bf16.msra.mxu0 %v2171
        %3153 = vmatprep.subr.bf16.mxu0 %v2160
        %3154 = vmatpush1.bf16.msra.mxu0 %v2159
        %3155 = vmatprep.subr.bf16.mxu0 %v2148
        %3156 = vmatpush1.bf16.msra.mxu0 %v2147
        %3157 = vmatprep.subr.bf16.mxu0 %v2136
        %3158 = vmatpush1.bf16.msra.mxu0 %v2135
        %3159 = vmatprep.subr.bf16.mxu0 %v2316
        %3160 = vmatpush2.bf16.msra.mxu0 %v2315
        %3161 = vmatprep.subr.bf16.mxu0 %v2304
        %3162 = vmatpush2.bf16.msra.mxu0 %v2303
        %3163 = vmatprep.subr.bf16.mxu0 %v2292
        %3164 = vmatpush2.bf16.msra.mxu0 %v2291
        %3165 = vmatprep.subr.bf16.mxu0 %v2280
        %3166 = vmatpush2.bf16.msra.mxu0 %v2279
        %3167 = vmatprep.subr.bf16.mxu0 %v2268
        %3168 = vmatpush2.bf16.msra.mxu0 %v2267
        %3169 = vmatprep.subr.bf16.mxu0 %v2256
        %3170 = vmatpush2.bf16.msra.mxu0 %v2255
        %3171 = vmatprep.subr.bf16.mxu0 %v2244
        %3172 = vmatpush2.bf16.msra.mxu0 %v2243
        %3173 = vmatprep.subr.bf16.mxu0 %v2232
        %3174 = vmatpush2.bf16.msra.mxu0 %v2231
        %3175 = vmatprep.mubr.bf16.mxu0 %v526
        %3176 = vmatmul.mubr.bf16.gmra.mxu0 %v525
        %v3177 = vpop.f32.mrf.mxu0
        %v3178 = vadd.f32 %v944, %v3177
        %v3179 = vpop.f32.mrf.mxu0
        %v3180 = vadd.f32 %v948, %v3179
        %v3181 = vpop.f32.mrf.mxu0
        %v3182 = vpop.f32.mrf.mxu0
        %3183 = vdwg.mxu0
        %3184 = vmatprep.subr.bf16.mxu0 %v2412
        %3185 = vmatpush1.bf16.msra.mxu0 %v2411
        %3186 = vmatprep.subr.bf16.mxu0 %v2400
        %3187 = vmatpush1.bf16.msra.mxu0 %v2399
        %3188 = vmatprep.subr.bf16.mxu0 %v2388
        %3189 = vmatpush1.bf16.msra.mxu0 %v2387
        %3190 = vmatprep.subr.bf16.mxu0 %v2376
        %3191 = vmatpush1.bf16.msra.mxu0 %v2375
        %3192 = vmatprep.subr.bf16.mxu0 %v2364
        %3193 = vmatpush1.bf16.msra.mxu0 %v2363
        %3194 = vmatprep.subr.bf16.mxu0 %v2352
        %3195 = vmatpush1.bf16.msra.mxu0 %v2351
        %3196 = vmatprep.subr.bf16.mxu0 %v2340
        %3197 = vmatpush1.bf16.msra.mxu0 %v2339
        %3198 = vmatprep.subr.bf16.mxu0 %v2328
        %3199 = vmatpush1.bf16.msra.mxu0 %v2327
        %3200 = vmatprep.subr.bf16.mxu0 %v2508
        %3201 = vmatpush2.bf16.msra.mxu0 %v2507
        %3202 = vmatprep.subr.bf16.mxu0 %v2496
        %3203 = vmatpush2.bf16.msra.mxu0 %v2495
        %3204 = vmatprep.subr.bf16.mxu0 %v2484
        %3205 = vmatpush2.bf16.msra.mxu0 %v2483
        %3206 = vmatprep.subr.bf16.mxu0 %v2472
        %3207 = vmatpush2.bf16.msra.mxu0 %v2471
        %3208 = vmatprep.subr.bf16.mxu0 %v2460
        %3209 = vmatpush2.bf16.msra.mxu0 %v2459
        %3210 = vmatprep.subr.bf16.mxu0 %v2448
        %3211 = vmatpush2.bf16.msra.mxu0 %v2447
        %3212 = vmatprep.subr.bf16.mxu0 %v2436
        %3213 = vmatpush2.bf16.msra.mxu0 %v2435
        %3214 = vmatprep.subr.bf16.mxu0 %v2424
        %3215 = vmatpush2.bf16.msra.mxu0 %v2423
        %3216 = vmatprep.mubr.bf16.mxu0 %v528
        %3217 = vmatmul.mubr.bf16.gmra.mxu0 %v527
        %v3218 = vpop.f32.mrf.mxu0
        %v3219 = vadd.f32 %v3178, %v3218
        %v3220 = vpop.f32.mrf.mxu0
        %v3221 = vadd.f32 %v3180, %v3220
        %v3222 = vpop.f32.mrf.mxu0
        %v3223 = vpop.f32.mrf.mxu0
        %3224 = vdwg.mxu0
        %3225 = vmatprep.subr.bf16.mxu0 %v2222
        %3226 = vmatpush1.bf16.msra.mxu0 %v2221
        %3227 = vmatprep.subr.bf16.mxu0 %v2210
        %3228 = vmatpush1.bf16.msra.mxu0 %v2209
        %3229 = vmatprep.subr.bf16.mxu0 %v2198
        %3230 = vmatpush1.bf16.msra.mxu0 %v2197
        %3231 = vmatprep.subr.bf16.mxu0 %v2186
        %3232 = vmatpush1.bf16.msra.mxu0 %v2185
        %3233 = vmatprep.subr.bf16.mxu0 %v2174
        %3234 = vmatpush1.bf16.msra.mxu0 %v2173
        %3235 = vmatprep.subr.bf16.mxu0 %v2162
        %3236 = vmatpush1.bf16.msra.mxu0 %v2161
        %3237 = vmatprep.subr.bf16.mxu0 %v2150
        %3238 = vmatpush1.bf16.msra.mxu0 %v2149
        %3239 = vmatprep.subr.bf16.mxu0 %v2138
        %3240 = vmatpush1.bf16.msra.mxu0 %v2137
        %3241 = vmatprep.subr.bf16.mxu0 %v2318
        %3242 = vmatpush2.bf16.msra.mxu0 %v2317
        %3243 = vmatprep.subr.bf16.mxu0 %v2306
        %3244 = vmatpush2.bf16.msra.mxu0 %v2305
        %3245 = vmatprep.subr.bf16.mxu0 %v2294
        %3246 = vmatpush2.bf16.msra.mxu0 %v2293
        %3247 = vmatprep.subr.bf16.mxu0 %v2282
        %3248 = vmatpush2.bf16.msra.mxu0 %v2281
        %3249 = vmatprep.subr.bf16.mxu0 %v2270
        %3250 = vmatpush2.bf16.msra.mxu0 %v2269
        %3251 = vmatprep.subr.bf16.mxu0 %v2258
        %3252 = vmatpush2.bf16.msra.mxu0 %v2257
        %3253 = vmatprep.subr.bf16.mxu0 %v2246
        %3254 = vmatpush2.bf16.msra.mxu0 %v2245
        %3255 = vmatprep.subr.bf16.mxu0 %v2234
        %3256 = vmatpush2.bf16.msra.mxu0 %v2233
        %3257 = vmatprep.mubr.bf16.mxu0 %v526
        %3258 = vmatmul.mubr.bf16.gmra.mxu0 %v525
        %v3259 = vpop.f32.mrf.mxu0
        %v3260 = vadd.f32 %v952, %v3259
        %v3261 = vpop.f32.mrf.mxu0
        %v3262 = vadd.f32 %v956, %v3261
        %v3263 = vpop.f32.mrf.mxu0
        %v3264 = vpop.f32.mrf.mxu0
        %3265 = vdwg.mxu0
        %3266 = vmatprep.subr.bf16.mxu0 %v2414
        %3267 = vmatpush1.bf16.msra.mxu0 %v2413
        %3268 = vmatprep.subr.bf16.mxu0 %v2402
        %3269 = vmatpush1.bf16.msra.mxu0 %v2401
        %3270 = vmatprep.subr.bf16.mxu0 %v2390
        %3271 = vmatpush1.bf16.msra.mxu0 %v2389
        %3272 = vmatprep.subr.bf16.mxu0 %v2378
        %3273 = vmatpush1.bf16.msra.mxu0 %v2377
        %3274 = vmatprep.subr.bf16.mxu0 %v2366
        %3275 = vmatpush1.bf16.msra.mxu0 %v2365
        %3276 = vmatprep.subr.bf16.mxu0 %v2354
        %3277 = vmatpush1.bf16.msra.mxu0 %v2353
        %3278 = vmatprep.subr.bf16.mxu0 %v2342
        %3279 = vmatpush1.bf16.msra.mxu0 %v2341
        %3280 = vmatprep.subr.bf16.mxu0 %v2330
        %3281 = vmatpush1.bf16.msra.mxu0 %v2329
        %3282 = vmatprep.subr.bf16.mxu0 %v2510
        %3283 = vmatpush2.bf16.msra.mxu0 %v2509
        %3284 = vmatprep.subr.bf16.mxu0 %v2498
        %3285 = vmatpush2.bf16.msra.mxu0 %v2497
        %3286 = vmatprep.subr.bf16.mxu0 %v2486
        %3287 = vmatpush2.bf16.msra.mxu0 %v2485
        %3288 = vmatprep.subr.bf16.mxu0 %v2474
        %3289 = vmatpush2.bf16.msra.mxu0 %v2473
        %3290 = vmatprep.subr.bf16.mxu0 %v2462
        %3291 = vmatpush2.bf16.msra.mxu0 %v2461
        %3292 = vmatprep.subr.bf16.mxu0 %v2450
        %3293 = vmatpush2.bf16.msra.mxu0 %v2449
        %3294 = vmatprep.subr.bf16.mxu0 %v2438
        %3295 = vmatpush2.bf16.msra.mxu0 %v2437
        %3296 = vmatprep.subr.bf16.mxu0 %v2426
        %3297 = vmatpush2.bf16.msra.mxu0 %v2425
        %3298 = vmatprep.mubr.bf16.mxu0 %v528
        %3299 = vmatmul.mubr.bf16.gmra.mxu0 %v527
        %v3300 = vpop.f32.mrf.mxu0
        %v3301 = vadd.f32 %v3260, %v3300
        %v3302 = vpop.f32.mrf.mxu0
        %v3303 = vadd.f32 %v3262, %v3302
        %v3304 = vpop.f32.mrf.mxu0
        %v3305 = vpop.f32.mrf.mxu0
        %3306 = vdwg.mxu0
        %3307 = vmatprep.subr.bf16.mxu0 %v2224
        %3308 = vmatpush1.bf16.msra.mxu0 %v2223
        %3309 = vmatprep.subr.bf16.mxu0 %v2212
        %3310 = vmatpush1.bf16.msra.mxu0 %v2211
        %3311 = vmatprep.subr.bf16.mxu0 %v2200
        %3312 = vmatpush1.bf16.msra.mxu0 %v2199
        %3313 = vmatprep.subr.bf16.mxu0 %v2188
        %3314 = vmatpush1.bf16.msra.mxu0 %v2187
        %3315 = vmatprep.subr.bf16.mxu0 %v2176
        %3316 = vmatpush1.bf16.msra.mxu0 %v2175
        %3317 = vmatprep.subr.bf16.mxu0 %v2164
        %3318 = vmatpush1.bf16.msra.mxu0 %v2163
        %3319 = vmatprep.subr.bf16.mxu0 %v2152
        %3320 = vmatpush1.bf16.msra.mxu0 %v2151
        %3321 = vmatprep.subr.bf16.mxu0 %v2140
        %3322 = vmatpush1.bf16.msra.mxu0 %v2139
        %3323 = vmatprep.subr.bf16.mxu0 %v2320
        %3324 = vmatpush2.bf16.msra.mxu0 %v2319
        %3325 = vmatprep.subr.bf16.mxu0 %v2308
        %3326 = vmatpush2.bf16.msra.mxu0 %v2307
        %3327 = vmatprep.subr.bf16.mxu0 %v2296
        %3328 = vmatpush2.bf16.msra.mxu0 %v2295
        %3329 = vmatprep.subr.bf16.mxu0 %v2284
        %3330 = vmatpush2.bf16.msra.mxu0 %v2283
        %3331 = vmatprep.subr.bf16.mxu0 %v2272
        %3332 = vmatpush2.bf16.msra.mxu0 %v2271
        %3333 = vmatprep.subr.bf16.mxu0 %v2260
        %3334 = vmatpush2.bf16.msra.mxu0 %v2259
        %3335 = vmatprep.subr.bf16.mxu0 %v2248
        %3336 = vmatpush2.bf16.msra.mxu0 %v2247
        %3337 = vmatprep.subr.bf16.mxu0 %v2236
        %3338 = vmatpush2.bf16.msra.mxu0 %v2235
        %3339 = vmatprep.mubr.bf16.mxu0 %v526
        %3340 = vmatmul.mubr.bf16.gmra.mxu0 %v525
        %v3341 = vpop.f32.mrf.mxu0
        %v3342 = vadd.f32 %v960, %v3341
        %v3343 = vpop.f32.mrf.mxu0
        %v3344 = vadd.f32 %v964, %v3343
        %v3345 = vpop.f32.mrf.mxu0
        %v3346 = vpop.f32.mrf.mxu0
        %3347 = vdwg.mxu0
        %3348 = vmatprep.subr.bf16.mxu0 %v2416
        %3349 = vmatpush1.bf16.msra.mxu0 %v2415
        %3350 = vmatprep.subr.bf16.mxu0 %v2404
        %3351 = vmatpush1.bf16.msra.mxu0 %v2403
        %3352 = vmatprep.subr.bf16.mxu0 %v2392
        %3353 = vmatpush1.bf16.msra.mxu0 %v2391
        %3354 = vmatprep.subr.bf16.mxu0 %v2380
        %3355 = vmatpush1.bf16.msra.mxu0 %v2379
        %3356 = vmatprep.subr.bf16.mxu0 %v2368
        %3357 = vmatpush1.bf16.msra.mxu0 %v2367
        %3358 = vmatprep.subr.bf16.mxu0 %v2356
        %3359 = vmatpush1.bf16.msra.mxu0 %v2355
        %3360 = vmatprep.subr.bf16.mxu0 %v2344
        %3361 = vmatpush1.bf16.msra.mxu0 %v2343
        %3362 = vmatprep.subr.bf16.mxu0 %v2332
        %3363 = vmatpush1.bf16.msra.mxu0 %v2331
        %3364 = vmatprep.subr.bf16.mxu0 %v2512
        %3365 = vmatpush2.bf16.msra.mxu0 %v2511
        %3366 = vmatprep.subr.bf16.mxu0 %v2500
        %3367 = vmatpush2.bf16.msra.mxu0 %v2499
        %3368 = vmatprep.subr.bf16.mxu0 %v2488
        %3369 = vmatpush2.bf16.msra.mxu0 %v2487
        %3370 = vmatprep.subr.bf16.mxu0 %v2476
        %3371 = vmatpush2.bf16.msra.mxu0 %v2475
        %3372 = vmatprep.subr.bf16.mxu0 %v2464
        %3373 = vmatpush2.bf16.msra.mxu0 %v2463
        %3374 = vmatprep.subr.bf16.mxu0 %v2452
        %3375 = vmatpush2.bf16.msra.mxu0 %v2451
        %3376 = vmatprep.subr.bf16.mxu0 %v2440
        %3377 = vmatpush2.bf16.msra.mxu0 %v2439
        %3378 = vmatprep.subr.bf16.mxu0 %v2428
        %3379 = vmatpush2.bf16.msra.mxu0 %v2427
        %3380 = vmatprep.mubr.bf16.mxu0 %v528
        %3381 = vmatmul.mubr.bf16.gmra.mxu0 %v527
        %v3382 = vpop.f32.mrf.mxu0
        %v3383 = vadd.f32 %v3342, %v3382
        %v3384 = vpop.f32.mrf.mxu0
        %v3385 = vadd.f32 %v3344, %v3384
        %v3386 = vpop.f32.mrf.mxu0
        %v3387 = vpop.f32.mrf.mxu0
        %3388 = vdwg.mxu0
        %v3389 = vmul.f32 %v2973, 0.125
        %v3390 = vmul.f32 %v2975, 0.125
        %v3391 = vmul.f32 %v3055, 0.125
        %v3392 = vmul.f32 %v3057, 0.125
        %v3393 = vpack.c.bf16 %v3389, %v3389
        %v3394 = vpack.c.bf16 %v3390, %v3390
        %v3395 = vpack.c.bf16 %v3391, %v3391
        %v3396 = vpack.c.bf16 %v3392, %v3392
        %v3397 = vpack.c.bf16 %v3137, %v3137
        %v3398 = vpack.c.bf16 %v3139, %v3139
        %v3399 = vpack.c.bf16 %v3219, %v3219
        %v3400 = vpack.c.bf16 %v3221, %v3221
        %v3401 = vpack.c.bf16 %v3301, %v3301
        %v3402 = vpack.c.bf16 %v3303, %v3303
        %v3403 = vpack.c.bf16 %v3383, %v3383
        %v3404 = vpack.c.bf16 %v3385, %v3385
        %v3405 = vlaneseq
        %v3406 = vshrl.u32 %v3405, 7
        %v3407 = vlaneseq
        %v3408 = vand.u32 %v3407, 127
        %vm3409 = vcmp.le.s32.totalorder %v3408, %v3406
        %v3410 = vsel %vm3409, 0.0, -1e+30
        %vm3411 = vcmask 523264
        %v3413 = vsel %vm3411, %v3393, 0
        %v3416 = vsel %vm3411, %v3397, 0
        %3418 = vmatprep.subr.bf16.mxu0 0
        %3419 = vmatpush1.bf16.xpose.msra.mxu0 0
        %3420 = vmatprep.subr.bf16.mxu0 0
        %3421 = vmatpush1.bf16.xpose.msra.mxu0 0
        %3422 = vmatprep.subr.bf16.mxu0 0
        %3423 = vmatpush1.bf16.xpose.msra.mxu0 0
        %3424 = vmatprep.subr.bf16.mxu0 0
        %3425 = vmatpush1.bf16.xpose.msra.mxu0 0
        %3426 = vmatprep.subr.bf16.mxu0 0
        %3427 = vmatpush1.bf16.xpose.msra.mxu0 0
        %3428 = vmatprep.subr.bf16.mxu0 0
        %3429 = vmatpush1.bf16.xpose.msra.mxu0 0
        %3430 = vmatprep.subr.bf16.mxu0 0
        %3431 = vmatpush1.bf16.xpose.msra.mxu0 0
        %3432 = vmatprep.subr.bf16.mxu0 0
        %3433 = vmatpush1.bf16.xpose.msra.mxu0 %v3416
        %3434 = vmatprep.subr.bf16.mxu0 0
        %3435 = vmatpush2.bf16.xpose.msra.mxu0 0
        %3436 = vmatprep.subr.bf16.mxu0 0
        %3437 = vmatpush2.bf16.xpose.msra.mxu0 0
        %3438 = vmatprep.subr.bf16.mxu0 0
        %3439 = vmatpush2.bf16.xpose.msra.mxu0 0
        %3440 = vmatprep.subr.bf16.mxu0 0
        %3441 = vmatpush2.bf16.xpose.msra.mxu0 0
        %3442 = vmatprep.subr.bf16.mxu0 0
        %3443 = vmatpush2.bf16.xpose.msra.mxu0 0
        %3444 = vmatprep.subr.bf16.mxu0 0
        %3445 = vmatpush2.bf16.xpose.msra.mxu0 0
        %3446 = vmatprep.subr.bf16.mxu0 0
        %3447 = vmatpush2.bf16.xpose.msra.mxu0 0
        %3448 = vmatprep.subr.bf16.mxu0 0
        %3449 = vmatpush2.bf16.xpose.msra.mxu0 0
        %3450 = vmatprep.mubr.bf16.mxu0 0
        %3451 = vmatmul.mubr.bf16.gmra.mxu0 %v3413
        %v3452 = vpop.f32.mrf.mxu0
        %v3453 = vadd.f32 %v3410, %v3452
        %v3454 = vpop.f32.mrf.mxu0
        %v3455 = vpop.f32.mrf.mxu0
        %v3456 = vpop.f32.mrf.mxu0
        %3457 = vdwg.mxu0
        %vm3458 = vcmask 64512
        %v3459 = vsel %vm3458, %v3453, -inf
        %3460 = vmax.xlane.f32.xlu0 %v3459
        %v3461 = vpop.xlane.xlu0 %3460
        %v3462 = vsub.f32 %v3453, %v3461
        %v3463 = vmul.f32 %v3462, 1.442695
        %v3464 = vpow.pop %v3463
        %v3465 = vsel %vm3458, %v3464, 0.0
        %3466 = vadd.xlane.f32.xlu0 %v3465
        %v3467 = vpop.xlane.xlu0 %3466
        %v3468 = vrcp.pop %v3467
        %v3469 = vmul.f32 %v3464, %v3468
        %v3470 = vpack.c.bf16 %v3469, %v3469
        %v3472 = vsel %vm3458, %v3470, 0
        %vm3474 = vcmask 1043456
        %v3476 = vsel %vm3474, %v3401, 0
        %3478 = vmatprep.subr.bf16.mxu0 0
        %3479 = vmatpush1.bf16.msra.mxu0 0
        %3480 = vmatprep.subr.bf16.mxu0 0
        %3481 = vmatpush1.bf16.msra.mxu0 0
        %3482 = vmatprep.subr.bf16.mxu0 0
        %3483 = vmatpush1.bf16.msra.mxu0 0
        %3484 = vmatprep.subr.bf16.mxu0 0
        %3485 = vmatpush1.bf16.msra.mxu0 0
        %3486 = vmatprep.subr.bf16.mxu0 0
        %3487 = vmatpush1.bf16.msra.mxu0 0
        %3488 = vmatprep.subr.bf16.mxu0 0
        %3489 = vmatpush1.bf16.msra.mxu0 0
        %3490 = vmatprep.subr.bf16.mxu0 0
        %3491 = vmatpush1.bf16.msra.mxu0 0
        %3492 = vmatprep.subr.bf16.mxu0 0
        %3493 = vmatpush1.bf16.msra.mxu0 %v3476
        %3494 = vmatprep.subr.bf16.mxu0 0
        %3495 = vmatpush2.bf16.msra.mxu0 0
        %3496 = vmatprep.subr.bf16.mxu0 0
        %3497 = vmatpush2.bf16.msra.mxu0 0
        %3498 = vmatprep.subr.bf16.mxu0 0
        %3499 = vmatpush2.bf16.msra.mxu0 0
        %3500 = vmatprep.subr.bf16.mxu0 0
        %3501 = vmatpush2.bf16.msra.mxu0 0
        %3502 = vmatprep.subr.bf16.mxu0 0
        %3503 = vmatpush2.bf16.msra.mxu0 0
        %3504 = vmatprep.subr.bf16.mxu0 0
        %3505 = vmatpush2.bf16.msra.mxu0 0
        %3506 = vmatprep.subr.bf16.mxu0 0
        %3507 = vmatpush2.bf16.msra.mxu0 0
        %3508 = vmatprep.subr.bf16.mxu0 0
        %3509 = vmatpush2.bf16.msra.mxu0 0
        %3510 = vmatprep.mubr.bf16.mxu0 0
        %3511 = vmatmul.mubr.bf16.gmra.mxu0 %v3472
        %v3512 = vpop.f32.mrf.mxu0
        %v3513 = vadd.f32 0.0, %v3512
        %v3514 = vpop.f32.mrf.mxu0
        %v3515 = vpop.f32.mrf.mxu0
        %v3516 = vpop.f32.mrf.mxu0
        %3517 = vdwg.mxu0
        %v3518 = vpack.c.bf16 %v3513, %v3513
        %3520 = vrot.lane.b32.xlu0 %v3393, 64
        %v3521 = vpop.permute.xlu0 %3520
        %3523 = vrot.lane.b32.xlu0 %v3397, 64
        %v3524 = vpop.permute.xlu0 %3523
        %v3526 = vsel %vm3411, %v3521, 0
        %v3529 = vsel %vm3411, %v3524, 0
        %3531 = vmatprep.subr.bf16.mxu0 0
        %3532 = vmatpush1.bf16.xpose.msra.mxu0 0
        %3533 = vmatprep.subr.bf16.mxu0 0
        %3534 = vmatpush1.bf16.xpose.msra.mxu0 0
        %3535 = vmatprep.subr.bf16.mxu0 0
        %3536 = vmatpush1.bf16.xpose.msra.mxu0 0
        %3537 = vmatprep.subr.bf16.mxu0 0
        %3538 = vmatpush1.bf16.xpose.msra.mxu0 0
        %3539 = vmatprep.subr.bf16.mxu0 0
        %3540 = vmatpush1.bf16.xpose.msra.mxu0 0
        %3541 = vmatprep.subr.bf16.mxu0 0
        %3542 = vmatpush1.bf16.xpose.msra.mxu0 0
        %3543 = vmatprep.subr.bf16.mxu0 0
        %3544 = vmatpush1.bf16.xpose.msra.mxu0 0
        %3545 = vmatprep.subr.bf16.mxu0 0
        %3546 = vmatpush1.bf16.xpose.msra.mxu0 %v3529
        %3547 = vmatprep.subr.bf16.mxu0 0
        %3548 = vmatpush2.bf16.xpose.msra.mxu0 0
        %3549 = vmatprep.subr.bf16.mxu0 0
        %3550 = vmatpush2.bf16.xpose.msra.mxu0 0
        %3551 = vmatprep.subr.bf16.mxu0 0
        %3552 = vmatpush2.bf16.xpose.msra.mxu0 0
        %3553 = vmatprep.subr.bf16.mxu0 0
        %3554 = vmatpush2.bf16.xpose.msra.mxu0 0
        %3555 = vmatprep.subr.bf16.mxu0 0
        %3556 = vmatpush2.bf16.xpose.msra.mxu0 0
        %3557 = vmatprep.subr.bf16.mxu0 0
        %3558 = vmatpush2.bf16.xpose.msra.mxu0 0
        %3559 = vmatprep.subr.bf16.mxu0 0
        %3560 = vmatpush2.bf16.xpose.msra.mxu0 0
        %3561 = vmatprep.subr.bf16.mxu0 0
        %3562 = vmatpush2.bf16.xpose.msra.mxu0 0
        %3563 = vmatprep.mubr.bf16.mxu0 0
        %3564 = vmatmul.mubr.bf16.gmra.mxu0 %v3526
        %v3565 = vpop.f32.mrf.mxu0
        %v3566 = vadd.f32 %v3410, %v3565
        %v3567 = vpop.f32.mrf.mxu0
        %v3568 = vpop.f32.mrf.mxu0
        %v3569 = vpop.f32.mrf.mxu0
        %3570 = vdwg.mxu0
        %v3571 = vsel %vm3458, %v3566, -inf
        %3572 = vmax.xlane.f32.xlu0 %v3571
        %v3573 = vpop.xlane.xlu0 %3572
        %v3574 = vsub.f32 %v3566, %v3573
        %v3575 = vmul.f32 %v3574, 1.442695
        %v3576 = vpow.pop %v3575
        %v3577 = vsel %vm3458, %v3576, 0.0
        %3578 = vadd.xlane.f32.xlu0 %v3577
        %v3579 = vpop.xlane.xlu0 %3578
        %v3580 = vrcp.pop %v3579
        %v3581 = vmul.f32 %v3576, %v3580
        %v3582 = vpack.c.bf16 %v3581, %v3581
        %3584 = vrot.lane.b32.xlu0 %v3401, 64
        %v3585 = vpop.permute.xlu0 %3584
        %v3587 = vsel %vm3458, %v3582, 0
        %v3590 = vsel %vm3474, %v3585, 0
        %3592 = vmatprep.subr.bf16.mxu0 0
        %3593 = vmatpush1.bf16.msra.mxu0 0
        %3594 = vmatprep.subr.bf16.mxu0 0
        %3595 = vmatpush1.bf16.msra.mxu0 0
        %3596 = vmatprep.subr.bf16.mxu0 0
        %3597 = vmatpush1.bf16.msra.mxu0 0
        %3598 = vmatprep.subr.bf16.mxu0 0
        %3599 = vmatpush1.bf16.msra.mxu0 0
        %3600 = vmatprep.subr.bf16.mxu0 0
        %3601 = vmatpush1.bf16.msra.mxu0 0
        %3602 = vmatprep.subr.bf16.mxu0 0
        %3603 = vmatpush1.bf16.msra.mxu0 0
        %3604 = vmatprep.subr.bf16.mxu0 0
        %3605 = vmatpush1.bf16.msra.mxu0 0
        %3606 = vmatprep.subr.bf16.mxu0 0
        %3607 = vmatpush1.bf16.msra.mxu0 %v3590
        %3608 = vmatprep.subr.bf16.mxu0 0
        %3609 = vmatpush2.bf16.msra.mxu0 0
        %3610 = vmatprep.subr.bf16.mxu0 0
        %3611 = vmatpush2.bf16.msra.mxu0 0
        %3612 = vmatprep.subr.bf16.mxu0 0
        %3613 = vmatpush2.bf16.msra.mxu0 0
        %3614 = vmatprep.subr.bf16.mxu0 0
        %3615 = vmatpush2.bf16.msra.mxu0 0
        %3616 = vmatprep.subr.bf16.mxu0 0
        %3617 = vmatpush2.bf16.msra.mxu0 0
        %3618 = vmatprep.subr.bf16.mxu0 0
        %3619 = vmatpush2.bf16.msra.mxu0 0
        %3620 = vmatprep.subr.bf16.mxu0 0
        %3621 = vmatpush2.bf16.msra.mxu0 0
        %3622 = vmatprep.subr.bf16.mxu0 0
        %3623 = vmatpush2.bf16.msra.mxu0 0
        %3624 = vmatprep.mubr.bf16.mxu0 0
        %3625 = vmatmul.mubr.bf16.gmra.mxu0 %v3587
        %v3626 = vpop.f32.mrf.mxu0
        %v3627 = vadd.f32 0.0, %v3626
        %v3628 = vpop.f32.mrf.mxu0
        %v3629 = vpop.f32.mrf.mxu0
        %v3630 = vpop.f32.mrf.mxu0
        %3631 = vdwg.mxu0
        %v3632 = vpack.c.bf16 %v3627, %v3627
        %v3634 = vsel %vm3411, %v3394, 0
        %v3637 = vsel %vm3411, %v3398, 0
        %3639 = vmatprep.subr.bf16.mxu0 0
        %3640 = vmatpush1.bf16.xpose.msra.mxu0 0
        %3641 = vmatprep.subr.bf16.mxu0 0
        %3642 = vmatpush1.bf16.xpose.msra.mxu0 0
        %3643 = vmatprep.subr.bf16.mxu0 0
        %3644 = vmatpush1.bf16.xpose.msra.mxu0 0
        %3645 = vmatprep.subr.bf16.mxu0 0
        %3646 = vmatpush1.bf16.xpose.msra.mxu0 0
        %3647 = vmatprep.subr.bf16.mxu0 0
        %3648 = vmatpush1.bf16.xpose.msra.mxu0 0
        %3649 = vmatprep.subr.bf16.mxu0 0
        %3650 = vmatpush1.bf16.xpose.msra.mxu0 0
        %3651 = vmatprep.subr.bf16.mxu0 0
        %3652 = vmatpush1.bf16.xpose.msra.mxu0 0
        %3653 = vmatprep.subr.bf16.mxu0 0
        %3654 = vmatpush1.bf16.xpose.msra.mxu0 %v3637
        %3655 = vmatprep.subr.bf16.mxu0 0
        %3656 = vmatpush2.bf16.xpose.msra.mxu0 0
        %3657 = vmatprep.subr.bf16.mxu0 0
        %3658 = vmatpush2.bf16.xpose.msra.mxu0 0
        %3659 = vmatprep.subr.bf16.mxu0 0
        %3660 = vmatpush2.bf16.xpose.msra.mxu0 0
        %3661 = vmatprep.subr.bf16.mxu0 0
        %3662 = vmatpush2.bf16.xpose.msra.mxu0 0
        %3663 = vmatprep.subr.bf16.mxu0 0
        %3664 = vmatpush2.bf16.xpose.msra.mxu0 0
        %3665 = vmatprep.subr.bf16.mxu0 0
        %3666 = vmatpush2.bf16.xpose.msra.mxu0 0
        %3667 = vmatprep.subr.bf16.mxu0 0
        %3668 = vmatpush2.bf16.xpose.msra.mxu0 0
        %3669 = vmatprep.subr.bf16.mxu0 0
        %3670 = vmatpush2.bf16.xpose.msra.mxu0 0
        %3671 = vmatprep.mubr.bf16.mxu0 0
        %3672 = vmatmul.mubr.bf16.gmra.mxu0 %v3634
        %v3673 = vpop.f32.mrf.mxu0
        %v3674 = vadd.f32 %v3410, %v3673
        %v3675 = vpop.f32.mrf.mxu0
        %v3676 = vpop.f32.mrf.mxu0
        %v3677 = vpop.f32.mrf.mxu0
        %3678 = vdwg.mxu0
        %v3679 = vsel %vm3458, %v3674, -inf
        %3680 = vmax.xlane.f32.xlu0 %v3679
        %v3681 = vpop.xlane.xlu0 %3680
        %v3682 = vsub.f32 %v3674, %v3681
        %v3683 = vmul.f32 %v3682, 1.442695
        %v3684 = vpow.pop %v3683
        %v3685 = vsel %vm3458, %v3684, 0.0
        %3686 = vadd.xlane.f32.xlu0 %v3685
        %v3687 = vpop.xlane.xlu0 %3686
        %v3688 = vrcp.pop %v3687
        %v3689 = vmul.f32 %v3684, %v3688
        %v3690 = vpack.c.bf16 %v3689, %v3689
        %v3692 = vsel %vm3458, %v3690, 0
        %v3695 = vsel %vm3474, %v3402, 0
        %3697 = vmatprep.subr.bf16.mxu0 0
        %3698 = vmatpush1.bf16.msra.mxu0 0
        %3699 = vmatprep.subr.bf16.mxu0 0
        %3700 = vmatpush1.bf16.msra.mxu0 0
        %3701 = vmatprep.subr.bf16.mxu0 0
        %3702 = vmatpush1.bf16.msra.mxu0 0
        %3703 = vmatprep.subr.bf16.mxu0 0
        %3704 = vmatpush1.bf16.msra.mxu0 0
        %3705 = vmatprep.subr.bf16.mxu0 0
        %3706 = vmatpush1.bf16.msra.mxu0 0
        %3707 = vmatprep.subr.bf16.mxu0 0
        %3708 = vmatpush1.bf16.msra.mxu0 0
        %3709 = vmatprep.subr.bf16.mxu0 0
        %3710 = vmatpush1.bf16.msra.mxu0 0
        %3711 = vmatprep.subr.bf16.mxu0 0
        %3712 = vmatpush1.bf16.msra.mxu0 %v3695
        %3713 = vmatprep.subr.bf16.mxu0 0
        %3714 = vmatpush2.bf16.msra.mxu0 0
        %3715 = vmatprep.subr.bf16.mxu0 0
        %3716 = vmatpush2.bf16.msra.mxu0 0
        %3717 = vmatprep.subr.bf16.mxu0 0
        %3718 = vmatpush2.bf16.msra.mxu0 0
        %3719 = vmatprep.subr.bf16.mxu0 0
        %3720 = vmatpush2.bf16.msra.mxu0 0
        %3721 = vmatprep.subr.bf16.mxu0 0
        %3722 = vmatpush2.bf16.msra.mxu0 0
        %3723 = vmatprep.subr.bf16.mxu0 0
        %3724 = vmatpush2.bf16.msra.mxu0 0
        %3725 = vmatprep.subr.bf16.mxu0 0
        %3726 = vmatpush2.bf16.msra.mxu0 0
        %3727 = vmatprep.subr.bf16.mxu0 0
        %3728 = vmatpush2.bf16.msra.mxu0 0
        %3729 = vmatprep.mubr.bf16.mxu0 0
        %3730 = vmatmul.mubr.bf16.gmra.mxu0 %v3692
        %v3731 = vpop.f32.mrf.mxu0
        %v3732 = vadd.f32 0.0, %v3731
        %v3733 = vpop.f32.mrf.mxu0
        %v3734 = vpop.f32.mrf.mxu0
        %v3735 = vpop.f32.mrf.mxu0
        %3736 = vdwg.mxu0
        %v3737 = vpack.c.bf16 %v3732, %v3732
        %3739 = vrot.lane.b32.xlu0 %v3394, 64
        %v3740 = vpop.permute.xlu0 %3739
        %3742 = vrot.lane.b32.xlu0 %v3398, 64
        %v3743 = vpop.permute.xlu0 %3742
        %v3745 = vsel %vm3411, %v3740, 0
        %v3748 = vsel %vm3411, %v3743, 0
        %3750 = vmatprep.subr.bf16.mxu0 0
        %3751 = vmatpush1.bf16.xpose.msra.mxu0 0
        %3752 = vmatprep.subr.bf16.mxu0 0
        %3753 = vmatpush1.bf16.xpose.msra.mxu0 0
        %3754 = vmatprep.subr.bf16.mxu0 0
        %3755 = vmatpush1.bf16.xpose.msra.mxu0 0
        %3756 = vmatprep.subr.bf16.mxu0 0
        %3757 = vmatpush1.bf16.xpose.msra.mxu0 0
        %3758 = vmatprep.subr.bf16.mxu0 0
        %3759 = vmatpush1.bf16.xpose.msra.mxu0 0
        %3760 = vmatprep.subr.bf16.mxu0 0
        %3761 = vmatpush1.bf16.xpose.msra.mxu0 0
        %3762 = vmatprep.subr.bf16.mxu0 0
        %3763 = vmatpush1.bf16.xpose.msra.mxu0 0
        %3764 = vmatprep.subr.bf16.mxu0 0
        %3765 = vmatpush1.bf16.xpose.msra.mxu0 %v3748
        %3766 = vmatprep.subr.bf16.mxu0 0
        %3767 = vmatpush2.bf16.xpose.msra.mxu0 0
        %3768 = vmatprep.subr.bf16.mxu0 0
        %3769 = vmatpush2.bf16.xpose.msra.mxu0 0
        %3770 = vmatprep.subr.bf16.mxu0 0
        %3771 = vmatpush2.bf16.xpose.msra.mxu0 0
        %3772 = vmatprep.subr.bf16.mxu0 0
        %3773 = vmatpush2.bf16.xpose.msra.mxu0 0
        %3774 = vmatprep.subr.bf16.mxu0 0
        %3775 = vmatpush2.bf16.xpose.msra.mxu0 0
        %3776 = vmatprep.subr.bf16.mxu0 0
        %3777 = vmatpush2.bf16.xpose.msra.mxu0 0
        %3778 = vmatprep.subr.bf16.mxu0 0
        %3779 = vmatpush2.bf16.xpose.msra.mxu0 0
        %3780 = vmatprep.subr.bf16.mxu0 0
        %3781 = vmatpush2.bf16.xpose.msra.mxu0 0
        %3782 = vmatprep.mubr.bf16.mxu0 0
        %3783 = vmatmul.mubr.bf16.gmra.mxu0 %v3745
        %v3784 = vpop.f32.mrf.mxu0
        %v3785 = vadd.f32 %v3410, %v3784
        %v3786 = vpop.f32.mrf.mxu0
        %v3787 = vpop.f32.mrf.mxu0
        %v3788 = vpop.f32.mrf.mxu0
        %3789 = vdwg.mxu0
        %v3790 = vsel %vm3458, %v3785, -inf
        %3791 = vmax.xlane.f32.xlu0 %v3790
        %v3792 = vpop.xlane.xlu0 %3791
        %v3793 = vsub.f32 %v3785, %v3792
        %v3794 = vmul.f32 %v3793, 1.442695
        %v3795 = vpow.pop %v3794
        %v3796 = vsel %vm3458, %v3795, 0.0
        %3797 = vadd.xlane.f32.xlu0 %v3796
        %v3798 = vpop.xlane.xlu0 %3797
        %v3799 = vrcp.pop %v3798
        %v3800 = vmul.f32 %v3795, %v3799
        %v3801 = vpack.c.bf16 %v3800, %v3800
        %3803 = vrot.lane.b32.xlu0 %v3402, 64
        %v3804 = vpop.permute.xlu0 %3803
        %v3806 = vsel %vm3458, %v3801, 0
        %v3809 = vsel %vm3474, %v3804, 0
        %3811 = vmatprep.subr.bf16.mxu0 0
        %3812 = vmatpush1.bf16.msra.mxu0 0
        %3813 = vmatprep.subr.bf16.mxu0 0
        %3814 = vmatpush1.bf16.msra.mxu0 0
        %3815 = vmatprep.subr.bf16.mxu0 0
        %3816 = vmatpush1.bf16.msra.mxu0 0
        %3817 = vmatprep.subr.bf16.mxu0 0
        %3818 = vmatpush1.bf16.msra.mxu0 0
        %3819 = vmatprep.subr.bf16.mxu0 0
        %3820 = vmatpush1.bf16.msra.mxu0 0
        %3821 = vmatprep.subr.bf16.mxu0 0
        %3822 = vmatpush1.bf16.msra.mxu0 0
        %3823 = vmatprep.subr.bf16.mxu0 0
        %3824 = vmatpush1.bf16.msra.mxu0 0
        %3825 = vmatprep.subr.bf16.mxu0 0
        %3826 = vmatpush1.bf16.msra.mxu0 %v3809
        %3827 = vmatprep.subr.bf16.mxu0 0
        %3828 = vmatpush2.bf16.msra.mxu0 0
        %3829 = vmatprep.subr.bf16.mxu0 0
        %3830 = vmatpush2.bf16.msra.mxu0 0
        %3831 = vmatprep.subr.bf16.mxu0 0
        %3832 = vmatpush2.bf16.msra.mxu0 0
        %3833 = vmatprep.subr.bf16.mxu0 0
        %3834 = vmatpush2.bf16.msra.mxu0 0
        %3835 = vmatprep.subr.bf16.mxu0 0
        %3836 = vmatpush2.bf16.msra.mxu0 0
        %3837 = vmatprep.subr.bf16.mxu0 0
        %3838 = vmatpush2.bf16.msra.mxu0 0
        %3839 = vmatprep.subr.bf16.mxu0 0
        %3840 = vmatpush2.bf16.msra.mxu0 0
        %3841 = vmatprep.subr.bf16.mxu0 0
        %3842 = vmatpush2.bf16.msra.mxu0 0
        %3843 = vmatprep.mubr.bf16.mxu0 0
        %3844 = vmatmul.mubr.bf16.gmra.mxu0 %v3806
        %v3845 = vpop.f32.mrf.mxu0
        %v3846 = vadd.f32 0.0, %v3845
        %v3847 = vpop.f32.mrf.mxu0
        %v3848 = vpop.f32.mrf.mxu0
        %v3849 = vpop.f32.mrf.mxu0
        %3850 = vdwg.mxu0
        %v3851 = vpack.c.bf16 %v3846, %v3846
        %v3853 = vsel %vm3411, %v3395, 0
        %v3856 = vsel %vm3411, %v3399, 0
        %3858 = vmatprep.subr.bf16.mxu0 0
        %3859 = vmatpush1.bf16.xpose.msra.mxu0 0
        %3860 = vmatprep.subr.bf16.mxu0 0
        %3861 = vmatpush1.bf16.xpose.msra.mxu0 0
        %3862 = vmatprep.subr.bf16.mxu0 0
        %3863 = vmatpush1.bf16.xpose.msra.mxu0 0
        %3864 = vmatprep.subr.bf16.mxu0 0
        %3865 = vmatpush1.bf16.xpose.msra.mxu0 0
        %3866 = vmatprep.subr.bf16.mxu0 0
        %3867 = vmatpush1.bf16.xpose.msra.mxu0 0
        %3868 = vmatprep.subr.bf16.mxu0 0
        %3869 = vmatpush1.bf16.xpose.msra.mxu0 0
        %3870 = vmatprep.subr.bf16.mxu0 0
        %3871 = vmatpush1.bf16.xpose.msra.mxu0 0
        %3872 = vmatprep.subr.bf16.mxu0 0
        %3873 = vmatpush1.bf16.xpose.msra.mxu0 %v3856
        %3874 = vmatprep.subr.bf16.mxu0 0
        %3875 = vmatpush2.bf16.xpose.msra.mxu0 0
        %3876 = vmatprep.subr.bf16.mxu0 0
        %3877 = vmatpush2.bf16.xpose.msra.mxu0 0
        %3878 = vmatprep.subr.bf16.mxu0 0
        %3879 = vmatpush2.bf16.xpose.msra.mxu0 0
        %3880 = vmatprep.subr.bf16.mxu0 0
        %3881 = vmatpush2.bf16.xpose.msra.mxu0 0
        %3882 = vmatprep.subr.bf16.mxu0 0
        %3883 = vmatpush2.bf16.xpose.msra.mxu0 0
        %3884 = vmatprep.subr.bf16.mxu0 0
        %3885 = vmatpush2.bf16.xpose.msra.mxu0 0
        %3886 = vmatprep.subr.bf16.mxu0 0
        %3887 = vmatpush2.bf16.xpose.msra.mxu0 0
        %3888 = vmatprep.subr.bf16.mxu0 0
        %3889 = vmatpush2.bf16.xpose.msra.mxu0 0
        %3890 = vmatprep.mubr.bf16.mxu0 0
        %3891 = vmatmul.mubr.bf16.gmra.mxu0 %v3853
        %v3892 = vpop.f32.mrf.mxu0
        %v3893 = vadd.f32 %v3410, %v3892
        %v3894 = vpop.f32.mrf.mxu0
        %v3895 = vpop.f32.mrf.mxu0
        %v3896 = vpop.f32.mrf.mxu0
        %3897 = vdwg.mxu0
        %v3898 = vsel %vm3458, %v3893, -inf
        %3899 = vmax.xlane.f32.xlu0 %v3898
        %v3900 = vpop.xlane.xlu0 %3899
        %v3901 = vsub.f32 %v3893, %v3900
        %v3902 = vmul.f32 %v3901, 1.442695
        %v3903 = vpow.pop %v3902
        %v3904 = vsel %vm3458, %v3903, 0.0
        %3905 = vadd.xlane.f32.xlu0 %v3904
        %v3906 = vpop.xlane.xlu0 %3905
        %v3907 = vrcp.pop %v3906
        %v3908 = vmul.f32 %v3903, %v3907
        %v3909 = vpack.c.bf16 %v3908, %v3908
        %v3911 = vsel %vm3458, %v3909, 0
        %v3914 = vsel %vm3474, %v3403, 0
        %3916 = vmatprep.subr.bf16.mxu0 0
        %3917 = vmatpush1.bf16.msra.mxu0 0
        %3918 = vmatprep.subr.bf16.mxu0 0
        %3919 = vmatpush1.bf16.msra.mxu0 0
        %3920 = vmatprep.subr.bf16.mxu0 0
        %3921 = vmatpush1.bf16.msra.mxu0 0
        %3922 = vmatprep.subr.bf16.mxu0 0
        %3923 = vmatpush1.bf16.msra.mxu0 0
        %3924 = vmatprep.subr.bf16.mxu0 0
        %3925 = vmatpush1.bf16.msra.mxu0 0
        %3926 = vmatprep.subr.bf16.mxu0 0
        %3927 = vmatpush1.bf16.msra.mxu0 0
        %3928 = vmatprep.subr.bf16.mxu0 0
        %3929 = vmatpush1.bf16.msra.mxu0 0
        %3930 = vmatprep.subr.bf16.mxu0 0
        %3931 = vmatpush1.bf16.msra.mxu0 %v3914
        %3932 = vmatprep.subr.bf16.mxu0 0
        %3933 = vmatpush2.bf16.msra.mxu0 0
        %3934 = vmatprep.subr.bf16.mxu0 0
        %3935 = vmatpush2.bf16.msra.mxu0 0
        %3936 = vmatprep.subr.bf16.mxu0 0
        %3937 = vmatpush2.bf16.msra.mxu0 0
        %3938 = vmatprep.subr.bf16.mxu0 0
        %3939 = vmatpush2.bf16.msra.mxu0 0
        %3940 = vmatprep.subr.bf16.mxu0 0
        %3941 = vmatpush2.bf16.msra.mxu0 0
        %3942 = vmatprep.subr.bf16.mxu0 0
        %3943 = vmatpush2.bf16.msra.mxu0 0
        %3944 = vmatprep.subr.bf16.mxu0 0
        %3945 = vmatpush2.bf16.msra.mxu0 0
        %3946 = vmatprep.subr.bf16.mxu0 0
        %3947 = vmatpush2.bf16.msra.mxu0 0
        %3948 = vmatprep.mubr.bf16.mxu0 0
        %3949 = vmatmul.mubr.bf16.gmra.mxu0 %v3911
        %v3950 = vpop.f32.mrf.mxu0
        %v3951 = vadd.f32 0.0, %v3950
        %v3952 = vpop.f32.mrf.mxu0
        %v3953 = vpop.f32.mrf.mxu0
        %v3954 = vpop.f32.mrf.mxu0
        %3955 = vdwg.mxu0
        %v3956 = vpack.c.bf16 %v3951, %v3951
        %3958 = vrot.lane.b32.xlu0 %v3395, 64
        %v3959 = vpop.permute.xlu0 %3958
        %3961 = vrot.lane.b32.xlu0 %v3399, 64
        %v3962 = vpop.permute.xlu0 %3961
        %v3964 = vsel %vm3411, %v3959, 0
        %v3967 = vsel %vm3411, %v3962, 0
        %3969 = vmatprep.subr.bf16.mxu0 0
        %3970 = vmatpush1.bf16.xpose.msra.mxu0 0
        %3971 = vmatprep.subr.bf16.mxu0 0
        %3972 = vmatpush1.bf16.xpose.msra.mxu0 0
        %3973 = vmatprep.subr.bf16.mxu0 0
        %3974 = vmatpush1.bf16.xpose.msra.mxu0 0
        %3975 = vmatprep.subr.bf16.mxu0 0
        %3976 = vmatpush1.bf16.xpose.msra.mxu0 0
        %3977 = vmatprep.subr.bf16.mxu0 0
        %3978 = vmatpush1.bf16.xpose.msra.mxu0 0
        %3979 = vmatprep.subr.bf16.mxu0 0
        %3980 = vmatpush1.bf16.xpose.msra.mxu0 0
        %3981 = vmatprep.subr.bf16.mxu0 0
        %3982 = vmatpush1.bf16.xpose.msra.mxu0 0
        %3983 = vmatprep.subr.bf16.mxu0 0
        %3984 = vmatpush1.bf16.xpose.msra.mxu0 %v3967
        %3985 = vmatprep.subr.bf16.mxu0 0
        %3986 = vmatpush2.bf16.xpose.msra.mxu0 0
        %3987 = vmatprep.subr.bf16.mxu0 0
        %3988 = vmatpush2.bf16.xpose.msra.mxu0 0
        %3989 = vmatprep.subr.bf16.mxu0 0
        %3990 = vmatpush2.bf16.xpose.msra.mxu0 0
        %3991 = vmatprep.subr.bf16.mxu0 0
        %3992 = vmatpush2.bf16.xpose.msra.mxu0 0
        %3993 = vmatprep.subr.bf16.mxu0 0
        %3994 = vmatpush2.bf16.xpose.msra.mxu0 0
        %3995 = vmatprep.subr.bf16.mxu0 0
        %3996 = vmatpush2.bf16.xpose.msra.mxu0 0
        %3997 = vmatprep.subr.bf16.mxu0 0
        %3998 = vmatpush2.bf16.xpose.msra.mxu0 0
        %3999 = vmatprep.subr.bf16.mxu0 0
        %4000 = vmatpush2.bf16.xpose.msra.mxu0 0
        %4001 = vmatprep.mubr.bf16.mxu0 0
        %4002 = vmatmul.mubr.bf16.gmra.mxu0 %v3964
        %v4003 = vpop.f32.mrf.mxu0
        %v4004 = vadd.f32 %v3410, %v4003
        %v4005 = vpop.f32.mrf.mxu0
        %v4006 = vpop.f32.mrf.mxu0
        %v4007 = vpop.f32.mrf.mxu0
        %4008 = vdwg.mxu0
        %v4009 = vsel %vm3458, %v4004, -inf
        %4010 = vmax.xlane.f32.xlu0 %v4009
        %v4011 = vpop.xlane.xlu0 %4010
        %v4012 = vsub.f32 %v4004, %v4011
        %v4013 = vmul.f32 %v4012, 1.442695
        %v4014 = vpow.pop %v4013
        %v4015 = vsel %vm3458, %v4014, 0.0
        %4016 = vadd.xlane.f32.xlu0 %v4015
        %v4017 = vpop.xlane.xlu0 %4016
        %v4018 = vrcp.pop %v4017
        %v4019 = vmul.f32 %v4014, %v4018
        %v4020 = vpack.c.bf16 %v4019, %v4019
        %4022 = vrot.lane.b32.xlu0 %v3403, 64
        %v4023 = vpop.permute.xlu0 %4022
        %v4025 = vsel %vm3458, %v4020, 0
        %v4028 = vsel %vm3474, %v4023, 0
        %4030 = vmatprep.subr.bf16.mxu0 0
        %4031 = vmatpush1.bf16.msra.mxu0 0
        %4032 = vmatprep.subr.bf16.mxu0 0
        %4033 = vmatpush1.bf16.msra.mxu0 0
        %4034 = vmatprep.subr.bf16.mxu0 0
        %4035 = vmatpush1.bf16.msra.mxu0 0
        %4036 = vmatprep.subr.bf16.mxu0 0
        %4037 = vmatpush1.bf16.msra.mxu0 0
        %4038 = vmatprep.subr.bf16.mxu0 0
        %4039 = vmatpush1.bf16.msra.mxu0 0
        %4040 = vmatprep.subr.bf16.mxu0 0
        %4041 = vmatpush1.bf16.msra.mxu0 0
        %4042 = vmatprep.subr.bf16.mxu0 0
        %4043 = vmatpush1.bf16.msra.mxu0 0
        %4044 = vmatprep.subr.bf16.mxu0 0
        %4045 = vmatpush1.bf16.msra.mxu0 %v4028
        %4046 = vmatprep.subr.bf16.mxu0 0
        %4047 = vmatpush2.bf16.msra.mxu0 0
        %4048 = vmatprep.subr.bf16.mxu0 0
        %4049 = vmatpush2.bf16.msra.mxu0 0
        %4050 = vmatprep.subr.bf16.mxu0 0
        %4051 = vmatpush2.bf16.msra.mxu0 0
        %4052 = vmatprep.subr.bf16.mxu0 0
        %4053 = vmatpush2.bf16.msra.mxu0 0
        %4054 = vmatprep.subr.bf16.mxu0 0
        %4055 = vmatpush2.bf16.msra.mxu0 0
        %4056 = vmatprep.subr.bf16.mxu0 0
        %4057 = vmatpush2.bf16.msra.mxu0 0
        %4058 = vmatprep.subr.bf16.mxu0 0
        %4059 = vmatpush2.bf16.msra.mxu0 0
        %4060 = vmatprep.subr.bf16.mxu0 0
        %4061 = vmatpush2.bf16.msra.mxu0 0
        %4062 = vmatprep.mubr.bf16.mxu0 0
        %4063 = vmatmul.mubr.bf16.gmra.mxu0 %v4025
        %v4064 = vpop.f32.mrf.mxu0
        %v4065 = vadd.f32 0.0, %v4064
        %v4066 = vpop.f32.mrf.mxu0
        %v4067 = vpop.f32.mrf.mxu0
        %v4068 = vpop.f32.mrf.mxu0
        %4069 = vdwg.mxu0
        %v4070 = vpack.c.bf16 %v4065, %v4065
        %v4072 = vsel %vm3411, %v3396, 0
        %v4075 = vsel %vm3411, %v3400, 0
        %4077 = vmatprep.subr.bf16.mxu0 0
        %4078 = vmatpush1.bf16.xpose.msra.mxu0 0
        %4079 = vmatprep.subr.bf16.mxu0 0
        %4080 = vmatpush1.bf16.xpose.msra.mxu0 0
        %4081 = vmatprep.subr.bf16.mxu0 0
        %4082 = vmatpush1.bf16.xpose.msra.mxu0 0
        %4083 = vmatprep.subr.bf16.mxu0 0
        %4084 = vmatpush1.bf16.xpose.msra.mxu0 0
        %4085 = vmatprep.subr.bf16.mxu0 0
        %4086 = vmatpush1.bf16.xpose.msra.mxu0 0
        %4087 = vmatprep.subr.bf16.mxu0 0
        %4088 = vmatpush1.bf16.xpose.msra.mxu0 0
        %4089 = vmatprep.subr.bf16.mxu0 0
        %4090 = vmatpush1.bf16.xpose.msra.mxu0 0
        %4091 = vmatprep.subr.bf16.mxu0 0
        %4092 = vmatpush1.bf16.xpose.msra.mxu0 %v4075
        %4093 = vmatprep.subr.bf16.mxu0 0
        %4094 = vmatpush2.bf16.xpose.msra.mxu0 0
        %4095 = vmatprep.subr.bf16.mxu0 0
        %4096 = vmatpush2.bf16.xpose.msra.mxu0 0
        %4097 = vmatprep.subr.bf16.mxu0 0
        %4098 = vmatpush2.bf16.xpose.msra.mxu0 0
        %4099 = vmatprep.subr.bf16.mxu0 0
        %4100 = vmatpush2.bf16.xpose.msra.mxu0 0
        %4101 = vmatprep.subr.bf16.mxu0 0
        %4102 = vmatpush2.bf16.xpose.msra.mxu0 0
        %4103 = vmatprep.subr.bf16.mxu0 0
        %4104 = vmatpush2.bf16.xpose.msra.mxu0 0
        %4105 = vmatprep.subr.bf16.mxu0 0
        %4106 = vmatpush2.bf16.xpose.msra.mxu0 0
        %4107 = vmatprep.subr.bf16.mxu0 0
        %4108 = vmatpush2.bf16.xpose.msra.mxu0 0
        %4109 = vmatprep.mubr.bf16.mxu0 0
        %4110 = vmatmul.mubr.bf16.gmra.mxu0 %v4072
        %v4111 = vpop.f32.mrf.mxu0
        %v4112 = vadd.f32 %v3410, %v4111
        %v4113 = vpop.f32.mrf.mxu0
        %v4114 = vpop.f32.mrf.mxu0
        %v4115 = vpop.f32.mrf.mxu0
        %4116 = vdwg.mxu0
        %v4117 = vsel %vm3458, %v4112, -inf
        %4118 = vmax.xlane.f32.xlu0 %v4117
        %v4119 = vpop.xlane.xlu0 %4118
        %v4120 = vsub.f32 %v4112, %v4119
        %v4121 = vmul.f32 %v4120, 1.442695
        %v4122 = vpow.pop %v4121
        %v4123 = vsel %vm3458, %v4122, 0.0
        %4124 = vadd.xlane.f32.xlu0 %v4123
        %v4125 = vpop.xlane.xlu0 %4124
        %v4126 = vrcp.pop %v4125
        %v4127 = vmul.f32 %v4122, %v4126
        %v4128 = vpack.c.bf16 %v4127, %v4127
        %v4130 = vsel %vm3458, %v4128, 0
        %v4133 = vsel %vm3474, %v3404, 0
        %4135 = vmatprep.subr.bf16.mxu0 0
        %4136 = vmatpush1.bf16.msra.mxu0 0
        %4137 = vmatprep.subr.bf16.mxu0 0
        %4138 = vmatpush1.bf16.msra.mxu0 0
        %4139 = vmatprep.subr.bf16.mxu0 0
        %4140 = vmatpush1.bf16.msra.mxu0 0
        %4141 = vmatprep.subr.bf16.mxu0 0
        %4142 = vmatpush1.bf16.msra.mxu0 0
        %4143 = vmatprep.subr.bf16.mxu0 0
        %4144 = vmatpush1.bf16.msra.mxu0 0
        %4145 = vmatprep.subr.bf16.mxu0 0
        %4146 = vmatpush1.bf16.msra.mxu0 0
        %4147 = vmatprep.subr.bf16.mxu0 0
        %4148 = vmatpush1.bf16.msra.mxu0 0
        %4149 = vmatprep.subr.bf16.mxu0 0
        %4150 = vmatpush1.bf16.msra.mxu0 %v4133
        %4151 = vmatprep.subr.bf16.mxu0 0
        %4152 = vmatpush2.bf16.msra.mxu0 0
        %4153 = vmatprep.subr.bf16.mxu0 0
        %4154 = vmatpush2.bf16.msra.mxu0 0
        %4155 = vmatprep.subr.bf16.mxu0 0
        %4156 = vmatpush2.bf16.msra.mxu0 0
        %4157 = vmatprep.subr.bf16.mxu0 0
        %4158 = vmatpush2.bf16.msra.mxu0 0
        %4159 = vmatprep.subr.bf16.mxu0 0
        %4160 = vmatpush2.bf16.msra.mxu0 0
        %4161 = vmatprep.subr.bf16.mxu0 0
        %4162 = vmatpush2.bf16.msra.mxu0 0
        %4163 = vmatprep.subr.bf16.mxu0 0
        %4164 = vmatpush2.bf16.msra.mxu0 0
        %4165 = vmatprep.subr.bf16.mxu0 0
        %4166 = vmatpush2.bf16.msra.mxu0 0
        %4167 = vmatprep.mubr.bf16.mxu0 0
        %4168 = vmatmul.mubr.bf16.gmra.mxu0 %v4130
        %v4169 = vpop.f32.mrf.mxu0
        %v4170 = vadd.f32 0.0, %v4169
        %v4171 = vpop.f32.mrf.mxu0
        %v4172 = vpop.f32.mrf.mxu0
        %v4173 = vpop.f32.mrf.mxu0
        %4174 = vdwg.mxu0
        %v4175 = vpack.c.bf16 %v4170, %v4170
        %4177 = vrot.lane.b32.xlu0 %v3396, 64
        %v4178 = vpop.permute.xlu0 %4177
        %4180 = vrot.lane.b32.xlu0 %v3400, 64
        %v4181 = vpop.permute.xlu0 %4180
        %v4183 = vsel %vm3411, %v4178, 0
        %v4186 = vsel %vm3411, %v4181, 0
        %4188 = vmatprep.subr.bf16.mxu0 0
        %4189 = vmatpush1.bf16.xpose.msra.mxu0 0
        %4190 = vmatprep.subr.bf16.mxu0 0
        %4191 = vmatpush1.bf16.xpose.msra.mxu0 0
        %4192 = vmatprep.subr.bf16.mxu0 0
        %4193 = vmatpush1.bf16.xpose.msra.mxu0 0
        %4194 = vmatprep.subr.bf16.mxu0 0
        %4195 = vmatpush1.bf16.xpose.msra.mxu0 0
        %4196 = vmatprep.subr.bf16.mxu0 0
        %4197 = vmatpush1.bf16.xpose.msra.mxu0 0
        %4198 = vmatprep.subr.bf16.mxu0 0
        %4199 = vmatpush1.bf16.xpose.msra.mxu0 0
        %4200 = vmatprep.subr.bf16.mxu0 0
        %4201 = vmatpush1.bf16.xpose.msra.mxu0 0
        %4202 = vmatprep.subr.bf16.mxu0 0
        %4203 = vmatpush1.bf16.xpose.msra.mxu0 %v4186
        %4204 = vmatprep.subr.bf16.mxu0 0
        %4205 = vmatpush2.bf16.xpose.msra.mxu0 0
        %4206 = vmatprep.subr.bf16.mxu0 0
        %4207 = vmatpush2.bf16.xpose.msra.mxu0 0
        %4208 = vmatprep.subr.bf16.mxu0 0
        %4209 = vmatpush2.bf16.xpose.msra.mxu0 0
        %4210 = vmatprep.subr.bf16.mxu0 0
        %4211 = vmatpush2.bf16.xpose.msra.mxu0 0
        %4212 = vmatprep.subr.bf16.mxu0 0
        %4213 = vmatpush2.bf16.xpose.msra.mxu0 0
        %4214 = vmatprep.subr.bf16.mxu0 0
        %4215 = vmatpush2.bf16.xpose.msra.mxu0 0
        %4216 = vmatprep.subr.bf16.mxu0 0
        %4217 = vmatpush2.bf16.xpose.msra.mxu0 0
        %4218 = vmatprep.subr.bf16.mxu0 0
        %4219 = vmatpush2.bf16.xpose.msra.mxu0 0
        %4220 = vmatprep.mubr.bf16.mxu0 0
        %4221 = vmatmul.mubr.bf16.gmra.mxu0 %v4183
        %v4222 = vpop.f32.mrf.mxu0
        %v4223 = vadd.f32 %v3410, %v4222
        %v4224 = vpop.f32.mrf.mxu0
        %v4225 = vpop.f32.mrf.mxu0
        %v4226 = vpop.f32.mrf.mxu0
        %4227 = vdwg.mxu0
        %v4228 = vsel %vm3458, %v4223, -inf
        %4229 = vmax.xlane.f32.xlu0 %v4228
        %v4230 = vpop.xlane.xlu0 %4229
        %v4231 = vsub.f32 %v4223, %v4230
        %v4232 = vmul.f32 %v4231, 1.442695
        %v4233 = vpow.pop %v4232
        %v4234 = vsel %vm3458, %v4233, 0.0
        %4235 = vadd.xlane.f32.xlu0 %v4234
        %v4236 = vpop.xlane.xlu0 %4235
        %v4237 = vrcp.pop %v4236
        %v4238 = vmul.f32 %v4233, %v4237
        %v4239 = vpack.c.bf16 %v4238, %v4238
        %4241 = vrot.lane.b32.xlu0 %v3404, 64
        %v4242 = vpop.permute.xlu0 %4241
        %v4244 = vsel %vm3458, %v4239, 0
        %v4247 = vsel %vm3474, %v4242, 0
        %4249 = vmatprep.subr.bf16.mxu0 0
        %4250 = vmatpush1.bf16.msra.mxu0 0
        %4251 = vmatprep.subr.bf16.mxu0 0
        %4252 = vmatpush1.bf16.msra.mxu0 0
        %4253 = vmatprep.subr.bf16.mxu0 0
        %4254 = vmatpush1.bf16.msra.mxu0 0
        %4255 = vmatprep.subr.bf16.mxu0 0
        %4256 = vmatpush1.bf16.msra.mxu0 0
        %4257 = vmatprep.subr.bf16.mxu0 0
        %4258 = vmatpush1.bf16.msra.mxu0 0
        %4259 = vmatprep.subr.bf16.mxu0 0
        %4260 = vmatpush1.bf16.msra.mxu0 0
        %4261 = vmatprep.subr.bf16.mxu0 0
        %4262 = vmatpush1.bf16.msra.mxu0 0
        %4263 = vmatprep.subr.bf16.mxu0 0
        %4264 = vmatpush1.bf16.msra.mxu0 %v4247
        %4265 = vmatprep.subr.bf16.mxu0 0
        %4266 = vmatpush2.bf16.msra.mxu0 0
        %4267 = vmatprep.subr.bf16.mxu0 0
        %4268 = vmatpush2.bf16.msra.mxu0 0
        %4269 = vmatprep.subr.bf16.mxu0 0
        %4270 = vmatpush2.bf16.msra.mxu0 0
        %4271 = vmatprep.subr.bf16.mxu0 0
        %4272 = vmatpush2.bf16.msra.mxu0 0
        %4273 = vmatprep.subr.bf16.mxu0 0
        %4274 = vmatpush2.bf16.msra.mxu0 0
        %4275 = vmatprep.subr.bf16.mxu0 0
        %4276 = vmatpush2.bf16.msra.mxu0 0
        %4277 = vmatprep.subr.bf16.mxu0 0
        %4278 = vmatpush2.bf16.msra.mxu0 0
        %4279 = vmatprep.subr.bf16.mxu0 0
        %4280 = vmatpush2.bf16.msra.mxu0 0
        %4281 = vmatprep.mubr.bf16.mxu0 0
        %4282 = vmatmul.mubr.bf16.gmra.mxu0 %v4244
        %v4283 = vpop.f32.mrf.mxu0
        %v4284 = vadd.f32 0.0, %v4283
        %v4285 = vpop.f32.mrf.mxu0
        %v4286 = vpop.f32.mrf.mxu0
        %v4287 = vpop.f32.mrf.mxu0
        %4288 = vdwg.mxu0
        %v4289 = vpack.c.bf16 %v4284, %v4284
        %4291 = vrot.lane.b32.xlu0 %v3632, 64
        %v4292 = vpop.permute.xlu0 %4291
        %4294 = vrot.lane.b32.xlu0 %v3851, 64
        %v4295 = vpop.permute.xlu0 %4294
        %4297 = vrot.lane.b32.xlu0 %v4070, 64
        %v4298 = vpop.permute.xlu0 %4297
        %4300 = vrot.lane.b32.xlu0 %v4289, 64
        %v4301 = vpop.permute.xlu0 %4300
        %v4304 = vsel %vm3411, %v3518, %v4292
        %v4308 = vsel %vm3411, %v3737, %v4295
        %v4312 = vsel %vm3411, %v3956, %v4298
        %v4316 = vsel %vm3411, %v4175, %v4301
        %v4318 = vld [vmem:[%s5] sm:$0xff]
        %v4319 = vld [vmem:[%s5 + $0x8] sm:$0xff]
        %v4320 = vld [vmem:[%s5 + $0x10] sm:$0xff]
        %v4321 = vld [vmem:[%s5 + $0x18] sm:$0xff]
        %v4322 = vld [vmem:[%s5 + $0x20] sm:$0xff]
        %v4323 = vld [vmem:[%s5 + $0x28] sm:$0xff]
        %v4324 = vld [vmem:[%s5 + $0x30] sm:$0xff]
        %v4325 = vld [vmem:[%s5 + $0x38] sm:$0xff]
        %v4326 = vld [vmem:[%s5 + $0x40] sm:$0xff]
        %v4327 = vld [vmem:[%s5 + $0x48] sm:$0xff]
        %v4328 = vld [vmem:[%s5 + $0x50] sm:$0xff]
        %v4329 = vld [vmem:[%s5 + $0x58] sm:$0xff]
        %v4330 = vld [vmem:[%s5 + $0x60] sm:$0xff]
        %v4331 = vld [vmem:[%s5 + $0x68] sm:$0xff]
        %v4332 = vld [vmem:[%s5 + $0x70] sm:$0xff]
        %v4333 = vld [vmem:[%s5 + $0x78] sm:$0xff]
        %v4334 = vld [vmem:[%s5 + $0x80] sm:$0xff]
        %v4335 = vld [vmem:[%s5 + $0x88] sm:$0xff]
        %v4336 = vld [vmem:[%s5 + $0x90] sm:$0xff]
        %v4337 = vld [vmem:[%s5 + $0x98] sm:$0xff]
        %v4338 = vld [vmem:[%s5 + $0xa0] sm:$0xff]
        %v4339 = vld [vmem:[%s5 + $0xa8] sm:$0xff]
        %v4340 = vld [vmem:[%s5 + $0xb0] sm:$0xff]
        %v4341 = vld [vmem:[%s5 + $0xb8] sm:$0xff]
        %v4342 = vld [vmem:[%s5 + $0xc0] sm:$0xff]
        %v4343 = vld [vmem:[%s5 + $0xc8] sm:$0xff]
        %v4344 = vld [vmem:[%s5 + $0xd0] sm:$0xff]
        %v4345 = vld [vmem:[%s5 + $0xd8] sm:$0xff]
        %v4346 = vld [vmem:[%s5 + $0xe0] sm:$0xff]
        %v4347 = vld [vmem:[%s5 + $0xe8] sm:$0xff]
        %v4348 = vld [vmem:[%s5 + $0xf0] sm:$0xff]
        %v4349 = vld [vmem:[%s5 + $0xf8] sm:$0xff]
        %v4350 = vld [vmem:[%s5 + $0x100] sm:$0xff]
        %v4351 = vld [vmem:[%s5 + $0x108] sm:$0xff]
        %v4352 = vld [vmem:[%s5 + $0x110] sm:$0xff]
        %v4353 = vld [vmem:[%s5 + $0x118] sm:$0xff]
        %v4354 = vld [vmem:[%s5 + $0x120] sm:$0xff]
        %v4355 = vld [vmem:[%s5 + $0x128] sm:$0xff]
        %v4356 = vld [vmem:[%s5 + $0x130] sm:$0xff]
        %v4357 = vld [vmem:[%s5 + $0x138] sm:$0xff]
        %v4358 = vld [vmem:[%s5 + $0x140] sm:$0xff]
        %v4359 = vld [vmem:[%s5 + $0x148] sm:$0xff]
        %v4360 = vld [vmem:[%s5 + $0x150] sm:$0xff]
        %v4361 = vld [vmem:[%s5 + $0x158] sm:$0xff]
        %v4362 = vld [vmem:[%s5 + $0x160] sm:$0xff]
        %v4363 = vld [vmem:[%s5 + $0x168] sm:$0xff]
        %v4364 = vld [vmem:[%s5 + $0x170] sm:$0xff]
        %v4365 = vld [vmem:[%s5 + $0x178] sm:$0xff]
        %v4366 = vld [vmem:[%s5 + $0x180] sm:$0xff]
        %v4367 = vld [vmem:[%s5 + $0x188] sm:$0xff]
        %v4368 = vld [vmem:[%s5 + $0x190] sm:$0xff]
        %v4369 = vld [vmem:[%s5 + $0x198] sm:$0xff]
        %v4370 = vld [vmem:[%s5 + $0x1a0] sm:$0xff]
        %v4371 = vld [vmem:[%s5 + $0x1a8] sm:$0xff]
        %v4372 = vld [vmem:[%s5 + $0x1b0] sm:$0xff]
        %v4373 = vld [vmem:[%s5 + $0x1b8] sm:$0xff]
        %v4374 = vld [vmem:[%s5 + $0x1c0] sm:$0xff]
        %v4375 = vld [vmem:[%s5 + $0x1c8] sm:$0xff]
        %v4376 = vld [vmem:[%s5 + $0x1d0] sm:$0xff]
        %v4377 = vld [vmem:[%s5 + $0x1d8] sm:$0xff]
        %v4378 = vld [vmem:[%s5 + $0x1e0] sm:$0xff]
        %v4379 = vld [vmem:[%s5 + $0x1e8] sm:$0xff]
        %v4380 = vld [vmem:[%s5 + $0x1f0] sm:$0xff]
        %v4381 = vld [vmem:[%s5 + $0x1f8] sm:$0xff]
        %v4382 = vld [vmem:[%s5 + $0x200] sm:$0xff]
        %v4383 = vld [vmem:[%s5 + $0x208] sm:$0xff]
        %v4384 = vld [vmem:[%s5 + $0x210] sm:$0xff]
        %v4385 = vld [vmem:[%s5 + $0x218] sm:$0xff]
        %v4386 = vld [vmem:[%s5 + $0x220] sm:$0xff]
        %v4387 = vld [vmem:[%s5 + $0x228] sm:$0xff]
        %v4388 = vld [vmem:[%s5 + $0x230] sm:$0xff]
        %v4389 = vld [vmem:[%s5 + $0x238] sm:$0xff]
        %v4390 = vld [vmem:[%s5 + $0x240] sm:$0xff]
        %v4391 = vld [vmem:[%s5 + $0x248] sm:$0xff]
        %v4392 = vld [vmem:[%s5 + $0x250] sm:$0xff]
        %v4393 = vld [vmem:[%s5 + $0x258] sm:$0xff]
        %v4394 = vld [vmem:[%s5 + $0x260] sm:$0xff]
        %v4395 = vld [vmem:[%s5 + $0x268] sm:$0xff]
        %v4396 = vld [vmem:[%s5 + $0x270] sm:$0xff]
        %v4397 = vld [vmem:[%s5 + $0x278] sm:$0xff]
        %v4398 = vld [vmem:[%s5 + $0x280] sm:$0xff]
        %v4399 = vld [vmem:[%s5 + $0x288] sm:$0xff]
        %v4400 = vld [vmem:[%s5 + $0x290] sm:$0xff]
        %v4401 = vld [vmem:[%s5 + $0x298] sm:$0xff]
        %v4402 = vld [vmem:[%s5 + $0x2a0] sm:$0xff]
        %v4403 = vld [vmem:[%s5 + $0x2a8] sm:$0xff]
        %v4404 = vld [vmem:[%s5 + $0x2b0] sm:$0xff]
        %v4405 = vld [vmem:[%s5 + $0x2b8] sm:$0xff]
        %v4406 = vld [vmem:[%s5 + $0x2c0] sm:$0xff]
        %v4407 = vld [vmem:[%s5 + $0x2c8] sm:$0xff]
        %v4408 = vld [vmem:[%s5 + $0x2d0] sm:$0xff]
        %v4409 = vld [vmem:[%s5 + $0x2d8] sm:$0xff]
        %v4410 = vld [vmem:[%s5 + $0x2e0] sm:$0xff]
        %v4411 = vld [vmem:[%s5 + $0x2e8] sm:$0xff]
        %v4412 = vld [vmem:[%s5 + $0x2f0] sm:$0xff]
        %v4413 = vld [vmem:[%s5 + $0x2f8] sm:$0xff]
        %v4414 = vld [vmem:[%s5 + $0x300] sm:$0xff]
        %v4415 = vld [vmem:[%s5 + $0x308] sm:$0xff]
        %v4416 = vld [vmem:[%s5 + $0x310] sm:$0xff]
        %v4417 = vld [vmem:[%s5 + $0x318] sm:$0xff]
        %v4418 = vld [vmem:[%s5 + $0x320] sm:$0xff]
        %v4419 = vld [vmem:[%s5 + $0x328] sm:$0xff]
        %v4420 = vld [vmem:[%s5 + $0x330] sm:$0xff]
        %v4421 = vld [vmem:[%s5 + $0x338] sm:$0xff]
        %v4422 = vld [vmem:[%s5 + $0x340] sm:$0xff]
        %v4423 = vld [vmem:[%s5 + $0x348] sm:$0xff]
        %v4424 = vld [vmem:[%s5 + $0x350] sm:$0xff]
        %v4425 = vld [vmem:[%s5 + $0x358] sm:$0xff]
        %v4426 = vld [vmem:[%s5 + $0x360] sm:$0xff]
        %v4427 = vld [vmem:[%s5 + $0x368] sm:$0xff]
        %v4428 = vld [vmem:[%s5 + $0x370] sm:$0xff]
        %v4429 = vld [vmem:[%s5 + $0x378] sm:$0xff]
        %v4430 = vld [vmem:[%s5 + $0x380] sm:$0xff]
        %v4431 = vld [vmem:[%s5 + $0x388] sm:$0xff]
        %v4432 = vld [vmem:[%s5 + $0x390] sm:$0xff]
        %v4433 = vld [vmem:[%s5 + $0x398] sm:$0xff]
        %v4434 = vld [vmem:[%s5 + $0x3a0] sm:$0xff]
        %v4435 = vld [vmem:[%s5 + $0x3a8] sm:$0xff]
        %v4436 = vld [vmem:[%s5 + $0x3b0] sm:$0xff]
        %v4437 = vld [vmem:[%s5 + $0x3b8] sm:$0xff]
        %v4438 = vld [vmem:[%s5 + $0x3c0] sm:$0xff]
        %v4439 = vld [vmem:[%s5 + $0x3c8] sm:$0xff]
        %v4440 = vld [vmem:[%s5 + $0x3d0] sm:$0xff]
        %v4441 = vld [vmem:[%s5 + $0x3d8] sm:$0xff]
        %v4442 = vld [vmem:[%s5 + $0x3e0] sm:$0xff]
        %v4443 = vld [vmem:[%s5 + $0x3e8] sm:$0xff]
        %v4444 = vld [vmem:[%s5 + $0x3f0] sm:$0xff]
        %v4445 = vld [vmem:[%s5 + $0x3f8] sm:$0xff]
        %v4446 = vld [vmem:[%s6] sm:$0xf]
        %v4448 = vlaneseq
        %v4449 = vshrl.u32 %v4448, 7
        %v4450 = vsub.s32 0, %v4449
        %v4451 = vrot.slane %v4446, %v4450
        %v4452 = vlaneseq
        %v4453 = vshrl.u32 %v4452, 7
        %v4454 = vsub.s32 1, %v4453
        %v4455 = vrot.slane %v4446, %v4454
        %v4456 = vlaneseq
        %v4457 = vshrl.u32 %v4456, 7
        %v4458 = vsub.s32 2, %v4457
        %v4459 = vrot.slane %v4446, %v4458
        %v4460 = vlaneseq
        %v4461 = vshrl.u32 %v4460, 7
        %v4462 = vsub.s32 3, %v4461
        %v4463 = vrot.slane %v4446, %v4462
        %v4596 = vunpack.c.l.b16 %v4318
        %v4597 = vunpack.c.h.b16 %v4318
        %v4598 = vunpack.c.l.b16 %v4319
        %v4599 = vunpack.c.h.b16 %v4319
        %v4600 = vunpack.c.l.b16 %v4320
        %v4601 = vunpack.c.h.b16 %v4320
        %v4602 = vunpack.c.l.b16 %v4321
        %v4603 = vunpack.c.h.b16 %v4321
        %v4604 = vunpack.c.l.b16 %v4322
        %v4605 = vunpack.c.h.b16 %v4322
        %v4606 = vunpack.c.l.b16 %v4323
        %v4607 = vunpack.c.h.b16 %v4323
        %v4608 = vunpack.c.l.b16 %v4324
        %v4609 = vunpack.c.h.b16 %v4324
        %v4610 = vunpack.c.l.b16 %v4325
        %v4611 = vunpack.c.h.b16 %v4325
        %v4612 = vunpack.c.l.b16 %v4326
        %v4613 = vunpack.c.h.b16 %v4326
        %v4614 = vunpack.c.l.b16 %v4327
        %v4615 = vunpack.c.h.b16 %v4327
        %v4616 = vunpack.c.l.b16 %v4328
        %v4617 = vunpack.c.h.b16 %v4328
        %v4618 = vunpack.c.l.b16 %v4329
        %v4619 = vunpack.c.h.b16 %v4329
        %v4620 = vunpack.c.l.b16 %v4330
        %v4621 = vunpack.c.h.b16 %v4330
        %v4622 = vunpack.c.l.b16 %v4331
        %v4623 = vunpack.c.h.b16 %v4331
        %v4624 = vunpack.c.l.b16 %v4332
        %v4625 = vunpack.c.h.b16 %v4332
        %v4626 = vunpack.c.l.b16 %v4333
        %v4627 = vunpack.c.h.b16 %v4333
        %v4628 = vunpack.c.l.b16 %v4334
        %v4629 = vunpack.c.h.b16 %v4334
        %v4630 = vunpack.c.l.b16 %v4335
        %v4631 = vunpack.c.h.b16 %v4335
        %v4632 = vunpack.c.l.b16 %v4336
        %v4633 = vunpack.c.h.b16 %v4336
        %v4634 = vunpack.c.l.b16 %v4337
        %v4635 = vunpack.c.h.b16 %v4337
        %v4636 = vunpack.c.l.b16 %v4338
        %v4637 = vunpack.c.h.b16 %v4338
        %v4638 = vunpack.c.l.b16 %v4339
        %v4639 = vunpack.c.h.b16 %v4339
        %v4640 = vunpack.c.l.b16 %v4340
        %v4641 = vunpack.c.h.b16 %v4340
        %v4642 = vunpack.c.l.b16 %v4341
        %v4643 = vunpack.c.h.b16 %v4341
        %v4644 = vunpack.c.l.b16 %v4342
        %v4645 = vunpack.c.h.b16 %v4342
        %v4646 = vunpack.c.l.b16 %v4343
        %v4647 = vunpack.c.h.b16 %v4343
        %v4648 = vunpack.c.l.b16 %v4344
        %v4649 = vunpack.c.h.b16 %v4344
        %v4650 = vunpack.c.l.b16 %v4345
        %v4651 = vunpack.c.h.b16 %v4345
        %v4652 = vunpack.c.l.b16 %v4346
        %v4653 = vunpack.c.h.b16 %v4346
        %v4654 = vunpack.c.l.b16 %v4347
        %v4655 = vunpack.c.h.b16 %v4347
        %v4656 = vunpack.c.l.b16 %v4348
        %v4657 = vunpack.c.h.b16 %v4348
        %v4658 = vunpack.c.l.b16 %v4349
        %v4659 = vunpack.c.h.b16 %v4349
        %v4660 = vunpack.c.l.b16 %v4350
        %v4661 = vunpack.c.h.b16 %v4350
        %v4662 = vunpack.c.l.b16 %v4351
        %v4663 = vunpack.c.h.b16 %v4351
        %v4664 = vunpack.c.l.b16 %v4352
        %v4665 = vunpack.c.h.b16 %v4352
        %v4666 = vunpack.c.l.b16 %v4353
        %v4667 = vunpack.c.h.b16 %v4353
        %v4668 = vunpack.c.l.b16 %v4354
        %v4669 = vunpack.c.h.b16 %v4354
        %v4670 = vunpack.c.l.b16 %v4355
        %v4671 = vunpack.c.h.b16 %v4355
        %v4672 = vunpack.c.l.b16 %v4356
        %v4673 = vunpack.c.h.b16 %v4356
        %v4674 = vunpack.c.l.b16 %v4357
        %v4675 = vunpack.c.h.b16 %v4357
        %v4676 = vunpack.c.l.b16 %v4358
        %v4677 = vunpack.c.h.b16 %v4358
        %v4678 = vunpack.c.l.b16 %v4359
        %v4679 = vunpack.c.h.b16 %v4359
        %v4680 = vunpack.c.l.b16 %v4360
        %v4681 = vunpack.c.h.b16 %v4360
        %v4682 = vunpack.c.l.b16 %v4361
        %v4683 = vunpack.c.h.b16 %v4361
        %v4684 = vunpack.c.l.b16 %v4362
        %v4685 = vunpack.c.h.b16 %v4362
        %v4686 = vunpack.c.l.b16 %v4363
        %v4687 = vunpack.c.h.b16 %v4363
        %v4688 = vunpack.c.l.b16 %v4364
        %v4689 = vunpack.c.h.b16 %v4364
        %v4690 = vunpack.c.l.b16 %v4365
        %v4691 = vunpack.c.h.b16 %v4365
        %v4692 = vunpack.c.l.b16 %v4366
        %v4693 = vunpack.c.h.b16 %v4366
        %v4694 = vunpack.c.l.b16 %v4367
        %v4695 = vunpack.c.h.b16 %v4367
        %v4696 = vunpack.c.l.b16 %v4368
        %v4697 = vunpack.c.h.b16 %v4368
        %v4698 = vunpack.c.l.b16 %v4369
        %v4699 = vunpack.c.h.b16 %v4369
        %v4700 = vunpack.c.l.b16 %v4370
        %v4701 = vunpack.c.h.b16 %v4370
        %v4702 = vunpack.c.l.b16 %v4371
        %v4703 = vunpack.c.h.b16 %v4371
        %v4704 = vunpack.c.l.b16 %v4372
        %v4705 = vunpack.c.h.b16 %v4372
        %v4706 = vunpack.c.l.b16 %v4373
        %v4707 = vunpack.c.h.b16 %v4373
        %v4708 = vunpack.c.l.b16 %v4374
        %v4709 = vunpack.c.h.b16 %v4374
        %v4710 = vunpack.c.l.b16 %v4375
        %v4711 = vunpack.c.h.b16 %v4375
        %v4712 = vunpack.c.l.b16 %v4376
        %v4713 = vunpack.c.h.b16 %v4376
        %v4714 = vunpack.c.l.b16 %v4377
        %v4715 = vunpack.c.h.b16 %v4377
        %v4716 = vunpack.c.l.b16 %v4378
        %v4717 = vunpack.c.h.b16 %v4378
        %v4718 = vunpack.c.l.b16 %v4379
        %v4719 = vunpack.c.h.b16 %v4379
        %v4720 = vunpack.c.l.b16 %v4380
        %v4721 = vunpack.c.h.b16 %v4380
        %v4722 = vunpack.c.l.b16 %v4381
        %v4723 = vunpack.c.h.b16 %v4381
        %v4724 = vunpack.c.l.b16 %v4382
        %v4725 = vunpack.c.h.b16 %v4382
        %v4726 = vunpack.c.l.b16 %v4383
        %v4727 = vunpack.c.h.b16 %v4383
        %v4728 = vunpack.c.l.b16 %v4384
        %v4729 = vunpack.c.h.b16 %v4384
        %v4730 = vunpack.c.l.b16 %v4385
        %v4731 = vunpack.c.h.b16 %v4385
        %v4732 = vunpack.c.l.b16 %v4386
        %v4733 = vunpack.c.h.b16 %v4386
        %v4734 = vunpack.c.l.b16 %v4387
        %v4735 = vunpack.c.h.b16 %v4387
        %v4736 = vunpack.c.l.b16 %v4388
        %v4737 = vunpack.c.h.b16 %v4388
        %v4738 = vunpack.c.l.b16 %v4389
        %v4739 = vunpack.c.h.b16 %v4389
        %v4740 = vunpack.c.l.b16 %v4390
        %v4741 = vunpack.c.h.b16 %v4390
        %v4742 = vunpack.c.l.b16 %v4391
        %v4743 = vunpack.c.h.b16 %v4391
        %v4744 = vunpack.c.l.b16 %v4392
        %v4745 = vunpack.c.h.b16 %v4392
        %v4746 = vunpack.c.l.b16 %v4393
        %v4747 = vunpack.c.h.b16 %v4393
        %v4748 = vunpack.c.l.b16 %v4394
        %v4749 = vunpack.c.h.b16 %v4394
        %v4750 = vunpack.c.l.b16 %v4395
        %v4751 = vunpack.c.h.b16 %v4395
        %v4752 = vunpack.c.l.b16 %v4396
        %v4753 = vunpack.c.h.b16 %v4396
        %v4754 = vunpack.c.l.b16 %v4397
        %v4755 = vunpack.c.h.b16 %v4397
        %v4756 = vunpack.c.l.b16 %v4398
        %v4757 = vunpack.c.h.b16 %v4398
        %v4758 = vunpack.c.l.b16 %v4399
        %v4759 = vunpack.c.h.b16 %v4399
        %v4760 = vunpack.c.l.b16 %v4400
        %v4761 = vunpack.c.h.b16 %v4400
        %v4762 = vunpack.c.l.b16 %v4401
        %v4763 = vunpack.c.h.b16 %v4401
        %v4764 = vunpack.c.l.b16 %v4402
        %v4765 = vunpack.c.h.b16 %v4402
        %v4766 = vunpack.c.l.b16 %v4403
        %v4767 = vunpack.c.h.b16 %v4403
        %v4768 = vunpack.c.l.b16 %v4404
        %v4769 = vunpack.c.h.b16 %v4404
        %v4770 = vunpack.c.l.b16 %v4405
        %v4771 = vunpack.c.h.b16 %v4405
        %v4772 = vunpack.c.l.b16 %v4406
        %v4773 = vunpack.c.h.b16 %v4406
        %v4774 = vunpack.c.l.b16 %v4407
        %v4775 = vunpack.c.h.b16 %v4407
        %v4776 = vunpack.c.l.b16 %v4408
        %v4777 = vunpack.c.h.b16 %v4408
        %v4778 = vunpack.c.l.b16 %v4409
        %v4779 = vunpack.c.h.b16 %v4409
        %v4780 = vunpack.c.l.b16 %v4410
        %v4781 = vunpack.c.h.b16 %v4410
        %v4782 = vunpack.c.l.b16 %v4411
        %v4783 = vunpack.c.h.b16 %v4411
        %v4784 = vunpack.c.l.b16 %v4412
        %v4785 = vunpack.c.h.b16 %v4412
        %v4786 = vunpack.c.l.b16 %v4413
        %v4787 = vunpack.c.h.b16 %v4413
        %v4788 = vunpack.c.l.b16 %v4414
        %v4789 = vunpack.c.h.b16 %v4414
        %v4790 = vunpack.c.l.b16 %v4415
        %v4791 = vunpack.c.h.b16 %v4415
        %v4792 = vunpack.c.l.b16 %v4416
        %v4793 = vunpack.c.h.b16 %v4416
        %v4794 = vunpack.c.l.b16 %v4417
        %v4795 = vunpack.c.h.b16 %v4417
        %v4796 = vunpack.c.l.b16 %v4418
        %v4797 = vunpack.c.h.b16 %v4418
        %v4798 = vunpack.c.l.b16 %v4419
        %v4799 = vunpack.c.h.b16 %v4419
        %v4800 = vunpack.c.l.b16 %v4420
        %v4801 = vunpack.c.h.b16 %v4420
        %v4802 = vunpack.c.l.b16 %v4421
        %v4803 = vunpack.c.h.b16 %v4421
        %v4804 = vunpack.c.l.b16 %v4422
        %v4805 = vunpack.c.h.b16 %v4422
        %v4806 = vunpack.c.l.b16 %v4423
        %v4807 = vunpack.c.h.b16 %v4423
        %v4808 = vunpack.c.l.b16 %v4424
        %v4809 = vunpack.c.h.b16 %v4424
        %v4810 = vunpack.c.l.b16 %v4425
        %v4811 = vunpack.c.h.b16 %v4425
        %v4812 = vunpack.c.l.b16 %v4426
        %v4813 = vunpack.c.h.b16 %v4426
        %v4814 = vunpack.c.l.b16 %v4427
        %v4815 = vunpack.c.h.b16 %v4427
        %v4816 = vunpack.c.l.b16 %v4428
        %v4817 = vunpack.c.h.b16 %v4428
        %v4818 = vunpack.c.l.b16 %v4429
        %v4819 = vunpack.c.h.b16 %v4429
        %v4820 = vunpack.c.l.b16 %v4430
        %v4821 = vunpack.c.h.b16 %v4430
        %v4822 = vunpack.c.l.b16 %v4431
        %v4823 = vunpack.c.h.b16 %v4431
        %v4824 = vunpack.c.l.b16 %v4432
        %v4825 = vunpack.c.h.b16 %v4432
        %v4826 = vunpack.c.l.b16 %v4433
        %v4827 = vunpack.c.h.b16 %v4433
        %v4828 = vunpack.c.l.b16 %v4434
        %v4829 = vunpack.c.h.b16 %v4434
        %v4830 = vunpack.c.l.b16 %v4435
        %v4831 = vunpack.c.h.b16 %v4435
        %v4832 = vunpack.c.l.b16 %v4436
        %v4833 = vunpack.c.h.b16 %v4436
        %v4834 = vunpack.c.l.b16 %v4437
        %v4835 = vunpack.c.h.b16 %v4437
        %v4836 = vunpack.c.l.b16 %v4438
        %v4837 = vunpack.c.h.b16 %v4438
        %v4838 = vunpack.c.l.b16 %v4439
        %v4839 = vunpack.c.h.b16 %v4439
        %v4840 = vunpack.c.l.b16 %v4440
        %v4841 = vunpack.c.h.b16 %v4440
        %v4842 = vunpack.c.l.b16 %v4441
        %v4843 = vunpack.c.h.b16 %v4441
        %v4844 = vunpack.c.l.b16 %v4442
        %v4845 = vunpack.c.h.b16 %v4442
        %v4846 = vunpack.c.l.b16 %v4443
        %v4847 = vunpack.c.h.b16 %v4443
        %v4848 = vunpack.c.l.b16 %v4444
        %v4849 = vunpack.c.h.b16 %v4444
        %v4850 = vunpack.c.l.b16 %v4445
        %v4851 = vunpack.c.h.b16 %v4445
        %v4852 = vpack.c.b16 %v4600, %v4596
        %v4853 = vpack.c.b16 %v4601, %v4597
        %v4854 = vpack.c.b16 %v4602, %v4598
        %v4855 = vpack.c.b16 %v4603, %v4599
        %v4856 = vpack.c.b16 %v4608, %v4604
        %v4857 = vpack.c.b16 %v4609, %v4605
        %v4858 = vpack.c.b16 %v4610, %v4606
        %v4859 = vpack.c.b16 %v4611, %v4607
        %v4860 = vpack.c.b16 %v4616, %v4612
        %v4861 = vpack.c.b16 %v4617, %v4613
        %v4862 = vpack.c.b16 %v4618, %v4614
        %v4863 = vpack.c.b16 %v4619, %v4615
        %v4864 = vpack.c.b16 %v4624, %v4620
        %v4865 = vpack.c.b16 %v4625, %v4621
        %v4866 = vpack.c.b16 %v4626, %v4622
        %v4867 = vpack.c.b16 %v4627, %v4623
        %v4868 = vpack.c.b16 %v4632, %v4628
        %v4869 = vpack.c.b16 %v4633, %v4629
        %v4870 = vpack.c.b16 %v4634, %v4630
        %v4871 = vpack.c.b16 %v4635, %v4631
        %v4872 = vpack.c.b16 %v4640, %v4636
        %v4873 = vpack.c.b16 %v4641, %v4637
        %v4874 = vpack.c.b16 %v4642, %v4638
        %v4875 = vpack.c.b16 %v4643, %v4639
        %v4876 = vpack.c.b16 %v4648, %v4644
        %v4877 = vpack.c.b16 %v4649, %v4645
        %v4878 = vpack.c.b16 %v4650, %v4646
        %v4879 = vpack.c.b16 %v4651, %v4647
        %v4880 = vpack.c.b16 %v4656, %v4652
        %v4881 = vpack.c.b16 %v4657, %v4653
        %v4882 = vpack.c.b16 %v4658, %v4654
        %v4883 = vpack.c.b16 %v4659, %v4655
        %v4884 = vpack.c.b16 %v4664, %v4660
        %v4885 = vpack.c.b16 %v4665, %v4661
        %v4886 = vpack.c.b16 %v4666, %v4662
        %v4887 = vpack.c.b16 %v4667, %v4663
        %v4888 = vpack.c.b16 %v4672, %v4668
        %v4889 = vpack.c.b16 %v4673, %v4669
        %v4890 = vpack.c.b16 %v4674, %v4670
        %v4891 = vpack.c.b16 %v4675, %v4671
        %v4892 = vpack.c.b16 %v4680, %v4676
        %v4893 = vpack.c.b16 %v4681, %v4677
        %v4894 = vpack.c.b16 %v4682, %v4678
        %v4895 = vpack.c.b16 %v4683, %v4679
        %v4896 = vpack.c.b16 %v4688, %v4684
        %v4897 = vpack.c.b16 %v4689, %v4685
        %v4898 = vpack.c.b16 %v4690, %v4686
        %v4899 = vpack.c.b16 %v4691, %v4687
        %v4900 = vpack.c.b16 %v4696, %v4692
        %v4901 = vpack.c.b16 %v4697, %v4693
        %v4902 = vpack.c.b16 %v4698, %v4694
        %v4903 = vpack.c.b16 %v4699, %v4695
        %v4904 = vpack.c.b16 %v4704, %v4700
        %v4905 = vpack.c.b16 %v4705, %v4701
        %v4906 = vpack.c.b16 %v4706, %v4702
        %v4907 = vpack.c.b16 %v4707, %v4703
        %v4908 = vpack.c.b16 %v4712, %v4708
        %v4909 = vpack.c.b16 %v4713, %v4709
        %v4910 = vpack.c.b16 %v4714, %v4710
        %v4911 = vpack.c.b16 %v4715, %v4711
        %v4912 = vpack.c.b16 %v4720, %v4716
        %v4913 = vpack.c.b16 %v4721, %v4717
        %v4914 = vpack.c.b16 %v4722, %v4718
        %v4915 = vpack.c.b16 %v4723, %v4719
        %v4916 = vpack.c.b16 %v4728, %v4724
        %v4917 = vpack.c.b16 %v4729, %v4725
        %v4918 = vpack.c.b16 %v4730, %v4726
        %v4919 = vpack.c.b16 %v4731, %v4727
        %v4920 = vpack.c.b16 %v4736, %v4732
        %v4921 = vpack.c.b16 %v4737, %v4733
        %v4922 = vpack.c.b16 %v4738, %v4734
        %v4923 = vpack.c.b16 %v4739, %v4735
        %v4924 = vpack.c.b16 %v4744, %v4740
        %v4925 = vpack.c.b16 %v4745, %v4741
        %v4926 = vpack.c.b16 %v4746, %v4742
        %v4927 = vpack.c.b16 %v4747, %v4743
        %v4928 = vpack.c.b16 %v4752, %v4748
        %v4929 = vpack.c.b16 %v4753, %v4749
        %v4930 = vpack.c.b16 %v4754, %v4750
        %v4931 = vpack.c.b16 %v4755, %v4751
        %v4932 = vpack.c.b16 %v4760, %v4756
        %v4933 = vpack.c.b16 %v4761, %v4757
        %v4934 = vpack.c.b16 %v4762, %v4758
        %v4935 = vpack.c.b16 %v4763, %v4759
        %v4936 = vpack.c.b16 %v4768, %v4764
        %v4937 = vpack.c.b16 %v4769, %v4765
        %v4938 = vpack.c.b16 %v4770, %v4766
        %v4939 = vpack.c.b16 %v4771, %v4767
        %v4940 = vpack.c.b16 %v4776, %v4772
        %v4941 = vpack.c.b16 %v4777, %v4773
        %v4942 = vpack.c.b16 %v4778, %v4774
        %v4943 = vpack.c.b16 %v4779, %v4775
        %v4944 = vpack.c.b16 %v4784, %v4780
        %v4945 = vpack.c.b16 %v4785, %v4781
        %v4946 = vpack.c.b16 %v4786, %v4782
        %v4947 = vpack.c.b16 %v4787, %v4783
        %v4948 = vpack.c.b16 %v4792, %v4788
        %v4949 = vpack.c.b16 %v4793, %v4789
        %v4950 = vpack.c.b16 %v4794, %v4790
        %v4951 = vpack.c.b16 %v4795, %v4791
        %v4952 = vpack.c.b16 %v4800, %v4796
        %v4953 = vpack.c.b16 %v4801, %v4797
        %v4954 = vpack.c.b16 %v4802, %v4798
        %v4955 = vpack.c.b16 %v4803, %v4799
        %v4956 = vpack.c.b16 %v4808, %v4804
        %v4957 = vpack.c.b16 %v4809, %v4805
        %v4958 = vpack.c.b16 %v4810, %v4806
        %v4959 = vpack.c.b16 %v4811, %v4807
        %v4960 = vpack.c.b16 %v4816, %v4812
        %v4961 = vpack.c.b16 %v4817, %v4813
        %v4962 = vpack.c.b16 %v4818, %v4814
        %v4963 = vpack.c.b16 %v4819, %v4815
        %v4964 = vpack.c.b16 %v4824, %v4820
        %v4965 = vpack.c.b16 %v4825, %v4821
        %v4966 = vpack.c.b16 %v4826, %v4822
        %v4967 = vpack.c.b16 %v4827, %v4823
        %v4968 = vpack.c.b16 %v4832, %v4828
        %v4969 = vpack.c.b16 %v4833, %v4829
        %v4970 = vpack.c.b16 %v4834, %v4830
        %v4971 = vpack.c.b16 %v4835, %v4831
        %v4972 = vpack.c.b16 %v4840, %v4836
        %v4973 = vpack.c.b16 %v4841, %v4837
        %v4974 = vpack.c.b16 %v4842, %v4838
        %v4975 = vpack.c.b16 %v4843, %v4839
        %v4976 = vpack.c.b16 %v4848, %v4844
        %v4977 = vpack.c.b16 %v4849, %v4845
        %v4978 = vpack.c.b16 %v4850, %v4846
        %v4979 = vpack.c.b16 %v4851, %v4847
        %5108 = vmatprep.subr.bf16.mxu0 %v4881
        %5109 = vmatpush1.bf16.msra.mxu0 %v4880
        %5110 = vmatprep.subr.bf16.mxu0 %v4877
        %5111 = vmatpush1.bf16.msra.mxu0 %v4876
        %5112 = vmatprep.subr.bf16.mxu0 %v4873
        %5113 = vmatpush1.bf16.msra.mxu0 %v4872
        %5114 = vmatprep.subr.bf16.mxu0 %v4869
        %5115 = vmatpush1.bf16.msra.mxu0 %v4868
        %5116 = vmatprep.subr.bf16.mxu0 %v4865
        %5117 = vmatpush1.bf16.msra.mxu0 %v4864
        %5118 = vmatprep.subr.bf16.mxu0 %v4861
        %5119 = vmatpush1.bf16.msra.mxu0 %v4860
        %5120 = vmatprep.subr.bf16.mxu0 %v4857
        %5121 = vmatpush1.bf16.msra.mxu0 %v4856
        %5122 = vmatprep.subr.bf16.mxu0 %v4853
        %5123 = vmatpush1.bf16.msra.mxu0 %v4852
        %5124 = vmatprep.subr.bf16.mxu0 %v4913
        %5125 = vmatpush2.bf16.msra.mxu0 %v4912
        %5126 = vmatprep.subr.bf16.mxu0 %v4909
        %5127 = vmatpush2.bf16.msra.mxu0 %v4908
        %5128 = vmatprep.subr.bf16.mxu0 %v4905
        %5129 = vmatpush2.bf16.msra.mxu0 %v4904
        %5130 = vmatprep.subr.bf16.mxu0 %v4901
        %5131 = vmatpush2.bf16.msra.mxu0 %v4900
        %5132 = vmatprep.subr.bf16.mxu0 %v4897
        %5133 = vmatpush2.bf16.msra.mxu0 %v4896
        %5134 = vmatprep.subr.bf16.mxu0 %v4893
        %5135 = vmatpush2.bf16.msra.mxu0 %v4892
        %5136 = vmatprep.subr.bf16.mxu0 %v4889
        %5137 = vmatpush2.bf16.msra.mxu0 %v4888
        %5138 = vmatprep.subr.bf16.mxu0 %v4885
        %5139 = vmatpush2.bf16.msra.mxu0 %v4884
        %5140 = vmatprep.mubr.bf16.mxu0 %v4308
        %5141 = vmatmul.mubr.bf16.gmra.mxu0 %v4304
        %v5142 = vpop.f32.mrf.mxu0
        %v5143 = vadd.f32 %v4451, %v5142
        %v5144 = vpop.f32.mrf.mxu0
        %v5145 = vadd.f32 %v4455, %v5144
        %v5146 = vpop.f32.mrf.mxu0
        %v5147 = vpop.f32.mrf.mxu0
        %5148 = vdwg.mxu0
        %5149 = vmatprep.subr.bf16.mxu0 %v4945
        %5150 = vmatpush1.bf16.msra.mxu0 %v4944
        %5151 = vmatprep.subr.bf16.mxu0 %v4941
        %5152 = vmatpush1.bf16.msra.mxu0 %v4940
        %5153 = vmatprep.subr.bf16.mxu0 %v4937
        %5154 = vmatpush1.bf16.msra.mxu0 %v4936
        %5155 = vmatprep.subr.bf16.mxu0 %v4933
        %5156 = vmatpush1.bf16.msra.mxu0 %v4932
        %5157 = vmatprep.subr.bf16.mxu0 %v4929
        %5158 = vmatpush1.bf16.msra.mxu0 %v4928
        %5159 = vmatprep.subr.bf16.mxu0 %v4925
        %5160 = vmatpush1.bf16.msra.mxu0 %v4924
        %5161 = vmatprep.subr.bf16.mxu0 %v4921
        %5162 = vmatpush1.bf16.msra.mxu0 %v4920
        %5163 = vmatprep.subr.bf16.mxu0 %v4917
        %5164 = vmatpush1.bf16.msra.mxu0 %v4916
        %5165 = vmatprep.subr.bf16.mxu0 %v4977
        %5166 = vmatpush2.bf16.msra.mxu0 %v4976
        %5167 = vmatprep.subr.bf16.mxu0 %v4973
        %5168 = vmatpush2.bf16.msra.mxu0 %v4972
        %5169 = vmatprep.subr.bf16.mxu0 %v4969
        %5170 = vmatpush2.bf16.msra.mxu0 %v4968
        %5171 = vmatprep.subr.bf16.mxu0 %v4965
        %5172 = vmatpush2.bf16.msra.mxu0 %v4964
        %5173 = vmatprep.subr.bf16.mxu0 %v4961
        %5174 = vmatpush2.bf16.msra.mxu0 %v4960
        %5175 = vmatprep.subr.bf16.mxu0 %v4957
        %5176 = vmatpush2.bf16.msra.mxu0 %v4956
        %5177 = vmatprep.subr.bf16.mxu0 %v4953
        %5178 = vmatpush2.bf16.msra.mxu0 %v4952
        %5179 = vmatprep.subr.bf16.mxu0 %v4949
        %5180 = vmatpush2.bf16.msra.mxu0 %v4948
        %5181 = vmatprep.mubr.bf16.mxu0 %v4316
        %5182 = vmatmul.mubr.bf16.gmra.mxu0 %v4312
        %v5183 = vpop.f32.mrf.mxu0
        %v5184 = vadd.f32 %v5143, %v5183
        %v5185 = vpop.f32.mrf.mxu0
        %v5186 = vadd.f32 %v5145, %v5185
        %v5187 = vpop.f32.mrf.mxu0
        %v5188 = vpop.f32.mrf.mxu0
        %5189 = vdwg.mxu0
        %5190 = vmatprep.subr.bf16.mxu0 %v4883
        %5191 = vmatpush1.bf16.msra.mxu0 %v4882
        %5192 = vmatprep.subr.bf16.mxu0 %v4879
        %5193 = vmatpush1.bf16.msra.mxu0 %v4878
        %5194 = vmatprep.subr.bf16.mxu0 %v4875
        %5195 = vmatpush1.bf16.msra.mxu0 %v4874
        %5196 = vmatprep.subr.bf16.mxu0 %v4871
        %5197 = vmatpush1.bf16.msra.mxu0 %v4870
        %5198 = vmatprep.subr.bf16.mxu0 %v4867
        %5199 = vmatpush1.bf16.msra.mxu0 %v4866
        %5200 = vmatprep.subr.bf16.mxu0 %v4863
        %5201 = vmatpush1.bf16.msra.mxu0 %v4862
        %5202 = vmatprep.subr.bf16.mxu0 %v4859
        %5203 = vmatpush1.bf16.msra.mxu0 %v4858
        %5204 = vmatprep.subr.bf16.mxu0 %v4855
        %5205 = vmatpush1.bf16.msra.mxu0 %v4854
        %5206 = vmatprep.subr.bf16.mxu0 %v4915
        %5207 = vmatpush2.bf16.msra.mxu0 %v4914
        %5208 = vmatprep.subr.bf16.mxu0 %v4911
        %5209 = vmatpush2.bf16.msra.mxu0 %v4910
        %5210 = vmatprep.subr.bf16.mxu0 %v4907
        %5211 = vmatpush2.bf16.msra.mxu0 %v4906
        %5212 = vmatprep.subr.bf16.mxu0 %v4903
        %5213 = vmatpush2.bf16.msra.mxu0 %v4902
        %5214 = vmatprep.subr.bf16.mxu0 %v4899
        %5215 = vmatpush2.bf16.msra.mxu0 %v4898
        %5216 = vmatprep.subr.bf16.mxu0 %v4895
        %5217 = vmatpush2.bf16.msra.mxu0 %v4894
        %5218 = vmatprep.subr.bf16.mxu0 %v4891
        %5219 = vmatpush2.bf16.msra.mxu0 %v4890
        %5220 = vmatprep.subr.bf16.mxu0 %v4887
        %5221 = vmatpush2.bf16.msra.mxu0 %v4886
        %5222 = vmatprep.mubr.bf16.mxu0 %v4308
        %5223 = vmatmul.mubr.bf16.gmra.mxu0 %v4304
        %v5224 = vpop.f32.mrf.mxu0
        %v5225 = vadd.f32 %v4459, %v5224
        %v5226 = vpop.f32.mrf.mxu0
        %v5227 = vadd.f32 %v4463, %v5226
        %v5228 = vpop.f32.mrf.mxu0
        %v5229 = vpop.f32.mrf.mxu0
        %5230 = vdwg.mxu0
        %5231 = vmatprep.subr.bf16.mxu0 %v4947
        %5232 = vmatpush1.bf16.msra.mxu0 %v4946
        %5233 = vmatprep.subr.bf16.mxu0 %v4943
        %5234 = vmatpush1.bf16.msra.mxu0 %v4942
        %5235 = vmatprep.subr.bf16.mxu0 %v4939
        %5236 = vmatpush1.bf16.msra.mxu0 %v4938
        %5237 = vmatprep.subr.bf16.mxu0 %v4935
        %5238 = vmatpush1.bf16.msra.mxu0 %v4934
        %5239 = vmatprep.subr.bf16.mxu0 %v4931
        %5240 = vmatpush1.bf16.msra.mxu0 %v4930
        %5241 = vmatprep.subr.bf16.mxu0 %v4927
        %5242 = vmatpush1.bf16.msra.mxu0 %v4926
        %5243 = vmatprep.subr.bf16.mxu0 %v4923
        %5244 = vmatpush1.bf16.msra.mxu0 %v4922
        %5245 = vmatprep.subr.bf16.mxu0 %v4919
        %5246 = vmatpush1.bf16.msra.mxu0 %v4918
        %5247 = vmatprep.subr.bf16.mxu0 %v4979
        %5248 = vmatpush2.bf16.msra.mxu0 %v4978
        %5249 = vmatprep.subr.bf16.mxu0 %v4975
        %5250 = vmatpush2.bf16.msra.mxu0 %v4974
        %5251 = vmatprep.subr.bf16.mxu0 %v4971
        %5252 = vmatpush2.bf16.msra.mxu0 %v4970
        %5253 = vmatprep.subr.bf16.mxu0 %v4967
        %5254 = vmatpush2.bf16.msra.mxu0 %v4966
        %5255 = vmatprep.subr.bf16.mxu0 %v4963
        %5256 = vmatpush2.bf16.msra.mxu0 %v4962
        %5257 = vmatprep.subr.bf16.mxu0 %v4959
        %5258 = vmatpush2.bf16.msra.mxu0 %v4958
        %5259 = vmatprep.subr.bf16.mxu0 %v4955
        %5260 = vmatpush2.bf16.msra.mxu0 %v4954
        %5261 = vmatprep.subr.bf16.mxu0 %v4951
        %5262 = vmatpush2.bf16.msra.mxu0 %v4950
        %5263 = vmatprep.mubr.bf16.mxu0 %v4316
        %5264 = vmatmul.mubr.bf16.gmra.mxu0 %v4312
        %v5265 = vpop.f32.mrf.mxu0
        %v5266 = vadd.f32 %v5225, %v5265
        %v5267 = vpop.f32.mrf.mxu0
        %v5268 = vadd.f32 %v5227, %v5267
        %v5269 = vpop.f32.mrf.mxu0
        %v5270 = vpop.f32.mrf.mxu0
        %5271 = vdwg.mxu0
        %v5272 = vadd.f32 %v442, %v5184
        %v5273 = vadd.f32 %v443, %v5186
        %v5274 = vadd.f32 %v444, %v5266
        %v5275 = vadd.f32 %v445, %v5268
        %v5276 = vadd.f32 %v5272, %v5273
        %v5277 = vadd.f32 %v5276, %v5274
        %v5278 = vadd.f32 %v5277, %v5275
        %5279 = vadd.xlane.f32.xlu0 %v5278
        %v5280 = vpop.xlane.xlu0 %5279
        %v5281 = vmul.f32 %v5280, %v451
        %v5282 = vsub.f32 %v5272, %v5281
        %v5283 = vsub.f32 %v5273, %v5281
        %v5284 = vsub.f32 %v5274, %v5281
        %v5285 = vsub.f32 %v5275, %v5281
        %v5286 = vmul.f32 %v5282, %v5282
        %v5287 = vmul.f32 %v5283, %v5283
        %v5288 = vmul.f32 %v5284, %v5284
        %v5289 = vmul.f32 %v5285, %v5285
        %v5290 = vadd.f32 %v5286, %v5287
        %v5291 = vadd.f32 %v5290, %v5288
        %v5292 = vadd.f32 %v5291, %v5289
        %5293 = vadd.xlane.f32.xlu0 %v5292
        %v5294 = vpop.xlane.xlu0 %5293
        %v5295 = vmul.f32 %v5294, %v451
        %v5296 = vadd.f32 %v5295, 1e-05
        %v5297 = vrsqrt.pop %v5296
        %v5298 = vmul.f32 %v5282, %v5297
        %v5299 = vmul.f32 %v5283, %v5297
        %v5300 = vmul.f32 %v5284, %v5297
        %v5301 = vmul.f32 %v5285, %v5297
        %v5302 = vld [vmem:[%s7] sm:$0xf]
        %v5304 = vlaneseq
        %v5305 = vshrl.u32 %v5304, 7
        %v5306 = vsub.s32 0, %v5305
        %v5307 = vrot.slane %v5302, %v5306
        %v5308 = vlaneseq
        %v5309 = vshrl.u32 %v5308, 7
        %v5310 = vsub.s32 1, %v5309
        %v5311 = vrot.slane %v5302, %v5310
        %v5312 = vlaneseq
        %v5313 = vshrl.u32 %v5312, 7
        %v5314 = vsub.s32 2, %v5313
        %v5315 = vrot.slane %v5302, %v5314
        %v5316 = vlaneseq
        %v5317 = vshrl.u32 %v5316, 7
        %v5318 = vsub.s32 3, %v5317
        %v5319 = vrot.slane %v5302, %v5318
        %v5324 = vmul.f32 %v5298, %v5307
        %v5325 = vmul.f32 %v5299, %v5311
        %v5326 = vmul.f32 %v5300, %v5315
        %v5327 = vmul.f32 %v5301, %v5319
        %v5328 = vld [vmem:[%s8] sm:$0xf]
        %v5330 = vlaneseq
        %v5331 = vshrl.u32 %v5330, 7
        %v5332 = vsub.s32 0, %v5331
        %v5333 = vrot.slane %v5328, %v5332
        %v5334 = vlaneseq
        %v5335 = vshrl.u32 %v5334, 7
        %v5336 = vsub.s32 1, %v5335
        %v5337 = vrot.slane %v5328, %v5336
        %v5338 = vlaneseq
        %v5339 = vshrl.u32 %v5338, 7
        %v5340 = vsub.s32 2, %v5339
        %v5341 = vrot.slane %v5328, %v5340
        %v5342 = vlaneseq
        %v5343 = vshrl.u32 %v5342, 7
        %v5344 = vsub.s32 3, %v5343
        %v5345 = vrot.slane %v5328, %v5344
        %v5350 = vadd.f32 %v5324, %v5333
        %v5351 = vadd.f32 %v5325, %v5337
        %v5352 = vadd.f32 %v5326, %v5341
        %v5353 = vadd.f32 %v5327, %v5345
        %v5354 = vpack.c.bf16 %v5350, %v5350
        %v5355 = vpack.c.bf16 %v5351, %v5351
        %v5356 = vpack.c.bf16 %v5352, %v5352
        %v5357 = vpack.c.bf16 %v5353, %v5353
        %v5358 = vld [vmem:[%s9] sm:$0xff]
        %v5359 = vld [vmem:[%s9 + $0x8] sm:$0xff]
        %v5360 = vld [vmem:[%s9 + $0x10] sm:$0xff]
        %v5361 = vld [vmem:[%s9 + $0x18] sm:$0xff]
        %v5362 = vld [vmem:[%s9 + $0x20] sm:$0xff]
        %v5363 = vld [vmem:[%s9 + $0x28] sm:$0xff]
        %v5364 = vld [vmem:[%s9 + $0x30] sm:$0xff]
        %v5365 = vld [vmem:[%s9 + $0x38] sm:$0xff]
        %v5366 = vld [vmem:[%s9 + $0x40] sm:$0xff]
        %v5367 = vld [vmem:[%s9 + $0x48] sm:$0xff]
        %v5368 = vld [vmem:[%s9 + $0x50] sm:$0xff]
        %v5369 = vld [vmem:[%s9 + $0x58] sm:$0xff]
        %v5370 = vld [vmem:[%s9 + $0x60] sm:$0xff]
        %v5371 = vld [vmem:[%s9 + $0x68] sm:$0xff]
        %v5372 = vld [vmem:[%s9 + $0x70] sm:$0xff]
        %v5373 = vld [vmem:[%s9 + $0x78] sm:$0xff]
        %v5374 = vld [vmem:[%s9 + $0x80] sm:$0xff]
        %v5375 = vld [vmem:[%s9 + $0x88] sm:$0xff]
        %v5376 = vld [vmem:[%s9 + $0x90] sm:$0xff]
        %v5377 = vld [vmem:[%s9 + $0x98] sm:$0xff]
        %v5378 = vld [vmem:[%s9 + $0xa0] sm:$0xff]
        %v5379 = vld [vmem:[%s9 + $0xa8] sm:$0xff]
        %v5380 = vld [vmem:[%s9 + $0xb0] sm:$0xff]
        %v5381 = vld [vmem:[%s9 + $0xb8] sm:$0xff]
        %v5382 = vld [vmem:[%s9 + $0xc0] sm:$0xff]
        %v5383 = vld [vmem:[%s9 + $0xc8] sm:$0xff]
        %v5384 = vld [vmem:[%s9 + $0xd0] sm:$0xff]
        %v5385 = vld [vmem:[%s9 + $0xd8] sm:$0xff]
        %v5386 = vld [vmem:[%s9 + $0xe0] sm:$0xff]
        %v5387 = vld [vmem:[%s9 + $0xe8] sm:$0xff]
        %v5388 = vld [vmem:[%s9 + $0xf0] sm:$0xff]
        %v5389 = vld [vmem:[%s9 + $0xf8] sm:$0xff]
        %v5390 = vld [vmem:[%s9 + $0x100] sm:$0xff]
        %v5391 = vld [vmem:[%s9 + $0x108] sm:$0xff]
        %v5392 = vld [vmem:[%s9 + $0x110] sm:$0xff]
        %v5393 = vld [vmem:[%s9 + $0x118] sm:$0xff]
        %v5394 = vld [vmem:[%s9 + $0x120] sm:$0xff]
        %v5395 = vld [vmem:[%s9 + $0x128] sm:$0xff]
        %v5396 = vld [vmem:[%s9 + $0x130] sm:$0xff]
        %v5397 = vld [vmem:[%s9 + $0x138] sm:$0xff]
        %v5398 = vld [vmem:[%s9 + $0x140] sm:$0xff]
        %v5399 = vld [vmem:[%s9 + $0x148] sm:$0xff]
        %v5400 = vld [vmem:[%s9 + $0x150] sm:$0xff]
        %v5401 = vld [vmem:[%s9 + $0x158] sm:$0xff]
        %v5402 = vld [vmem:[%s9 + $0x160] sm:$0xff]
        %v5403 = vld [vmem:[%s9 + $0x168] sm:$0xff]
        %v5404 = vld [vmem:[%s9 + $0x170] sm:$0xff]
        %v5405 = vld [vmem:[%s9 + $0x178] sm:$0xff]
        %v5406 = vld [vmem:[%s9 + $0x180] sm:$0xff]
        %v5407 = vld [vmem:[%s9 + $0x188] sm:$0xff]
        %v5408 = vld [vmem:[%s9 + $0x190] sm:$0xff]
        %v5409 = vld [vmem:[%s9 + $0x198] sm:$0xff]
        %v5410 = vld [vmem:[%s9 + $0x1a0] sm:$0xff]
        %v5411 = vld [vmem:[%s9 + $0x1a8] sm:$0xff]
        %v5412 = vld [vmem:[%s9 + $0x1b0] sm:$0xff]
        %v5413 = vld [vmem:[%s9 + $0x1b8] sm:$0xff]
        %v5414 = vld [vmem:[%s9 + $0x1c0] sm:$0xff]
        %v5415 = vld [vmem:[%s9 + $0x1c8] sm:$0xff]
        %v5416 = vld [vmem:[%s9 + $0x1d0] sm:$0xff]
        %v5417 = vld [vmem:[%s9 + $0x1d8] sm:$0xff]
        %v5418 = vld [vmem:[%s9 + $0x1e0] sm:$0xff]
        %v5419 = vld [vmem:[%s9 + $0x1e8] sm:$0xff]
        %v5420 = vld [vmem:[%s9 + $0x1f0] sm:$0xff]
        %v5421 = vld [vmem:[%s9 + $0x1f8] sm:$0xff]
        %v5422 = vld [vmem:[%s9 + $0x200] sm:$0xff]
        %v5423 = vld [vmem:[%s9 + $0x208] sm:$0xff]
        %v5424 = vld [vmem:[%s9 + $0x210] sm:$0xff]
        %v5425 = vld [vmem:[%s9 + $0x218] sm:$0xff]
        %v5426 = vld [vmem:[%s9 + $0x220] sm:$0xff]
        %v5427 = vld [vmem:[%s9 + $0x228] sm:$0xff]
        %v5428 = vld [vmem:[%s9 + $0x230] sm:$0xff]
        %v5429 = vld [vmem:[%s9 + $0x238] sm:$0xff]
        %v5430 = vld [vmem:[%s9 + $0x240] sm:$0xff]
        %v5431 = vld [vmem:[%s9 + $0x248] sm:$0xff]
        %v5432 = vld [vmem:[%s9 + $0x250] sm:$0xff]
        %v5433 = vld [vmem:[%s9 + $0x258] sm:$0xff]
        %v5434 = vld [vmem:[%s9 + $0x260] sm:$0xff]
        %v5435 = vld [vmem:[%s9 + $0x268] sm:$0xff]
        %v5436 = vld [vmem:[%s9 + $0x270] sm:$0xff]
        %v5437 = vld [vmem:[%s9 + $0x278] sm:$0xff]
        %v5438 = vld [vmem:[%s9 + $0x280] sm:$0xff]
        %v5439 = vld [vmem:[%s9 + $0x288] sm:$0xff]
        %v5440 = vld [vmem:[%s9 + $0x290] sm:$0xff]
        %v5441 = vld [vmem:[%s9 + $0x298] sm:$0xff]
        %v5442 = vld [vmem:[%s9 + $0x2a0] sm:$0xff]
        %v5443 = vld [vmem:[%s9 + $0x2a8] sm:$0xff]
        %v5444 = vld [vmem:[%s9 + $0x2b0] sm:$0xff]
        %v5445 = vld [vmem:[%s9 + $0x2b8] sm:$0xff]
        %v5446 = vld [vmem:[%s9 + $0x2c0] sm:$0xff]
        %v5447 = vld [vmem:[%s9 + $0x2c8] sm:$0xff]
        %v5448 = vld [vmem:[%s9 + $0x2d0] sm:$0xff]
        %v5449 = vld [vmem:[%s9 + $0x2d8] sm:$0xff]
        %v5450 = vld [vmem:[%s9 + $0x2e0] sm:$0xff]
        %v5451 = vld [vmem:[%s9 + $0x2e8] sm:$0xff]
        %v5452 = vld [vmem:[%s9 + $0x2f0] sm:$0xff]
        %v5453 = vld [vmem:[%s9 + $0x2f8] sm:$0xff]
        %v5454 = vld [vmem:[%s9 + $0x300] sm:$0xff]
        %v5455 = vld [vmem:[%s9 + $0x308] sm:$0xff]
        %v5456 = vld [vmem:[%s9 + $0x310] sm:$0xff]
        %v5457 = vld [vmem:[%s9 + $0x318] sm:$0xff]
        %v5458 = vld [vmem:[%s9 + $0x320] sm:$0xff]
        %v5459 = vld [vmem:[%s9 + $0x328] sm:$0xff]
        %v5460 = vld [vmem:[%s9 + $0x330] sm:$0xff]
        %v5461 = vld [vmem:[%s9 + $0x338] sm:$0xff]
        %v5462 = vld [vmem:[%s9 + $0x340] sm:$0xff]
        %v5463 = vld [vmem:[%s9 + $0x348] sm:$0xff]
        %v5464 = vld [vmem:[%s9 + $0x350] sm:$0xff]
        %v5465 = vld [vmem:[%s9 + $0x358] sm:$0xff]
        %v5466 = vld [vmem:[%s9 + $0x360] sm:$0xff]
        %v5467 = vld [vmem:[%s9 + $0x368] sm:$0xff]
        %v5468 = vld [vmem:[%s9 + $0x370] sm:$0xff]
        %v5469 = vld [vmem:[%s9 + $0x378] sm:$0xff]
        %v5470 = vld [vmem:[%s9 + $0x380] sm:$0xff]
        %v5471 = vld [vmem:[%s9 + $0x388] sm:$0xff]
        %v5472 = vld [vmem:[%s9 + $0x390] sm:$0xff]
        %v5473 = vld [vmem:[%s9 + $0x398] sm:$0xff]
        %v5474 = vld [vmem:[%s9 + $0x3a0] sm:$0xff]
        %v5475 = vld [vmem:[%s9 + $0x3a8] sm:$0xff]
        %v5476 = vld [vmem:[%s9 + $0x3b0] sm:$0xff]
        %v5477 = vld [vmem:[%s9 + $0x3b8] sm:$0xff]
        %v5478 = vld [vmem:[%s9 + $0x3c0] sm:$0xff]
        %v5479 = vld [vmem:[%s9 + $0x3c8] sm:$0xff]
        %v5480 = vld [vmem:[%s9 + $0x3d0] sm:$0xff]
        %v5481 = vld [vmem:[%s9 + $0x3d8] sm:$0xff]
        %v5482 = vld [vmem:[%s9 + $0x3e0] sm:$0xff]
        %v5483 = vld [vmem:[%s9 + $0x3e8] sm:$0xff]
        %v5484 = vld [vmem:[%s9 + $0x3f0] sm:$0xff]
        %v5485 = vld [vmem:[%s9 + $0x3f8] sm:$0xff]
        %v5486 = vld [vmem:[%s9 + $0x400] sm:$0xff]
        %v5487 = vld [vmem:[%s9 + $0x408] sm:$0xff]
        %v5488 = vld [vmem:[%s9 + $0x410] sm:$0xff]
        %v5489 = vld [vmem:[%s9 + $0x418] sm:$0xff]
        %v5490 = vld [vmem:[%s9 + $0x420] sm:$0xff]
        %v5491 = vld [vmem:[%s9 + $0x428] sm:$0xff]
        %v5492 = vld [vmem:[%s9 + $0x430] sm:$0xff]
        %v5493 = vld [vmem:[%s9 + $0x438] sm:$0xff]
        %v5494 = vld [vmem:[%s9 + $0x440] sm:$0xff]
        %v5495 = vld [vmem:[%s9 + $0x448] sm:$0xff]
        %v5496 = vld [vmem:[%s9 + $0x450] sm:$0xff]
        %v5497 = vld [vmem:[%s9 + $0x458] sm:$0xff]
        %v5498 = vld [vmem:[%s9 + $0x460] sm:$0xff]
        %v5499 = vld [vmem:[%s9 + $0x468] sm:$0xff]
        %v5500 = vld [vmem:[%s9 + $0x470] sm:$0xff]
        %v5501 = vld [vmem:[%s9 + $0x478] sm:$0xff]
        %v5502 = vld [vmem:[%s9 + $0x480] sm:$0xff]
        %v5503 = vld [vmem:[%s9 + $0x488] sm:$0xff]
        %v5504 = vld [vmem:[%s9 + $0x490] sm:$0xff]
        %v5505 = vld [vmem:[%s9 + $0x498] sm:$0xff]
        %v5506 = vld [vmem:[%s9 + $0x4a0] sm:$0xff]
        %v5507 = vld [vmem:[%s9 + $0x4a8] sm:$0xff]
        %v5508 = vld [vmem:[%s9 + $0x4b0] sm:$0xff]
        %v5509 = vld [vmem:[%s9 + $0x4b8] sm:$0xff]
        %v5510 = vld [vmem:[%s9 + $0x4c0] sm:$0xff]
        %v5511 = vld [vmem:[%s9 + $0x4c8] sm:$0xff]
        %v5512 = vld [vmem:[%s9 + $0x4d0] sm:$0xff]
        %v5513 = vld [vmem:[%s9 + $0x4d8] sm:$0xff]
        %v5514 = vld [vmem:[%s9 + $0x4e0] sm:$0xff]
        %v5515 = vld [vmem:[%s9 + $0x4e8] sm:$0xff]
        %v5516 = vld [vmem:[%s9 + $0x4f0] sm:$0xff]
        %v5517 = vld [vmem:[%s9 + $0x4f8] sm:$0xff]
        %v5518 = vld [vmem:[%s9 + $0x500] sm:$0xff]
        %v5519 = vld [vmem:[%s9 + $0x508] sm:$0xff]
        %v5520 = vld [vmem:[%s9 + $0x510] sm:$0xff]
        %v5521 = vld [vmem:[%s9 + $0x518] sm:$0xff]
        %v5522 = vld [vmem:[%s9 + $0x520] sm:$0xff]
        %v5523 = vld [vmem:[%s9 + $0x528] sm:$0xff]
        %v5524 = vld [vmem:[%s9 + $0x530] sm:$0xff]
        %v5525 = vld [vmem:[%s9 + $0x538] sm:$0xff]
        %v5526 = vld [vmem:[%s9 + $0x540] sm:$0xff]
        %v5527 = vld [vmem:[%s9 + $0x548] sm:$0xff]
        %v5528 = vld [vmem:[%s9 + $0x550] sm:$0xff]
        %v5529 = vld [vmem:[%s9 + $0x558] sm:$0xff]
        %v5530 = vld [vmem:[%s9 + $0x560] sm:$0xff]
        %v5531 = vld [vmem:[%s9 + $0x568] sm:$0xff]
        %v5532 = vld [vmem:[%s9 + $0x570] sm:$0xff]
        %v5533 = vld [vmem:[%s9 + $0x578] sm:$0xff]
        %v5534 = vld [vmem:[%s9 + $0x580] sm:$0xff]
        %v5535 = vld [vmem:[%s9 + $0x588] sm:$0xff]
        %v5536 = vld [vmem:[%s9 + $0x590] sm:$0xff]
        %v5537 = vld [vmem:[%s9 + $0x598] sm:$0xff]
        %v5538 = vld [vmem:[%s9 + $0x5a0] sm:$0xff]
        %v5539 = vld [vmem:[%s9 + $0x5a8] sm:$0xff]
        %v5540 = vld [vmem:[%s9 + $0x5b0] sm:$0xff]
        %v5541 = vld [vmem:[%s9 + $0x5b8] sm:$0xff]
        %v5542 = vld [vmem:[%s9 + $0x5c0] sm:$0xff]
        %v5543 = vld [vmem:[%s9 + $0x5c8] sm:$0xff]
        %v5544 = vld [vmem:[%s9 + $0x5d0] sm:$0xff]
        %v5545 = vld [vmem:[%s9 + $0x5d8] sm:$0xff]
        %v5546 = vld [vmem:[%s9 + $0x5e0] sm:$0xff]
        %v5547 = vld [vmem:[%s9 + $0x5e8] sm:$0xff]
        %v5548 = vld [vmem:[%s9 + $0x5f0] sm:$0xff]
        %v5549 = vld [vmem:[%s9 + $0x5f8] sm:$0xff]
        %v5550 = vld [vmem:[%s9 + $0x600] sm:$0xff]
        %v5551 = vld [vmem:[%s9 + $0x608] sm:$0xff]
        %v5552 = vld [vmem:[%s9 + $0x610] sm:$0xff]
        %v5553 = vld [vmem:[%s9 + $0x618] sm:$0xff]
        %v5554 = vld [vmem:[%s9 + $0x620] sm:$0xff]
        %v5555 = vld [vmem:[%s9 + $0x628] sm:$0xff]
        %v5556 = vld [vmem:[%s9 + $0x630] sm:$0xff]
        %v5557 = vld [vmem:[%s9 + $0x638] sm:$0xff]
        %v5558 = vld [vmem:[%s9 + $0x640] sm:$0xff]
        %v5559 = vld [vmem:[%s9 + $0x648] sm:$0xff]
        %v5560 = vld [vmem:[%s9 + $0x650] sm:$0xff]
        %v5561 = vld [vmem:[%s9 + $0x658] sm:$0xff]
        %v5562 = vld [vmem:[%s9 + $0x660] sm:$0xff]
        %v5563 = vld [vmem:[%s9 + $0x668] sm:$0xff]
        %v5564 = vld [vmem:[%s9 + $0x670] sm:$0xff]
        %v5565 = vld [vmem:[%s9 + $0x678] sm:$0xff]
        %v5566 = vld [vmem:[%s9 + $0x680] sm:$0xff]
        %v5567 = vld [vmem:[%s9 + $0x688] sm:$0xff]
        %v5568 = vld [vmem:[%s9 + $0x690] sm:$0xff]
        %v5569 = vld [vmem:[%s9 + $0x698] sm:$0xff]
        %v5570 = vld [vmem:[%s9 + $0x6a0] sm:$0xff]
        %v5571 = vld [vmem:[%s9 + $0x6a8] sm:$0xff]
        %v5572 = vld [vmem:[%s9 + $0x6b0] sm:$0xff]
        %v5573 = vld [vmem:[%s9 + $0x6b8] sm:$0xff]
        %v5574 = vld [vmem:[%s9 + $0x6c0] sm:$0xff]
        %v5575 = vld [vmem:[%s9 + $0x6c8] sm:$0xff]
        %v5576 = vld [vmem:[%s9 + $0x6d0] sm:$0xff]
        %v5577 = vld [vmem:[%s9 + $0x6d8] sm:$0xff]
        %v5578 = vld [vmem:[%s9 + $0x6e0] sm:$0xff]
        %v5579 = vld [vmem:[%s9 + $0x6e8] sm:$0xff]
        %v5580 = vld [vmem:[%s9 + $0x6f0] sm:$0xff]
        %v5581 = vld [vmem:[%s9 + $0x6f8] sm:$0xff]
        %v5582 = vld [vmem:[%s9 + $0x700] sm:$0xff]
        %v5583 = vld [vmem:[%s9 + $0x708] sm:$0xff]
        %v5584 = vld [vmem:[%s9 + $0x710] sm:$0xff]
        %v5585 = vld [vmem:[%s9 + $0x718] sm:$0xff]
        %v5586 = vld [vmem:[%s9 + $0x720] sm:$0xff]
        %v5587 = vld [vmem:[%s9 + $0x728] sm:$0xff]
        %v5588 = vld [vmem:[%s9 + $0x730] sm:$0xff]
        %v5589 = vld [vmem:[%s9 + $0x738] sm:$0xff]
        %v5590 = vld [vmem:[%s9 + $0x740] sm:$0xff]
        %v5591 = vld [vmem:[%s9 + $0x748] sm:$0xff]
        %v5592 = vld [vmem:[%s9 + $0x750] sm:$0xff]
        %v5593 = vld [vmem:[%s9 + $0x758] sm:$0xff]
        %v5594 = vld [vmem:[%s9 + $0x760] sm:$0xff]
        %v5595 = vld [vmem:[%s9 + $0x768] sm:$0xff]
        %v5596 = vld [vmem:[%s9 + $0x770] sm:$0xff]
        %v5597 = vld [vmem:[%s9 + $0x778] sm:$0xff]
        %v5598 = vld [vmem:[%s9 + $0x780] sm:$0xff]
        %v5599 = vld [vmem:[%s9 + $0x788] sm:$0xff]
        %v5600 = vld [vmem:[%s9 + $0x790] sm:$0xff]
        %v5601 = vld [vmem:[%s9 + $0x798] sm:$0xff]
        %v5602 = vld [vmem:[%s9 + $0x7a0] sm:$0xff]
        %v5603 = vld [vmem:[%s9 + $0x7a8] sm:$0xff]
        %v5604 = vld [vmem:[%s9 + $0x7b0] sm:$0xff]
        %v5605 = vld [vmem:[%s9 + $0x7b8] sm:$0xff]
        %v5606 = vld [vmem:[%s9 + $0x7c0] sm:$0xff]
        %v5607 = vld [vmem:[%s9 + $0x7c8] sm:$0xff]
        %v5608 = vld [vmem:[%s9 + $0x7d0] sm:$0xff]
        %v5609 = vld [vmem:[%s9 + $0x7d8] sm:$0xff]
        %v5610 = vld [vmem:[%s9 + $0x7e0] sm:$0xff]
        %v5611 = vld [vmem:[%s9 + $0x7e8] sm:$0xff]
        %v5612 = vld [vmem:[%s9 + $0x7f0] sm:$0xff]
        %v5613 = vld [vmem:[%s9 + $0x7f8] sm:$0xff]
        %v5614 = vld [vmem:[%s9 + $0x800] sm:$0xff]
        %v5615 = vld [vmem:[%s9 + $0x808] sm:$0xff]
        %v5616 = vld [vmem:[%s9 + $0x810] sm:$0xff]
        %v5617 = vld [vmem:[%s9 + $0x818] sm:$0xff]
        %v5618 = vld [vmem:[%s9 + $0x820] sm:$0xff]
        %v5619 = vld [vmem:[%s9 + $0x828] sm:$0xff]
        %v5620 = vld [vmem:[%s9 + $0x830] sm:$0xff]
        %v5621 = vld [vmem:[%s9 + $0x838] sm:$0xff]
        %v5622 = vld [vmem:[%s9 + $0x840] sm:$0xff]
        %v5623 = vld [vmem:[%s9 + $0x848] sm:$0xff]
        %v5624 = vld [vmem:[%s9 + $0x850] sm:$0xff]
        %v5625 = vld [vmem:[%s9 + $0x858] sm:$0xff]
        %v5626 = vld [vmem:[%s9 + $0x860] sm:$0xff]
        %v5627 = vld [vmem:[%s9 + $0x868] sm:$0xff]
        %v5628 = vld [vmem:[%s9 + $0x870] sm:$0xff]
        %v5629 = vld [vmem:[%s9 + $0x878] sm:$0xff]
        %v5630 = vld [vmem:[%s9 + $0x880] sm:$0xff]
        %v5631 = vld [vmem:[%s9 + $0x888] sm:$0xff]
        %v5632 = vld [vmem:[%s9 + $0x890] sm:$0xff]
        %v5633 = vld [vmem:[%s9 + $0x898] sm:$0xff]
        %v5634 = vld [vmem:[%s9 + $0x8a0] sm:$0xff]
        %v5635 = vld [vmem:[%s9 + $0x8a8] sm:$0xff]
        %v5636 = vld [vmem:[%s9 + $0x8b0] sm:$0xff]
        %v5637 = vld [vmem:[%s9 + $0x8b8] sm:$0xff]
        %v5638 = vld [vmem:[%s9 + $0x8c0] sm:$0xff]
        %v5639 = vld [vmem:[%s9 + $0x8c8] sm:$0xff]
        %v5640 = vld [vmem:[%s9 + $0x8d0] sm:$0xff]
        %v5641 = vld [vmem:[%s9 + $0x8d8] sm:$0xff]
        %v5642 = vld [vmem:[%s9 + $0x8e0] sm:$0xff]
        %v5643 = vld [vmem:[%s9 + $0x8e8] sm:$0xff]
        %v5644 = vld [vmem:[%s9 + $0x8f0] sm:$0xff]
        %v5645 = vld [vmem:[%s9 + $0x8f8] sm:$0xff]
        %v5646 = vld [vmem:[%s9 + $0x900] sm:$0xff]
        %v5647 = vld [vmem:[%s9 + $0x908] sm:$0xff]
        %v5648 = vld [vmem:[%s9 + $0x910] sm:$0xff]
        %v5649 = vld [vmem:[%s9 + $0x918] sm:$0xff]
        %v5650 = vld [vmem:[%s9 + $0x920] sm:$0xff]
        %v5651 = vld [vmem:[%s9 + $0x928] sm:$0xff]
        %v5652 = vld [vmem:[%s9 + $0x930] sm:$0xff]
        %v5653 = vld [vmem:[%s9 + $0x938] sm:$0xff]
        %v5654 = vld [vmem:[%s9 + $0x940] sm:$0xff]
        %v5655 = vld [vmem:[%s9 + $0x948] sm:$0xff]
        %v5656 = vld [vmem:[%s9 + $0x950] sm:$0xff]
        %v5657 = vld [vmem:[%s9 + $0x958] sm:$0xff]
        %v5658 = vld [vmem:[%s9 + $0x960] sm:$0xff]
        %v5659 = vld [vmem:[%s9 + $0x968] sm:$0xff]
        %v5660 = vld [vmem:[%s9 + $0x970] sm:$0xff]
        %v5661 = vld [vmem:[%s9 + $0x978] sm:$0xff]
        %v5662 = vld [vmem:[%s9 + $0x980] sm:$0xff]
        %v5663 = vld [vmem:[%s9 + $0x988] sm:$0xff]
        %v5664 = vld [vmem:[%s9 + $0x990] sm:$0xff]
        %v5665 = vld [vmem:[%s9 + $0x998] sm:$0xff]
        %v5666 = vld [vmem:[%s9 + $0x9a0] sm:$0xff]
        %v5667 = vld [vmem:[%s9 + $0x9a8] sm:$0xff]
        %v5668 = vld [vmem:[%s9 + $0x9b0] sm:$0xff]
        %v5669 = vld [vmem:[%s9 + $0x9b8] sm:$0xff]
        %v5670 = vld [vmem:[%s9 + $0x9c0] sm:$0xff]
        %v5671 = vld [vmem:[%s9 + $0x9c8] sm:$0xff]
        %v5672 = vld [vmem:[%s9 + $0x9d0] sm:$0xff]
        %v5673 = vld [vmem:[%s9 + $0x9d8] sm:$0xff]
        %v5674 = vld [vmem:[%s9 + $0x9e0] sm:$0xff]
        %v5675 = vld [vmem:[%s9 + $0x9e8] sm:$0xff]
        %v5676 = vld [vmem:[%s9 + $0x9f0] sm:$0xff]
        %v5677 = vld [vmem:[%s9 + $0x9f8] sm:$0xff]
        %v5678 = vld [vmem:[%s9 + $0xa00] sm:$0xff]
        %v5679 = vld [vmem:[%s9 + $0xa08] sm:$0xff]
        %v5680 = vld [vmem:[%s9 + $0xa10] sm:$0xff]
        %v5681 = vld [vmem:[%s9 + $0xa18] sm:$0xff]
        %v5682 = vld [vmem:[%s9 + $0xa20] sm:$0xff]
        %v5683 = vld [vmem:[%s9 + $0xa28] sm:$0xff]
        %v5684 = vld [vmem:[%s9 + $0xa30] sm:$0xff]
        %v5685 = vld [vmem:[%s9 + $0xa38] sm:$0xff]
        %v5686 = vld [vmem:[%s9 + $0xa40] sm:$0xff]
        %v5687 = vld [vmem:[%s9 + $0xa48] sm:$0xff]
        %v5688 = vld [vmem:[%s9 + $0xa50] sm:$0xff]
        %v5689 = vld [vmem:[%s9 + $0xa58] sm:$0xff]
        %v5690 = vld [vmem:[%s9 + $0xa60] sm:$0xff]
        %v5691 = vld [vmem:[%s9 + $0xa68] sm:$0xff]
        %v5692 = vld [vmem:[%s9 + $0xa70] sm:$0xff]
        %v5693 = vld [vmem:[%s9 + $0xa78] sm:$0xff]
        %v5694 = vld [vmem:[%s9 + $0xa80] sm:$0xff]
        %v5695 = vld [vmem:[%s9 + $0xa88] sm:$0xff]
        %v5696 = vld [vmem:[%s9 + $0xa90] sm:$0xff]
        %v5697 = vld [vmem:[%s9 + $0xa98] sm:$0xff]
        %v5698 = vld [vmem:[%s9 + $0xaa0] sm:$0xff]
        %v5699 = vld [vmem:[%s9 + $0xaa8] sm:$0xff]
        %v5700 = vld [vmem:[%s9 + $0xab0] sm:$0xff]
        %v5701 = vld [vmem:[%s9 + $0xab8] sm:$0xff]
        %v5702 = vld [vmem:[%s9 + $0xac0] sm:$0xff]
        %v5703 = vld [vmem:[%s9 + $0xac8] sm:$0xff]
        %v5704 = vld [vmem:[%s9 + $0xad0] sm:$0xff]
        %v5705 = vld [vmem:[%s9 + $0xad8] sm:$0xff]
        %v5706 = vld [vmem:[%s9 + $0xae0] sm:$0xff]
        %v5707 = vld [vmem:[%s9 + $0xae8] sm:$0xff]
        %v5708 = vld [vmem:[%s9 + $0xaf0] sm:$0xff]
        %v5709 = vld [vmem:[%s9 + $0xaf8] sm:$0xff]
        %v5710 = vld [vmem:[%s9 + $0xb00] sm:$0xff]
        %v5711 = vld [vmem:[%s9 + $0xb08] sm:$0xff]
        %v5712 = vld [vmem:[%s9 + $0xb10] sm:$0xff]
        %v5713 = vld [vmem:[%s9 + $0xb18] sm:$0xff]
        %v5714 = vld [vmem:[%s9 + $0xb20] sm:$0xff]
        %v5715 = vld [vmem:[%s9 + $0xb28] sm:$0xff]
        %v5716 = vld [vmem:[%s9 + $0xb30] sm:$0xff]
        %v5717 = vld [vmem:[%s9 + $0xb38] sm:$0xff]
        %v5718 = vld [vmem:[%s9 + $0xb40] sm:$0xff]
        %v5719 = vld [vmem:[%s9 + $0xb48] sm:$0xff]
        %v5720 = vld [vmem:[%s9 + $0xb50] sm:$0xff]
        %v5721 = vld [vmem:[%s9 + $0xb58] sm:$0xff]
        %v5722 = vld [vmem:[%s9 + $0xb60] sm:$0xff]
        %v5723 = vld [vmem:[%s9 + $0xb68] sm:$0xff]
        %v5724 = vld [vmem:[%s9 + $0xb70] sm:$0xff]
        %v5725 = vld [vmem:[%s9 + $0xb78] sm:$0xff]
        %v5726 = vld [vmem:[%s9 + $0xb80] sm:$0xff]
        %v5727 = vld [vmem:[%s9 + $0xb88] sm:$0xff]
        %v5728 = vld [vmem:[%s9 + $0xb90] sm:$0xff]
        %v5729 = vld [vmem:[%s9 + $0xb98] sm:$0xff]
        %v5730 = vld [vmem:[%s9 + $0xba0] sm:$0xff]
        %v5731 = vld [vmem:[%s9 + $0xba8] sm:$0xff]
        %v5732 = vld [vmem:[%s9 + $0xbb0] sm:$0xff]
        %v5733 = vld [vmem:[%s9 + $0xbb8] sm:$0xff]
        %v5734 = vld [vmem:[%s9 + $0xbc0] sm:$0xff]
        %v5735 = vld [vmem:[%s9 + $0xbc8] sm:$0xff]
        %v5736 = vld [vmem:[%s9 + $0xbd0] sm:$0xff]
        %v5737 = vld [vmem:[%s9 + $0xbd8] sm:$0xff]
        %v5738 = vld [vmem:[%s9 + $0xbe0] sm:$0xff]
        %v5739 = vld [vmem:[%s9 + $0xbe8] sm:$0xff]
        %v5740 = vld [vmem:[%s9 + $0xbf0] sm:$0xff]
        %v5741 = vld [vmem:[%s9 + $0xbf8] sm:$0xff]
        %v5742 = vld [vmem:[%s9 + $0xc00] sm:$0xff]
        %v5743 = vld [vmem:[%s9 + $0xc08] sm:$0xff]
        %v5744 = vld [vmem:[%s9 + $0xc10] sm:$0xff]
        %v5745 = vld [vmem:[%s9 + $0xc18] sm:$0xff]
        %v5746 = vld [vmem:[%s9 + $0xc20] sm:$0xff]
        %v5747 = vld [vmem:[%s9 + $0xc28] sm:$0xff]
        %v5748 = vld [vmem:[%s9 + $0xc30] sm:$0xff]
        %v5749 = vld [vmem:[%s9 + $0xc38] sm:$0xff]
        %v5750 = vld [vmem:[%s9 + $0xc40] sm:$0xff]
        %v5751 = vld [vmem:[%s9 + $0xc48] sm:$0xff]
        %v5752 = vld [vmem:[%s9 + $0xc50] sm:$0xff]
        %v5753 = vld [vmem:[%s9 + $0xc58] sm:$0xff]
        %v5754 = vld [vmem:[%s9 + $0xc60] sm:$0xff]
        %v5755 = vld [vmem:[%s9 + $0xc68] sm:$0xff]
        %v5756 = vld [vmem:[%s9 + $0xc70] sm:$0xff]
        %v5757 = vld [vmem:[%s9 + $0xc78] sm:$0xff]
        %v5758 = vld [vmem:[%s9 + $0xc80] sm:$0xff]
        %v5759 = vld [vmem:[%s9 + $0xc88] sm:$0xff]
        %v5760 = vld [vmem:[%s9 + $0xc90] sm:$0xff]
        %v5761 = vld [vmem:[%s9 + $0xc98] sm:$0xff]
        %v5762 = vld [vmem:[%s9 + $0xca0] sm:$0xff]
        %v5763 = vld [vmem:[%s9 + $0xca8] sm:$0xff]
        %v5764 = vld [vmem:[%s9 + $0xcb0] sm:$0xff]
        %v5765 = vld [vmem:[%s9 + $0xcb8] sm:$0xff]
        %v5766 = vld [vmem:[%s9 + $0xcc0] sm:$0xff]
        %v5767 = vld [vmem:[%s9 + $0xcc8] sm:$0xff]
        %v5768 = vld [vmem:[%s9 + $0xcd0] sm:$0xff]
        %v5769 = vld [vmem:[%s9 + $0xcd8] sm:$0xff]
        %v5770 = vld [vmem:[%s9 + $0xce0] sm:$0xff]
        %v5771 = vld [vmem:[%s9 + $0xce8] sm:$0xff]
        %v5772 = vld [vmem:[%s9 + $0xcf0] sm:$0xff]
        %v5773 = vld [vmem:[%s9 + $0xcf8] sm:$0xff]
        %v5774 = vld [vmem:[%s9 + $0xd00] sm:$0xff]
        %v5775 = vld [vmem:[%s9 + $0xd08] sm:$0xff]
        %v5776 = vld [vmem:[%s9 + $0xd10] sm:$0xff]
        %v5777 = vld [vmem:[%s9 + $0xd18] sm:$0xff]
        %v5778 = vld [vmem:[%s9 + $0xd20] sm:$0xff]
        %v5779 = vld [vmem:[%s9 + $0xd28] sm:$0xff]
        %v5780 = vld [vmem:[%s9 + $0xd30] sm:$0xff]
        %v5781 = vld [vmem:[%s9 + $0xd38] sm:$0xff]
        %v5782 = vld [vmem:[%s9 + $0xd40] sm:$0xff]
        %v5783 = vld [vmem:[%s9 + $0xd48] sm:$0xff]
        %v5784 = vld [vmem:[%s9 + $0xd50] sm:$0xff]
        %v5785 = vld [vmem:[%s9 + $0xd58] sm:$0xff]
        %v5786 = vld [vmem:[%s9 + $0xd60] sm:$0xff]
        %v5787 = vld [vmem:[%s9 + $0xd68] sm:$0xff]
        %v5788 = vld [vmem:[%s9 + $0xd70] sm:$0xff]
        %v5789 = vld [vmem:[%s9 + $0xd78] sm:$0xff]
        %v5790 = vld [vmem:[%s9 + $0xd80] sm:$0xff]
        %v5791 = vld [vmem:[%s9 + $0xd88] sm:$0xff]
        %v5792 = vld [vmem:[%s9 + $0xd90] sm:$0xff]
        %v5793 = vld [vmem:[%s9 + $0xd98] sm:$0xff]
        %v5794 = vld [vmem:[%s9 + $0xda0] sm:$0xff]
        %v5795 = vld [vmem:[%s9 + $0xda8] sm:$0xff]
        %v5796 = vld [vmem:[%s9 + $0xdb0] sm:$0xff]
        %v5797 = vld [vmem:[%s9 + $0xdb8] sm:$0xff]
        %v5798 = vld [vmem:[%s9 + $0xdc0] sm:$0xff]
        %v5799 = vld [vmem:[%s9 + $0xdc8] sm:$0xff]
        %v5800 = vld [vmem:[%s9 + $0xdd0] sm:$0xff]
        %v5801 = vld [vmem:[%s9 + $0xdd8] sm:$0xff]
        %v5802 = vld [vmem:[%s9 + $0xde0] sm:$0xff]
        %v5803 = vld [vmem:[%s9 + $0xde8] sm:$0xff]
        %v5804 = vld [vmem:[%s9 + $0xdf0] sm:$0xff]
        %v5805 = vld [vmem:[%s9 + $0xdf8] sm:$0xff]
        %v5806 = vld [vmem:[%s9 + $0xe00] sm:$0xff]
        %v5807 = vld [vmem:[%s9 + $0xe08] sm:$0xff]
        %v5808 = vld [vmem:[%s9 + $0xe10] sm:$0xff]
        %v5809 = vld [vmem:[%s9 + $0xe18] sm:$0xff]
        %v5810 = vld [vmem:[%s9 + $0xe20] sm:$0xff]
        %v5811 = vld [vmem:[%s9 + $0xe28] sm:$0xff]
        %v5812 = vld [vmem:[%s9 + $0xe30] sm:$0xff]
        %v5813 = vld [vmem:[%s9 + $0xe38] sm:$0xff]
        %v5814 = vld [vmem:[%s9 + $0xe40] sm:$0xff]
        %v5815 = vld [vmem:[%s9 + $0xe48] sm:$0xff]
        %v5816 = vld [vmem:[%s9 + $0xe50] sm:$0xff]
        %v5817 = vld [vmem:[%s9 + $0xe58] sm:$0xff]
        %v5818 = vld [vmem:[%s9 + $0xe60] sm:$0xff]
        %v5819 = vld [vmem:[%s9 + $0xe68] sm:$0xff]
        %v5820 = vld [vmem:[%s9 + $0xe70] sm:$0xff]
        %v5821 = vld [vmem:[%s9 + $0xe78] sm:$0xff]
        %v5822 = vld [vmem:[%s9 + $0xe80] sm:$0xff]
        %v5823 = vld [vmem:[%s9 + $0xe88] sm:$0xff]
        %v5824 = vld [vmem:[%s9 + $0xe90] sm:$0xff]
        %v5825 = vld [vmem:[%s9 + $0xe98] sm:$0xff]
        %v5826 = vld [vmem:[%s9 + $0xea0] sm:$0xff]
        %v5827 = vld [vmem:[%s9 + $0xea8] sm:$0xff]
        %v5828 = vld [vmem:[%s9 + $0xeb0] sm:$0xff]
        %v5829 = vld [vmem:[%s9 + $0xeb8] sm:$0xff]
        %v5830 = vld [vmem:[%s9 + $0xec0] sm:$0xff]
        %v5831 = vld [vmem:[%s9 + $0xec8] sm:$0xff]
        %v5832 = vld [vmem:[%s9 + $0xed0] sm:$0xff]
        %v5833 = vld [vmem:[%s9 + $0xed8] sm:$0xff]
        %v5834 = vld [vmem:[%s9 + $0xee0] sm:$0xff]
        %v5835 = vld [vmem:[%s9 + $0xee8] sm:$0xff]
        %v5836 = vld [vmem:[%s9 + $0xef0] sm:$0xff]
        %v5837 = vld [vmem:[%s9 + $0xef8] sm:$0xff]
        %v5838 = vld [vmem:[%s9 + $0xf00] sm:$0xff]
        %v5839 = vld [vmem:[%s9 + $0xf08] sm:$0xff]
        %v5840 = vld [vmem:[%s9 + $0xf10] sm:$0xff]
        %v5841 = vld [vmem:[%s9 + $0xf18] sm:$0xff]
        %v5842 = vld [vmem:[%s9 + $0xf20] sm:$0xff]
        %v5843 = vld [vmem:[%s9 + $0xf28] sm:$0xff]
        %v5844 = vld [vmem:[%s9 + $0xf30] sm:$0xff]
        %v5845 = vld [vmem:[%s9 + $0xf38] sm:$0xff]
        %v5846 = vld [vmem:[%s9 + $0xf40] sm:$0xff]
        %v5847 = vld [vmem:[%s9 + $0xf48] sm:$0xff]
        %v5848 = vld [vmem:[%s9 + $0xf50] sm:$0xff]
        %v5849 = vld [vmem:[%s9 + $0xf58] sm:$0xff]
        %v5850 = vld [vmem:[%s9 + $0xf60] sm:$0xff]
        %v5851 = vld [vmem:[%s9 + $0xf68] sm:$0xff]
        %v5852 = vld [vmem:[%s9 + $0xf70] sm:$0xff]
        %v5853 = vld [vmem:[%s9 + $0xf78] sm:$0xff]
        %v5854 = vld [vmem:[%s9 + $0xf80] sm:$0xff]
        %v5855 = vld [vmem:[%s9 + $0xf88] sm:$0xff]
        %v5856 = vld [vmem:[%s9 + $0xf90] sm:$0xff]
        %v5857 = vld [vmem:[%s9 + $0xf98] sm:$0xff]
        %v5858 = vld [vmem:[%s9 + $0xfa0] sm:$0xff]
        %v5859 = vld [vmem:[%s9 + $0xfa8] sm:$0xff]
        %v5860 = vld [vmem:[%s9 + $0xfb0] sm:$0xff]
        %v5861 = vld [vmem:[%s9 + $0xfb8] sm:$0xff]
        %v5862 = vld [vmem:[%s9 + $0xfc0] sm:$0xff]
        %v5863 = vld [vmem:[%s9 + $0xfc8] sm:$0xff]
        %v5864 = vld [vmem:[%s9 + $0xfd0] sm:$0xff]
        %v5865 = vld [vmem:[%s9 + $0xfd8] sm:$0xff]
        %v5866 = vld [vmem:[%s9 + $0xfe0] sm:$0xff]
        %v5867 = vld [vmem:[%s9 + $0xfe8] sm:$0xff]
        %v5868 = vld [vmem:[%s9 + $0xff0] sm:$0xff]
        %v5869 = vld [vmem:[%s9 + $0xff8] sm:$0xff]
        %v5870 = vld [vmem:[%s10] sm:$0xff]
        %v5871 = vld [vmem:[%s10 + $0x8] sm:$0xff]
        %v5874 = vlaneseq
        %v5875 = vshrl.u32 %v5874, 7
        %v5876 = vsub.s32 0, %v5875
        %v5877 = vrot.slane %v5870, %v5876
        %v5878 = vlaneseq
        %v5879 = vshrl.u32 %v5878, 7
        %v5880 = vsub.s32 1, %v5879
        %v5881 = vrot.slane %v5870, %v5880
        %v5882 = vlaneseq
        %v5883 = vshrl.u32 %v5882, 7
        %v5884 = vsub.s32 2, %v5883
        %v5885 = vrot.slane %v5870, %v5884
        %v5886 = vlaneseq
        %v5887 = vshrl.u32 %v5886, 7
        %v5888 = vsub.s32 3, %v5887
        %v5889 = vrot.slane %v5870, %v5888
        %v5890 = vlaneseq
        %v5891 = vshrl.u32 %v5890, 7
        %v5892 = vsub.s32 4, %v5891
        %v5893 = vrot.slane %v5870, %v5892
        %v5894 = vlaneseq
        %v5895 = vshrl.u32 %v5894, 7
        %v5896 = vsub.s32 5, %v5895
        %v5897 = vrot.slane %v5870, %v5896
        %v5898 = vlaneseq
        %v5899 = vshrl.u32 %v5898, 7
        %v5900 = vsub.s32 6, %v5899
        %v5901 = vrot.slane %v5870, %v5900
        %v5902 = vlaneseq
        %v5903 = vshrl.u32 %v5902, 7
        %v5904 = vsub.s32 7, %v5903
        %v5905 = vrot.slane %v5870, %v5904
        %v5906 = vlaneseq
        %v5907 = vshrl.u32 %v5906, 7
        %v5908 = vsub.s32 0, %v5907
        %v5909 = vrot.slane %v5871, %v5908
        %v5910 = vlaneseq
        %v5911 = vshrl.u32 %v5910, 7
        %v5912 = vsub.s32 1, %v5911
        %v5913 = vrot.slane %v5871, %v5912
        %v5914 = vlaneseq
        %v5915 = vshrl.u32 %v5914, 7
        %v5916 = vsub.s32 2, %v5915
        %v5917 = vrot.slane %v5871, %v5916
        %v5918 = vlaneseq
        %v5919 = vshrl.u32 %v5918, 7
        %v5920 = vsub.s32 3, %v5919
        %v5921 = vrot.slane %v5871, %v5920
        %v5922 = vlaneseq
        %v5923 = vshrl.u32 %v5922, 7
        %v5924 = vsub.s32 4, %v5923
        %v5925 = vrot.slane %v5871, %v5924
        %v5926 = vlaneseq
        %v5927 = vshrl.u32 %v5926, 7
        %v5928 = vsub.s32 5, %v5927
        %v5929 = vrot.slane %v5871, %v5928
        %v5930 = vlaneseq
        %v5931 = vshrl.u32 %v5930, 7
        %v5932 = vsub.s32 6, %v5931
        %v5933 = vrot.slane %v5871, %v5932
        %v5934 = vlaneseq
        %v5935 = vshrl.u32 %v5934, 7
        %v5936 = vsub.s32 7, %v5935
        %v5937 = vrot.slane %v5871, %v5936
        %v6466 = vunpack.c.l.b16 %v5358
        %v6467 = vunpack.c.h.b16 %v5358
        %v6468 = vunpack.c.l.b16 %v5359
        %v6469 = vunpack.c.h.b16 %v5359
        %v6470 = vunpack.c.l.b16 %v5360
        %v6471 = vunpack.c.h.b16 %v5360
        %v6472 = vunpack.c.l.b16 %v5361
        %v6473 = vunpack.c.h.b16 %v5361
        %v6474 = vunpack.c.l.b16 %v5362
        %v6475 = vunpack.c.h.b16 %v5362
        %v6476 = vunpack.c.l.b16 %v5363
        %v6477 = vunpack.c.h.b16 %v5363
        %v6478 = vunpack.c.l.b16 %v5364
        %v6479 = vunpack.c.h.b16 %v5364
        %v6480 = vunpack.c.l.b16 %v5365
        %v6481 = vunpack.c.h.b16 %v5365
        %v6482 = vunpack.c.l.b16 %v5366
        %v6483 = vunpack.c.h.b16 %v5366
        %v6484 = vunpack.c.l.b16 %v5367
        %v6485 = vunpack.c.h.b16 %v5367
        %v6486 = vunpack.c.l.b16 %v5368
        %v6487 = vunpack.c.h.b16 %v5368
        %v6488 = vunpack.c.l.b16 %v5369
        %v6489 = vunpack.c.h.b16 %v5369
        %v6490 = vunpack.c.l.b16 %v5370
        %v6491 = vunpack.c.h.b16 %v5370
        %v6492 = vunpack.c.l.b16 %v5371
        %v6493 = vunpack.c.h.b16 %v5371
        %v6494 = vunpack.c.l.b16 %v5372
        %v6495 = vunpack.c.h.b16 %v5372
        %v6496 = vunpack.c.l.b16 %v5373
        %v6497 = vunpack.c.h.b16 %v5373
        %v6498 = vunpack.c.l.b16 %v5374
        %v6499 = vunpack.c.h.b16 %v5374
        %v6500 = vunpack.c.l.b16 %v5375
        %v6501 = vunpack.c.h.b16 %v5375
        %v6502 = vunpack.c.l.b16 %v5376
        %v6503 = vunpack.c.h.b16 %v5376
        %v6504 = vunpack.c.l.b16 %v5377
        %v6505 = vunpack.c.h.b16 %v5377
        %v6506 = vunpack.c.l.b16 %v5378
        %v6507 = vunpack.c.h.b16 %v5378
        %v6508 = vunpack.c.l.b16 %v5379
        %v6509 = vunpack.c.h.b16 %v5379
        %v6510 = vunpack.c.l.b16 %v5380
        %v6511 = vunpack.c.h.b16 %v5380
        %v6512 = vunpack.c.l.b16 %v5381
        %v6513 = vunpack.c.h.b16 %v5381
        %v6514 = vunpack.c.l.b16 %v5382
        %v6515 = vunpack.c.h.b16 %v5382
        %v6516 = vunpack.c.l.b16 %v5383
        %v6517 = vunpack.c.h.b16 %v5383
        %v6518 = vunpack.c.l.b16 %v5384
        %v6519 = vunpack.c.h.b16 %v5384
        %v6520 = vunpack.c.l.b16 %v5385
        %v6521 = vunpack.c.h.b16 %v5385
        %v6522 = vunpack.c.l.b16 %v5386
        %v6523 = vunpack.c.h.b16 %v5386
        %v6524 = vunpack.c.l.b16 %v5387
        %v6525 = vunpack.c.h.b16 %v5387
        %v6526 = vunpack.c.l.b16 %v5388
        %v6527 = vunpack.c.h.b16 %v5388
        %v6528 = vunpack.c.l.b16 %v5389
        %v6529 = vunpack.c.h.b16 %v5389
        %v6530 = vunpack.c.l.b16 %v5390
        %v6531 = vunpack.c.h.b16 %v5390
        %v6532 = vunpack.c.l.b16 %v5391
        %v6533 = vunpack.c.h.b16 %v5391
        %v6534 = vunpack.c.l.b16 %v5392
        %v6535 = vunpack.c.h.b16 %v5392
        %v6536 = vunpack.c.l.b16 %v5393
        %v6537 = vunpack.c.h.b16 %v5393
        %v6538 = vunpack.c.l.b16 %v5394
        %v6539 = vunpack.c.h.b16 %v5394
        %v6540 = vunpack.c.l.b16 %v5395
        %v6541 = vunpack.c.h.b16 %v5395
        %v6542 = vunpack.c.l.b16 %v5396
        %v6543 = vunpack.c.h.b16 %v5396
        %v6544 = vunpack.c.l.b16 %v5397
        %v6545 = vunpack.c.h.b16 %v5397
        %v6546 = vunpack.c.l.b16 %v5398
        %v6547 = vunpack.c.h.b16 %v5398
        %v6548 = vunpack.c.l.b16 %v5399
        %v6549 = vunpack.c.h.b16 %v5399
        %v6550 = vunpack.c.l.b16 %v5400
        %v6551 = vunpack.c.h.b16 %v5400
        %v6552 = vunpack.c.l.b16 %v5401
        %v6553 = vunpack.c.h.b16 %v5401
        %v6554 = vunpack.c.l.b16 %v5402
        %v6555 = vunpack.c.h.b16 %v5402
        %v6556 = vunpack.c.l.b16 %v5403
        %v6557 = vunpack.c.h.b16 %v5403
        %v6558 = vunpack.c.l.b16 %v5404
        %v6559 = vunpack.c.h.b16 %v5404
        %v6560 = vunpack.c.l.b16 %v5405
        %v6561 = vunpack.c.h.b16 %v5405
        %v6562 = vunpack.c.l.b16 %v5406
        %v6563 = vunpack.c.h.b16 %v5406
        %v6564 = vunpack.c.l.b16 %v5407
        %v6565 = vunpack.c.h.b16 %v5407
        %v6566 = vunpack.c.l.b16 %v5408
        %v6567 = vunpack.c.h.b16 %v5408
        %v6568 = vunpack.c.l.b16 %v5409
        %v6569 = vunpack.c.h.b16 %v5409
        %v6570 = vunpack.c.l.b16 %v5410
        %v6571 = vunpack.c.h.b16 %v5410
        %v6572 = vunpack.c.l.b16 %v5411
        %v6573 = vunpack.c.h.b16 %v5411
        %v6574 = vunpack.c.l.b16 %v5412
        %v6575 = vunpack.c.h.b16 %v5412
        %v6576 = vunpack.c.l.b16 %v5413
        %v6577 = vunpack.c.h.b16 %v5413
        %v6578 = vunpack.c.l.b16 %v5414
        %v6579 = vunpack.c.h.b16 %v5414
        %v6580 = vunpack.c.l.b16 %v5415
        %v6581 = vunpack.c.h.b16 %v5415
        %v6582 = vunpack.c.l.b16 %v5416
        %v6583 = vunpack.c.h.b16 %v5416
        %v6584 = vunpack.c.l.b16 %v5417
        %v6585 = vunpack.c.h.b16 %v5417
        %v6586 = vunpack.c.l.b16 %v5418
        %v6587 = vunpack.c.h.b16 %v5418
        %v6588 = vunpack.c.l.b16 %v5419
        %v6589 = vunpack.c.h.b16 %v5419
        %v6590 = vunpack.c.l.b16 %v5420
        %v6591 = vunpack.c.h.b16 %v5420
        %v6592 = vunpack.c.l.b16 %v5421
        %v6593 = vunpack.c.h.b16 %v5421
        %v6594 = vunpack.c.l.b16 %v5422
        %v6595 = vunpack.c.h.b16 %v5422
        %v6596 = vunpack.c.l.b16 %v5423
        %v6597 = vunpack.c.h.b16 %v5423
        %v6598 = vunpack.c.l.b16 %v5424
        %v6599 = vunpack.c.h.b16 %v5424
        %v6600 = vunpack.c.l.b16 %v5425
        %v6601 = vunpack.c.h.b16 %v5425
        %v6602 = vunpack.c.l.b16 %v5426
        %v6603 = vunpack.c.h.b16 %v5426
        %v6604 = vunpack.c.l.b16 %v5427
        %v6605 = vunpack.c.h.b16 %v5427
        %v6606 = vunpack.c.l.b16 %v5428
        %v6607 = vunpack.c.h.b16 %v5428
        %v6608 = vunpack.c.l.b16 %v5429
        %v6609 = vunpack.c.h.b16 %v5429
        %v6610 = vunpack.c.l.b16 %v5430
        %v6611 = vunpack.c.h.b16 %v5430
        %v6612 = vunpack.c.l.b16 %v5431
        %v6613 = vunpack.c.h.b16 %v5431
        %v6614 = vunpack.c.l.b16 %v5432
        %v6615 = vunpack.c.h.b16 %v5432
        %v6616 = vunpack.c.l.b16 %v5433
        %v6617 = vunpack.c.h.b16 %v5433
        %v6618 = vunpack.c.l.b16 %v5434
        %v6619 = vunpack.c.h.b16 %v5434
        %v6620 = vunpack.c.l.b16 %v5435
        %v6621 = vunpack.c.h.b16 %v5435
        %v6622 = vunpack.c.l.b16 %v5436
        %v6623 = vunpack.c.h.b16 %v5436
        %v6624 = vunpack.c.l.b16 %v5437
        %v6625 = vunpack.c.h.b16 %v5437
        %v6626 = vunpack.c.l.b16 %v5438
        %v6627 = vunpack.c.h.b16 %v5438
        %v6628 = vunpack.c.l.b16 %v5439
        %v6629 = vunpack.c.h.b16 %v5439
        %v6630 = vunpack.c.l.b16 %v5440
        %v6631 = vunpack.c.h.b16 %v5440
        %v6632 = vunpack.c.l.b16 %v5441
        %v6633 = vunpack.c.h.b16 %v5441
        %v6634 = vunpack.c.l.b16 %v5442
        %v6635 = vunpack.c.h.b16 %v5442
        %v6636 = vunpack.c.l.b16 %v5443
        %v6637 = vunpack.c.h.b16 %v5443
        %v6638 = vunpack.c.l.b16 %v5444
        %v6639 = vunpack.c.h.b16 %v5444
        %v6640 = vunpack.c.l.b16 %v5445
        %v6641 = vunpack.c.h.b16 %v5445
        %v6642 = vunpack.c.l.b16 %v5446
        %v6643 = vunpack.c.h.b16 %v5446
        %v6644 = vunpack.c.l.b16 %v5447
        %v6645 = vunpack.c.h.b16 %v5447
        %v6646 = vunpack.c.l.b16 %v5448
        %v6647 = vunpack.c.h.b16 %v5448
        %v6648 = vunpack.c.l.b16 %v5449
        %v6649 = vunpack.c.h.b16 %v5449
        %v6650 = vunpack.c.l.b16 %v5450
        %v6651 = vunpack.c.h.b16 %v5450
        %v6652 = vunpack.c.l.b16 %v5451
        %v6653 = vunpack.c.h.b16 %v5451
        %v6654 = vunpack.c.l.b16 %v5452
        %v6655 = vunpack.c.h.b16 %v5452
        %v6656 = vunpack.c.l.b16 %v5453
        %v6657 = vunpack.c.h.b16 %v5453
        %v6658 = vunpack.c.l.b16 %v5454
        %v6659 = vunpack.c.h.b16 %v5454
        %v6660 = vunpack.c.l.b16 %v5455
        %v6661 = vunpack.c.h.b16 %v5455
        %v6662 = vunpack.c.l.b16 %v5456
        %v6663 = vunpack.c.h.b16 %v5456
        %v6664 = vunpack.c.l.b16 %v5457
        %v6665 = vunpack.c.h.b16 %v5457
        %v6666 = vunpack.c.l.b16 %v5458
        %v6667 = vunpack.c.h.b16 %v5458
        %v6668 = vunpack.c.l.b16 %v5459
        %v6669 = vunpack.c.h.b16 %v5459
        %v6670 = vunpack.c.l.b16 %v5460
        %v6671 = vunpack.c.h.b16 %v5460
        %v6672 = vunpack.c.l.b16 %v5461
        %v6673 = vunpack.c.h.b16 %v5461
        %v6674 = vunpack.c.l.b16 %v5462
        %v6675 = vunpack.c.h.b16 %v5462
        %v6676 = vunpack.c.l.b16 %v5463
        %v6677 = vunpack.c.h.b16 %v5463
        %v6678 = vunpack.c.l.b16 %v5464
        %v6679 = vunpack.c.h.b16 %v5464
        %v6680 = vunpack.c.l.b16 %v5465
        %v6681 = vunpack.c.h.b16 %v5465
        %v6682 = vunpack.c.l.b16 %v5466
        %v6683 = vunpack.c.h.b16 %v5466
        %v6684 = vunpack.c.l.b16 %v5467
        %v6685 = vunpack.c.h.b16 %v5467
        %v6686 = vunpack.c.l.b16 %v5468
        %v6687 = vunpack.c.h.b16 %v5468
        %v6688 = vunpack.c.l.b16 %v5469
        %v6689 = vunpack.c.h.b16 %v5469
        %v6690 = vunpack.c.l.b16 %v5470
        %v6691 = vunpack.c.h.b16 %v5470
        %v6692 = vunpack.c.l.b16 %v5471
        %v6693 = vunpack.c.h.b16 %v5471
        %v6694 = vunpack.c.l.b16 %v5472
        %v6695 = vunpack.c.h.b16 %v5472
        %v6696 = vunpack.c.l.b16 %v5473
        %v6697 = vunpack.c.h.b16 %v5473
        %v6698 = vunpack.c.l.b16 %v5474
        %v6699 = vunpack.c.h.b16 %v5474
        %v6700 = vunpack.c.l.b16 %v5475
        %v6701 = vunpack.c.h.b16 %v5475
        %v6702 = vunpack.c.l.b16 %v5476
        %v6703 = vunpack.c.h.b16 %v5476
        %v6704 = vunpack.c.l.b16 %v5477
        %v6705 = vunpack.c.h.b16 %v5477
        %v6706 = vunpack.c.l.b16 %v5478
        %v6707 = vunpack.c.h.b16 %v5478
        %v6708 = vunpack.c.l.b16 %v5479
        %v6709 = vunpack.c.h.b16 %v5479
        %v6710 = vunpack.c.l.b16 %v5480
        %v6711 = vunpack.c.h.b16 %v5480
        %v6712 = vunpack.c.l.b16 %v5481
        %v6713 = vunpack.c.h.b16 %v5481
        %v6714 = vunpack.c.l.b16 %v5482
        %v6715 = vunpack.c.h.b16 %v5482
        %v6716 = vunpack.c.l.b16 %v5483
        %v6717 = vunpack.c.h.b16 %v5483
        %v6718 = vunpack.c.l.b16 %v5484
        %v6719 = vunpack.c.h.b16 %v5484
        %v6720 = vunpack.c.l.b16 %v5485
        %v6721 = vunpack.c.h.b16 %v5485
        %v6722 = vunpack.c.l.b16 %v5486
        %v6723 = vunpack.c.h.b16 %v5486
        %v6724 = vunpack.c.l.b16 %v5487
        %v6725 = vunpack.c.h.b16 %v5487
        %v6726 = vunpack.c.l.b16 %v5488
        %v6727 = vunpack.c.h.b16 %v5488
        %v6728 = vunpack.c.l.b16 %v5489
        %v6729 = vunpack.c.h.b16 %v5489
        %v6730 = vunpack.c.l.b16 %v5490
        %v6731 = vunpack.c.h.b16 %v5490
        %v6732 = vunpack.c.l.b16 %v5491
        %v6733 = vunpack.c.h.b16 %v5491
        %v6734 = vunpack.c.l.b16 %v5492
        %v6735 = vunpack.c.h.b16 %v5492
        %v6736 = vunpack.c.l.b16 %v5493
        %v6737 = vunpack.c.h.b16 %v5493
        %v6738 = vunpack.c.l.b16 %v5494
        %v6739 = vunpack.c.h.b16 %v5494
        %v6740 = vunpack.c.l.b16 %v5495
        %v6741 = vunpack.c.h.b16 %v5495
        %v6742 = vunpack.c.l.b16 %v5496
        %v6743 = vunpack.c.h.b16 %v5496
        %v6744 = vunpack.c.l.b16 %v5497
        %v6745 = vunpack.c.h.b16 %v5497
        %v6746 = vunpack.c.l.b16 %v5498
        %v6747 = vunpack.c.h.b16 %v5498
        %v6748 = vunpack.c.l.b16 %v5499
        %v6749 = vunpack.c.h.b16 %v5499
        %v6750 = vunpack.c.l.b16 %v5500
        %v6751 = vunpack.c.h.b16 %v5500
        %v6752 = vunpack.c.l.b16 %v5501
        %v6753 = vunpack.c.h.b16 %v5501
        %v6754 = vunpack.c.l.b16 %v5502
        %v6755 = vunpack.c.h.b16 %v5502
        %v6756 = vunpack.c.l.b16 %v5503
        %v6757 = vunpack.c.h.b16 %v5503
        %v6758 = vunpack.c.l.b16 %v5504
        %v6759 = vunpack.c.h.b16 %v5504
        %v6760 = vunpack.c.l.b16 %v5505
        %v6761 = vunpack.c.h.b16 %v5505
        %v6762 = vunpack.c.l.b16 %v5506
        %v6763 = vunpack.c.h.b16 %v5506
        %v6764 = vunpack.c.l.b16 %v5507
        %v6765 = vunpack.c.h.b16 %v5507
        %v6766 = vunpack.c.l.b16 %v5508
        %v6767 = vunpack.c.h.b16 %v5508
        %v6768 = vunpack.c.l.b16 %v5509
        %v6769 = vunpack.c.h.b16 %v5509
        %v6770 = vunpack.c.l.b16 %v5510
        %v6771 = vunpack.c.h.b16 %v5510
        %v6772 = vunpack.c.l.b16 %v5511
        %v6773 = vunpack.c.h.b16 %v5511
        %v6774 = vunpack.c.l.b16 %v5512
        %v6775 = vunpack.c.h.b16 %v5512
        %v6776 = vunpack.c.l.b16 %v5513
        %v6777 = vunpack.c.h.b16 %v5513
        %v6778 = vunpack.c.l.b16 %v5514
        %v6779 = vunpack.c.h.b16 %v5514
        %v6780 = vunpack.c.l.b16 %v5515
        %v6781 = vunpack.c.h.b16 %v5515
        %v6782 = vunpack.c.l.b16 %v5516
        %v6783 = vunpack.c.h.b16 %v5516
        %v6784 = vunpack.c.l.b16 %v5517
        %v6785 = vunpack.c.h.b16 %v5517
        %v6786 = vunpack.c.l.b16 %v5518
        %v6787 = vunpack.c.h.b16 %v5518
        %v6788 = vunpack.c.l.b16 %v5519
        %v6789 = vunpack.c.h.b16 %v5519
        %v6790 = vunpack.c.l.b16 %v5520
        %v6791 = vunpack.c.h.b16 %v5520
        %v6792 = vunpack.c.l.b16 %v5521
        %v6793 = vunpack.c.h.b16 %v5521
        %v6794 = vunpack.c.l.b16 %v5522
        %v6795 = vunpack.c.h.b16 %v5522
        %v6796 = vunpack.c.l.b16 %v5523
        %v6797 = vunpack.c.h.b16 %v5523
        %v6798 = vunpack.c.l.b16 %v5524
        %v6799 = vunpack.c.h.b16 %v5524
        %v6800 = vunpack.c.l.b16 %v5525
        %v6801 = vunpack.c.h.b16 %v5525
        %v6802 = vunpack.c.l.b16 %v5526
        %v6803 = vunpack.c.h.b16 %v5526
        %v6804 = vunpack.c.l.b16 %v5527
        %v6805 = vunpack.c.h.b16 %v5527
        %v6806 = vunpack.c.l.b16 %v5528
        %v6807 = vunpack.c.h.b16 %v5528
        %v6808 = vunpack.c.l.b16 %v5529
        %v6809 = vunpack.c.h.b16 %v5529
        %v6810 = vunpack.c.l.b16 %v5530
        %v6811 = vunpack.c.h.b16 %v5530
        %v6812 = vunpack.c.l.b16 %v5531
        %v6813 = vunpack.c.h.b16 %v5531
        %v6814 = vunpack.c.l.b16 %v5532
        %v6815 = vunpack.c.h.b16 %v5532
        %v6816 = vunpack.c.l.b16 %v5533
        %v6817 = vunpack.c.h.b16 %v5533
        %v6818 = vunpack.c.l.b16 %v5534
        %v6819 = vunpack.c.h.b16 %v5534
        %v6820 = vunpack.c.l.b16 %v5535
        %v6821 = vunpack.c.h.b16 %v5535
        %v6822 = vunpack.c.l.b16 %v5536
        %v6823 = vunpack.c.h.b16 %v5536
        %v6824 = vunpack.c.l.b16 %v5537
        %v6825 = vunpack.c.h.b16 %v5537
        %v6826 = vunpack.c.l.b16 %v5538
        %v6827 = vunpack.c.h.b16 %v5538
        %v6828 = vunpack.c.l.b16 %v5539
        %v6829 = vunpack.c.h.b16 %v5539
        %v6830 = vunpack.c.l.b16 %v5540
        %v6831 = vunpack.c.h.b16 %v5540
        %v6832 = vunpack.c.l.b16 %v5541
        %v6833 = vunpack.c.h.b16 %v5541
        %v6834 = vunpack.c.l.b16 %v5542
        %v6835 = vunpack.c.h.b16 %v5542
        %v6836 = vunpack.c.l.b16 %v5543
        %v6837 = vunpack.c.h.b16 %v5543
        %v6838 = vunpack.c.l.b16 %v5544
        %v6839 = vunpack.c.h.b16 %v5544
        %v6840 = vunpack.c.l.b16 %v5545
        %v6841 = vunpack.c.h.b16 %v5545
        %v6842 = vunpack.c.l.b16 %v5546
        %v6843 = vunpack.c.h.b16 %v5546
        %v6844 = vunpack.c.l.b16 %v5547
        %v6845 = vunpack.c.h.b16 %v5547
        %v6846 = vunpack.c.l.b16 %v5548
        %v6847 = vunpack.c.h.b16 %v5548
        %v6848 = vunpack.c.l.b16 %v5549
        %v6849 = vunpack.c.h.b16 %v5549
        %v6850 = vunpack.c.l.b16 %v5550
        %v6851 = vunpack.c.h.b16 %v5550
        %v6852 = vunpack.c.l.b16 %v5551
        %v6853 = vunpack.c.h.b16 %v5551
        %v6854 = vunpack.c.l.b16 %v5552
        %v6855 = vunpack.c.h.b16 %v5552
        %v6856 = vunpack.c.l.b16 %v5553
        %v6857 = vunpack.c.h.b16 %v5553
        %v6858 = vunpack.c.l.b16 %v5554
        %v6859 = vunpack.c.h.b16 %v5554
        %v6860 = vunpack.c.l.b16 %v5555
        %v6861 = vunpack.c.h.b16 %v5555
        %v6862 = vunpack.c.l.b16 %v5556
        %v6863 = vunpack.c.h.b16 %v5556
        %v6864 = vunpack.c.l.b16 %v5557
        %v6865 = vunpack.c.h.b16 %v5557
        %v6866 = vunpack.c.l.b16 %v5558
        %v6867 = vunpack.c.h.b16 %v5558
        %v6868 = vunpack.c.l.b16 %v5559
        %v6869 = vunpack.c.h.b16 %v5559
        %v6870 = vunpack.c.l.b16 %v5560
        %v6871 = vunpack.c.h.b16 %v5560
        %v6872 = vunpack.c.l.b16 %v5561
        %v6873 = vunpack.c.h.b16 %v5561
        %v6874 = vunpack.c.l.b16 %v5562
        %v6875 = vunpack.c.h.b16 %v5562
        %v6876 = vunpack.c.l.b16 %v5563
        %v6877 = vunpack.c.h.b16 %v5563
        %v6878 = vunpack.c.l.b16 %v5564
        %v6879 = vunpack.c.h.b16 %v5564
        %v6880 = vunpack.c.l.b16 %v5565
        %v6881 = vunpack.c.h.b16 %v5565
        %v6882 = vunpack.c.l.b16 %v5566
        %v6883 = vunpack.c.h.b16 %v5566
        %v6884 = vunpack.c.l.b16 %v5567
        %v6885 = vunpack.c.h.b16 %v5567
        %v6886 = vunpack.c.l.b16 %v5568
        %v6887 = vunpack.c.h.b16 %v5568
        %v6888 = vunpack.c.l.b16 %v5569
        %v6889 = vunpack.c.h.b16 %v5569
        %v6890 = vunpack.c.l.b16 %v5570
        %v6891 = vunpack.c.h.b16 %v5570
        %v6892 = vunpack.c.l.b16 %v5571
        %v6893 = vunpack.c.h.b16 %v5571
        %v6894 = vunpack.c.l.b16 %v5572
        %v6895 = vunpack.c.h.b16 %v5572
        %v6896 = vunpack.c.l.b16 %v5573
        %v6897 = vunpack.c.h.b16 %v5573
        %v6898 = vunpack.c.l.b16 %v5574
        %v6899 = vunpack.c.h.b16 %v5574
        %v6900 = vunpack.c.l.b16 %v5575
        %v6901 = vunpack.c.h.b16 %v5575
        %v6902 = vunpack.c.l.b16 %v5576
        %v6903 = vunpack.c.h.b16 %v5576
        %v6904 = vunpack.c.l.b16 %v5577
        %v6905 = vunpack.c.h.b16 %v5577
        %v6906 = vunpack.c.l.b16 %v5578
        %v6907 = vunpack.c.h.b16 %v5578
        %v6908 = vunpack.c.l.b16 %v5579
        %v6909 = vunpack.c.h.b16 %v5579
        %v6910 = vunpack.c.l.b16 %v5580
        %v6911 = vunpack.c.h.b16 %v5580
        %v6912 = vunpack.c.l.b16 %v5581
        %v6913 = vunpack.c.h.b16 %v5581
        %v6914 = vunpack.c.l.b16 %v5582
        %v6915 = vunpack.c.h.b16 %v5582
        %v6916 = vunpack.c.l.b16 %v5583
        %v6917 = vunpack.c.h.b16 %v5583
        %v6918 = vunpack.c.l.b16 %v5584
        %v6919 = vunpack.c.h.b16 %v5584
        %v6920 = vunpack.c.l.b16 %v5585
        %v6921 = vunpack.c.h.b16 %v5585
        %v6922 = vunpack.c.l.b16 %v5586
        %v6923 = vunpack.c.h.b16 %v5586
        %v6924 = vunpack.c.l.b16 %v5587
        %v6925 = vunpack.c.h.b16 %v5587
        %v6926 = vunpack.c.l.b16 %v5588
        %v6927 = vunpack.c.h.b16 %v5588
        %v6928 = vunpack.c.l.b16 %v5589
        %v6929 = vunpack.c.h.b16 %v5589
        %v6930 = vunpack.c.l.b16 %v5590
        %v6931 = vunpack.c.h.b16 %v5590
        %v6932 = vunpack.c.l.b16 %v5591
        %v6933 = vunpack.c.h.b16 %v5591
        %v6934 = vunpack.c.l.b16 %v5592
        %v6935 = vunpack.c.h.b16 %v5592
        %v6936 = vunpack.c.l.b16 %v5593
        %v6937 = vunpack.c.h.b16 %v5593
        %v6938 = vunpack.c.l.b16 %v5594
        %v6939 = vunpack.c.h.b16 %v5594
        %v6940 = vunpack.c.l.b16 %v5595
        %v6941 = vunpack.c.h.b16 %v5595
        %v6942 = vunpack.c.l.b16 %v5596
        %v6943 = vunpack.c.h.b16 %v5596
        %v6944 = vunpack.c.l.b16 %v5597
        %v6945 = vunpack.c.h.b16 %v5597
        %v6946 = vunpack.c.l.b16 %v5598
        %v6947 = vunpack.c.h.b16 %v5598
        %v6948 = vunpack.c.l.b16 %v5599
        %v6949 = vunpack.c.h.b16 %v5599
        %v6950 = vunpack.c.l.b16 %v5600
        %v6951 = vunpack.c.h.b16 %v5600
        %v6952 = vunpack.c.l.b16 %v5601
        %v6953 = vunpack.c.h.b16 %v5601
        %v6954 = vunpack.c.l.b16 %v5602
        %v6955 = vunpack.c.h.b16 %v5602
        %v6956 = vunpack.c.l.b16 %v5603
        %v6957 = vunpack.c.h.b16 %v5603
        %v6958 = vunpack.c.l.b16 %v5604
        %v6959 = vunpack.c.h.b16 %v5604
        %v6960 = vunpack.c.l.b16 %v5605
        %v6961 = vunpack.c.h.b16 %v5605
        %v6962 = vunpack.c.l.b16 %v5606
        %v6963 = vunpack.c.h.b16 %v5606
        %v6964 = vunpack.c.l.b16 %v5607
        %v6965 = vunpack.c.h.b16 %v5607
        %v6966 = vunpack.c.l.b16 %v5608
        %v6967 = vunpack.c.h.b16 %v5608
        %v6968 = vunpack.c.l.b16 %v5609
        %v6969 = vunpack.c.h.b16 %v5609
        %v6970 = vunpack.c.l.b16 %v5610
        %v6971 = vunpack.c.h.b16 %v5610
        %v6972 = vunpack.c.l.b16 %v5611
        %v6973 = vunpack.c.h.b16 %v5611
        %v6974 = vunpack.c.l.b16 %v5612
        %v6975 = vunpack.c.h.b16 %v5612
        %v6976 = vunpack.c.l.b16 %v5613
        %v6977 = vunpack.c.h.b16 %v5613
        %v6978 = vunpack.c.l.b16 %v5614
        %v6979 = vunpack.c.h.b16 %v5614
        %v6980 = vunpack.c.l.b16 %v5615
        %v6981 = vunpack.c.h.b16 %v5615
        %v6982 = vunpack.c.l.b16 %v5616
        %v6983 = vunpack.c.h.b16 %v5616
        %v6984 = vunpack.c.l.b16 %v5617
        %v6985 = vunpack.c.h.b16 %v5617
        %v6986 = vunpack.c.l.b16 %v5618
        %v6987 = vunpack.c.h.b16 %v5618
        %v6988 = vunpack.c.l.b16 %v5619
        %v6989 = vunpack.c.h.b16 %v5619
        %v6990 = vunpack.c.l.b16 %v5620
        %v6991 = vunpack.c.h.b16 %v5620
        %v6992 = vunpack.c.l.b16 %v5621
        %v6993 = vunpack.c.h.b16 %v5621
        %v6994 = vunpack.c.l.b16 %v5622
        %v6995 = vunpack.c.h.b16 %v5622
        %v6996 = vunpack.c.l.b16 %v5623
        %v6997 = vunpack.c.h.b16 %v5623
        %v6998 = vunpack.c.l.b16 %v5624
        %v6999 = vunpack.c.h.b16 %v5624
        %v7000 = vunpack.c.l.b16 %v5625
        %v7001 = vunpack.c.h.b16 %v5625
        %v7002 = vunpack.c.l.b16 %v5626
        %v7003 = vunpack.c.h.b16 %v5626
        %v7004 = vunpack.c.l.b16 %v5627
        %v7005 = vunpack.c.h.b16 %v5627
        %v7006 = vunpack.c.l.b16 %v5628
        %v7007 = vunpack.c.h.b16 %v5628
        %v7008 = vunpack.c.l.b16 %v5629
        %v7009 = vunpack.c.h.b16 %v5629
        %v7010 = vunpack.c.l.b16 %v5630
        %v7011 = vunpack.c.h.b16 %v5630
        %v7012 = vunpack.c.l.b16 %v5631
        %v7013 = vunpack.c.h.b16 %v5631
        %v7014 = vunpack.c.l.b16 %v5632
        %v7015 = vunpack.c.h.b16 %v5632
        %v7016 = vunpack.c.l.b16 %v5633
        %v7017 = vunpack.c.h.b16 %v5633
        %v7018 = vunpack.c.l.b16 %v5634
        %v7019 = vunpack.c.h.b16 %v5634
        %v7020 = vunpack.c.l.b16 %v5635
        %v7021 = vunpack.c.h.b16 %v5635
        %v7022 = vunpack.c.l.b16 %v5636
        %v7023 = vunpack.c.h.b16 %v5636
        %v7024 = vunpack.c.l.b16 %v5637
        %v7025 = vunpack.c.h.b16 %v5637
        %v7026 = vunpack.c.l.b16 %v5638
        %v7027 = vunpack.c.h.b16 %v5638
        %v7028 = vunpack.c.l.b16 %v5639
        %v7029 = vunpack.c.h.b16 %v5639
        %v7030 = vunpack.c.l.b16 %v5640
        %v7031 = vunpack.c.h.b16 %v5640
        %v7032 = vunpack.c.l.b16 %v5641
        %v7033 = vunpack.c.h.b16 %v5641
        %v7034 = vunpack.c.l.b16 %v5642
        %v7035 = vunpack.c.h.b16 %v5642
        %v7036 = vunpack.c.l.b16 %v5643
        %v7037 = vunpack.c.h.b16 %v5643
        %v7038 = vunpack.c.l.b16 %v5644
        %v7039 = vunpack.c.h.b16 %v5644
        %v7040 = vunpack.c.l.b16 %v5645
        %v7041 = vunpack.c.h.b16 %v5645
        %v7042 = vunpack.c.l.b16 %v5646
        %v7043 = vunpack.c.h.b16 %v5646
        %v7044 = vunpack.c.l.b16 %v5647
        %v7045 = vunpack.c.h.b16 %v5647
        %v7046 = vunpack.c.l.b16 %v5648
        %v7047 = vunpack.c.h.b16 %v5648
        %v7048 = vunpack.c.l.b16 %v5649
        %v7049 = vunpack.c.h.b16 %v5649
        %v7050 = vunpack.c.l.b16 %v5650
        %v7051 = vunpack.c.h.b16 %v5650
        %v7052 = vunpack.c.l.b16 %v5651
        %v7053 = vunpack.c.h.b16 %v5651
        %v7054 = vunpack.c.l.b16 %v5652
        %v7055 = vunpack.c.h.b16 %v5652
        %v7056 = vunpack.c.l.b16 %v5653
        %v7057 = vunpack.c.h.b16 %v5653
        %v7058 = vunpack.c.l.b16 %v5654
        %v7059 = vunpack.c.h.b16 %v5654
        %v7060 = vunpack.c.l.b16 %v5655
        %v7061 = vunpack.c.h.b16 %v5655
        %v7062 = vunpack.c.l.b16 %v5656
        %v7063 = vunpack.c.h.b16 %v5656
        %v7064 = vunpack.c.l.b16 %v5657
        %v7065 = vunpack.c.h.b16 %v5657
        %v7066 = vunpack.c.l.b16 %v5658
        %v7067 = vunpack.c.h.b16 %v5658
        %v7068 = vunpack.c.l.b16 %v5659
        %v7069 = vunpack.c.h.b16 %v5659
        %v7070 = vunpack.c.l.b16 %v5660
        %v7071 = vunpack.c.h.b16 %v5660
        %v7072 = vunpack.c.l.b16 %v5661
        %v7073 = vunpack.c.h.b16 %v5661
        %v7074 = vunpack.c.l.b16 %v5662
        %v7075 = vunpack.c.h.b16 %v5662
        %v7076 = vunpack.c.l.b16 %v5663
        %v7077 = vunpack.c.h.b16 %v5663
        %v7078 = vunpack.c.l.b16 %v5664
        %v7079 = vunpack.c.h.b16 %v5664
        %v7080 = vunpack.c.l.b16 %v5665
        %v7081 = vunpack.c.h.b16 %v5665
        %v7082 = vunpack.c.l.b16 %v5666
        %v7083 = vunpack.c.h.b16 %v5666
        %v7084 = vunpack.c.l.b16 %v5667
        %v7085 = vunpack.c.h.b16 %v5667
        %v7086 = vunpack.c.l.b16 %v5668
        %v7087 = vunpack.c.h.b16 %v5668
        %v7088 = vunpack.c.l.b16 %v5669
        %v7089 = vunpack.c.h.b16 %v5669
        %v7090 = vunpack.c.l.b16 %v5670
        %v7091 = vunpack.c.h.b16 %v5670
        %v7092 = vunpack.c.l.b16 %v5671
        %v7093 = vunpack.c.h.b16 %v5671
        %v7094 = vunpack.c.l.b16 %v5672
        %v7095 = vunpack.c.h.b16 %v5672
        %v7096 = vunpack.c.l.b16 %v5673
        %v7097 = vunpack.c.h.b16 %v5673
        %v7098 = vunpack.c.l.b16 %v5674
        %v7099 = vunpack.c.h.b16 %v5674
        %v7100 = vunpack.c.l.b16 %v5675
        %v7101 = vunpack.c.h.b16 %v5675
        %v7102 = vunpack.c.l.b16 %v5676
        %v7103 = vunpack.c.h.b16 %v5676
        %v7104 = vunpack.c.l.b16 %v5677
        %v7105 = vunpack.c.h.b16 %v5677
        %v7106 = vunpack.c.l.b16 %v5678
        %v7107 = vunpack.c.h.b16 %v5678
        %v7108 = vunpack.c.l.b16 %v5679
        %v7109 = vunpack.c.h.b16 %v5679
        %v7110 = vunpack.c.l.b16 %v5680
        %v7111 = vunpack.c.h.b16 %v5680
        %v7112 = vunpack.c.l.b16 %v5681
        %v7113 = vunpack.c.h.b16 %v5681
        %v7114 = vunpack.c.l.b16 %v5682
        %v7115 = vunpack.c.h.b16 %v5682
        %v7116 = vunpack.c.l.b16 %v5683
        %v7117 = vunpack.c.h.b16 %v5683
        %v7118 = vunpack.c.l.b16 %v5684
        %v7119 = vunpack.c.h.b16 %v5684
        %v7120 = vunpack.c.l.b16 %v5685
        %v7121 = vunpack.c.h.b16 %v5685
        %v7122 = vunpack.c.l.b16 %v5686
        %v7123 = vunpack.c.h.b16 %v5686
        %v7124 = vunpack.c.l.b16 %v5687
        %v7125 = vunpack.c.h.b16 %v5687
        %v7126 = vunpack.c.l.b16 %v5688
        %v7127 = vunpack.c.h.b16 %v5688
        %v7128 = vunpack.c.l.b16 %v5689
        %v7129 = vunpack.c.h.b16 %v5689
        %v7130 = vunpack.c.l.b16 %v5690
        %v7131 = vunpack.c.h.b16 %v5690
        %v7132 = vunpack.c.l.b16 %v5691
        %v7133 = vunpack.c.h.b16 %v5691
        %v7134 = vunpack.c.l.b16 %v5692
        %v7135 = vunpack.c.h.b16 %v5692
        %v7136 = vunpack.c.l.b16 %v5693
        %v7137 = vunpack.c.h.b16 %v5693
        %v7138 = vunpack.c.l.b16 %v5694
        %v7139 = vunpack.c.h.b16 %v5694
        %v7140 = vunpack.c.l.b16 %v5695
        %v7141 = vunpack.c.h.b16 %v5695
        %v7142 = vunpack.c.l.b16 %v5696
        %v7143 = vunpack.c.h.b16 %v5696
        %v7144 = vunpack.c.l.b16 %v5697
        %v7145 = vunpack.c.h.b16 %v5697
        %v7146 = vunpack.c.l.b16 %v5698
        %v7147 = vunpack.c.h.b16 %v5698
        %v7148 = vunpack.c.l.b16 %v5699
        %v7149 = vunpack.c.h.b16 %v5699
        %v7150 = vunpack.c.l.b16 %v5700
        %v7151 = vunpack.c.h.b16 %v5700
        %v7152 = vunpack.c.l.b16 %v5701
        %v7153 = vunpack.c.h.b16 %v5701
        %v7154 = vunpack.c.l.b16 %v5702
        %v7155 = vunpack.c.h.b16 %v5702
        %v7156 = vunpack.c.l.b16 %v5703
        %v7157 = vunpack.c.h.b16 %v5703
        %v7158 = vunpack.c.l.b16 %v5704
        %v7159 = vunpack.c.h.b16 %v5704
        %v7160 = vunpack.c.l.b16 %v5705
        %v7161 = vunpack.c.h.b16 %v5705
        %v7162 = vunpack.c.l.b16 %v5706
        %v7163 = vunpack.c.h.b16 %v5706
        %v7164 = vunpack.c.l.b16 %v5707
        %v7165 = vunpack.c.h.b16 %v5707
        %v7166 = vunpack.c.l.b16 %v5708
        %v7167 = vunpack.c.h.b16 %v5708
        %v7168 = vunpack.c.l.b16 %v5709
        %v7169 = vunpack.c.h.b16 %v5709
        %v7170 = vunpack.c.l.b16 %v5710
        %v7171 = vunpack.c.h.b16 %v5710
        %v7172 = vunpack.c.l.b16 %v5711
        %v7173 = vunpack.c.h.b16 %v5711
        %v7174 = vunpack.c.l.b16 %v5712
        %v7175 = vunpack.c.h.b16 %v5712
        %v7176 = vunpack.c.l.b16 %v5713
        %v7177 = vunpack.c.h.b16 %v5713
        %v7178 = vunpack.c.l.b16 %v5714
        %v7179 = vunpack.c.h.b16 %v5714
        %v7180 = vunpack.c.l.b16 %v5715
        %v7181 = vunpack.c.h.b16 %v5715
        %v7182 = vunpack.c.l.b16 %v5716
        %v7183 = vunpack.c.h.b16 %v5716
        %v7184 = vunpack.c.l.b16 %v5717
        %v7185 = vunpack.c.h.b16 %v5717
        %v7186 = vunpack.c.l.b16 %v5718
        %v7187 = vunpack.c.h.b16 %v5718
        %v7188 = vunpack.c.l.b16 %v5719
        %v7189 = vunpack.c.h.b16 %v5719
        %v7190 = vunpack.c.l.b16 %v5720
        %v7191 = vunpack.c.h.b16 %v5720
        %v7192 = vunpack.c.l.b16 %v5721
        %v7193 = vunpack.c.h.b16 %v5721
        %v7194 = vunpack.c.l.b16 %v5722
        %v7195 = vunpack.c.h.b16 %v5722
        %v7196 = vunpack.c.l.b16 %v5723
        %v7197 = vunpack.c.h.b16 %v5723
        %v7198 = vunpack.c.l.b16 %v5724
        %v7199 = vunpack.c.h.b16 %v5724
        %v7200 = vunpack.c.l.b16 %v5725
        %v7201 = vunpack.c.h.b16 %v5725
        %v7202 = vunpack.c.l.b16 %v5726
        %v7203 = vunpack.c.h.b16 %v5726
        %v7204 = vunpack.c.l.b16 %v5727
        %v7205 = vunpack.c.h.b16 %v5727
        %v7206 = vunpack.c.l.b16 %v5728
        %v7207 = vunpack.c.h.b16 %v5728
        %v7208 = vunpack.c.l.b16 %v5729
        %v7209 = vunpack.c.h.b16 %v5729
        %v7210 = vunpack.c.l.b16 %v5730
        %v7211 = vunpack.c.h.b16 %v5730
        %v7212 = vunpack.c.l.b16 %v5731
        %v7213 = vunpack.c.h.b16 %v5731
        %v7214 = vunpack.c.l.b16 %v5732
        %v7215 = vunpack.c.h.b16 %v5732
        %v7216 = vunpack.c.l.b16 %v5733
        %v7217 = vunpack.c.h.b16 %v5733
        %v7218 = vunpack.c.l.b16 %v5734
        %v7219 = vunpack.c.h.b16 %v5734
        %v7220 = vunpack.c.l.b16 %v5735
        %v7221 = vunpack.c.h.b16 %v5735
        %v7222 = vunpack.c.l.b16 %v5736
        %v7223 = vunpack.c.h.b16 %v5736
        %v7224 = vunpack.c.l.b16 %v5737
        %v7225 = vunpack.c.h.b16 %v5737
        %v7226 = vunpack.c.l.b16 %v5738
        %v7227 = vunpack.c.h.b16 %v5738
        %v7228 = vunpack.c.l.b16 %v5739
        %v7229 = vunpack.c.h.b16 %v5739
        %v7230 = vunpack.c.l.b16 %v5740
        %v7231 = vunpack.c.h.b16 %v5740
        %v7232 = vunpack.c.l.b16 %v5741
        %v7233 = vunpack.c.h.b16 %v5741
        %v7234 = vunpack.c.l.b16 %v5742
        %v7235 = vunpack.c.h.b16 %v5742
        %v7236 = vunpack.c.l.b16 %v5743
        %v7237 = vunpack.c.h.b16 %v5743
        %v7238 = vunpack.c.l.b16 %v5744
        %v7239 = vunpack.c.h.b16 %v5744
        %v7240 = vunpack.c.l.b16 %v5745
        %v7241 = vunpack.c.h.b16 %v5745
        %v7242 = vunpack.c.l.b16 %v5746
        %v7243 = vunpack.c.h.b16 %v5746
        %v7244 = vunpack.c.l.b16 %v5747
        %v7245 = vunpack.c.h.b16 %v5747
        %v7246 = vunpack.c.l.b16 %v5748
        %v7247 = vunpack.c.h.b16 %v5748
        %v7248 = vunpack.c.l.b16 %v5749
        %v7249 = vunpack.c.h.b16 %v5749
        %v7250 = vunpack.c.l.b16 %v5750
        %v7251 = vunpack.c.h.b16 %v5750
        %v7252 = vunpack.c.l.b16 %v5751
        %v7253 = vunpack.c.h.b16 %v5751
        %v7254 = vunpack.c.l.b16 %v5752
        %v7255 = vunpack.c.h.b16 %v5752
        %v7256 = vunpack.c.l.b16 %v5753
        %v7257 = vunpack.c.h.b16 %v5753
        %v7258 = vunpack.c.l.b16 %v5754
        %v7259 = vunpack.c.h.b16 %v5754
        %v7260 = vunpack.c.l.b16 %v5755
        %v7261 = vunpack.c.h.b16 %v5755
        %v7262 = vunpack.c.l.b16 %v5756
        %v7263 = vunpack.c.h.b16 %v5756
        %v7264 = vunpack.c.l.b16 %v5757
        %v7265 = vunpack.c.h.b16 %v5757
        %v7266 = vunpack.c.l.b16 %v5758
        %v7267 = vunpack.c.h.b16 %v5758
        %v7268 = vunpack.c.l.b16 %v5759
        %v7269 = vunpack.c.h.b16 %v5759
        %v7270 = vunpack.c.l.b16 %v5760
        %v7271 = vunpack.c.h.b16 %v5760
        %v7272 = vunpack.c.l.b16 %v5761
        %v7273 = vunpack.c.h.b16 %v5761
        %v7274 = vunpack.c.l.b16 %v5762
        %v7275 = vunpack.c.h.b16 %v5762
        %v7276 = vunpack.c.l.b16 %v5763
        %v7277 = vunpack.c.h.b16 %v5763
        %v7278 = vunpack.c.l.b16 %v5764
        %v7279 = vunpack.c.h.b16 %v5764
        %v7280 = vunpack.c.l.b16 %v5765
        %v7281 = vunpack.c.h.b16 %v5765
        %v7282 = vunpack.c.l.b16 %v5766
        %v7283 = vunpack.c.h.b16 %v5766
        %v7284 = vunpack.c.l.b16 %v5767
        %v7285 = vunpack.c.h.b16 %v5767
        %v7286 = vunpack.c.l.b16 %v5768
        %v7287 = vunpack.c.h.b16 %v5768
        %v7288 = vunpack.c.l.b16 %v5769
        %v7289 = vunpack.c.h.b16 %v5769
        %v7290 = vunpack.c.l.b16 %v5770
        %v7291 = vunpack.c.h.b16 %v5770
        %v7292 = vunpack.c.l.b16 %v5771
        %v7293 = vunpack.c.h.b16 %v5771
        %v7294 = vunpack.c.l.b16 %v5772
        %v7295 = vunpack.c.h.b16 %v5772
        %v7296 = vunpack.c.l.b16 %v5773
        %v7297 = vunpack.c.h.b16 %v5773
        %v7298 = vunpack.c.l.b16 %v5774
        %v7299 = vunpack.c.h.b16 %v5774
        %v7300 = vunpack.c.l.b16 %v5775
        %v7301 = vunpack.c.h.b16 %v5775
        %v7302 = vunpack.c.l.b16 %v5776
        %v7303 = vunpack.c.h.b16 %v5776
        %v7304 = vunpack.c.l.b16 %v5777
        %v7305 = vunpack.c.h.b16 %v5777
        %v7306 = vunpack.c.l.b16 %v5778
        %v7307 = vunpack.c.h.b16 %v5778
        %v7308 = vunpack.c.l.b16 %v5779
        %v7309 = vunpack.c.h.b16 %v5779
        %v7310 = vunpack.c.l.b16 %v5780
        %v7311 = vunpack.c.h.b16 %v5780
        %v7312 = vunpack.c.l.b16 %v5781
        %v7313 = vunpack.c.h.b16 %v5781
        %v7314 = vunpack.c.l.b16 %v5782
        %v7315 = vunpack.c.h.b16 %v5782
        %v7316 = vunpack.c.l.b16 %v5783
        %v7317 = vunpack.c.h.b16 %v5783
        %v7318 = vunpack.c.l.b16 %v5784
        %v7319 = vunpack.c.h.b16 %v5784
        %v7320 = vunpack.c.l.b16 %v5785
        %v7321 = vunpack.c.h.b16 %v5785
        %v7322 = vunpack.c.l.b16 %v5786
        %v7323 = vunpack.c.h.b16 %v5786
        %v7324 = vunpack.c.l.b16 %v5787
        %v7325 = vunpack.c.h.b16 %v5787
        %v7326 = vunpack.c.l.b16 %v5788
        %v7327 = vunpack.c.h.b16 %v5788
        %v7328 = vunpack.c.l.b16 %v5789
        %v7329 = vunpack.c.h.b16 %v5789
        %v7330 = vunpack.c.l.b16 %v5790
        %v7331 = vunpack.c.h.b16 %v5790
        %v7332 = vunpack.c.l.b16 %v5791
        %v7333 = vunpack.c.h.b16 %v5791
        %v7334 = vunpack.c.l.b16 %v5792
        %v7335 = vunpack.c.h.b16 %v5792
        %v7336 = vunpack.c.l.b16 %v5793
        %v7337 = vunpack.c.h.b16 %v5793
        %v7338 = vunpack.c.l.b16 %v5794
        %v7339 = vunpack.c.h.b16 %v5794
        %v7340 = vunpack.c.l.b16 %v5795
        %v7341 = vunpack.c.h.b16 %v5795
        %v7342 = vunpack.c.l.b16 %v5796
        %v7343 = vunpack.c.h.b16 %v5796
        %v7344 = vunpack.c.l.b16 %v5797
        %v7345 = vunpack.c.h.b16 %v5797
        %v7346 = vunpack.c.l.b16 %v5798
        %v7347 = vunpack.c.h.b16 %v5798
        %v7348 = vunpack.c.l.b16 %v5799
        %v7349 = vunpack.c.h.b16 %v5799
        %v7350 = vunpack.c.l.b16 %v5800
        %v7351 = vunpack.c.h.b16 %v5800
        %v7352 = vunpack.c.l.b16 %v5801
        %v7353 = vunpack.c.h.b16 %v5801
        %v7354 = vunpack.c.l.b16 %v5802
        %v7355 = vunpack.c.h.b16 %v5802
        %v7356 = vunpack.c.l.b16 %v5803
        %v7357 = vunpack.c.h.b16 %v5803
        %v7358 = vunpack.c.l.b16 %v5804
        %v7359 = vunpack.c.h.b16 %v5804
        %v7360 = vunpack.c.l.b16 %v5805
        %v7361 = vunpack.c.h.b16 %v5805
        %v7362 = vunpack.c.l.b16 %v5806
        %v7363 = vunpack.c.h.b16 %v5806
        %v7364 = vunpack.c.l.b16 %v5807
        %v7365 = vunpack.c.h.b16 %v5807
        %v7366 = vunpack.c.l.b16 %v5808
        %v7367 = vunpack.c.h.b16 %v5808
        %v7368 = vunpack.c.l.b16 %v5809
        %v7369 = vunpack.c.h.b16 %v5809
        %v7370 = vunpack.c.l.b16 %v5810
        %v7371 = vunpack.c.h.b16 %v5810
        %v7372 = vunpack.c.l.b16 %v5811
        %v7373 = vunpack.c.h.b16 %v5811
        %v7374 = vunpack.c.l.b16 %v5812
        %v7375 = vunpack.c.h.b16 %v5812
        %v7376 = vunpack.c.l.b16 %v5813
        %v7377 = vunpack.c.h.b16 %v5813
        %v7378 = vunpack.c.l.b16 %v5814
        %v7379 = vunpack.c.h.b16 %v5814
        %v7380 = vunpack.c.l.b16 %v5815
        %v7381 = vunpack.c.h.b16 %v5815
        %v7382 = vunpack.c.l.b16 %v5816
        %v7383 = vunpack.c.h.b16 %v5816
        %v7384 = vunpack.c.l.b16 %v5817
        %v7385 = vunpack.c.h.b16 %v5817
        %v7386 = vunpack.c.l.b16 %v5818
        %v7387 = vunpack.c.h.b16 %v5818
        %v7388 = vunpack.c.l.b16 %v5819
        %v7389 = vunpack.c.h.b16 %v5819
        %v7390 = vunpack.c.l.b16 %v5820
        %v7391 = vunpack.c.h.b16 %v5820
        %v7392 = vunpack.c.l.b16 %v5821
        %v7393 = vunpack.c.h.b16 %v5821
        %v7394 = vunpack.c.l.b16 %v5822
        %v7395 = vunpack.c.h.b16 %v5822
        %v7396 = vunpack.c.l.b16 %v5823
        %v7397 = vunpack.c.h.b16 %v5823
        %v7398 = vunpack.c.l.b16 %v5824
        %v7399 = vunpack.c.h.b16 %v5824
        %v7400 = vunpack.c.l.b16 %v5825
        %v7401 = vunpack.c.h.b16 %v5825
        %v7402 = vunpack.c.l.b16 %v5826
        %v7403 = vunpack.c.h.b16 %v5826
        %v7404 = vunpack.c.l.b16 %v5827
        %v7405 = vunpack.c.h.b16 %v5827
        %v7406 = vunpack.c.l.b16 %v5828
        %v7407 = vunpack.c.h.b16 %v5828
        %v7408 = vunpack.c.l.b16 %v5829
        %v7409 = vunpack.c.h.b16 %v5829
        %v7410 = vunpack.c.l.b16 %v5830
        %v7411 = vunpack.c.h.b16 %v5830
        %v7412 = vunpack.c.l.b16 %v5831
        %v7413 = vunpack.c.h.b16 %v5831
        %v7414 = vunpack.c.l.b16 %v5832
        %v7415 = vunpack.c.h.b16 %v5832
        %v7416 = vunpack.c.l.b16 %v5833
        %v7417 = vunpack.c.h.b16 %v5833
        %v7418 = vunpack.c.l.b16 %v5834
        %v7419 = vunpack.c.h.b16 %v5834
        %v7420 = vunpack.c.l.b16 %v5835
        %v7421 = vunpack.c.h.b16 %v5835
        %v7422 = vunpack.c.l.b16 %v5836
        %v7423 = vunpack.c.h.b16 %v5836
        %v7424 = vunpack.c.l.b16 %v5837
        %v7425 = vunpack.c.h.b16 %v5837
        %v7426 = vunpack.c.l.b16 %v5838
        %v7427 = vunpack.c.h.b16 %v5838
        %v7428 = vunpack.c.l.b16 %v5839
        %v7429 = vunpack.c.h.b16 %v5839
        %v7430 = vunpack.c.l.b16 %v5840
        %v7431 = vunpack.c.h.b16 %v5840
        %v7432 = vunpack.c.l.b16 %v5841
        %v7433 = vunpack.c.h.b16 %v5841
        %v7434 = vunpack.c.l.b16 %v5842
        %v7435 = vunpack.c.h.b16 %v5842
        %v7436 = vunpack.c.l.b16 %v5843
        %v7437 = vunpack.c.h.b16 %v5843
        %v7438 = vunpack.c.l.b16 %v5844
        %v7439 = vunpack.c.h.b16 %v5844
        %v7440 = vunpack.c.l.b16 %v5845
        %v7441 = vunpack.c.h.b16 %v5845
        %v7442 = vunpack.c.l.b16 %v5846
        %v7443 = vunpack.c.h.b16 %v5846
        %v7444 = vunpack.c.l.b16 %v5847
        %v7445 = vunpack.c.h.b16 %v5847
        %v7446 = vunpack.c.l.b16 %v5848
        %v7447 = vunpack.c.h.b16 %v5848
        %v7448 = vunpack.c.l.b16 %v5849
        %v7449 = vunpack.c.h.b16 %v5849
        %v7450 = vunpack.c.l.b16 %v5850
        %v7451 = vunpack.c.h.b16 %v5850
        %v7452 = vunpack.c.l.b16 %v5851
        %v7453 = vunpack.c.h.b16 %v5851
        %v7454 = vunpack.c.l.b16 %v5852
        %v7455 = vunpack.c.h.b16 %v5852
        %v7456 = vunpack.c.l.b16 %v5853
        %v7457 = vunpack.c.h.b16 %v5853
        %v7458 = vunpack.c.l.b16 %v5854
        %v7459 = vunpack.c.h.b16 %v5854
        %v7460 = vunpack.c.l.b16 %v5855
        %v7461 = vunpack.c.h.b16 %v5855
        %v7462 = vunpack.c.l.b16 %v5856
        %v7463 = vunpack.c.h.b16 %v5856
        %v7464 = vunpack.c.l.b16 %v5857
        %v7465 = vunpack.c.h.b16 %v5857
        %v7466 = vunpack.c.l.b16 %v5858
        %v7467 = vunpack.c.h.b16 %v5858
        %v7468 = vunpack.c.l.b16 %v5859
        %v7469 = vunpack.c.h.b16 %v5859
        %v7470 = vunpack.c.l.b16 %v5860
        %v7471 = vunpack.c.h.b16 %v5860
        %v7472 = vunpack.c.l.b16 %v5861
        %v7473 = vunpack.c.h.b16 %v5861
        %v7474 = vunpack.c.l.b16 %v5862
        %v7475 = vunpack.c.h.b16 %v5862
        %v7476 = vunpack.c.l.b16 %v5863
        %v7477 = vunpack.c.h.b16 %v5863
        %v7478 = vunpack.c.l.b16 %v5864
        %v7479 = vunpack.c.h.b16 %v5864
        %v7480 = vunpack.c.l.b16 %v5865
        %v7481 = vunpack.c.h.b16 %v5865
        %v7482 = vunpack.c.l.b16 %v5866
        %v7483 = vunpack.c.h.b16 %v5866
        %v7484 = vunpack.c.l.b16 %v5867
        %v7485 = vunpack.c.h.b16 %v5867
        %v7486 = vunpack.c.l.b16 %v5868
        %v7487 = vunpack.c.h.b16 %v5868
        %v7488 = vunpack.c.l.b16 %v5869
        %v7489 = vunpack.c.h.b16 %v5869
        %v7490 = vpack.c.b16 %v6482, %v6466
        %v7491 = vpack.c.b16 %v6483, %v6467
        %v7492 = vpack.c.b16 %v6484, %v6468
        %v7493 = vpack.c.b16 %v6485, %v6469
        %v7494 = vpack.c.b16 %v6486, %v6470
        %v7495 = vpack.c.b16 %v6487, %v6471
        %v7496 = vpack.c.b16 %v6488, %v6472
        %v7497 = vpack.c.b16 %v6489, %v6473
        %v7498 = vpack.c.b16 %v6490, %v6474
        %v7499 = vpack.c.b16 %v6491, %v6475
        %v7500 = vpack.c.b16 %v6492, %v6476
        %v7501 = vpack.c.b16 %v6493, %v6477
        %v7502 = vpack.c.b16 %v6494, %v6478
        %v7503 = vpack.c.b16 %v6495, %v6479
        %v7504 = vpack.c.b16 %v6496, %v6480
        %v7505 = vpack.c.b16 %v6497, %v6481
        %v7506 = vpack.c.b16 %v6514, %v6498
        %v7507 = vpack.c.b16 %v6515, %v6499
        %v7508 = vpack.c.b16 %v6516, %v6500
        %v7509 = vpack.c.b16 %v6517, %v6501
        %v7510 = vpack.c.b16 %v6518, %v6502
        %v7511 = vpack.c.b16 %v6519, %v6503
        %v7512 = vpack.c.b16 %v6520, %v6504
        %v7513 = vpack.c.b16 %v6521, %v6505
        %v7514 = vpack.c.b16 %v6522, %v6506
        %v7515 = vpack.c.b16 %v6523, %v6507
        %v7516 = vpack.c.b16 %v6524, %v6508
        %v7517 = vpack.c.b16 %v6525, %v6509
        %v7518 = vpack.c.b16 %v6526, %v6510
        %v7519 = vpack.c.b16 %v6527, %v6511
        %v7520 = vpack.c.b16 %v6528, %v6512
        %v7521 = vpack.c.b16 %v6529, %v6513
        %v7522 = vpack.c.b16 %v6546, %v6530
        %v7523 = vpack.c.b16 %v6547, %v6531
        %v7524 = vpack.c.b16 %v6548, %v6532
        %v7525 = vpack.c.b16 %v6549, %v6533
        %v7526 = vpack.c.b16 %v6550, %v6534
        %v7527 = vpack.c.b16 %v6551, %v6535
        %v7528 = vpack.c.b16 %v6552, %v6536
        %v7529 = vpack.c.b16 %v6553, %v6537
        %v7530 = vpack.c.b16 %v6554, %v6538
        %v7531 = vpack.c.b16 %v6555, %v6539
        %v7532 = vpack.c.b16 %v6556, %v6540
        %v7533 = vpack.c.b16 %v6557, %v6541
        %v7534 = vpack.c.b16 %v6558, %v6542
        %v7535 = vpack.c.b16 %v6559, %v6543
        %v7536 = vpack.c.b16 %v6560, %v6544
        %v7537 = vpack.c.b16 %v6561, %v6545
        %v7538 = vpack.c.b16 %v6578, %v6562
        %v7539 = vpack.c.b16 %v6579, %v6563
        %v7540 = vpack.c.b16 %v6580, %v6564
        %v7541 = vpack.c.b16 %v6581, %v6565
        %v7542 = vpack.c.b16 %v6582, %v6566
        %v7543 = vpack.c.b16 %v6583, %v6567
        %v7544 = vpack.c.b16 %v6584, %v6568
        %v7545 = vpack.c.b16 %v6585, %v6569
        %v7546 = vpack.c.b16 %v6586, %v6570
        %v7547 = vpack.c.b16 %v6587, %v6571
        %v7548 = vpack.c.b16 %v6588, %v6572
        %v7549 = vpack.c.b16 %v6589, %v6573
        %v7550 = vpack.c.b16 %v6590, %v6574
        %v7551 = vpack.c.b16 %v6591, %v6575
        %v7552 = vpack.c.b16 %v6592, %v6576
        %v7553 = vpack.c.b16 %v6593, %v6577
        %v7554 = vpack.c.b16 %v6610, %v6594
        %v7555 = vpack.c.b16 %v6611, %v6595
        %v7556 = vpack.c.b16 %v6612, %v6596
        %v7557 = vpack.c.b16 %v6613, %v6597
        %v7558 = vpack.c.b16 %v6614, %v6598
        %v7559 = vpack.c.b16 %v6615, %v6599
        %v7560 = vpack.c.b16 %v6616, %v6600
        %v7561 = vpack.c.b16 %v6617, %v6601
        %v7562 = vpack.c.b16 %v6618, %v6602
        %v7563 = vpack.c.b16 %v6619, %v6603
        %v7564 = vpack.c.b16 %v6620, %v6604
        %v7565 = vpack.c.b16 %v6621, %v6605
        %v7566 = vpack.c.b16 %v6622, %v6606
        %v7567 = vpack.c.b16 %v6623, %v6607
        %v7568 = vpack.c.b16 %v6624, %v6608
        %v7569 = vpack.c.b16 %v6625, %v6609
        %v7570 = vpack.c.b16 %v6642, %v6626
        %v7571 = vpack.c.b16 %v6643, %v6627
        %v7572 = vpack.c.b16 %v6644, %v6628
        %v7573 = vpack.c.b16 %v6645, %v6629
        %v7574 = vpack.c.b16 %v6646, %v6630
        %v7575 = vpack.c.b16 %v6647, %v6631
        %v7576 = vpack.c.b16 %v6648, %v6632
        %v7577 = vpack.c.b16 %v6649, %v6633
        %v7578 = vpack.c.b16 %v6650, %v6634
        %v7579 = vpack.c.b16 %v6651, %v6635
        %v7580 = vpack.c.b16 %v6652, %v6636
        %v7581 = vpack.c.b16 %v6653, %v6637
        %v7582 = vpack.c.b16 %v6654, %v6638
        %v7583 = vpack.c.b16 %v6655, %v6639
        %v7584 = vpack.c.b16 %v6656, %v6640
        %v7585 = vpack.c.b16 %v6657, %v6641
        %v7586 = vpack.c.b16 %v6674, %v6658
        %v7587 = vpack.c.b16 %v6675, %v6659
        %v7588 = vpack.c.b16 %v6676, %v6660
        %v7589 = vpack.c.b16 %v6677, %v6661
        %v7590 = vpack.c.b16 %v6678, %v6662
        %v7591 = vpack.c.b16 %v6679, %v6663
        %v7592 = vpack.c.b16 %v6680, %v6664
        %v7593 = vpack.c.b16 %v6681, %v6665
        %v7594 = vpack.c.b16 %v6682, %v6666
        %v7595 = vpack.c.b16 %v6683, %v6667
        %v7596 = vpack.c.b16 %v6684, %v6668
        %v7597 = vpack.c.b16 %v6685, %v6669
        %v7598 = vpack.c.b16 %v6686, %v6670
        %v7599 = vpack.c.b16 %v6687, %v6671
        %v7600 = vpack.c.b16 %v6688, %v6672
        %v7601 = vpack.c.b16 %v6689, %v6673
        %v7602 = vpack.c.b16 %v6706, %v6690
        %v7603 = vpack.c.b16 %v6707, %v6691
        %v7604 = vpack.c.b16 %v6708, %v6692
        %v7605 = vpack.c.b16 %v6709, %v6693
        %v7606 = vpack.c.b16 %v6710, %v6694
        %v7607 = vpack.c.b16 %v6711, %v6695
        %v7608 = vpack.c.b16 %v6712, %v6696
        %v7609 = vpack.c.b16 %v6713, %v6697
        %v7610 = vpack.c.b16 %v6714, %v6698
        %v7611 = vpack.c.b16 %v6715, %v6699
        %v7612 = vpack.c.b16 %v6716, %v6700
        %v7613 = vpack.c.b16 %v6717, %v6701
        %v7614 = vpack.c.b16 %v6718, %v6702
        %v7615 = vpack.c.b16 %v6719, %v6703
        %v7616 = vpack.c.b16 %v6720, %v6704
        %v7617 = vpack.c.b16 %v6721, %v6705
        %v7618 = vpack.c.b16 %v6738, %v6722
        %v7619 = vpack.c.b16 %v6739, %v6723
        %v7620 = vpack.c.b16 %v6740, %v6724
        %v7621 = vpack.c.b16 %v6741, %v6725
        %v7622 = vpack.c.b16 %v6742, %v6726
        %v7623 = vpack.c.b16 %v6743, %v6727
        %v7624 = vpack.c.b16 %v6744, %v6728
        %v7625 = vpack.c.b16 %v6745, %v6729
        %v7626 = vpack.c.b16 %v6746, %v6730
        %v7627 = vpack.c.b16 %v6747, %v6731
        %v7628 = vpack.c.b16 %v6748, %v6732
        %v7629 = vpack.c.b16 %v6749, %v6733
        %v7630 = vpack.c.b16 %v6750, %v6734
        %v7631 = vpack.c.b16 %v6751, %v6735
        %v7632 = vpack.c.b16 %v6752, %v6736
        %v7633 = vpack.c.b16 %v6753, %v6737
        %v7634 = vpack.c.b16 %v6770, %v6754
        %v7635 = vpack.c.b16 %v6771, %v6755
        %v7636 = vpack.c.b16 %v6772, %v6756
        %v7637 = vpack.c.b16 %v6773, %v6757
        %v7638 = vpack.c.b16 %v6774, %v6758
        %v7639 = vpack.c.b16 %v6775, %v6759
        %v7640 = vpack.c.b16 %v6776, %v6760
        %v7641 = vpack.c.b16 %v6777, %v6761
        %v7642 = vpack.c.b16 %v6778, %v6762
        %v7643 = vpack.c.b16 %v6779, %v6763
        %v7644 = vpack.c.b16 %v6780, %v6764
        %v7645 = vpack.c.b16 %v6781, %v6765
        %v7646 = vpack.c.b16 %v6782, %v6766
        %v7647 = vpack.c.b16 %v6783, %v6767
        %v7648 = vpack.c.b16 %v6784, %v6768
        %v7649 = vpack.c.b16 %v6785, %v6769
        %v7650 = vpack.c.b16 %v6802, %v6786
        %v7651 = vpack.c.b16 %v6803, %v6787
        %v7652 = vpack.c.b16 %v6804, %v6788
        %v7653 = vpack.c.b16 %v6805, %v6789
        %v7654 = vpack.c.b16 %v6806, %v6790
        %v7655 = vpack.c.b16 %v6807, %v6791
        %v7656 = vpack.c.b16 %v6808, %v6792
        %v7657 = vpack.c.b16 %v6809, %v6793
        %v7658 = vpack.c.b16 %v6810, %v6794
        %v7659 = vpack.c.b16 %v6811, %v6795
        %v7660 = vpack.c.b16 %v6812, %v6796
        %v7661 = vpack.c.b16 %v6813, %v6797
        %v7662 = vpack.c.b16 %v6814, %v6798
        %v7663 = vpack.c.b16 %v6815, %v6799
        %v7664 = vpack.c.b16 %v6816, %v6800
        %v7665 = vpack.c.b16 %v6817, %v6801
        %v7666 = vpack.c.b16 %v6834, %v6818
        %v7667 = vpack.c.b16 %v6835, %v6819
        %v7668 = vpack.c.b16 %v6836, %v6820
        %v7669 = vpack.c.b16 %v6837, %v6821
        %v7670 = vpack.c.b16 %v6838, %v6822
        %v7671 = vpack.c.b16 %v6839, %v6823
        %v7672 = vpack.c.b16 %v6840, %v6824
        %v7673 = vpack.c.b16 %v6841, %v6825
        %v7674 = vpack.c.b16 %v6842, %v6826
        %v7675 = vpack.c.b16 %v6843, %v6827
        %v7676 = vpack.c.b16 %v6844, %v6828
        %v7677 = vpack.c.b16 %v6845, %v6829
        %v7678 = vpack.c.b16 %v6846, %v6830
        %v7679 = vpack.c.b16 %v6847, %v6831
        %v7680 = vpack.c.b16 %v6848, %v6832
        %v7681 = vpack.c.b16 %v6849, %v6833
        %v7682 = vpack.c.b16 %v6866, %v6850
        %v7683 = vpack.c.b16 %v6867, %v6851
        %v7684 = vpack.c.b16 %v6868, %v6852
        %v7685 = vpack.c.b16 %v6869, %v6853
        %v7686 = vpack.c.b16 %v6870, %v6854
        %v7687 = vpack.c.b16 %v6871, %v6855
        %v7688 = vpack.c.b16 %v6872, %v6856
        %v7689 = vpack.c.b16 %v6873, %v6857
        %v7690 = vpack.c.b16 %v6874, %v6858
        %v7691 = vpack.c.b16 %v6875, %v6859
        %v7692 = vpack.c.b16 %v6876, %v6860
        %v7693 = vpack.c.b16 %v6877, %v6861
        %v7694 = vpack.c.b16 %v6878, %v6862
        %v7695 = vpack.c.b16 %v6879, %v6863
        %v7696 = vpack.c.b16 %v6880, %v6864
        %v7697 = vpack.c.b16 %v6881, %v6865
        %v7698 = vpack.c.b16 %v6898, %v6882
        %v7699 = vpack.c.b16 %v6899, %v6883
        %v7700 = vpack.c.b16 %v6900, %v6884
        %v7701 = vpack.c.b16 %v6901, %v6885
        %v7702 = vpack.c.b16 %v6902, %v6886
        %v7703 = vpack.c.b16 %v6903, %v6887
        %v7704 = vpack.c.b16 %v6904, %v6888
        %v7705 = vpack.c.b16 %v6905, %v6889
        %v7706 = vpack.c.b16 %v6906, %v6890
        %v7707 = vpack.c.b16 %v6907, %v6891
        %v7708 = vpack.c.b16 %v6908, %v6892
        %v7709 = vpack.c.b16 %v6909, %v6893
        %v7710 = vpack.c.b16 %v6910, %v6894
        %v7711 = vpack.c.b16 %v6911, %v6895
        %v7712 = vpack.c.b16 %v6912, %v6896
        %v7713 = vpack.c.b16 %v6913, %v6897
        %v7714 = vpack.c.b16 %v6930, %v6914
        %v7715 = vpack.c.b16 %v6931, %v6915
        %v7716 = vpack.c.b16 %v6932, %v6916
        %v7717 = vpack.c.b16 %v6933, %v6917
        %v7718 = vpack.c.b16 %v6934, %v6918
        %v7719 = vpack.c.b16 %v6935, %v6919
        %v7720 = vpack.c.b16 %v6936, %v6920
        %v7721 = vpack.c.b16 %v6937, %v6921
        %v7722 = vpack.c.b16 %v6938, %v6922
        %v7723 = vpack.c.b16 %v6939, %v6923
        %v7724 = vpack.c.b16 %v6940, %v6924
        %v7725 = vpack.c.b16 %v6941, %v6925
        %v7726 = vpack.c.b16 %v6942, %v6926
        %v7727 = vpack.c.b16 %v6943, %v6927
        %v7728 = vpack.c.b16 %v6944, %v6928
        %v7729 = vpack.c.b16 %v6945, %v6929
        %v7730 = vpack.c.b16 %v6962, %v6946
        %v7731 = vpack.c.b16 %v6963, %v6947
        %v7732 = vpack.c.b16 %v6964, %v6948
        %v7733 = vpack.c.b16 %v6965, %v6949
        %v7734 = vpack.c.b16 %v6966, %v6950
        %v7735 = vpack.c.b16 %v6967, %v6951
        %v7736 = vpack.c.b16 %v6968, %v6952
        %v7737 = vpack.c.b16 %v6969, %v6953
        %v7738 = vpack.c.b16 %v6970, %v6954
        %v7739 = vpack.c.b16 %v6971, %v6955
        %v7740 = vpack.c.b16 %v6972, %v6956
        %v7741 = vpack.c.b16 %v6973, %v6957
        %v7742 = vpack.c.b16 %v6974, %v6958
        %v7743 = vpack.c.b16 %v6975, %v6959
        %v7744 = vpack.c.b16 %v6976, %v6960
        %v7745 = vpack.c.b16 %v6977, %v6961
        %v7746 = vpack.c.b16 %v6994, %v6978
        %v7747 = vpack.c.b16 %v6995, %v6979
        %v7748 = vpack.c.b16 %v6996, %v6980
        %v7749 = vpack.c.b16 %v6997, %v6981
        %v7750 = vpack.c.b16 %v6998, %v6982
        %v7751 = vpack.c.b16 %v6999, %v6983
        %v7752 = vpack.c.b16 %v7000, %v6984
        %v7753 = vpack.c.b16 %v7001, %v6985
        %v7754 = vpack.c.b16 %v7002, %v6986
        %v7755 = vpack.c.b16 %v7003, %v6987
        %v7756 = vpack.c.b16 %v7004, %v6988
        %v7757 = vpack.c.b16 %v7005, %v6989
        %v7758 = vpack.c.b16 %v7006, %v6990
        %v7759 = vpack.c.b16 %v7007, %v6991
        %v7760 = vpack.c.b16 %v7008, %v6992
        %v7761 = vpack.c.b16 %v7009, %v6993
        %v7762 = vpack.c.b16 %v7026, %v7010
        %v7763 = vpack.c.b16 %v7027, %v7011
        %v7764 = vpack.c.b16 %v7028, %v7012
        %v7765 = vpack.c.b16 %v7029, %v7013
        %v7766 = vpack.c.b16 %v7030, %v7014
        %v7767 = vpack.c.b16 %v7031, %v7015
        %v7768 = vpack.c.b16 %v7032, %v7016
        %v7769 = vpack.c.b16 %v7033, %v7017
        %v7770 = vpack.c.b16 %v7034, %v7018
        %v7771 = vpack.c.b16 %v7035, %v7019
        %v7772 = vpack.c.b16 %v7036, %v7020
        %v7773 = vpack.c.b16 %v7037, %v7021
        %v7774 = vpack.c.b16 %v7038, %v7022
        %v7775 = vpack.c.b16 %v7039, %v7023
        %v7776 = vpack.c.b16 %v7040, %v7024
        %v7777 = vpack.c.b16 %v7041, %v7025
        %v7778 = vpack.c.b16 %v7058, %v7042
        %v7779 = vpack.c.b16 %v7059, %v7043
        %v7780 = vpack.c.b16 %v7060, %v7044
        %v7781 = vpack.c.b16 %v7061, %v7045
        %v7782 = vpack.c.b16 %v7062, %v7046
        %v7783 = vpack.c.b16 %v7063, %v7047
        %v7784 = vpack.c.b16 %v7064, %v7048
        %v7785 = vpack.c.b16 %v7065, %v7049
        %v7786 = vpack.c.b16 %v7066, %v7050
        %v7787 = vpack.c.b16 %v7067, %v7051
        %v7788 = vpack.c.b16 %v7068, %v7052
        %v7789 = vpack.c.b16 %v7069, %v7053
        %v7790 = vpack.c.b16 %v7070, %v7054
        %v7791 = vpack.c.b16 %v7071, %v7055
        %v7792 = vpack.c.b16 %v7072, %v7056
        %v7793 = vpack.c.b16 %v7073, %v7057
        %v7794 = vpack.c.b16 %v7090, %v7074
        %v7795 = vpack.c.b16 %v7091, %v7075
        %v7796 = vpack.c.b16 %v7092, %v7076
        %v7797 = vpack.c.b16 %v7093, %v7077
        %v7798 = vpack.c.b16 %v7094, %v7078
        %v7799 = vpack.c.b16 %v7095, %v7079
        %v7800 = vpack.c.b16 %v7096, %v7080
        %v7801 = vpack.c.b16 %v7097, %v7081
        %v7802 = vpack.c.b16 %v7098, %v7082
        %v7803 = vpack.c.b16 %v7099, %v7083
        %v7804 = vpack.c.b16 %v7100, %v7084
        %v7805 = vpack.c.b16 %v7101, %v7085
        %v7806 = vpack.c.b16 %v7102, %v7086
        %v7807 = vpack.c.b16 %v7103, %v7087
        %v7808 = vpack.c.b16 %v7104, %v7088
        %v7809 = vpack.c.b16 %v7105, %v7089
        %v7810 = vpack.c.b16 %v7122, %v7106
        %v7811 = vpack.c.b16 %v7123, %v7107
        %v7812 = vpack.c.b16 %v7124, %v7108
        %v7813 = vpack.c.b16 %v7125, %v7109
        %v7814 = vpack.c.b16 %v7126, %v7110
        %v7815 = vpack.c.b16 %v7127, %v7111
        %v7816 = vpack.c.b16 %v7128, %v7112
        %v7817 = vpack.c.b16 %v7129, %v7113
        %v7818 = vpack.c.b16 %v7130, %v7114
        %v7819 = vpack.c.b16 %v7131, %v7115
        %v7820 = vpack.c.b16 %v7132, %v7116
        %v7821 = vpack.c.b16 %v7133, %v7117
        %v7822 = vpack.c.b16 %v7134, %v7118
        %v7823 = vpack.c.b16 %v7135, %v7119
        %v7824 = vpack.c.b16 %v7136, %v7120
        %v7825 = vpack.c.b16 %v7137, %v7121
        %v7826 = vpack.c.b16 %v7154, %v7138
        %v7827 = vpack.c.b16 %v7155, %v7139
        %v7828 = vpack.c.b16 %v7156, %v7140
        %v7829 = vpack.c.b16 %v7157, %v7141
        %v7830 = vpack.c.b16 %v7158, %v7142
        %v7831 = vpack.c.b16 %v7159, %v7143
        %v7832 = vpack.c.b16 %v7160, %v7144
        %v7833 = vpack.c.b16 %v7161, %v7145
        %v7834 = vpack.c.b16 %v7162, %v7146
        %v7835 = vpack.c.b16 %v7163, %v7147
        %v7836 = vpack.c.b16 %v7164, %v7148
        %v7837 = vpack.c.b16 %v7165, %v7149
        %v7838 = vpack.c.b16 %v7166, %v7150
        %v7839 = vpack.c.b16 %v7167, %v7151
        %v7840 = vpack.c.b16 %v7168, %v7152
        %v7841 = vpack.c.b16 %v7169, %v7153
        %v7842 = vpack.c.b16 %v7186, %v7170
        %v7843 = vpack.c.b16 %v7187, %v7171
        %v7844 = vpack.c.b16 %v7188, %v7172
        %v7845 = vpack.c.b16 %v7189, %v7173
        %v7846 = vpack.c.b16 %v7190, %v7174
        %v7847 = vpack.c.b16 %v7191, %v7175
        %v7848 = vpack.c.b16 %v7192, %v7176
        %v7849 = vpack.c.b16 %v7193, %v7177
        %v7850 = vpack.c.b16 %v7194, %v7178
        %v7851 = vpack.c.b16 %v7195, %v7179
        %v7852 = vpack.c.b16 %v7196, %v7180
        %v7853 = vpack.c.b16 %v7197, %v7181
        %v7854 = vpack.c.b16 %v7198, %v7182
        %v7855 = vpack.c.b16 %v7199, %v7183
        %v7856 = vpack.c.b16 %v7200, %v7184
        %v7857 = vpack.c.b16 %v7201, %v7185
        %v7858 = vpack.c.b16 %v7218, %v7202
        %v7859 = vpack.c.b16 %v7219, %v7203
        %v7860 = vpack.c.b16 %v7220, %v7204
        %v7861 = vpack.c.b16 %v7221, %v7205
        %v7862 = vpack.c.b16 %v7222, %v7206
        %v7863 = vpack.c.b16 %v7223, %v7207
        %v7864 = vpack.c.b16 %v7224, %v7208
        %v7865 = vpack.c.b16 %v7225, %v7209
        %v7866 = vpack.c.b16 %v7226, %v7210
        %v7867 = vpack.c.b16 %v7227, %v7211
        %v7868 = vpack.c.b16 %v7228, %v7212
        %v7869 = vpack.c.b16 %v7229, %v7213
        %v7870 = vpack.c.b16 %v7230, %v7214
        %v7871 = vpack.c.b16 %v7231, %v7215
        %v7872 = vpack.c.b16 %v7232, %v7216
        %v7873 = vpack.c.b16 %v7233, %v7217
        %v7874 = vpack.c.b16 %v7250, %v7234
        %v7875 = vpack.c.b16 %v7251, %v7235
        %v7876 = vpack.c.b16 %v7252, %v7236
        %v7877 = vpack.c.b16 %v7253, %v7237
        %v7878 = vpack.c.b16 %v7254, %v7238
        %v7879 = vpack.c.b16 %v7255, %v7239
        %v7880 = vpack.c.b16 %v7256, %v7240
        %v7881 = vpack.c.b16 %v7257, %v7241
        %v7882 = vpack.c.b16 %v7258, %v7242
        %v7883 = vpack.c.b16 %v7259, %v7243
        %v7884 = vpack.c.b16 %v7260, %v7244
        %v7885 = vpack.c.b16 %v7261, %v7245
        %v7886 = vpack.c.b16 %v7262, %v7246
        %v7887 = vpack.c.b16 %v7263, %v7247
        %v7888 = vpack.c.b16 %v7264, %v7248
        %v7889 = vpack.c.b16 %v7265, %v7249
        %v7890 = vpack.c.b16 %v7282, %v7266
        %v7891 = vpack.c.b16 %v7283, %v7267
        %v7892 = vpack.c.b16 %v7284, %v7268
        %v7893 = vpack.c.b16 %v7285, %v7269
        %v7894 = vpack.c.b16 %v7286, %v7270
        %v7895 = vpack.c.b16 %v7287, %v7271
        %v7896 = vpack.c.b16 %v7288, %v7272
        %v7897 = vpack.c.b16 %v7289, %v7273
        %v7898 = vpack.c.b16 %v7290, %v7274
        %v7899 = vpack.c.b16 %v7291, %v7275
        %v7900 = vpack.c.b16 %v7292, %v7276
        %v7901 = vpack.c.b16 %v7293, %v7277
        %v7902 = vpack.c.b16 %v7294, %v7278
        %v7903 = vpack.c.b16 %v7295, %v7279
        %v7904 = vpack.c.b16 %v7296, %v7280
        %v7905 = vpack.c.b16 %v7297, %v7281
        %v7906 = vpack.c.b16 %v7314, %v7298
        %v7907 = vpack.c.b16 %v7315, %v7299
        %v7908 = vpack.c.b16 %v7316, %v7300
        %v7909 = vpack.c.b16 %v7317, %v7301
        %v7910 = vpack.c.b16 %v7318, %v7302
        %v7911 = vpack.c.b16 %v7319, %v7303
        %v7912 = vpack.c.b16 %v7320, %v7304
        %v7913 = vpack.c.b16 %v7321, %v7305
        %v7914 = vpack.c.b16 %v7322, %v7306
        %v7915 = vpack.c.b16 %v7323, %v7307
        %v7916 = vpack.c.b16 %v7324, %v7308
        %v7917 = vpack.c.b16 %v7325, %v7309
        %v7918 = vpack.c.b16 %v7326, %v7310
        %v7919 = vpack.c.b16 %v7327, %v7311
        %v7920 = vpack.c.b16 %v7328, %v7312
        %v7921 = vpack.c.b16 %v7329, %v7313
        %v7922 = vpack.c.b16 %v7346, %v7330
        %v7923 = vpack.c.b16 %v7347, %v7331
        %v7924 = vpack.c.b16 %v7348, %v7332
        %v7925 = vpack.c.b16 %v7349, %v7333
        %v7926 = vpack.c.b16 %v7350, %v7334
        %v7927 = vpack.c.b16 %v7351, %v7335
        %v7928 = vpack.c.b16 %v7352, %v7336
        %v7929 = vpack.c.b16 %v7353, %v7337
        %v7930 = vpack.c.b16 %v7354, %v7338
        %v7931 = vpack.c.b16 %v7355, %v7339
        %v7932 = vpack.c.b16 %v7356, %v7340
        %v7933 = vpack.c.b16 %v7357, %v7341
        %v7934 = vpack.c.b16 %v7358, %v7342
        %v7935 = vpack.c.b16 %v7359, %v7343
        %v7936 = vpack.c.b16 %v7360, %v7344
        %v7937 = vpack.c.b16 %v7361, %v7345
        %v7938 = vpack.c.b16 %v7378, %v7362
        %v7939 = vpack.c.b16 %v7379, %v7363
        %v7940 = vpack.c.b16 %v7380, %v7364
        %v7941 = vpack.c.b16 %v7381, %v7365
        %v7942 = vpack.c.b16 %v7382, %v7366
        %v7943 = vpack.c.b16 %v7383, %v7367
        %v7944 = vpack.c.b16 %v7384, %v7368
        %v7945 = vpack.c.b16 %v7385, %v7369
        %v7946 = vpack.c.b16 %v7386, %v7370
        %v7947 = vpack.c.b16 %v7387, %v7371
        %v7948 = vpack.c.b16 %v7388, %v7372
        %v7949 = vpack.c.b16 %v7389, %v7373
        %v7950 = vpack.c.b16 %v7390, %v7374
        %v7951 = vpack.c.b16 %v7391, %v7375
        %v7952 = vpack.c.b16 %v7392, %v7376
        %v7953 = vpack.c.b16 %v7393, %v7377
        %v7954 = vpack.c.b16 %v7410, %v7394
        %v7955 = vpack.c.b16 %v7411, %v7395
        %v7956 = vpack.c.b16 %v7412, %v7396
        %v7957 = vpack.c.b16 %v7413, %v7397
        %v7958 = vpack.c.b16 %v7414, %v7398
        %v7959 = vpack.c.b16 %v7415, %v7399
        %v7960 = vpack.c.b16 %v7416, %v7400
        %v7961 = vpack.c.b16 %v7417, %v7401
        %v7962 = vpack.c.b16 %v7418, %v7402
        %v7963 = vpack.c.b16 %v7419, %v7403
        %v7964 = vpack.c.b16 %v7420, %v7404
        %v7965 = vpack.c.b16 %v7421, %v7405
        %v7966 = vpack.c.b16 %v7422, %v7406
        %v7967 = vpack.c.b16 %v7423, %v7407
        %v7968 = vpack.c.b16 %v7424, %v7408
        %v7969 = vpack.c.b16 %v7425, %v7409
        %v7970 = vpack.c.b16 %v7442, %v7426
        %v7971 = vpack.c.b16 %v7443, %v7427
        %v7972 = vpack.c.b16 %v7444, %v7428
        %v7973 = vpack.c.b16 %v7445, %v7429
        %v7974 = vpack.c.b16 %v7446, %v7430
        %v7975 = vpack.c.b16 %v7447, %v7431
        %v7976 = vpack.c.b16 %v7448, %v7432
        %v7977 = vpack.c.b16 %v7449, %v7433
        %v7978 = vpack.c.b16 %v7450, %v7434
        %v7979 = vpack.c.b16 %v7451, %v7435
        %v7980 = vpack.c.b16 %v7452, %v7436
        %v7981 = vpack.c.b16 %v7453, %v7437
        %v7982 = vpack.c.b16 %v7454, %v7438
        %v7983 = vpack.c.b16 %v7455, %v7439
        %v7984 = vpack.c.b16 %v7456, %v7440
        %v7985 = vpack.c.b16 %v7457, %v7441
        %v7986 = vpack.c.b16 %v7474, %v7458
        %v7987 = vpack.c.b16 %v7475, %v7459
        %v7988 = vpack.c.b16 %v7476, %v7460
        %v7989 = vpack.c.b16 %v7477, %v7461
        %v7990 = vpack.c.b16 %v7478, %v7462
        %v7991 = vpack.c.b16 %v7479, %v7463
        %v7992 = vpack.c.b16 %v7480, %v7464
        %v7993 = vpack.c.b16 %v7481, %v7465
        %v7994 = vpack.c.b16 %v7482, %v7466
        %v7995 = vpack.c.b16 %v7483, %v7467
        %v7996 = vpack.c.b16 %v7484, %v7468
        %v7997 = vpack.c.b16 %v7485, %v7469
        %v7998 = vpack.c.b16 %v7486, %v7470
        %v7999 = vpack.c.b16 %v7487, %v7471
        %v8000 = vpack.c.b16 %v7488, %v7472
        %v8001 = vpack.c.b16 %v7489, %v7473
        %8514 = vmatprep.subr.bf16.mxu0 %v7603
        %8515 = vmatpush1.bf16.msra.mxu0 %v7602
        %8516 = vmatprep.subr.bf16.mxu0 %v7587
        %8517 = vmatpush1.bf16.msra.mxu0 %v7586
        %8518 = vmatprep.subr.bf16.mxu0 %v7571
        %8519 = vmatpush1.bf16.msra.mxu0 %v7570
        %8520 = vmatprep.subr.bf16.mxu0 %v7555
        %8521 = vmatpush1.bf16.msra.mxu0 %v7554
        %8522 = vmatprep.subr.bf16.mxu0 %v7539
        %8523 = vmatpush1.bf16.msra.mxu0 %v7538
        %8524 = vmatprep.subr.bf16.mxu0 %v7523
        %8525 = vmatpush1.bf16.msra.mxu0 %v7522
        %8526 = vmatprep.subr.bf16.mxu0 %v7507
        %8527 = vmatpush1.bf16.msra.mxu0 %v7506
        %8528 = vmatprep.subr.bf16.mxu0 %v7491
        %8529 = vmatpush1.bf16.msra.mxu0 %v7490
        %8530 = vmatprep.subr.bf16.mxu0 %v7731
        %8531 = vmatpush2.bf16.msra.mxu0 %v7730
        %8532 = vmatprep.subr.bf16.mxu0 %v7715
        %8533 = vmatpush2.bf16.msra.mxu0 %v7714
        %8534 = vmatprep.subr.bf16.mxu0 %v7699
        %8535 = vmatpush2.bf16.msra.mxu0 %v7698
        %8536 = vmatprep.subr.bf16.mxu0 %v7683
        %8537 = vmatpush2.bf16.msra.mxu0 %v7682
        %8538 = vmatprep.subr.bf16.mxu0 %v7667
        %8539 = vmatpush2.bf16.msra.mxu0 %v7666
        %8540 = vmatprep.subr.bf16.mxu0 %v7651
        %8541 = vmatpush2.bf16.msra.mxu0 %v7650
        %8542 = vmatprep.subr.bf16.mxu0 %v7635
        %8543 = vmatpush2.bf16.msra.mxu0 %v7634
        %8544 = vmatprep.subr.bf16.mxu0 %v7619
        %8545 = vmatpush2.bf16.msra.mxu0 %v7618
        %8546 = vmatprep.mubr.bf16.mxu0 %v5355
        %8547 = vmatmul.mubr.bf16.gmra.mxu0 %v5354
        %v8548 = vpop.f32.mrf.mxu0
        %v8549 = vadd.f32 %v5877, %v8548
        %v8550 = vpop.f32.mrf.mxu0
        %v8551 = vadd.f32 %v5881, %v8550
        %v8552 = vpop.f32.mrf.mxu0
        %v8553 = vpop.f32.mrf.mxu0
        %8554 = vdwg.mxu0
        %8555 = vmatprep.subr.bf16.mxu0 %v7859
        %8556 = vmatpush1.bf16.msra.mxu0 %v7858
        %8557 = vmatprep.subr.bf16.mxu0 %v7843
        %8558 = vmatpush1.bf16.msra.mxu0 %v7842
        %8559 = vmatprep.subr.bf16.mxu0 %v7827
        %8560 = vmatpush1.bf16.msra.mxu0 %v7826
        %8561 = vmatprep.subr.bf16.mxu0 %v7811
        %8562 = vmatpush1.bf16.msra.mxu0 %v7810
        %8563 = vmatprep.subr.bf16.mxu0 %v7795
        %8564 = vmatpush1.bf16.msra.mxu0 %v7794
        %8565 = vmatprep.subr.bf16.mxu0 %v7779
        %8566 = vmatpush1.bf16.msra.mxu0 %v7778
        %8567 = vmatprep.subr.bf16.mxu0 %v7763
        %8568 = vmatpush1.bf16.msra.mxu0 %v7762
        %8569 = vmatprep.subr.bf16.mxu0 %v7747
        %8570 = vmatpush1.bf16.msra.mxu0 %v7746
        %8571 = vmatprep.subr.bf16.mxu0 %v7987
        %8572 = vmatpush2.bf16.msra.mxu0 %v7986
        %8573 = vmatprep.subr.bf16.mxu0 %v7971
        %8574 = vmatpush2.bf16.msra.mxu0 %v7970
        %8575 = vmatprep.subr.bf16.mxu0 %v7955
        %8576 = vmatpush2.bf16.msra.mxu0 %v7954
        %8577 = vmatprep.subr.bf16.mxu0 %v7939
        %8578 = vmatpush2.bf16.msra.mxu0 %v7938
        %8579 = vmatprep.subr.bf16.mxu0 %v7923
        %8580 = vmatpush2.bf16.msra.mxu0 %v7922
        %8581 = vmatprep.subr.bf16.mxu0 %v7907
        %8582 = vmatpush2.bf16.msra.mxu0 %v7906
        %8583 = vmatprep.subr.bf16.mxu0 %v7891
        %8584 = vmatpush2.bf16.msra.mxu0 %v7890
        %8585 = vmatprep.subr.bf16.mxu0 %v7875
        %8586 = vmatpush2.bf16.msra.mxu0 %v7874
        %8587 = vmatprep.mubr.bf16.mxu0 %v5357
        %8588 = vmatmul.mubr.bf16.gmra.mxu0 %v5356
        %v8589 = vpop.f32.mrf.mxu0
        %v8590 = vadd.f32 %v8549, %v8589
        %v8591 = vpop.f32.mrf.mxu0
        %v8592 = vadd.f32 %v8551, %v8591
        %v8593 = vpop.f32.mrf.mxu0
        %v8594 = vpop.f32.mrf.mxu0
        %8595 = vdwg.mxu0
        %8596 = vmatprep.subr.bf16.mxu0 %v7605
        %8597 = vmatpush1.bf16.msra.mxu0 %v7604
        %8598 = vmatprep.subr.bf16.mxu0 %v7589
        %8599 = vmatpush1.bf16.msra.mxu0 %v7588
        %8600 = vmatprep.subr.bf16.mxu0 %v7573
        %8601 = vmatpush1.bf16.msra.mxu0 %v7572
        %8602 = vmatprep.subr.bf16.mxu0 %v7557
        %8603 = vmatpush1.bf16.msra.mxu0 %v7556
        %8604 = vmatprep.subr.bf16.mxu0 %v7541
        %8605 = vmatpush1.bf16.msra.mxu0 %v7540
        %8606 = vmatprep.subr.bf16.mxu0 %v7525
        %8607 = vmatpush1.bf16.msra.mxu0 %v7524
        %8608 = vmatprep.subr.bf16.mxu0 %v7509
        %8609 = vmatpush1.bf16.msra.mxu0 %v7508
        %8610 = vmatprep.subr.bf16.mxu0 %v7493
        %8611 = vmatpush1.bf16.msra.mxu0 %v7492
        %8612 = vmatprep.subr.bf16.mxu0 %v7733
        %8613 = vmatpush2.bf16.msra.mxu0 %v7732
        %8614 = vmatprep.subr.bf16.mxu0 %v7717
        %8615 = vmatpush2.bf16.msra.mxu0 %v7716
        %8616 = vmatprep.subr.bf16.mxu0 %v7701
        %8617 = vmatpush2.bf16.msra.mxu0 %v7700
        %8618 = vmatprep.subr.bf16.mxu0 %v7685
        %8619 = vmatpush2.bf16.msra.mxu0 %v7684
        %8620 = vmatprep.subr.bf16.mxu0 %v7669
        %8621 = vmatpush2.bf16.msra.mxu0 %v7668
        %8622 = vmatprep.subr.bf16.mxu0 %v7653
        %8623 = vmatpush2.bf16.msra.mxu0 %v7652
        %8624 = vmatprep.subr.bf16.mxu0 %v7637
        %8625 = vmatpush2.bf16.msra.mxu0 %v7636
        %8626 = vmatprep.subr.bf16.mxu0 %v7621
        %8627 = vmatpush2.bf16.msra.mxu0 %v7620
        %8628 = vmatprep.mubr.bf16.mxu0 %v5355
        %8629 = vmatmul.mubr.bf16.gmra.mxu0 %v5354
        %v8630 = vpop.f32.mrf.mxu0
        %v8631 = vadd.f32 %v5885, %v8630
        %v8632 = vpop.f32.mrf.mxu0
        %v8633 = vadd.f32 %v5889, %v8632
        %v8634 = vpop.f32.mrf.mxu0
        %v8635 = vpop.f32.mrf.mxu0
        %8636 = vdwg.mxu0
        %8637 = vmatprep.subr.bf16.mxu0 %v7861
        %8638 = vmatpush1.bf16.msra.mxu0 %v7860
        %8639 = vmatprep.subr.bf16.mxu0 %v7845
        %8640 = vmatpush1.bf16.msra.mxu0 %v7844
        %8641 = vmatprep.subr.bf16.mxu0 %v7829
        %8642 = vmatpush1.bf16.msra.mxu0 %v7828
        %8643 = vmatprep.subr.bf16.mxu0 %v7813
        %8644 = vmatpush1.bf16.msra.mxu0 %v7812
        %8645 = vmatprep.subr.bf16.mxu0 %v7797
        %8646 = vmatpush1.bf16.msra.mxu0 %v7796
        %8647 = vmatprep.subr.bf16.mxu0 %v7781
        %8648 = vmatpush1.bf16.msra.mxu0 %v7780
        %8649 = vmatprep.subr.bf16.mxu0 %v7765
        %8650 = vmatpush1.bf16.msra.mxu0 %v7764
        %8651 = vmatprep.subr.bf16.mxu0 %v7749
        %8652 = vmatpush1.bf16.msra.mxu0 %v7748
        %8653 = vmatprep.subr.bf16.mxu0 %v7989
        %8654 = vmatpush2.bf16.msra.mxu0 %v7988
        %8655 = vmatprep.subr.bf16.mxu0 %v7973
        %8656 = vmatpush2.bf16.msra.mxu0 %v7972
        %8657 = vmatprep.subr.bf16.mxu0 %v7957
        %8658 = vmatpush2.bf16.msra.mxu0 %v7956
        %8659 = vmatprep.subr.bf16.mxu0 %v7941
        %8660 = vmatpush2.bf16.msra.mxu0 %v7940
        %8661 = vmatprep.subr.bf16.mxu0 %v7925
        %8662 = vmatpush2.bf16.msra.mxu0 %v7924
        %8663 = vmatprep.subr.bf16.mxu0 %v7909
        %8664 = vmatpush2.bf16.msra.mxu0 %v7908
        %8665 = vmatprep.subr.bf16.mxu0 %v7893
        %8666 = vmatpush2.bf16.msra.mxu0 %v7892
        %8667 = vmatprep.subr.bf16.mxu0 %v7877
        %8668 = vmatpush2.bf16.msra.mxu0 %v7876
        %8669 = vmatprep.mubr.bf16.mxu0 %v5357
        %8670 = vmatmul.mubr.bf16.gmra.mxu0 %v5356
        %v8671 = vpop.f32.mrf.mxu0
        %v8672 = vadd.f32 %v8631, %v8671
        %v8673 = vpop.f32.mrf.mxu0
        %v8674 = vadd.f32 %v8633, %v8673
        %v8675 = vpop.f32.mrf.mxu0
        %v8676 = vpop.f32.mrf.mxu0
        %8677 = vdwg.mxu0
        %8678 = vmatprep.subr.bf16.mxu0 %v7607
        %8679 = vmatpush1.bf16.msra.mxu0 %v7606
        %8680 = vmatprep.subr.bf16.mxu0 %v7591
        %8681 = vmatpush1.bf16.msra.mxu0 %v7590
        %8682 = vmatprep.subr.bf16.mxu0 %v7575
        %8683 = vmatpush1.bf16.msra.mxu0 %v7574
        %8684 = vmatprep.subr.bf16.mxu0 %v7559
        %8685 = vmatpush1.bf16.msra.mxu0 %v7558
        %8686 = vmatprep.subr.bf16.mxu0 %v7543
        %8687 = vmatpush1.bf16.msra.mxu0 %v7542
        %8688 = vmatprep.subr.bf16.mxu0 %v7527
        %8689 = vmatpush1.bf16.msra.mxu0 %v7526
        %8690 = vmatprep.subr.bf16.mxu0 %v7511
        %8691 = vmatpush1.bf16.msra.mxu0 %v7510
        %8692 = vmatprep.subr.bf16.mxu0 %v7495
        %8693 = vmatpush1.bf16.msra.mxu0 %v7494
        %8694 = vmatprep.subr.bf16.mxu0 %v7735
        %8695 = vmatpush2.bf16.msra.mxu0 %v7734
        %8696 = vmatprep.subr.bf16.mxu0 %v7719
        %8697 = vmatpush2.bf16.msra.mxu0 %v7718
        %8698 = vmatprep.subr.bf16.mxu0 %v7703
        %8699 = vmatpush2.bf16.msra.mxu0 %v7702
        %8700 = vmatprep.subr.bf16.mxu0 %v7687
        %8701 = vmatpush2.bf16.msra.mxu0 %v7686
        %8702 = vmatprep.subr.bf16.mxu0 %v7671
        %8703 = vmatpush2.bf16.msra.mxu0 %v7670
        %8704 = vmatprep.subr.bf16.mxu0 %v7655
        %8705 = vmatpush2.bf16.msra.mxu0 %v7654
        %8706 = vmatprep.subr.bf16.mxu0 %v7639
        %8707 = vmatpush2.bf16.msra.mxu0 %v7638
        %8708 = vmatprep.subr.bf16.mxu0 %v7623
        %8709 = vmatpush2.bf16.msra.mxu0 %v7622
        %8710 = vmatprep.mubr.bf16.mxu0 %v5355
        %8711 = vmatmul.mubr.bf16.gmra.mxu0 %v5354
        %v8712 = vpop.f32.mrf.mxu0
        %v8713 = vadd.f32 %v5893, %v8712
        %v8714 = vpop.f32.mrf.mxu0
        %v8715 = vadd.f32 %v5897, %v8714
        %v8716 = vpop.f32.mrf.mxu0
        %v8717 = vpop.f32.mrf.mxu0
        %8718 = vdwg.mxu0
        %8719 = vmatprep.subr.bf16.mxu0 %v7863
        %8720 = vmatpush1.bf16.msra.mxu0 %v7862
        %8721 = vmatprep.subr.bf16.mxu0 %v7847
        %8722 = vmatpush1.bf16.msra.mxu0 %v7846
        %8723 = vmatprep.subr.bf16.mxu0 %v7831
        %8724 = vmatpush1.bf16.msra.mxu0 %v7830
        %8725 = vmatprep.subr.bf16.mxu0 %v7815
        %8726 = vmatpush1.bf16.msra.mxu0 %v7814
        %8727 = vmatprep.subr.bf16.mxu0 %v7799
        %8728 = vmatpush1.bf16.msra.mxu0 %v7798
        %8729 = vmatprep.subr.bf16.mxu0 %v7783
        %8730 = vmatpush1.bf16.msra.mxu0 %v7782
        %8731 = vmatprep.subr.bf16.mxu0 %v7767
        %8732 = vmatpush1.bf16.msra.mxu0 %v7766
        %8733 = vmatprep.subr.bf16.mxu0 %v7751
        %8734 = vmatpush1.bf16.msra.mxu0 %v7750
        %8735 = vmatprep.subr.bf16.mxu0 %v7991
        %8736 = vmatpush2.bf16.msra.mxu0 %v7990
        %8737 = vmatprep.subr.bf16.mxu0 %v7975
        %8738 = vmatpush2.bf16.msra.mxu0 %v7974
        %8739 = vmatprep.subr.bf16.mxu0 %v7959
        %8740 = vmatpush2.bf16.msra.mxu0 %v7958
        %8741 = vmatprep.subr.bf16.mxu0 %v7943
        %8742 = vmatpush2.bf16.msra.mxu0 %v7942
        %8743 = vmatprep.subr.bf16.mxu0 %v7927
        %8744 = vmatpush2.bf16.msra.mxu0 %v7926
        %8745 = vmatprep.subr.bf16.mxu0 %v7911
        %8746 = vmatpush2.bf16.msra.mxu0 %v7910
        %8747 = vmatprep.subr.bf16.mxu0 %v7895
        %8748 = vmatpush2.bf16.msra.mxu0 %v7894
        %8749 = vmatprep.subr.bf16.mxu0 %v7879
        %8750 = vmatpush2.bf16.msra.mxu0 %v7878
        %8751 = vmatprep.mubr.bf16.mxu0 %v5357
        %8752 = vmatmul.mubr.bf16.gmra.mxu0 %v5356
        %v8753 = vpop.f32.mrf.mxu0
        %v8754 = vadd.f32 %v8713, %v8753
        %v8755 = vpop.f32.mrf.mxu0
        %v8756 = vadd.f32 %v8715, %v8755
        %v8757 = vpop.f32.mrf.mxu0
        %v8758 = vpop.f32.mrf.mxu0
        %8759 = vdwg.mxu0
        %8760 = vmatprep.subr.bf16.mxu0 %v7609
        %8761 = vmatpush1.bf16.msra.mxu0 %v7608
        %8762 = vmatprep.subr.bf16.mxu0 %v7593
        %8763 = vmatpush1.bf16.msra.mxu0 %v7592
        %8764 = vmatprep.subr.bf16.mxu0 %v7577
        %8765 = vmatpush1.bf16.msra.mxu0 %v7576
        %8766 = vmatprep.subr.bf16.mxu0 %v7561
        %8767 = vmatpush1.bf16.msra.mxu0 %v7560
        %8768 = vmatprep.subr.bf16.mxu0 %v7545
        %8769 = vmatpush1.bf16.msra.mxu0 %v7544
        %8770 = vmatprep.subr.bf16.mxu0 %v7529
        %8771 = vmatpush1.bf16.msra.mxu0 %v7528
        %8772 = vmatprep.subr.bf16.mxu0 %v7513
        %8773 = vmatpush1.bf16.msra.mxu0 %v7512
        %8774 = vmatprep.subr.bf16.mxu0 %v7497
        %8775 = vmatpush1.bf16.msra.mxu0 %v7496
        %8776 = vmatprep.subr.bf16.mxu0 %v7737
        %8777 = vmatpush2.bf16.msra.mxu0 %v7736
        %8778 = vmatprep.subr.bf16.mxu0 %v7721
        %8779 = vmatpush2.bf16.msra.mxu0 %v7720
        %8780 = vmatprep.subr.bf16.mxu0 %v7705
        %8781 = vmatpush2.bf16.msra.mxu0 %v7704
        %8782 = vmatprep.subr.bf16.mxu0 %v7689
        %8783 = vmatpush2.bf16.msra.mxu0 %v7688
        %8784 = vmatprep.subr.bf16.mxu0 %v7673
        %8785 = vmatpush2.bf16.msra.mxu0 %v7672
        %8786 = vmatprep.subr.bf16.mxu0 %v7657
        %8787 = vmatpush2.bf16.msra.mxu0 %v7656
        %8788 = vmatprep.subr.bf16.mxu0 %v7641
        %8789 = vmatpush2.bf16.msra.mxu0 %v7640
        %8790 = vmatprep.subr.bf16.mxu0 %v7625
        %8791 = vmatpush2.bf16.msra.mxu0 %v7624
        %8792 = vmatprep.mubr.bf16.mxu0 %v5355
        %8793 = vmatmul.mubr.bf16.gmra.mxu0 %v5354
        %v8794 = vpop.f32.mrf.mxu0
        %v8795 = vadd.f32 %v5901, %v8794
        %v8796 = vpop.f32.mrf.mxu0
        %v8797 = vadd.f32 %v5905, %v8796
        %v8798 = vpop.f32.mrf.mxu0
        %v8799 = vpop.f32.mrf.mxu0
        %8800 = vdwg.mxu0
        %8801 = vmatprep.subr.bf16.mxu0 %v7865
        %8802 = vmatpush1.bf16.msra.mxu0 %v7864
        %8803 = vmatprep.subr.bf16.mxu0 %v7849
        %8804 = vmatpush1.bf16.msra.mxu0 %v7848
        %8805 = vmatprep.subr.bf16.mxu0 %v7833
        %8806 = vmatpush1.bf16.msra.mxu0 %v7832
        %8807 = vmatprep.subr.bf16.mxu0 %v7817
        %8808 = vmatpush1.bf16.msra.mxu0 %v7816
        %8809 = vmatprep.subr.bf16.mxu0 %v7801
        %8810 = vmatpush1.bf16.msra.mxu0 %v7800
        %8811 = vmatprep.subr.bf16.mxu0 %v7785
        %8812 = vmatpush1.bf16.msra.mxu0 %v7784
        %8813 = vmatprep.subr.bf16.mxu0 %v7769
        %8814 = vmatpush1.bf16.msra.mxu0 %v7768
        %8815 = vmatprep.subr.bf16.mxu0 %v7753
        %8816 = vmatpush1.bf16.msra.mxu0 %v7752
        %8817 = vmatprep.subr.bf16.mxu0 %v7993
        %8818 = vmatpush2.bf16.msra.mxu0 %v7992
        %8819 = vmatprep.subr.bf16.mxu0 %v7977
        %8820 = vmatpush2.bf16.msra.mxu0 %v7976
        %8821 = vmatprep.subr.bf16.mxu0 %v7961
        %8822 = vmatpush2.bf16.msra.mxu0 %v7960
        %8823 = vmatprep.subr.bf16.mxu0 %v7945
        %8824 = vmatpush2.bf16.msra.mxu0 %v7944
        %8825 = vmatprep.subr.bf16.mxu0 %v7929
        %8826 = vmatpush2.bf16.msra.mxu0 %v7928
        %8827 = vmatprep.subr.bf16.mxu0 %v7913
        %8828 = vmatpush2.bf16.msra.mxu0 %v7912
        %8829 = vmatprep.subr.bf16.mxu0 %v7897
        %8830 = vmatpush2.bf16.msra.mxu0 %v7896
        %8831 = vmatprep.subr.bf16.mxu0 %v7881
        %8832 = vmatpush2.bf16.msra.mxu0 %v7880
        %8833 = vmatprep.mubr.bf16.mxu0 %v5357
        %8834 = vmatmul.mubr.bf16.gmra.mxu0 %v5356
        %v8835 = vpop.f32.mrf.mxu0
        %v8836 = vadd.f32 %v8795, %v8835
        %v8837 = vpop.f32.mrf.mxu0
        %v8838 = vadd.f32 %v8797, %v8837
        %v8839 = vpop.f32.mrf.mxu0
        %v8840 = vpop.f32.mrf.mxu0
        %8841 = vdwg.mxu0
        %8842 = vmatprep.subr.bf16.mxu0 %v7611
        %8843 = vmatpush1.bf16.msra.mxu0 %v7610
        %8844 = vmatprep.subr.bf16.mxu0 %v7595
        %8845 = vmatpush1.bf16.msra.mxu0 %v7594
        %8846 = vmatprep.subr.bf16.mxu0 %v7579
        %8847 = vmatpush1.bf16.msra.mxu0 %v7578
        %8848 = vmatprep.subr.bf16.mxu0 %v7563
        %8849 = vmatpush1.bf16.msra.mxu0 %v7562
        %8850 = vmatprep.subr.bf16.mxu0 %v7547
        %8851 = vmatpush1.bf16.msra.mxu0 %v7546
        %8852 = vmatprep.subr.bf16.mxu0 %v7531
        %8853 = vmatpush1.bf16.msra.mxu0 %v7530
        %8854 = vmatprep.subr.bf16.mxu0 %v7515
        %8855 = vmatpush1.bf16.msra.mxu0 %v7514
        %8856 = vmatprep.subr.bf16.mxu0 %v7499
        %8857 = vmatpush1.bf16.msra.mxu0 %v7498
        %8858 = vmatprep.subr.bf16.mxu0 %v7739
        %8859 = vmatpush2.bf16.msra.mxu0 %v7738
        %8860 = vmatprep.subr.bf16.mxu0 %v7723
        %8861 = vmatpush2.bf16.msra.mxu0 %v7722
        %8862 = vmatprep.subr.bf16.mxu0 %v7707
        %8863 = vmatpush2.bf16.msra.mxu0 %v7706
        %8864 = vmatprep.subr.bf16.mxu0 %v7691
        %8865 = vmatpush2.bf16.msra.mxu0 %v7690
        %8866 = vmatprep.subr.bf16.mxu0 %v7675
        %8867 = vmatpush2.bf16.msra.mxu0 %v7674
        %8868 = vmatprep.subr.bf16.mxu0 %v7659
        %8869 = vmatpush2.bf16.msra.mxu0 %v7658
        %8870 = vmatprep.subr.bf16.mxu0 %v7643
        %8871 = vmatpush2.bf16.msra.mxu0 %v7642
        %8872 = vmatprep.subr.bf16.mxu0 %v7627
        %8873 = vmatpush2.bf16.msra.mxu0 %v7626
        %8874 = vmatprep.mubr.bf16.mxu0 %v5355
        %8875 = vmatmul.mubr.bf16.gmra.mxu0 %v5354
        %v8876 = vpop.f32.mrf.mxu0
        %v8877 = vadd.f32 %v5909, %v8876
        %v8878 = vpop.f32.mrf.mxu0
        %v8879 = vadd.f32 %v5913, %v8878
        %v8880 = vpop.f32.mrf.mxu0
        %v8881 = vpop.f32.mrf.mxu0
        %8882 = vdwg.mxu0
        %8883 = vmatprep.subr.bf16.mxu0 %v7867
        %8884 = vmatpush1.bf16.msra.mxu0 %v7866
        %8885 = vmatprep.subr.bf16.mxu0 %v7851
        %8886 = vmatpush1.bf16.msra.mxu0 %v7850
        %8887 = vmatprep.subr.bf16.mxu0 %v7835
        %8888 = vmatpush1.bf16.msra.mxu0 %v7834
        %8889 = vmatprep.subr.bf16.mxu0 %v7819
        %8890 = vmatpush1.bf16.msra.mxu0 %v7818
        %8891 = vmatprep.subr.bf16.mxu0 %v7803
        %8892 = vmatpush1.bf16.msra.mxu0 %v7802
        %8893 = vmatprep.subr.bf16.mxu0 %v7787
        %8894 = vmatpush1.bf16.msra.mxu0 %v7786
        %8895 = vmatprep.subr.bf16.mxu0 %v7771
        %8896 = vmatpush1.bf16.msra.mxu0 %v7770
        %8897 = vmatprep.subr.bf16.mxu0 %v7755
        %8898 = vmatpush1.bf16.msra.mxu0 %v7754
        %8899 = vmatprep.subr.bf16.mxu0 %v7995
        %8900 = vmatpush2.bf16.msra.mxu0 %v7994
        %8901 = vmatprep.subr.bf16.mxu0 %v7979
        %8902 = vmatpush2.bf16.msra.mxu0 %v7978
        %8903 = vmatprep.subr.bf16.mxu0 %v7963
        %8904 = vmatpush2.bf16.msra.mxu0 %v7962
        %8905 = vmatprep.subr.bf16.mxu0 %v7947
        %8906 = vmatpush2.bf16.msra.mxu0 %v7946
        %8907 = vmatprep.subr.bf16.mxu0 %v7931
        %8908 = vmatpush2.bf16.msra.mxu0 %v7930
        %8909 = vmatprep.subr.bf16.mxu0 %v7915
        %8910 = vmatpush2.bf16.msra.mxu0 %v7914
        %8911 = vmatprep.subr.bf16.mxu0 %v7899
        %8912 = vmatpush2.bf16.msra.mxu0 %v7898
        %8913 = vmatprep.subr.bf16.mxu0 %v7883
        %8914 = vmatpush2.bf16.msra.mxu0 %v7882
        %8915 = vmatprep.mubr.bf16.mxu0 %v5357
        %8916 = vmatmul.mubr.bf16.gmra.mxu0 %v5356
        %v8917 = vpop.f32.mrf.mxu0
        %v8918 = vadd.f32 %v8877, %v8917
        %v8919 = vpop.f32.mrf.mxu0
        %v8920 = vadd.f32 %v8879, %v8919
        %v8921 = vpop.f32.mrf.mxu0
        %v8922 = vpop.f32.mrf.mxu0
        %8923 = vdwg.mxu0
        %8924 = vmatprep.subr.bf16.mxu0 %v7613
        %8925 = vmatpush1.bf16.msra.mxu0 %v7612
        %8926 = vmatprep.subr.bf16.mxu0 %v7597
        %8927 = vmatpush1.bf16.msra.mxu0 %v7596
        %8928 = vmatprep.subr.bf16.mxu0 %v7581
        %8929 = vmatpush1.bf16.msra.mxu0 %v7580
        %8930 = vmatprep.subr.bf16.mxu0 %v7565
        %8931 = vmatpush1.bf16.msra.mxu0 %v7564
        %8932 = vmatprep.subr.bf16.mxu0 %v7549
        %8933 = vmatpush1.bf16.msra.mxu0 %v7548
        %8934 = vmatprep.subr.bf16.mxu0 %v7533
        %8935 = vmatpush1.bf16.msra.mxu0 %v7532
        %8936 = vmatprep.subr.bf16.mxu0 %v7517
        %8937 = vmatpush1.bf16.msra.mxu0 %v7516
        %8938 = vmatprep.subr.bf16.mxu0 %v7501
        %8939 = vmatpush1.bf16.msra.mxu0 %v7500
        %8940 = vmatprep.subr.bf16.mxu0 %v7741
        %8941 = vmatpush2.bf16.msra.mxu0 %v7740
        %8942 = vmatprep.subr.bf16.mxu0 %v7725
        %8943 = vmatpush2.bf16.msra.mxu0 %v7724
        %8944 = vmatprep.subr.bf16.mxu0 %v7709
        %8945 = vmatpush2.bf16.msra.mxu0 %v7708
        %8946 = vmatprep.subr.bf16.mxu0 %v7693
        %8947 = vmatpush2.bf16.msra.mxu0 %v7692
        %8948 = vmatprep.subr.bf16.mxu0 %v7677
        %8949 = vmatpush2.bf16.msra.mxu0 %v7676
        %8950 = vmatprep.subr.bf16.mxu0 %v7661
        %8951 = vmatpush2.bf16.msra.mxu0 %v7660
        %8952 = vmatprep.subr.bf16.mxu0 %v7645
        %8953 = vmatpush2.bf16.msra.mxu0 %v7644
        %8954 = vmatprep.subr.bf16.mxu0 %v7629
        %8955 = vmatpush2.bf16.msra.mxu0 %v7628
        %8956 = vmatprep.mubr.bf16.mxu0 %v5355
        %8957 = vmatmul.mubr.bf16.gmra.mxu0 %v5354
        %v8958 = vpop.f32.mrf.mxu0
        %v8959 = vadd.f32 %v5917, %v8958
        %v8960 = vpop.f32.mrf.mxu0
        %v8961 = vadd.f32 %v5921, %v8960
        %v8962 = vpop.f32.mrf.mxu0
        %v8963 = vpop.f32.mrf.mxu0
        %8964 = vdwg.mxu0
        %8965 = vmatprep.subr.bf16.mxu0 %v7869
        %8966 = vmatpush1.bf16.msra.mxu0 %v7868
        %8967 = vmatprep.subr.bf16.mxu0 %v7853
        %8968 = vmatpush1.bf16.msra.mxu0 %v7852
        %8969 = vmatprep.subr.bf16.mxu0 %v7837
        %8970 = vmatpush1.bf16.msra.mxu0 %v7836
        %8971 = vmatprep.subr.bf16.mxu0 %v7821
        %8972 = vmatpush1.bf16.msra.mxu0 %v7820
        %8973 = vmatprep.subr.bf16.mxu0 %v7805
        %8974 = vmatpush1.bf16.msra.mxu0 %v7804
        %8975 = vmatprep.subr.bf16.mxu0 %v7789
        %8976 = vmatpush1.bf16.msra.mxu0 %v7788
        %8977 = vmatprep.subr.bf16.mxu0 %v7773
        %8978 = vmatpush1.bf16.msra.mxu0 %v7772
        %8979 = vmatprep.subr.bf16.mxu0 %v7757
        %8980 = vmatpush1.bf16.msra.mxu0 %v7756
        %8981 = vmatprep.subr.bf16.mxu0 %v7997
        %8982 = vmatpush2.bf16.msra.mxu0 %v7996
        %8983 = vmatprep.subr.bf16.mxu0 %v7981
        %8984 = vmatpush2.bf16.msra.mxu0 %v7980
        %8985 = vmatprep.subr.bf16.mxu0 %v7965
        %8986 = vmatpush2.bf16.msra.mxu0 %v7964
        %8987 = vmatprep.subr.bf16.mxu0 %v7949
        %8988 = vmatpush2.bf16.msra.mxu0 %v7948
        %8989 = vmatprep.subr.bf16.mxu0 %v7933
        %8990 = vmatpush2.bf16.msra.mxu0 %v7932
        %8991 = vmatprep.subr.bf16.mxu0 %v7917
        %8992 = vmatpush2.bf16.msra.mxu0 %v7916
        %8993 = vmatprep.subr.bf16.mxu0 %v7901
        %8994 = vmatpush2.bf16.msra.mxu0 %v7900
        %8995 = vmatprep.subr.bf16.mxu0 %v7885
        %8996 = vmatpush2.bf16.msra.mxu0 %v7884
        %8997 = vmatprep.mubr.bf16.mxu0 %v5357
        %8998 = vmatmul.mubr.bf16.gmra.mxu0 %v5356
        %v8999 = vpop.f32.mrf.mxu0
        %v9000 = vadd.f32 %v8959, %v8999
        %v9001 = vpop.f32.mrf.mxu0
        %v9002 = vadd.f32 %v8961, %v9001
        %v9003 = vpop.f32.mrf.mxu0
        %v9004 = vpop.f32.mrf.mxu0
        %9005 = vdwg.mxu0
        %9006 = vmatprep.subr.bf16.mxu0 %v7615
        %9007 = vmatpush1.bf16.msra.mxu0 %v7614
        %9008 = vmatprep.subr.bf16.mxu0 %v7599
        %9009 = vmatpush1.bf16.msra.mxu0 %v7598
        %9010 = vmatprep.subr.bf16.mxu0 %v7583
        %9011 = vmatpush1.bf16.msra.mxu0 %v7582
        %9012 = vmatprep.subr.bf16.mxu0 %v7567
        %9013 = vmatpush1.bf16.msra.mxu0 %v7566
        %9014 = vmatprep.subr.bf16.mxu0 %v7551
        %9015 = vmatpush1.bf16.msra.mxu0 %v7550
        %9016 = vmatprep.subr.bf16.mxu0 %v7535
        %9017 = vmatpush1.bf16.msra.mxu0 %v7534
        %9018 = vmatprep.subr.bf16.mxu0 %v7519
        %9019 = vmatpush1.bf16.msra.mxu0 %v7518
        %9020 = vmatprep.subr.bf16.mxu0 %v7503
        %9021 = vmatpush1.bf16.msra.mxu0 %v7502
        %9022 = vmatprep.subr.bf16.mxu0 %v7743
        %9023 = vmatpush2.bf16.msra.mxu0 %v7742
        %9024 = vmatprep.subr.bf16.mxu0 %v7727
        %9025 = vmatpush2.bf16.msra.mxu0 %v7726
        %9026 = vmatprep.subr.bf16.mxu0 %v7711
        %9027 = vmatpush2.bf16.msra.mxu0 %v7710
        %9028 = vmatprep.subr.bf16.mxu0 %v7695
        %9029 = vmatpush2.bf16.msra.mxu0 %v7694
        %9030 = vmatprep.subr.bf16.mxu0 %v7679
        %9031 = vmatpush2.bf16.msra.mxu0 %v7678
        %9032 = vmatprep.subr.bf16.mxu0 %v7663
        %9033 = vmatpush2.bf16.msra.mxu0 %v7662
        %9034 = vmatprep.subr.bf16.mxu0 %v7647
        %9035 = vmatpush2.bf16.msra.mxu0 %v7646
        %9036 = vmatprep.subr.bf16.mxu0 %v7631
        %9037 = vmatpush2.bf16.msra.mxu0 %v7630
        %9038 = vmatprep.mubr.bf16.mxu0 %v5355
        %9039 = vmatmul.mubr.bf16.gmra.mxu0 %v5354
        %v9040 = vpop.f32.mrf.mxu0
        %v9041 = vadd.f32 %v5925, %v9040
        %v9042 = vpop.f32.mrf.mxu0
        %v9043 = vadd.f32 %v5929, %v9042
        %v9044 = vpop.f32.mrf.mxu0
        %v9045 = vpop.f32.mrf.mxu0
        %9046 = vdwg.mxu0
        %9047 = vmatprep.subr.bf16.mxu0 %v7871
        %9048 = vmatpush1.bf16.msra.mxu0 %v7870
        %9049 = vmatprep.subr.bf16.mxu0 %v7855
        %9050 = vmatpush1.bf16.msra.mxu0 %v7854
        %9051 = vmatprep.subr.bf16.mxu0 %v7839
        %9052 = vmatpush1.bf16.msra.mxu0 %v7838
        %9053 = vmatprep.subr.bf16.mxu0 %v7823
        %9054 = vmatpush1.bf16.msra.mxu0 %v7822
        %9055 = vmatprep.subr.bf16.mxu0 %v7807
        %9056 = vmatpush1.bf16.msra.mxu0 %v7806
        %9057 = vmatprep.subr.bf16.mxu0 %v7791
        %9058 = vmatpush1.bf16.msra.mxu0 %v7790
        %9059 = vmatprep.subr.bf16.mxu0 %v7775
        %9060 = vmatpush1.bf16.msra.mxu0 %v7774
        %9061 = vmatprep.subr.bf16.mxu0 %v7759
        %9062 = vmatpush1.bf16.msra.mxu0 %v7758
        %9063 = vmatprep.subr.bf16.mxu0 %v7999
        %9064 = vmatpush2.bf16.msra.mxu0 %v7998
        %9065 = vmatprep.subr.bf16.mxu0 %v7983
        %9066 = vmatpush2.bf16.msra.mxu0 %v7982
        %9067 = vmatprep.subr.bf16.mxu0 %v7967
        %9068 = vmatpush2.bf16.msra.mxu0 %v7966
        %9069 = vmatprep.subr.bf16.mxu0 %v7951
        %9070 = vmatpush2.bf16.msra.mxu0 %v7950
        %9071 = vmatprep.subr.bf16.mxu0 %v7935
        %9072 = vmatpush2.bf16.msra.mxu0 %v7934
        %9073 = vmatprep.subr.bf16.mxu0 %v7919
        %9074 = vmatpush2.bf16.msra.mxu0 %v7918
        %9075 = vmatprep.subr.bf16.mxu0 %v7903
        %9076 = vmatpush2.bf16.msra.mxu0 %v7902
        %9077 = vmatprep.subr.bf16.mxu0 %v7887
        %9078 = vmatpush2.bf16.msra.mxu0 %v7886
        %9079 = vmatprep.mubr.bf16.mxu0 %v5357
        %9080 = vmatmul.mubr.bf16.gmra.mxu0 %v5356
        %v9081 = vpop.f32.mrf.mxu0
        %v9082 = vadd.f32 %v9041, %v9081
        %v9083 = vpop.f32.mrf.mxu0
        %v9084 = vadd.f32 %v9043, %v9083
        %v9085 = vpop.f32.mrf.mxu0
        %v9086 = vpop.f32.mrf.mxu0
        %9087 = vdwg.mxu0
        %9088 = vmatprep.subr.bf16.mxu0 %v7617
        %9089 = vmatpush1.bf16.msra.mxu0 %v7616
        %9090 = vmatprep.subr.bf16.mxu0 %v7601
        %9091 = vmatpush1.bf16.msra.mxu0 %v7600
        %9092 = vmatprep.subr.bf16.mxu0 %v7585
        %9093 = vmatpush1.bf16.msra.mxu0 %v7584
        %9094 = vmatprep.subr.bf16.mxu0 %v7569
        %9095 = vmatpush1.bf16.msra.mxu0 %v7568
        %9096 = vmatprep.subr.bf16.mxu0 %v7553
        %9097 = vmatpush1.bf16.msra.mxu0 %v7552
        %9098 = vmatprep.subr.bf16.mxu0 %v7537
        %9099 = vmatpush1.bf16.msra.mxu0 %v7536
        %9100 = vmatprep.subr.bf16.mxu0 %v7521
        %9101 = vmatpush1.bf16.msra.mxu0 %v7520
        %9102 = vmatprep.subr.bf16.mxu0 %v7505
        %9103 = vmatpush1.bf16.msra.mxu0 %v7504
        %9104 = vmatprep.subr.bf16.mxu0 %v7745
        %9105 = vmatpush2.bf16.msra.mxu0 %v7744
        %9106 = vmatprep.subr.bf16.mxu0 %v7729
        %9107 = vmatpush2.bf16.msra.mxu0 %v7728
        %9108 = vmatprep.subr.bf16.mxu0 %v7713
        %9109 = vmatpush2.bf16.msra.mxu0 %v7712
        %9110 = vmatprep.subr.bf16.mxu0 %v7697
        %9111 = vmatpush2.bf16.msra.mxu0 %v7696
        %9112 = vmatprep.subr.bf16.mxu0 %v7681
        %9113 = vmatpush2.bf16.msra.mxu0 %v7680
        %9114 = vmatprep.subr.bf16.mxu0 %v7665
        %9115 = vmatpush2.bf16.msra.mxu0 %v7664
        %9116 = vmatprep.subr.bf16.mxu0 %v7649
        %9117 = vmatpush2.bf16.msra.mxu0 %v7648
        %9118 = vmatprep.subr.bf16.mxu0 %v7633
        %9119 = vmatpush2.bf16.msra.mxu0 %v7632
        %9120 = vmatprep.mubr.bf16.mxu0 %v5355
        %9121 = vmatmul.mubr.bf16.gmra.mxu0 %v5354
        %v9122 = vpop.f32.mrf.mxu0
        %v9123 = vadd.f32 %v5933, %v9122
        %v9124 = vpop.f32.mrf.mxu0
        %v9125 = vadd.f32 %v5937, %v9124
        %v9126 = vpop.f32.mrf.mxu0
        %v9127 = vpop.f32.mrf.mxu0
        %9128 = vdwg.mxu0
        %9129 = vmatprep.subr.bf16.mxu0 %v7873
        %9130 = vmatpush1.bf16.msra.mxu0 %v7872
        %9131 = vmatprep.subr.bf16.mxu0 %v7857
        %9132 = vmatpush1.bf16.msra.mxu0 %v7856
        %9133 = vmatprep.subr.bf16.mxu0 %v7841
        %9134 = vmatpush1.bf16.msra.mxu0 %v7840
        %9135 = vmatprep.subr.bf16.mxu0 %v7825
        %9136 = vmatpush1.bf16.msra.mxu0 %v7824
        %9137 = vmatprep.subr.bf16.mxu0 %v7809
        %9138 = vmatpush1.bf16.msra.mxu0 %v7808
        %9139 = vmatprep.subr.bf16.mxu0 %v7793
        %9140 = vmatpush1.bf16.msra.mxu0 %v7792
        %9141 = vmatprep.subr.bf16.mxu0 %v7777
        %9142 = vmatpush1.bf16.msra.mxu0 %v7776
        %9143 = vmatprep.subr.bf16.mxu0 %v7761
        %9144 = vmatpush1.bf16.msra.mxu0 %v7760
        %9145 = vmatprep.subr.bf16.mxu0 %v8001
        %9146 = vmatpush2.bf16.msra.mxu0 %v8000
        %9147 = vmatprep.subr.bf16.mxu0 %v7985
        %9148 = vmatpush2.bf16.msra.mxu0 %v7984
        %9149 = vmatprep.subr.bf16.mxu0 %v7969
        %9150 = vmatpush2.bf16.msra.mxu0 %v7968
        %9151 = vmatprep.subr.bf16.mxu0 %v7953
        %9152 = vmatpush2.bf16.msra.mxu0 %v7952
        %9153 = vmatprep.subr.bf16.mxu0 %v7937
        %9154 = vmatpush2.bf16.msra.mxu0 %v7936
        %9155 = vmatprep.subr.bf16.mxu0 %v7921
        %9156 = vmatpush2.bf16.msra.mxu0 %v7920
        %9157 = vmatprep.subr.bf16.mxu0 %v7905
        %9158 = vmatpush2.bf16.msra.mxu0 %v7904
        %9159 = vmatprep.subr.bf16.mxu0 %v7889
        %9160 = vmatpush2.bf16.msra.mxu0 %v7888
        %9161 = vmatprep.mubr.bf16.mxu0 %v5357
        %9162 = vmatmul.mubr.bf16.gmra.mxu0 %v5356
        %v9163 = vpop.f32.mrf.mxu0
        %v9164 = vadd.f32 %v9123, %v9163
        %v9165 = vpop.f32.mrf.mxu0
        %v9166 = vadd.f32 %v9125, %v9165
        %v9167 = vpop.f32.mrf.mxu0
        %v9168 = vpop.f32.mrf.mxu0
        %9169 = vdwg.mxu0
        %v9170 = vmax.f32 %v8590, 0.0
        %v9171 = vmax.f32 %v8592, 0.0
        %v9172 = vmax.f32 %v8672, 0.0
        %v9173 = vmax.f32 %v8674, 0.0
        %v9174 = vmax.f32 %v8754, 0.0
        %v9175 = vmax.f32 %v8756, 0.0
        %v9176 = vmax.f32 %v8836, 0.0
        %v9177 = vmax.f32 %v8838, 0.0
        %v9178 = vmax.f32 %v8918, 0.0
        %v9179 = vmax.f32 %v8920, 0.0
        %v9180 = vmax.f32 %v9000, 0.0
        %v9181 = vmax.f32 %v9002, 0.0
        %v9182 = vmax.f32 %v9082, 0.0
        %v9183 = vmax.f32 %v9084, 0.0
        %v9184 = vmax.f32 %v9164, 0.0
        %v9185 = vmax.f32 %v9166, 0.0
        %v9186 = vpack.c.bf16 %v9170, %v9170
        %v9187 = vpack.c.bf16 %v9171, %v9171
        %v9188 = vpack.c.bf16 %v9172, %v9172
        %v9189 = vpack.c.bf16 %v9173, %v9173
        %v9190 = vpack.c.bf16 %v9174, %v9174
        %v9191 = vpack.c.bf16 %v9175, %v9175
        %v9192 = vpack.c.bf16 %v9176, %v9176
        %v9193 = vpack.c.bf16 %v9177, %v9177
        %v9194 = vpack.c.bf16 %v9178, %v9178
        %v9195 = vpack.c.bf16 %v9179, %v9179
        %v9196 = vpack.c.bf16 %v9180, %v9180
        %v9197 = vpack.c.bf16 %v9181, %v9181
        %v9198 = vpack.c.bf16 %v9182, %v9182
        %v9199 = vpack.c.bf16 %v9183, %v9183
        %v9200 = vpack.c.bf16 %v9184, %v9184
        %v9201 = vpack.c.bf16 %v9185, %v9185
        %v9202 = vld [vmem:[%s11] sm:$0xff]
        %v9203 = vld [vmem:[%s11 + $0x8] sm:$0xff]
        %v9204 = vld [vmem:[%s11 + $0x10] sm:$0xff]
        %v9205 = vld [vmem:[%s11 + $0x18] sm:$0xff]
        %v9206 = vld [vmem:[%s11 + $0x20] sm:$0xff]
        %v9207 = vld [vmem:[%s11 + $0x28] sm:$0xff]
        %v9208 = vld [vmem:[%s11 + $0x30] sm:$0xff]
        %v9209 = vld [vmem:[%s11 + $0x38] sm:$0xff]
        %v9210 = vld [vmem:[%s11 + $0x40] sm:$0xff]
        %v9211 = vld [vmem:[%s11 + $0x48] sm:$0xff]
        %v9212 = vld [vmem:[%s11 + $0x50] sm:$0xff]
        %v9213 = vld [vmem:[%s11 + $0x58] sm:$0xff]
        %v9214 = vld [vmem:[%s11 + $0x60] sm:$0xff]
        %v9215 = vld [vmem:[%s11 + $0x68] sm:$0xff]
        %v9216 = vld [vmem:[%s11 + $0x70] sm:$0xff]
        %v9217 = vld [vmem:[%s11 + $0x78] sm:$0xff]
        %v9218 = vld [vmem:[%s11 + $0x80] sm:$0xff]
        %v9219 = vld [vmem:[%s11 + $0x88] sm:$0xff]
        %v9220 = vld [vmem:[%s11 + $0x90] sm:$0xff]
        %v9221 = vld [vmem:[%s11 + $0x98] sm:$0xff]
        %v9222 = vld [vmem:[%s11 + $0xa0] sm:$0xff]
        %v9223 = vld [vmem:[%s11 + $0xa8] sm:$0xff]
        %v9224 = vld [vmem:[%s11 + $0xb0] sm:$0xff]
        %v9225 = vld [vmem:[%s11 + $0xb8] sm:$0xff]
        %v9226 = vld [vmem:[%s11 + $0xc0] sm:$0xff]
        %v9227 = vld [vmem:[%s11 + $0xc8] sm:$0xff]
        %v9228 = vld [vmem:[%s11 + $0xd0] sm:$0xff]
        %v9229 = vld [vmem:[%s11 + $0xd8] sm:$0xff]
        %v9230 = vld [vmem:[%s11 + $0xe0] sm:$0xff]
        %v9231 = vld [vmem:[%s11 + $0xe8] sm:$0xff]
        %v9232 = vld [vmem:[%s11 + $0xf0] sm:$0xff]
        %v9233 = vld [vmem:[%s11 + $0xf8] sm:$0xff]
        %v9234 = vld [vmem:[%s11 + $0x100] sm:$0xff]
        %v9235 = vld [vmem:[%s11 + $0x108] sm:$0xff]
        %v9236 = vld [vmem:[%s11 + $0x110] sm:$0xff]
        %v9237 = vld [vmem:[%s11 + $0x118] sm:$0xff]
        %v9238 = vld [vmem:[%s11 + $0x120] sm:$0xff]
        %v9239 = vld [vmem:[%s11 + $0x128] sm:$0xff]
        %v9240 = vld [vmem:[%s11 + $0x130] sm:$0xff]
        %v9241 = vld [vmem:[%s11 + $0x138] sm:$0xff]
        %v9242 = vld [vmem:[%s11 + $0x140] sm:$0xff]
        %v9243 = vld [vmem:[%s11 + $0x148] sm:$0xff]
        %v9244 = vld [vmem:[%s11 + $0x150] sm:$0xff]
        %v9245 = vld [vmem:[%s11 + $0x158] sm:$0xff]
        %v9246 = vld [vmem:[%s11 + $0x160] sm:$0xff]
        %v9247 = vld [vmem:[%s11 + $0x168] sm:$0xff]
        %v9248 = vld [vmem:[%s11 + $0x170] sm:$0xff]
        %v9249 = vld [vmem:[%s11 + $0x178] sm:$0xff]
        %v9250 = vld [vmem:[%s11 + $0x180] sm:$0xff]
        %v9251 = vld [vmem:[%s11 + $0x188] sm:$0xff]
        %v9252 = vld [vmem:[%s11 + $0x190] sm:$0xff]
        %v9253 = vld [vmem:[%s11 + $0x198] sm:$0xff]
        %v9254 = vld [vmem:[%s11 + $0x1a0] sm:$0xff]
        %v9255 = vld [vmem:[%s11 + $0x1a8] sm:$0xff]
        %v9256 = vld [vmem:[%s11 + $0x1b0] sm:$0xff]
        %v9257 = vld [vmem:[%s11 + $0x1b8] sm:$0xff]
        %v9258 = vld [vmem:[%s11 + $0x1c0] sm:$0xff]
        %v9259 = vld [vmem:[%s11 + $0x1c8] sm:$0xff]
        %v9260 = vld [vmem:[%s11 + $0x1d0] sm:$0xff]
        %v9261 = vld [vmem:[%s11 + $0x1d8] sm:$0xff]
        %v9262 = vld [vmem:[%s11 + $0x1e0] sm:$0xff]
        %v9263 = vld [vmem:[%s11 + $0x1e8] sm:$0xff]
        %v9264 = vld [vmem:[%s11 + $0x1f0] sm:$0xff]
        %v9265 = vld [vmem:[%s11 + $0x1f8] sm:$0xff]
        %v9266 = vld [vmem:[%s11 + $0x200] sm:$0xff]
        %v9267 = vld [vmem:[%s11 + $0x208] sm:$0xff]
        %v9268 = vld [vmem:[%s11 + $0x210] sm:$0xff]
        %v9269 = vld [vmem:[%s11 + $0x218] sm:$0xff]
        %v9270 = vld [vmem:[%s11 + $0x220] sm:$0xff]
        %v9271 = vld [vmem:[%s11 + $0x228] sm:$0xff]
        %v9272 = vld [vmem:[%s11 + $0x230] sm:$0xff]
        %v9273 = vld [vmem:[%s11 + $0x238] sm:$0xff]
        %v9274 = vld [vmem:[%s11 + $0x240] sm:$0xff]
        %v9275 = vld [vmem:[%s11 + $0x248] sm:$0xff]
        %v9276 = vld [vmem:[%s11 + $0x250] sm:$0xff]
        %v9277 = vld [vmem:[%s11 + $0x258] sm:$0xff]
        %v9278 = vld [vmem:[%s11 + $0x260] sm:$0xff]
        %v9279 = vld [vmem:[%s11 + $0x268] sm:$0xff]
        %v9280 = vld [vmem:[%s11 + $0x270] sm:$0xff]
        %v9281 = vld [vmem:[%s11 + $0x278] sm:$0xff]
        %v9282 = vld [vmem:[%s11 + $0x280] sm:$0xff]
        %v9283 = vld [vmem:[%s11 + $0x288] sm:$0xff]
        %v9284 = vld [vmem:[%s11 + $0x290] sm:$0xff]
        %v9285 = vld [vmem:[%s11 + $0x298] sm:$0xff]
        %v9286 = vld [vmem:[%s11 + $0x2a0] sm:$0xff]
        %v9287 = vld [vmem:[%s11 + $0x2a8] sm:$0xff]
        %v9288 = vld [vmem:[%s11 + $0x2b0] sm:$0xff]
        %v9289 = vld [vmem:[%s11 + $0x2b8] sm:$0xff]
        %v9290 = vld [vmem:[%s11 + $0x2c0] sm:$0xff]
        %v9291 = vld [vmem:[%s11 + $0x2c8] sm:$0xff]
        %v9292 = vld [vmem:[%s11 + $0x2d0] sm:$0xff]
        %v9293 = vld [vmem:[%s11 + $0x2d8] sm:$0xff]
        %v9294 = vld [vmem:[%s11 + $0x2e0] sm:$0xff]
        %v9295 = vld [vmem:[%s11 + $0x2e8] sm:$0xff]
        %v9296 = vld [vmem:[%s11 + $0x2f0] sm:$0xff]
        %v9297 = vld [vmem:[%s11 + $0x2f8] sm:$0xff]
        %v9298 = vld [vmem:[%s11 + $0x300] sm:$0xff]
        %v9299 = vld [vmem:[%s11 + $0x308] sm:$0xff]
        %v9300 = vld [vmem:[%s11 + $0x310] sm:$0xff]
        %v9301 = vld [vmem:[%s11 + $0x318] sm:$0xff]
        %v9302 = vld [vmem:[%s11 + $0x320] sm:$0xff]
        %v9303 = vld [vmem:[%s11 + $0x328] sm:$0xff]
        %v9304 = vld [vmem:[%s11 + $0x330] sm:$0xff]
        %v9305 = vld [vmem:[%s11 + $0x338] sm:$0xff]
        %v9306 = vld [vmem:[%s11 + $0x340] sm:$0xff]
        %v9307 = vld [vmem:[%s11 + $0x348] sm:$0xff]
        %v9308 = vld [vmem:[%s11 + $0x350] sm:$0xff]
        %v9309 = vld [vmem:[%s11 + $0x358] sm:$0xff]
        %v9310 = vld [vmem:[%s11 + $0x360] sm:$0xff]
        %v9311 = vld [vmem:[%s11 + $0x368] sm:$0xff]
        %v9312 = vld [vmem:[%s11 + $0x370] sm:$0xff]
        %v9313 = vld [vmem:[%s11 + $0x378] sm:$0xff]
        %v9314 = vld [vmem:[%s11 + $0x380] sm:$0xff]
        %v9315 = vld [vmem:[%s11 + $0x388] sm:$0xff]
        %v9316 = vld [vmem:[%s11 + $0x390] sm:$0xff]
        %v9317 = vld [vmem:[%s11 + $0x398] sm:$0xff]
        %v9318 = vld [vmem:[%s11 + $0x3a0] sm:$0xff]
        %v9319 = vld [vmem:[%s11 + $0x3a8] sm:$0xff]
        %v9320 = vld [vmem:[%s11 + $0x3b0] sm:$0xff]
        %v9321 = vld [vmem:[%s11 + $0x3b8] sm:$0xff]
        %v9322 = vld [vmem:[%s11 + $0x3c0] sm:$0xff]
        %v9323 = vld [vmem:[%s11 + $0x3c8] sm:$0xff]
        %v9324 = vld [vmem:[%s11 + $0x3d0] sm:$0xff]
        %v9325 = vld [vmem:[%s11 + $0x3d8] sm:$0xff]
        %v9326 = vld [vmem:[%s11 + $0x3e0] sm:$0xff]
        %v9327 = vld [vmem:[%s11 + $0x3e8] sm:$0xff]
        %v9328 = vld [vmem:[%s11 + $0x3f0] sm:$0xff]
        %v9329 = vld [vmem:[%s11 + $0x3f8] sm:$0xff]
        %v9330 = vld [vmem:[%s11 + $0x400] sm:$0xff]
        %v9331 = vld [vmem:[%s11 + $0x408] sm:$0xff]
        %v9332 = vld [vmem:[%s11 + $0x410] sm:$0xff]
        %v9333 = vld [vmem:[%s11 + $0x418] sm:$0xff]
        %v9334 = vld [vmem:[%s11 + $0x420] sm:$0xff]
        %v9335 = vld [vmem:[%s11 + $0x428] sm:$0xff]
        %v9336 = vld [vmem:[%s11 + $0x430] sm:$0xff]
        %v9337 = vld [vmem:[%s11 + $0x438] sm:$0xff]
        %v9338 = vld [vmem:[%s11 + $0x440] sm:$0xff]
        %v9339 = vld [vmem:[%s11 + $0x448] sm:$0xff]
        %v9340 = vld [vmem:[%s11 + $0x450] sm:$0xff]
        %v9341 = vld [vmem:[%s11 + $0x458] sm:$0xff]
        %v9342 = vld [vmem:[%s11 + $0x460] sm:$0xff]
        %v9343 = vld [vmem:[%s11 + $0x468] sm:$0xff]
        %v9344 = vld [vmem:[%s11 + $0x470] sm:$0xff]
        %v9345 = vld [vmem:[%s11 + $0x478] sm:$0xff]
        %v9346 = vld [vmem:[%s11 + $0x480] sm:$0xff]
        %v9347 = vld [vmem:[%s11 + $0x488] sm:$0xff]
        %v9348 = vld [vmem:[%s11 + $0x490] sm:$0xff]
        %v9349 = vld [vmem:[%s11 + $0x498] sm:$0xff]
        %v9350 = vld [vmem:[%s11 + $0x4a0] sm:$0xff]
        %v9351 = vld [vmem:[%s11 + $0x4a8] sm:$0xff]
        %v9352 = vld [vmem:[%s11 + $0x4b0] sm:$0xff]
        %v9353 = vld [vmem:[%s11 + $0x4b8] sm:$0xff]
        %v9354 = vld [vmem:[%s11 + $0x4c0] sm:$0xff]
        %v9355 = vld [vmem:[%s11 + $0x4c8] sm:$0xff]
        %v9356 = vld [vmem:[%s11 + $0x4d0] sm:$0xff]
        %v9357 = vld [vmem:[%s11 + $0x4d8] sm:$0xff]
        %v9358 = vld [vmem:[%s11 + $0x4e0] sm:$0xff]
        %v9359 = vld [vmem:[%s11 + $0x4e8] sm:$0xff]
        %v9360 = vld [vmem:[%s11 + $0x4f0] sm:$0xff]
        %v9361 = vld [vmem:[%s11 + $0x4f8] sm:$0xff]
        %v9362 = vld [vmem:[%s11 + $0x500] sm:$0xff]
        %v9363 = vld [vmem:[%s11 + $0x508] sm:$0xff]
        %v9364 = vld [vmem:[%s11 + $0x510] sm:$0xff]
        %v9365 = vld [vmem:[%s11 + $0x518] sm:$0xff]
        %v9366 = vld [vmem:[%s11 + $0x520] sm:$0xff]
        %v9367 = vld [vmem:[%s11 + $0x528] sm:$0xff]
        %v9368 = vld [vmem:[%s11 + $0x530] sm:$0xff]
        %v9369 = vld [vmem:[%s11 + $0x538] sm:$0xff]
        %v9370 = vld [vmem:[%s11 + $0x540] sm:$0xff]
        %v9371 = vld [vmem:[%s11 + $0x548] sm:$0xff]
        %v9372 = vld [vmem:[%s11 + $0x550] sm:$0xff]
        %v9373 = vld [vmem:[%s11 + $0x558] sm:$0xff]
        %v9374 = vld [vmem:[%s11 + $0x560] sm:$0xff]
        %v9375 = vld [vmem:[%s11 + $0x568] sm:$0xff]
        %v9376 = vld [vmem:[%s11 + $0x570] sm:$0xff]
        %v9377 = vld [vmem:[%s11 + $0x578] sm:$0xff]
        %v9378 = vld [vmem:[%s11 + $0x580] sm:$0xff]
        %v9379 = vld [vmem:[%s11 + $0x588] sm:$0xff]
        %v9380 = vld [vmem:[%s11 + $0x590] sm:$0xff]
        %v9381 = vld [vmem:[%s11 + $0x598] sm:$0xff]
        %v9382 = vld [vmem:[%s11 + $0x5a0] sm:$0xff]
        %v9383 = vld [vmem:[%s11 + $0x5a8] sm:$0xff]
        %v9384 = vld [vmem:[%s11 + $0x5b0] sm:$0xff]
        %v9385 = vld [vmem:[%s11 + $0x5b8] sm:$0xff]
        %v9386 = vld [vmem:[%s11 + $0x5c0] sm:$0xff]
        %v9387 = vld [vmem:[%s11 + $0x5c8] sm:$0xff]
        %v9388 = vld [vmem:[%s11 + $0x5d0] sm:$0xff]
        %v9389 = vld [vmem:[%s11 + $0x5d8] sm:$0xff]
        %v9390 = vld [vmem:[%s11 + $0x5e0] sm:$0xff]
        %v9391 = vld [vmem:[%s11 + $0x5e8] sm:$0xff]
        %v9392 = vld [vmem:[%s11 + $0x5f0] sm:$0xff]
        %v9393 = vld [vmem:[%s11 + $0x5f8] sm:$0xff]
        %v9394 = vld [vmem:[%s11 + $0x600] sm:$0xff]
        %v9395 = vld [vmem:[%s11 + $0x608] sm:$0xff]
        %v9396 = vld [vmem:[%s11 + $0x610] sm:$0xff]
        %v9397 = vld [vmem:[%s11 + $0x618] sm:$0xff]
        %v9398 = vld [vmem:[%s11 + $0x620] sm:$0xff]
        %v9399 = vld [vmem:[%s11 + $0x628] sm:$0xff]
        %v9400 = vld [vmem:[%s11 + $0x630] sm:$0xff]
        %v9401 = vld [vmem:[%s11 + $0x638] sm:$0xff]
        %v9402 = vld [vmem:[%s11 + $0x640] sm:$0xff]
        %v9403 = vld [vmem:[%s11 + $0x648] sm:$0xff]
        %v9404 = vld [vmem:[%s11 + $0x650] sm:$0xff]
        %v9405 = vld [vmem:[%s11 + $0x658] sm:$0xff]
        %v9406 = vld [vmem:[%s11 + $0x660] sm:$0xff]
        %v9407 = vld [vmem:[%s11 + $0x668] sm:$0xff]
        %v9408 = vld [vmem:[%s11 + $0x670] sm:$0xff]
        %v9409 = vld [vmem:[%s11 + $0x678] sm:$0xff]
        %v9410 = vld [vmem:[%s11 + $0x680] sm:$0xff]
        %v9411 = vld [vmem:[%s11 + $0x688] sm:$0xff]
        %v9412 = vld [vmem:[%s11 + $0x690] sm:$0xff]
        %v9413 = vld [vmem:[%s11 + $0x698] sm:$0xff]
        %v9414 = vld [vmem:[%s11 + $0x6a0] sm:$0xff]
        %v9415 = vld [vmem:[%s11 + $0x6a8] sm:$0xff]
        %v9416 = vld [vmem:[%s11 + $0x6b0] sm:$0xff]
        %v9417 = vld [vmem:[%s11 + $0x6b8] sm:$0xff]
        %v9418 = vld [vmem:[%s11 + $0x6c0] sm:$0xff]
        %v9419 = vld [vmem:[%s11 + $0x6c8] sm:$0xff]
        %v9420 = vld [vmem:[%s11 + $0x6d0] sm:$0xff]
        %v9421 = vld [vmem:[%s11 + $0x6d8] sm:$0xff]
        %v9422 = vld [vmem:[%s11 + $0x6e0] sm:$0xff]
        %v9423 = vld [vmem:[%s11 + $0x6e8] sm:$0xff]
        %v9424 = vld [vmem:[%s11 + $0x6f0] sm:$0xff]
        %v9425 = vld [vmem:[%s11 + $0x6f8] sm:$0xff]
        %v9426 = vld [vmem:[%s11 + $0x700] sm:$0xff]
        %v9427 = vld [vmem:[%s11 + $0x708] sm:$0xff]
        %v9428 = vld [vmem:[%s11 + $0x710] sm:$0xff]
        %v9429 = vld [vmem:[%s11 + $0x718] sm:$0xff]
        %v9430 = vld [vmem:[%s11 + $0x720] sm:$0xff]
        %v9431 = vld [vmem:[%s11 + $0x728] sm:$0xff]
        %v9432 = vld [vmem:[%s11 + $0x730] sm:$0xff]
        %v9433 = vld [vmem:[%s11 + $0x738] sm:$0xff]
        %v9434 = vld [vmem:[%s11 + $0x740] sm:$0xff]
        %v9435 = vld [vmem:[%s11 + $0x748] sm:$0xff]
        %v9436 = vld [vmem:[%s11 + $0x750] sm:$0xff]
        %v9437 = vld [vmem:[%s11 + $0x758] sm:$0xff]
        %v9438 = vld [vmem:[%s11 + $0x760] sm:$0xff]
        %v9439 = vld [vmem:[%s11 + $0x768] sm:$0xff]
        %v9440 = vld [vmem:[%s11 + $0x770] sm:$0xff]
        %v9441 = vld [vmem:[%s11 + $0x778] sm:$0xff]
        %v9442 = vld [vmem:[%s11 + $0x780] sm:$0xff]
        %v9443 = vld [vmem:[%s11 + $0x788] sm:$0xff]
        %v9444 = vld [vmem:[%s11 + $0x790] sm:$0xff]
        %v9445 = vld [vmem:[%s11 + $0x798] sm:$0xff]
        %v9446 = vld [vmem:[%s11 + $0x7a0] sm:$0xff]
        %v9447 = vld [vmem:[%s11 + $0x7a8] sm:$0xff]
        %v9448 = vld [vmem:[%s11 + $0x7b0] sm:$0xff]
        %v9449 = vld [vmem:[%s11 + $0x7b8] sm:$0xff]
        %v9450 = vld [vmem:[%s11 + $0x7c0] sm:$0xff]
        %v9451 = vld [vmem:[%s11 + $0x7c8] sm:$0xff]
        %v9452 = vld [vmem:[%s11 + $0x7d0] sm:$0xff]
        %v9453 = vld [vmem:[%s11 + $0x7d8] sm:$0xff]
        %v9454 = vld [vmem:[%s11 + $0x7e0] sm:$0xff]
        %v9455 = vld [vmem:[%s11 + $0x7e8] sm:$0xff]
        %v9456 = vld [vmem:[%s11 + $0x7f0] sm:$0xff]
        %v9457 = vld [vmem:[%s11 + $0x7f8] sm:$0xff]
        %v9458 = vld [vmem:[%s11 + $0x800] sm:$0xff]
        %v9459 = vld [vmem:[%s11 + $0x808] sm:$0xff]
        %v9460 = vld [vmem:[%s11 + $0x810] sm:$0xff]
        %v9461 = vld [vmem:[%s11 + $0x818] sm:$0xff]
        %v9462 = vld [vmem:[%s11 + $0x820] sm:$0xff]
        %v9463 = vld [vmem:[%s11 + $0x828] sm:$0xff]
        %v9464 = vld [vmem:[%s11 + $0x830] sm:$0xff]
        %v9465 = vld [vmem:[%s11 + $0x838] sm:$0xff]
        %v9466 = vld [vmem:[%s11 + $0x840] sm:$0xff]
        %v9467 = vld [vmem:[%s11 + $0x848] sm:$0xff]
        %v9468 = vld [vmem:[%s11 + $0x850] sm:$0xff]
        %v9469 = vld [vmem:[%s11 + $0x858] sm:$0xff]
        %v9470 = vld [vmem:[%s11 + $0x860] sm:$0xff]
        %v9471 = vld [vmem:[%s11 + $0x868] sm:$0xff]
        %v9472 = vld [vmem:[%s11 + $0x870] sm:$0xff]
        %v9473 = vld [vmem:[%s11 + $0x878] sm:$0xff]
        %v9474 = vld [vmem:[%s11 + $0x880] sm:$0xff]
        %v9475 = vld [vmem:[%s11 + $0x888] sm:$0xff]
        %v9476 = vld [vmem:[%s11 + $0x890] sm:$0xff]
        %v9477 = vld [vmem:[%s11 + $0x898] sm:$0xff]
        %v9478 = vld [vmem:[%s11 + $0x8a0] sm:$0xff]
        %v9479 = vld [vmem:[%s11 + $0x8a8] sm:$0xff]
        %v9480 = vld [vmem:[%s11 + $0x8b0] sm:$0xff]
        %v9481 = vld [vmem:[%s11 + $0x8b8] sm:$0xff]
        %v9482 = vld [vmem:[%s11 + $0x8c0] sm:$0xff]
        %v9483 = vld [vmem:[%s11 + $0x8c8] sm:$0xff]
        %v9484 = vld [vmem:[%s11 + $0x8d0] sm:$0xff]
        %v9485 = vld [vmem:[%s11 + $0x8d8] sm:$0xff]
        %v9486 = vld [vmem:[%s11 + $0x8e0] sm:$0xff]
        %v9487 = vld [vmem:[%s11 + $0x8e8] sm:$0xff]
        %v9488 = vld [vmem:[%s11 + $0x8f0] sm:$0xff]
        %v9489 = vld [vmem:[%s11 + $0x8f8] sm:$0xff]
        %v9490 = vld [vmem:[%s11 + $0x900] sm:$0xff]
        %v9491 = vld [vmem:[%s11 + $0x908] sm:$0xff]
        %v9492 = vld [vmem:[%s11 + $0x910] sm:$0xff]
        %v9493 = vld [vmem:[%s11 + $0x918] sm:$0xff]
        %v9494 = vld [vmem:[%s11 + $0x920] sm:$0xff]
        %v9495 = vld [vmem:[%s11 + $0x928] sm:$0xff]
        %v9496 = vld [vmem:[%s11 + $0x930] sm:$0xff]
        %v9497 = vld [vmem:[%s11 + $0x938] sm:$0xff]
        %v9498 = vld [vmem:[%s11 + $0x940] sm:$0xff]
        %v9499 = vld [vmem:[%s11 + $0x948] sm:$0xff]
        %v9500 = vld [vmem:[%s11 + $0x950] sm:$0xff]
        %v9501 = vld [vmem:[%s11 + $0x958] sm:$0xff]
        %v9502 = vld [vmem:[%s11 + $0x960] sm:$0xff]
        %v9503 = vld [vmem:[%s11 + $0x968] sm:$0xff]
        %v9504 = vld [vmem:[%s11 + $0x970] sm:$0xff]
        %v9505 = vld [vmem:[%s11 + $0x978] sm:$0xff]
        %v9506 = vld [vmem:[%s11 + $0x980] sm:$0xff]
        %v9507 = vld [vmem:[%s11 + $0x988] sm:$0xff]
        %v9508 = vld [vmem:[%s11 + $0x990] sm:$0xff]
        %v9509 = vld [vmem:[%s11 + $0x998] sm:$0xff]
        %v9510 = vld [vmem:[%s11 + $0x9a0] sm:$0xff]
        %v9511 = vld [vmem:[%s11 + $0x9a8] sm:$0xff]
        %v9512 = vld [vmem:[%s11 + $0x9b0] sm:$0xff]
        %v9513 = vld [vmem:[%s11 + $0x9b8] sm:$0xff]
        %v9514 = vld [vmem:[%s11 + $0x9c0] sm:$0xff]
        %v9515 = vld [vmem:[%s11 + $0x9c8] sm:$0xff]
        %v9516 = vld [vmem:[%s11 + $0x9d0] sm:$0xff]
        %v9517 = vld [vmem:[%s11 + $0x9d8] sm:$0xff]
        %v9518 = vld [vmem:[%s11 + $0x9e0] sm:$0xff]
        %v9519 = vld [vmem:[%s11 + $0x9e8] sm:$0xff]
        %v9520 = vld [vmem:[%s11 + $0x9f0] sm:$0xff]
        %v9521 = vld [vmem:[%s11 + $0x9f8] sm:$0xff]
        %v9522 = vld [vmem:[%s11 + $0xa00] sm:$0xff]
        %v9523 = vld [vmem:[%s11 + $0xa08] sm:$0xff]
        %v9524 = vld [vmem:[%s11 + $0xa10] sm:$0xff]
        %v9525 = vld [vmem:[%s11 + $0xa18] sm:$0xff]
        %v9526 = vld [vmem:[%s11 + $0xa20] sm:$0xff]
        %v9527 = vld [vmem:[%s11 + $0xa28] sm:$0xff]
        %v9528 = vld [vmem:[%s11 + $0xa30] sm:$0xff]
        %v9529 = vld [vmem:[%s11 + $0xa38] sm:$0xff]
        %v9530 = vld [vmem:[%s11 + $0xa40] sm:$0xff]
        %v9531 = vld [vmem:[%s11 + $0xa48] sm:$0xff]
        %v9532 = vld [vmem:[%s11 + $0xa50] sm:$0xff]
        %v9533 = vld [vmem:[%s11 + $0xa58] sm:$0xff]
        %v9534 = vld [vmem:[%s11 + $0xa60] sm:$0xff]
        %v9535 = vld [vmem:[%s11 + $0xa68] sm:$0xff]
        %v9536 = vld [vmem:[%s11 + $0xa70] sm:$0xff]
        %v9537 = vld [vmem:[%s11 + $0xa78] sm:$0xff]
        %v9538 = vld [vmem:[%s11 + $0xa80] sm:$0xff]
        %v9539 = vld [vmem:[%s11 + $0xa88] sm:$0xff]
        %v9540 = vld [vmem:[%s11 + $0xa90] sm:$0xff]
        %v9541 = vld [vmem:[%s11 + $0xa98] sm:$0xff]
        %v9542 = vld [vmem:[%s11 + $0xaa0] sm:$0xff]
        %v9543 = vld [vmem:[%s11 + $0xaa8] sm:$0xff]
        %v9544 = vld [vmem:[%s11 + $0xab0] sm:$0xff]
        %v9545 = vld [vmem:[%s11 + $0xab8] sm:$0xff]
        %v9546 = vld [vmem:[%s11 + $0xac0] sm:$0xff]
        %v9547 = vld [vmem:[%s11 + $0xac8] sm:$0xff]
        %v9548 = vld [vmem:[%s11 + $0xad0] sm:$0xff]
        %v9549 = vld [vmem:[%s11 + $0xad8] sm:$0xff]
        %v9550 = vld [vmem:[%s11 + $0xae0] sm:$0xff]
        %v9551 = vld [vmem:[%s11 + $0xae8] sm:$0xff]
        %v9552 = vld [vmem:[%s11 + $0xaf0] sm:$0xff]
        %v9553 = vld [vmem:[%s11 + $0xaf8] sm:$0xff]
        %v9554 = vld [vmem:[%s11 + $0xb00] sm:$0xff]
        %v9555 = vld [vmem:[%s11 + $0xb08] sm:$0xff]
        %v9556 = vld [vmem:[%s11 + $0xb10] sm:$0xff]
        %v9557 = vld [vmem:[%s11 + $0xb18] sm:$0xff]
        %v9558 = vld [vmem:[%s11 + $0xb20] sm:$0xff]
        %v9559 = vld [vmem:[%s11 + $0xb28] sm:$0xff]
        %v9560 = vld [vmem:[%s11 + $0xb30] sm:$0xff]
        %v9561 = vld [vmem:[%s11 + $0xb38] sm:$0xff]
        %v9562 = vld [vmem:[%s11 + $0xb40] sm:$0xff]
        %v9563 = vld [vmem:[%s11 + $0xb48] sm:$0xff]
        %v9564 = vld [vmem:[%s11 + $0xb50] sm:$0xff]
        %v9565 = vld [vmem:[%s11 + $0xb58] sm:$0xff]
        %v9566 = vld [vmem:[%s11 + $0xb60] sm:$0xff]
        %v9567 = vld [vmem:[%s11 + $0xb68] sm:$0xff]
        %v9568 = vld [vmem:[%s11 + $0xb70] sm:$0xff]
        %v9569 = vld [vmem:[%s11 + $0xb78] sm:$0xff]
        %v9570 = vld [vmem:[%s11 + $0xb80] sm:$0xff]
        %v9571 = vld [vmem:[%s11 + $0xb88] sm:$0xff]
        %v9572 = vld [vmem:[%s11 + $0xb90] sm:$0xff]
        %v9573 = vld [vmem:[%s11 + $0xb98] sm:$0xff]
        %v9574 = vld [vmem:[%s11 + $0xba0] sm:$0xff]
        %v9575 = vld [vmem:[%s11 + $0xba8] sm:$0xff]
        %v9576 = vld [vmem:[%s11 + $0xbb0] sm:$0xff]
        %v9577 = vld [vmem:[%s11 + $0xbb8] sm:$0xff]
        %v9578 = vld [vmem:[%s11 + $0xbc0] sm:$0xff]
        %v9579 = vld [vmem:[%s11 + $0xbc8] sm:$0xff]
        %v9580 = vld [vmem:[%s11 + $0xbd0] sm:$0xff]
        %v9581 = vld [vmem:[%s11 + $0xbd8] sm:$0xff]
        %v9582 = vld [vmem:[%s11 + $0xbe0] sm:$0xff]
        %v9583 = vld [vmem:[%s11 + $0xbe8] sm:$0xff]
        %v9584 = vld [vmem:[%s11 + $0xbf0] sm:$0xff]
        %v9585 = vld [vmem:[%s11 + $0xbf8] sm:$0xff]
        %v9586 = vld [vmem:[%s11 + $0xc00] sm:$0xff]
        %v9587 = vld [vmem:[%s11 + $0xc08] sm:$0xff]
        %v9588 = vld [vmem:[%s11 + $0xc10] sm:$0xff]
        %v9589 = vld [vmem:[%s11 + $0xc18] sm:$0xff]
        %v9590 = vld [vmem:[%s11 + $0xc20] sm:$0xff]
        %v9591 = vld [vmem:[%s11 + $0xc28] sm:$0xff]
        %v9592 = vld [vmem:[%s11 + $0xc30] sm:$0xff]
        %v9593 = vld [vmem:[%s11 + $0xc38] sm:$0xff]
        %v9594 = vld [vmem:[%s11 + $0xc40] sm:$0xff]
        %v9595 = vld [vmem:[%s11 + $0xc48] sm:$0xff]
        %v9596 = vld [vmem:[%s11 + $0xc50] sm:$0xff]
        %v9597 = vld [vmem:[%s11 + $0xc58] sm:$0xff]
        %v9598 = vld [vmem:[%s11 + $0xc60] sm:$0xff]
        %v9599 = vld [vmem:[%s11 + $0xc68] sm:$0xff]
        %v9600 = vld [vmem:[%s11 + $0xc70] sm:$0xff]
        %v9601 = vld [vmem:[%s11 + $0xc78] sm:$0xff]
        %v9602 = vld [vmem:[%s11 + $0xc80] sm:$0xff]
        %v9603 = vld [vmem:[%s11 + $0xc88] sm:$0xff]
        %v9604 = vld [vmem:[%s11 + $0xc90] sm:$0xff]
        %v9605 = vld [vmem:[%s11 + $0xc98] sm:$0xff]
        %v9606 = vld [vmem:[%s11 + $0xca0] sm:$0xff]
        %v9607 = vld [vmem:[%s11 + $0xca8] sm:$0xff]
        %v9608 = vld [vmem:[%s11 + $0xcb0] sm:$0xff]
        %v9609 = vld [vmem:[%s11 + $0xcb8] sm:$0xff]
        %v9610 = vld [vmem:[%s11 + $0xcc0] sm:$0xff]
        %v9611 = vld [vmem:[%s11 + $0xcc8] sm:$0xff]
        %v9612 = vld [vmem:[%s11 + $0xcd0] sm:$0xff]
        %v9613 = vld [vmem:[%s11 + $0xcd8] sm:$0xff]
        %v9614 = vld [vmem:[%s11 + $0xce0] sm:$0xff]
        %v9615 = vld [vmem:[%s11 + $0xce8] sm:$0xff]
        %v9616 = vld [vmem:[%s11 + $0xcf0] sm:$0xff]
        %v9617 = vld [vmem:[%s11 + $0xcf8] sm:$0xff]
        %v9618 = vld [vmem:[%s11 + $0xd00] sm:$0xff]
        %v9619 = vld [vmem:[%s11 + $0xd08] sm:$0xff]
        %v9620 = vld [vmem:[%s11 + $0xd10] sm:$0xff]
        %v9621 = vld [vmem:[%s11 + $0xd18] sm:$0xff]
        %v9622 = vld [vmem:[%s11 + $0xd20] sm:$0xff]
        %v9623 = vld [vmem:[%s11 + $0xd28] sm:$0xff]
        %v9624 = vld [vmem:[%s11 + $0xd30] sm:$0xff]
        %v9625 = vld [vmem:[%s11 + $0xd38] sm:$0xff]
        %v9626 = vld [vmem:[%s11 + $0xd40] sm:$0xff]
        %v9627 = vld [vmem:[%s11 + $0xd48] sm:$0xff]
        %v9628 = vld [vmem:[%s11 + $0xd50] sm:$0xff]
        %v9629 = vld [vmem:[%s11 + $0xd58] sm:$0xff]
        %v9630 = vld [vmem:[%s11 + $0xd60] sm:$0xff]
        %v9631 = vld [vmem:[%s11 + $0xd68] sm:$0xff]
        %v9632 = vld [vmem:[%s11 + $0xd70] sm:$0xff]
        %v9633 = vld [vmem:[%s11 + $0xd78] sm:$0xff]
        %v9634 = vld [vmem:[%s11 + $0xd80] sm:$0xff]
        %v9635 = vld [vmem:[%s11 + $0xd88] sm:$0xff]
        %v9636 = vld [vmem:[%s11 + $0xd90] sm:$0xff]
        %v9637 = vld [vmem:[%s11 + $0xd98] sm:$0xff]
        %v9638 = vld [vmem:[%s11 + $0xda0] sm:$0xff]
        %v9639 = vld [vmem:[%s11 + $0xda8] sm:$0xff]
        %v9640 = vld [vmem:[%s11 + $0xdb0] sm:$0xff]
        %v9641 = vld [vmem:[%s11 + $0xdb8] sm:$0xff]
        %v9642 = vld [vmem:[%s11 + $0xdc0] sm:$0xff]
        %v9643 = vld [vmem:[%s11 + $0xdc8] sm:$0xff]
        %v9644 = vld [vmem:[%s11 + $0xdd0] sm:$0xff]
        %v9645 = vld [vmem:[%s11 + $0xdd8] sm:$0xff]
        %v9646 = vld [vmem:[%s11 + $0xde0] sm:$0xff]
        %v9647 = vld [vmem:[%s11 + $0xde8] sm:$0xff]
        %v9648 = vld [vmem:[%s11 + $0xdf0] sm:$0xff]
        %v9649 = vld [vmem:[%s11 + $0xdf8] sm:$0xff]
        %v9650 = vld [vmem:[%s11 + $0xe00] sm:$0xff]
        %v9651 = vld [vmem:[%s11 + $0xe08] sm:$0xff]
        %v9652 = vld [vmem:[%s11 + $0xe10] sm:$0xff]
        %v9653 = vld [vmem:[%s11 + $0xe18] sm:$0xff]
        %v9654 = vld [vmem:[%s11 + $0xe20] sm:$0xff]
        %v9655 = vld [vmem:[%s11 + $0xe28] sm:$0xff]
        %v9656 = vld [vmem:[%s11 + $0xe30] sm:$0xff]
        %v9657 = vld [vmem:[%s11 + $0xe38] sm:$0xff]
        %v9658 = vld [vmem:[%s11 + $0xe40] sm:$0xff]
        %v9659 = vld [vmem:[%s11 + $0xe48] sm:$0xff]
        %v9660 = vld [vmem:[%s11 + $0xe50] sm:$0xff]
        %v9661 = vld [vmem:[%s11 + $0xe58] sm:$0xff]
        %v9662 = vld [vmem:[%s11 + $0xe60] sm:$0xff]
        %v9663 = vld [vmem:[%s11 + $0xe68] sm:$0xff]
        %v9664 = vld [vmem:[%s11 + $0xe70] sm:$0xff]
        %v9665 = vld [vmem:[%s11 + $0xe78] sm:$0xff]
        %v9666 = vld [vmem:[%s11 + $0xe80] sm:$0xff]
        %v9667 = vld [vmem:[%s11 + $0xe88] sm:$0xff]
        %v9668 = vld [vmem:[%s11 + $0xe90] sm:$0xff]
        %v9669 = vld [vmem:[%s11 + $0xe98] sm:$0xff]
        %v9670 = vld [vmem:[%s11 + $0xea0] sm:$0xff]
        %v9671 = vld [vmem:[%s11 + $0xea8] sm:$0xff]
        %v9672 = vld [vmem:[%s11 + $0xeb0] sm:$0xff]
        %v9673 = vld [vmem:[%s11 + $0xeb8] sm:$0xff]
        %v9674 = vld [vmem:[%s11 + $0xec0] sm:$0xff]
        %v9675 = vld [vmem:[%s11 + $0xec8] sm:$0xff]
        %v9676 = vld [vmem:[%s11 + $0xed0] sm:$0xff]
        %v9677 = vld [vmem:[%s11 + $0xed8] sm:$0xff]
        %v9678 = vld [vmem:[%s11 + $0xee0] sm:$0xff]
        %v9679 = vld [vmem:[%s11 + $0xee8] sm:$0xff]
        %v9680 = vld [vmem:[%s11 + $0xef0] sm:$0xff]
        %v9681 = vld [vmem:[%s11 + $0xef8] sm:$0xff]
        %v9682 = vld [vmem:[%s11 + $0xf00] sm:$0xff]
        %v9683 = vld [vmem:[%s11 + $0xf08] sm:$0xff]
        %v9684 = vld [vmem:[%s11 + $0xf10] sm:$0xff]
        %v9685 = vld [vmem:[%s11 + $0xf18] sm:$0xff]
        %v9686 = vld [vmem:[%s11 + $0xf20] sm:$0xff]
        %v9687 = vld [vmem:[%s11 + $0xf28] sm:$0xff]
        %v9688 = vld [vmem:[%s11 + $0xf30] sm:$0xff]
        %v9689 = vld [vmem:[%s11 + $0xf38] sm:$0xff]
        %v9690 = vld [vmem:[%s11 + $0xf40] sm:$0xff]
        %v9691 = vld [vmem:[%s11 + $0xf48] sm:$0xff]
        %v9692 = vld [vmem:[%s11 + $0xf50] sm:$0xff]
        %v9693 = vld [vmem:[%s11 + $0xf58] sm:$0xff]
        %v9694 = vld [vmem:[%s11 + $0xf60] sm:$0xff]
        %v9695 = vld [vmem:[%s11 + $0xf68] sm:$0xff]
        %v9696 = vld [vmem:[%s11 + $0xf70] sm:$0xff]
        %v9697 = vld [vmem:[%s11 + $0xf78] sm:$0xff]
        %v9698 = vld [vmem:[%s11 + $0xf80] sm:$0xff]
        %v9699 = vld [vmem:[%s11 + $0xf88] sm:$0xff]
        %v9700 = vld [vmem:[%s11 + $0xf90] sm:$0xff]
        %v9701 = vld [vmem:[%s11 + $0xf98] sm:$0xff]
        %v9702 = vld [vmem:[%s11 + $0xfa0] sm:$0xff]
        %v9703 = vld [vmem:[%s11 + $0xfa8] sm:$0xff]
        %v9704 = vld [vmem:[%s11 + $0xfb0] sm:$0xff]
        %v9705 = vld [vmem:[%s11 + $0xfb8] sm:$0xff]
        %v9706 = vld [vmem:[%s11 + $0xfc0] sm:$0xff]
        %v9707 = vld [vmem:[%s11 + $0xfc8] sm:$0xff]
        %v9708 = vld [vmem:[%s11 + $0xfd0] sm:$0xff]
        %v9709 = vld [vmem:[%s11 + $0xfd8] sm:$0xff]
        %v9710 = vld [vmem:[%s11 + $0xfe0] sm:$0xff]
        %v9711 = vld [vmem:[%s11 + $0xfe8] sm:$0xff]
        %v9712 = vld [vmem:[%s11 + $0xff0] sm:$0xff]
        %v9713 = vld [vmem:[%s11 + $0xff8] sm:$0xff]
        %v9714 = vld [vmem:[%s12] sm:$0xf]
        %v9716 = vlaneseq
        %v9717 = vshrl.u32 %v9716, 7
        %v9718 = vsub.s32 0, %v9717
        %v9719 = vrot.slane %v9714, %v9718
        %v9720 = vlaneseq
        %v9721 = vshrl.u32 %v9720, 7
        %v9722 = vsub.s32 1, %v9721
        %v9723 = vrot.slane %v9714, %v9722
        %v9724 = vlaneseq
        %v9725 = vshrl.u32 %v9724, 7
        %v9726 = vsub.s32 2, %v9725
        %v9727 = vrot.slane %v9714, %v9726
        %v9728 = vlaneseq
        %v9729 = vshrl.u32 %v9728, 7
        %v9730 = vsub.s32 3, %v9729
        %v9731 = vrot.slane %v9714, %v9730
        %v10248 = vunpack.c.l.b16 %v9202
        %v10249 = vunpack.c.h.b16 %v9202
        %v10250 = vunpack.c.l.b16 %v9203
        %v10251 = vunpack.c.h.b16 %v9203
        %v10252 = vunpack.c.l.b16 %v9204
        %v10253 = vunpack.c.h.b16 %v9204
        %v10254 = vunpack.c.l.b16 %v9205
        %v10255 = vunpack.c.h.b16 %v9205
        %v10256 = vunpack.c.l.b16 %v9206
        %v10257 = vunpack.c.h.b16 %v9206
        %v10258 = vunpack.c.l.b16 %v9207
        %v10259 = vunpack.c.h.b16 %v9207
        %v10260 = vunpack.c.l.b16 %v9208
        %v10261 = vunpack.c.h.b16 %v9208
        %v10262 = vunpack.c.l.b16 %v9209
        %v10263 = vunpack.c.h.b16 %v9209
        %v10264 = vunpack.c.l.b16 %v9210
        %v10265 = vunpack.c.h.b16 %v9210
        %v10266 = vunpack.c.l.b16 %v9211
        %v10267 = vunpack.c.h.b16 %v9211
        %v10268 = vunpack.c.l.b16 %v9212
        %v10269 = vunpack.c.h.b16 %v9212
        %v10270 = vunpack.c.l.b16 %v9213
        %v10271 = vunpack.c.h.b16 %v9213
        %v10272 = vunpack.c.l.b16 %v9214
        %v10273 = vunpack.c.h.b16 %v9214
        %v10274 = vunpack.c.l.b16 %v9215
        %v10275 = vunpack.c.h.b16 %v9215
        %v10276 = vunpack.c.l.b16 %v9216
        %v10277 = vunpack.c.h.b16 %v9216
        %v10278 = vunpack.c.l.b16 %v9217
        %v10279 = vunpack.c.h.b16 %v9217
        %v10280 = vunpack.c.l.b16 %v9218
        %v10281 = vunpack.c.h.b16 %v9218
        %v10282 = vunpack.c.l.b16 %v9219
        %v10283 = vunpack.c.h.b16 %v9219
        %v10284 = vunpack.c.l.b16 %v9220
        %v10285 = vunpack.c.h.b16 %v9220
        %v10286 = vunpack.c.l.b16 %v9221
        %v10287 = vunpack.c.h.b16 %v9221
        %v10288 = vunpack.c.l.b16 %v9222
        %v10289 = vunpack.c.h.b16 %v9222
        %v10290 = vunpack.c.l.b16 %v9223
        %v10291 = vunpack.c.h.b16 %v9223
        %v10292 = vunpack.c.l.b16 %v9224
        %v10293 = vunpack.c.h.b16 %v9224
        %v10294 = vunpack.c.l.b16 %v9225
        %v10295 = vunpack.c.h.b16 %v9225
        %v10296 = vunpack.c.l.b16 %v9226
        %v10297 = vunpack.c.h.b16 %v9226
        %v10298 = vunpack.c.l.b16 %v9227
        %v10299 = vunpack.c.h.b16 %v9227
        %v10300 = vunpack.c.l.b16 %v9228
        %v10301 = vunpack.c.h.b16 %v9228
        %v10302 = vunpack.c.l.b16 %v9229
        %v10303 = vunpack.c.h.b16 %v9229
        %v10304 = vunpack.c.l.b16 %v9230
        %v10305 = vunpack.c.h.b16 %v9230
        %v10306 = vunpack.c.l.b16 %v9231
        %v10307 = vunpack.c.h.b16 %v9231
        %v10308 = vunpack.c.l.b16 %v9232
        %v10309 = vunpack.c.h.b16 %v9232
        %v10310 = vunpack.c.l.b16 %v9233
        %v10311 = vunpack.c.h.b16 %v9233
        %v10312 = vunpack.c.l.b16 %v9234
        %v10313 = vunpack.c.h.b16 %v9234
        %v10314 = vunpack.c.l.b16 %v9235
        %v10315 = vunpack.c.h.b16 %v9235
        %v10316 = vunpack.c.l.b16 %v9236
        %v10317 = vunpack.c.h.b16 %v9236
        %v10318 = vunpack.c.l.b16 %v9237
        %v10319 = vunpack.c.h.b16 %v9237
        %v10320 = vunpack.c.l.b16 %v9238
        %v10321 = vunpack.c.h.b16 %v9238
        %v10322 = vunpack.c.l.b16 %v9239
        %v10323 = vunpack.c.h.b16 %v9239
        %v10324 = vunpack.c.l.b16 %v9240
        %v10325 = vunpack.c.h.b16 %v9240
        %v10326 = vunpack.c.l.b16 %v9241
        %v10327 = vunpack.c.h.b16 %v9241
        %v10328 = vunpack.c.l.b16 %v9242
        %v10329 = vunpack.c.h.b16 %v9242
        %v10330 = vunpack.c.l.b16 %v9243
        %v10331 = vunpack.c.h.b16 %v9243
        %v10332 = vunpack.c.l.b16 %v9244
        %v10333 = vunpack.c.h.b16 %v9244
        %v10334 = vunpack.c.l.b16 %v9245
        %v10335 = vunpack.c.h.b16 %v9245
        %v10336 = vunpack.c.l.b16 %v9246
        %v10337 = vunpack.c.h.b16 %v9246
        %v10338 = vunpack.c.l.b16 %v9247
        %v10339 = vunpack.c.h.b16 %v9247
        %v10340 = vunpack.c.l.b16 %v9248
        %v10341 = vunpack.c.h.b16 %v9248
        %v10342 = vunpack.c.l.b16 %v9249
        %v10343 = vunpack.c.h.b16 %v9249
        %v10344 = vunpack.c.l.b16 %v9250
        %v10345 = vunpack.c.h.b16 %v9250
        %v10346 = vunpack.c.l.b16 %v9251
        %v10347 = vunpack.c.h.b16 %v9251
        %v10348 = vunpack.c.l.b16 %v9252
        %v10349 = vunpack.c.h.b16 %v9252
        %v10350 = vunpack.c.l.b16 %v9253
        %v10351 = vunpack.c.h.b16 %v9253
        %v10352 = vunpack.c.l.b16 %v9254
        %v10353 = vunpack.c.h.b16 %v9254
        %v10354 = vunpack.c.l.b16 %v9255
        %v10355 = vunpack.c.h.b16 %v9255
        %v10356 = vunpack.c.l.b16 %v9256
        %v10357 = vunpack.c.h.b16 %v9256
        %v10358 = vunpack.c.l.b16 %v9257
        %v10359 = vunpack.c.h.b16 %v9257
        %v10360 = vunpack.c.l.b16 %v9258
        %v10361 = vunpack.c.h.b16 %v9258
        %v10362 = vunpack.c.l.b16 %v9259
        %v10363 = vunpack.c.h.b16 %v9259
        %v10364 = vunpack.c.l.b16 %v9260
        %v10365 = vunpack.c.h.b16 %v9260
        %v10366 = vunpack.c.l.b16 %v9261
        %v10367 = vunpack.c.h.b16 %v9261
        %v10368 = vunpack.c.l.b16 %v9262
        %v10369 = vunpack.c.h.b16 %v9262
        %v10370 = vunpack.c.l.b16 %v9263
        %v10371 = vunpack.c.h.b16 %v9263
        %v10372 = vunpack.c.l.b16 %v9264
        %v10373 = vunpack.c.h.b16 %v9264
        %v10374 = vunpack.c.l.b16 %v9265
        %v10375 = vunpack.c.h.b16 %v9265
        %v10376 = vunpack.c.l.b16 %v9266
        %v10377 = vunpack.c.h.b16 %v9266
        %v10378 = vunpack.c.l.b16 %v9267
        %v10379 = vunpack.c.h.b16 %v9267
        %v10380 = vunpack.c.l.b16 %v9268
        %v10381 = vunpack.c.h.b16 %v9268
        %v10382 = vunpack.c.l.b16 %v9269
        %v10383 = vunpack.c.h.b16 %v9269
        %v10384 = vunpack.c.l.b16 %v9270
        %v10385 = vunpack.c.h.b16 %v9270
        %v10386 = vunpack.c.l.b16 %v9271
        %v10387 = vunpack.c.h.b16 %v9271
        %v10388 = vunpack.c.l.b16 %v9272
        %v10389 = vunpack.c.h.b16 %v9272
        %v10390 = vunpack.c.l.b16 %v9273
        %v10391 = vunpack.c.h.b16 %v9273
        %v10392 = vunpack.c.l.b16 %v9274
        %v10393 = vunpack.c.h.b16 %v9274
        %v10394 = vunpack.c.l.b16 %v9275
        %v10395 = vunpack.c.h.b16 %v9275
        %v10396 = vunpack.c.l.b16 %v9276
        %v10397 = vunpack.c.h.b16 %v9276
        %v10398 = vunpack.c.l.b16 %v9277
        %v10399 = vunpack.c.h.b16 %v9277
        %v10400 = vunpack.c.l.b16 %v9278
        %v10401 = vunpack.c.h.b16 %v9278
        %v10402 = vunpack.c.l.b16 %v9279
        %v10403 = vunpack.c.h.b16 %v9279
        %v10404 = vunpack.c.l.b16 %v9280
        %v10405 = vunpack.c.h.b16 %v9280
        %v10406 = vunpack.c.l.b16 %v9281
        %v10407 = vunpack.c.h.b16 %v9281
        %v10408 = vunpack.c.l.b16 %v9282
        %v10409 = vunpack.c.h.b16 %v9282
        %v10410 = vunpack.c.l.b16 %v9283
        %v10411 = vunpack.c.h.b16 %v9283
        %v10412 = vunpack.c.l.b16 %v9284
        %v10413 = vunpack.c.h.b16 %v9284
        %v10414 = vunpack.c.l.b16 %v9285
        %v10415 = vunpack.c.h.b16 %v9285
        %v10416 = vunpack.c.l.b16 %v9286
        %v10417 = vunpack.c.h.b16 %v9286
        %v10418 = vunpack.c.l.b16 %v9287
        %v10419 = vunpack.c.h.b16 %v9287
        %v10420 = vunpack.c.l.b16 %v9288
        %v10421 = vunpack.c.h.b16 %v9288
        %v10422 = vunpack.c.l.b16 %v9289
        %v10423 = vunpack.c.h.b16 %v9289
        %v10424 = vunpack.c.l.b16 %v9290
        %v10425 = vunpack.c.h.b16 %v9290
        %v10426 = vunpack.c.l.b16 %v9291
        %v10427 = vunpack.c.h.b16 %v9291
        %v10428 = vunpack.c.l.b16 %v9292
        %v10429 = vunpack.c.h.b16 %v9292
        %v10430 = vunpack.c.l.b16 %v9293
        %v10431 = vunpack.c.h.b16 %v9293
        %v10432 = vunpack.c.l.b16 %v9294
        %v10433 = vunpack.c.h.b16 %v9294
        %v10434 = vunpack.c.l.b16 %v9295
        %v10435 = vunpack.c.h.b16 %v9295
        %v10436 = vunpack.c.l.b16 %v9296
        %v10437 = vunpack.c.h.b16 %v9296
        %v10438 = vunpack.c.l.b16 %v9297
        %v10439 = vunpack.c.h.b16 %v9297
        %v10440 = vunpack.c.l.b16 %v9298
        %v10441 = vunpack.c.h.b16 %v9298
        %v10442 = vunpack.c.l.b16 %v9299
        %v10443 = vunpack.c.h.b16 %v9299
        %v10444 = vunpack.c.l.b16 %v9300
        %v10445 = vunpack.c.h.b16 %v9300
        %v10446 = vunpack.c.l.b16 %v9301
        %v10447 = vunpack.c.h.b16 %v9301
        %v10448 = vunpack.c.l.b16 %v9302
        %v10449 = vunpack.c.h.b16 %v9302
        %v10450 = vunpack.c.l.b16 %v9303
        %v10451 = vunpack.c.h.b16 %v9303
        %v10452 = vunpack.c.l.b16 %v9304
        %v10453 = vunpack.c.h.b16 %v9304
        %v10454 = vunpack.c.l.b16 %v9305
        %v10455 = vunpack.c.h.b16 %v9305
        %v10456 = vunpack.c.l.b16 %v9306
        %v10457 = vunpack.c.h.b16 %v9306
        %v10458 = vunpack.c.l.b16 %v9307
        %v10459 = vunpack.c.h.b16 %v9307
        %v10460 = vunpack.c.l.b16 %v9308
        %v10461 = vunpack.c.h.b16 %v9308
        %v10462 = vunpack.c.l.b16 %v9309
        %v10463 = vunpack.c.h.b16 %v9309
        %v10464 = vunpack.c.l.b16 %v9310
        %v10465 = vunpack.c.h.b16 %v9310
        %v10466 = vunpack.c.l.b16 %v9311
        %v10467 = vunpack.c.h.b16 %v9311
        %v10468 = vunpack.c.l.b16 %v9312
        %v10469 = vunpack.c.h.b16 %v9312
        %v10470 = vunpack.c.l.b16 %v9313
        %v10471 = vunpack.c.h.b16 %v9313
        %v10472 = vunpack.c.l.b16 %v9314
        %v10473 = vunpack.c.h.b16 %v9314
        %v10474 = vunpack.c.l.b16 %v9315
        %v10475 = vunpack.c.h.b16 %v9315
        %v10476 = vunpack.c.l.b16 %v9316
        %v10477 = vunpack.c.h.b16 %v9316
        %v10478 = vunpack.c.l.b16 %v9317
        %v10479 = vunpack.c.h.b16 %v9317
        %v10480 = vunpack.c.l.b16 %v9318
        %v10481 = vunpack.c.h.b16 %v9318
        %v10482 = vunpack.c.l.b16 %v9319
        %v10483 = vunpack.c.h.b16 %v9319
        %v10484 = vunpack.c.l.b16 %v9320
        %v10485 = vunpack.c.h.b16 %v9320
        %v10486 = vunpack.c.l.b16 %v9321
        %v10487 = vunpack.c.h.b16 %v9321
        %v10488 = vunpack.c.l.b16 %v9322
        %v10489 = vunpack.c.h.b16 %v9322
        %v10490 = vunpack.c.l.b16 %v9323
        %v10491 = vunpack.c.h.b16 %v9323
        %v10492 = vunpack.c.l.b16 %v9324
        %v10493 = vunpack.c.h.b16 %v9324
        %v10494 = vunpack.c.l.b16 %v9325
        %v10495 = vunpack.c.h.b16 %v9325
        %v10496 = vunpack.c.l.b16 %v9326
        %v10497 = vunpack.c.h.b16 %v9326
        %v10498 = vunpack.c.l.b16 %v9327
        %v10499 = vunpack.c.h.b16 %v9327
        %v10500 = vunpack.c.l.b16 %v9328
        %v10501 = vunpack.c.h.b16 %v9328
        %v10502 = vunpack.c.l.b16 %v9329
        %v10503 = vunpack.c.h.b16 %v9329
        %v10504 = vunpack.c.l.b16 %v9330
        %v10505 = vunpack.c.h.b16 %v9330
        %v10506 = vunpack.c.l.b16 %v9331
        %v10507 = vunpack.c.h.b16 %v9331
        %v10508 = vunpack.c.l.b16 %v9332
        %v10509 = vunpack.c.h.b16 %v9332
        %v10510 = vunpack.c.l.b16 %v9333
        %v10511 = vunpack.c.h.b16 %v9333
        %v10512 = vunpack.c.l.b16 %v9334
        %v10513 = vunpack.c.h.b16 %v9334
        %v10514 = vunpack.c.l.b16 %v9335
        %v10515 = vunpack.c.h.b16 %v9335
        %v10516 = vunpack.c.l.b16 %v9336
        %v10517 = vunpack.c.h.b16 %v9336
        %v10518 = vunpack.c.l.b16 %v9337
        %v10519 = vunpack.c.h.b16 %v9337
        %v10520 = vunpack.c.l.b16 %v9338
        %v10521 = vunpack.c.h.b16 %v9338
        %v10522 = vunpack.c.l.b16 %v9339
        %v10523 = vunpack.c.h.b16 %v9339
        %v10524 = vunpack.c.l.b16 %v9340
        %v10525 = vunpack.c.h.b16 %v9340
        %v10526 = vunpack.c.l.b16 %v9341
        %v10527 = vunpack.c.h.b16 %v9341
        %v10528 = vunpack.c.l.b16 %v9342
        %v10529 = vunpack.c.h.b16 %v9342
        %v10530 = vunpack.c.l.b16 %v9343
        %v10531 = vunpack.c.h.b16 %v9343
        %v10532 = vunpack.c.l.b16 %v9344
        %v10533 = vunpack.c.h.b16 %v9344
        %v10534 = vunpack.c.l.b16 %v9345
        %v10535 = vunpack.c.h.b16 %v9345
        %v10536 = vunpack.c.l.b16 %v9346
        %v10537 = vunpack.c.h.b16 %v9346
        %v10538 = vunpack.c.l.b16 %v9347
        %v10539 = vunpack.c.h.b16 %v9347
        %v10540 = vunpack.c.l.b16 %v9348
        %v10541 = vunpack.c.h.b16 %v9348
        %v10542 = vunpack.c.l.b16 %v9349
        %v10543 = vunpack.c.h.b16 %v9349
        %v10544 = vunpack.c.l.b16 %v9350
        %v10545 = vunpack.c.h.b16 %v9350
        %v10546 = vunpack.c.l.b16 %v9351
        %v10547 = vunpack.c.h.b16 %v9351
        %v10548 = vunpack.c.l.b16 %v9352
        %v10549 = vunpack.c.h.b16 %v9352
        %v10550 = vunpack.c.l.b16 %v9353
        %v10551 = vunpack.c.h.b16 %v9353
        %v10552 = vunpack.c.l.b16 %v9354
        %v10553 = vunpack.c.h.b16 %v9354
        %v10554 = vunpack.c.l.b16 %v9355
        %v10555 = vunpack.c.h.b16 %v9355
        %v10556 = vunpack.c.l.b16 %v9356
        %v10557 = vunpack.c.h.b16 %v9356
        %v10558 = vunpack.c.l.b16 %v9357
        %v10559 = vunpack.c.h.b16 %v9357
        %v10560 = vunpack.c.l.b16 %v9358
        %v10561 = vunpack.c.h.b16 %v9358
        %v10562 = vunpack.c.l.b16 %v9359
        %v10563 = vunpack.c.h.b16 %v9359
        %v10564 = vunpack.c.l.b16 %v9360
        %v10565 = vunpack.c.h.b16 %v9360
        %v10566 = vunpack.c.l.b16 %v9361
        %v10567 = vunpack.c.h.b16 %v9361
        %v10568 = vunpack.c.l.b16 %v9362
        %v10569 = vunpack.c.h.b16 %v9362
        %v10570 = vunpack.c.l.b16 %v9363
        %v10571 = vunpack.c.h.b16 %v9363
        %v10572 = vunpack.c.l.b16 %v9364
        %v10573 = vunpack.c.h.b16 %v9364
        %v10574 = vunpack.c.l.b16 %v9365
        %v10575 = vunpack.c.h.b16 %v9365
        %v10576 = vunpack.c.l.b16 %v9366
        %v10577 = vunpack.c.h.b16 %v9366
        %v10578 = vunpack.c.l.b16 %v9367
        %v10579 = vunpack.c.h.b16 %v9367
        %v10580 = vunpack.c.l.b16 %v9368
        %v10581 = vunpack.c.h.b16 %v9368
        %v10582 = vunpack.c.l.b16 %v9369
        %v10583 = vunpack.c.h.b16 %v9369
        %v10584 = vunpack.c.l.b16 %v9370
        %v10585 = vunpack.c.h.b16 %v9370
        %v10586 = vunpack.c.l.b16 %v9371
        %v10587 = vunpack.c.h.b16 %v9371
        %v10588 = vunpack.c.l.b16 %v9372
        %v10589 = vunpack.c.h.b16 %v9372
        %v10590 = vunpack.c.l.b16 %v9373
        %v10591 = vunpack.c.h.b16 %v9373
        %v10592 = vunpack.c.l.b16 %v9374
        %v10593 = vunpack.c.h.b16 %v9374
        %v10594 = vunpack.c.l.b16 %v9375
        %v10595 = vunpack.c.h.b16 %v9375
        %v10596 = vunpack.c.l.b16 %v9376
        %v10597 = vunpack.c.h.b16 %v9376
        %v10598 = vunpack.c.l.b16 %v9377
        %v10599 = vunpack.c.h.b16 %v9377
        %v10600 = vunpack.c.l.b16 %v9378
        %v10601 = vunpack.c.h.b16 %v9378
        %v10602 = vunpack.c.l.b16 %v9379
        %v10603 = vunpack.c.h.b16 %v9379
        %v10604 = vunpack.c.l.b16 %v9380
        %v10605 = vunpack.c.h.b16 %v9380
        %v10606 = vunpack.c.l.b16 %v9381
        %v10607 = vunpack.c.h.b16 %v9381
        %v10608 = vunpack.c.l.b16 %v9382
        %v10609 = vunpack.c.h.b16 %v9382
        %v10610 = vunpack.c.l.b16 %v9383
        %v10611 = vunpack.c.h.b16 %v9383
        %v10612 = vunpack.c.l.b16 %v9384
        %v10613 = vunpack.c.h.b16 %v9384
        %v10614 = vunpack.c.l.b16 %v9385
        %v10615 = vunpack.c.h.b16 %v9385
        %v10616 = vunpack.c.l.b16 %v9386
        %v10617 = vunpack.c.h.b16 %v9386
        %v10618 = vunpack.c.l.b16 %v9387
        %v10619 = vunpack.c.h.b16 %v9387
        %v10620 = vunpack.c.l.b16 %v9388
        %v10621 = vunpack.c.h.b16 %v9388
        %v10622 = vunpack.c.l.b16 %v9389
        %v10623 = vunpack.c.h.b16 %v9389
        %v10624 = vunpack.c.l.b16 %v9390
        %v10625 = vunpack.c.h.b16 %v9390
        %v10626 = vunpack.c.l.b16 %v9391
        %v10627 = vunpack.c.h.b16 %v9391
        %v10628 = vunpack.c.l.b16 %v9392
        %v10629 = vunpack.c.h.b16 %v9392
        %v10630 = vunpack.c.l.b16 %v9393
        %v10631 = vunpack.c.h.b16 %v9393
        %v10632 = vunpack.c.l.b16 %v9394
        %v10633 = vunpack.c.h.b16 %v9394
        %v10634 = vunpack.c.l.b16 %v9395
        %v10635 = vunpack.c.h.b16 %v9395
        %v10636 = vunpack.c.l.b16 %v9396
        %v10637 = vunpack.c.h.b16 %v9396
        %v10638 = vunpack.c.l.b16 %v9397
        %v10639 = vunpack.c.h.b16 %v9397
        %v10640 = vunpack.c.l.b16 %v9398
        %v10641 = vunpack.c.h.b16 %v9398
        %v10642 = vunpack.c.l.b16 %v9399
        %v10643 = vunpack.c.h.b16 %v9399
        %v10644 = vunpack.c.l.b16 %v9400
        %v10645 = vunpack.c.h.b16 %v9400
        %v10646 = vunpack.c.l.b16 %v9401
        %v10647 = vunpack.c.h.b16 %v9401
        %v10648 = vunpack.c.l.b16 %v9402
        %v10649 = vunpack.c.h.b16 %v9402
        %v10650 = vunpack.c.l.b16 %v9403
        %v10651 = vunpack.c.h.b16 %v9403
        %v10652 = vunpack.c.l.b16 %v9404
        %v10653 = vunpack.c.h.b16 %v9404
        %v10654 = vunpack.c.l.b16 %v9405
        %v10655 = vunpack.c.h.b16 %v9405
        %v10656 = vunpack.c.l.b16 %v9406
        %v10657 = vunpack.c.h.b16 %v9406
        %v10658 = vunpack.c.l.b16 %v9407
        %v10659 = vunpack.c.h.b16 %v9407
        %v10660 = vunpack.c.l.b16 %v9408
        %v10661 = vunpack.c.h.b16 %v9408
        %v10662 = vunpack.c.l.b16 %v9409
        %v10663 = vunpack.c.h.b16 %v9409
        %v10664 = vunpack.c.l.b16 %v9410
        %v10665 = vunpack.c.h.b16 %v9410
        %v10666 = vunpack.c.l.b16 %v9411
        %v10667 = vunpack.c.h.b16 %v9411
        %v10668 = vunpack.c.l.b16 %v9412
        %v10669 = vunpack.c.h.b16 %v9412
        %v10670 = vunpack.c.l.b16 %v9413
        %v10671 = vunpack.c.h.b16 %v9413
        %v10672 = vunpack.c.l.b16 %v9414
        %v10673 = vunpack.c.h.b16 %v9414
        %v10674 = vunpack.c.l.b16 %v9415
        %v10675 = vunpack.c.h.b16 %v9415
        %v10676 = vunpack.c.l.b16 %v9416
        %v10677 = vunpack.c.h.b16 %v9416
        %v10678 = vunpack.c.l.b16 %v9417
        %v10679 = vunpack.c.h.b16 %v9417
        %v10680 = vunpack.c.l.b16 %v9418
        %v10681 = vunpack.c.h.b16 %v9418
        %v10682 = vunpack.c.l.b16 %v9419
        %v10683 = vunpack.c.h.b16 %v9419
        %v10684 = vunpack.c.l.b16 %v9420
        %v10685 = vunpack.c.h.b16 %v9420
        %v10686 = vunpack.c.l.b16 %v9421
        %v10687 = vunpack.c.h.b16 %v9421
        %v10688 = vunpack.c.l.b16 %v9422
        %v10689 = vunpack.c.h.b16 %v9422
        %v10690 = vunpack.c.l.b16 %v9423
        %v10691 = vunpack.c.h.b16 %v9423
        %v10692 = vunpack.c.l.b16 %v9424
        %v10693 = vunpack.c.h.b16 %v9424
        %v10694 = vunpack.c.l.b16 %v9425
        %v10695 = vunpack.c.h.b16 %v9425
        %v10696 = vunpack.c.l.b16 %v9426
        %v10697 = vunpack.c.h.b16 %v9426
        %v10698 = vunpack.c.l.b16 %v9427
        %v10699 = vunpack.c.h.b16 %v9427
        %v10700 = vunpack.c.l.b16 %v9428
        %v10701 = vunpack.c.h.b16 %v9428
        %v10702 = vunpack.c.l.b16 %v9429
        %v10703 = vunpack.c.h.b16 %v9429
        %v10704 = vunpack.c.l.b16 %v9430
        %v10705 = vunpack.c.h.b16 %v9430
        %v10706 = vunpack.c.l.b16 %v9431
        %v10707 = vunpack.c.h.b16 %v9431
        %v10708 = vunpack.c.l.b16 %v9432
        %v10709 = vunpack.c.h.b16 %v9432
        %v10710 = vunpack.c.l.b16 %v9433
        %v10711 = vunpack.c.h.b16 %v9433
        %v10712 = vunpack.c.l.b16 %v9434
        %v10713 = vunpack.c.h.b16 %v9434
        %v10714 = vunpack.c.l.b16 %v9435
        %v10715 = vunpack.c.h.b16 %v9435
        %v10716 = vunpack.c.l.b16 %v9436
        %v10717 = vunpack.c.h.b16 %v9436
        %v10718 = vunpack.c.l.b16 %v9437
        %v10719 = vunpack.c.h.b16 %v9437
        %v10720 = vunpack.c.l.b16 %v9438
        %v10721 = vunpack.c.h.b16 %v9438
        %v10722 = vunpack.c.l.b16 %v9439
        %v10723 = vunpack.c.h.b16 %v9439
        %v10724 = vunpack.c.l.b16 %v9440
        %v10725 = vunpack.c.h.b16 %v9440
        %v10726 = vunpack.c.l.b16 %v9441
        %v10727 = vunpack.c.h.b16 %v9441
        %v10728 = vunpack.c.l.b16 %v9442
        %v10729 = vunpack.c.h.b16 %v9442
        %v10730 = vunpack.c.l.b16 %v9443
        %v10731 = vunpack.c.h.b16 %v9443
        %v10732 = vunpack.c.l.b16 %v9444
        %v10733 = vunpack.c.h.b16 %v9444
        %v10734 = vunpack.c.l.b16 %v9445
        %v10735 = vunpack.c.h.b16 %v9445
        %v10736 = vunpack.c.l.b16 %v9446
        %v10737 = vunpack.c.h.b16 %v9446
        %v10738 = vunpack.c.l.b16 %v9447
        %v10739 = vunpack.c.h.b16 %v9447
        %v10740 = vunpack.c.l.b16 %v9448
        %v10741 = vunpack.c.h.b16 %v9448
        %v10742 = vunpack.c.l.b16 %v9449
        %v10743 = vunpack.c.h.b16 %v9449
        %v10744 = vunpack.c.l.b16 %v9450
        %v10745 = vunpack.c.h.b16 %v9450
        %v10746 = vunpack.c.l.b16 %v9451
        %v10747 = vunpack.c.h.b16 %v9451
        %v10748 = vunpack.c.l.b16 %v9452
        %v10749 = vunpack.c.h.b16 %v9452
        %v10750 = vunpack.c.l.b16 %v9453
        %v10751 = vunpack.c.h.b16 %v9453
        %v10752 = vunpack.c.l.b16 %v9454
        %v10753 = vunpack.c.h.b16 %v9454
        %v10754 = vunpack.c.l.b16 %v9455
        %v10755 = vunpack.c.h.b16 %v9455
        %v10756 = vunpack.c.l.b16 %v9456
        %v10757 = vunpack.c.h.b16 %v9456
        %v10758 = vunpack.c.l.b16 %v9457
        %v10759 = vunpack.c.h.b16 %v9457
        %v10760 = vunpack.c.l.b16 %v9458
        %v10761 = vunpack.c.h.b16 %v9458
        %v10762 = vunpack.c.l.b16 %v9459
        %v10763 = vunpack.c.h.b16 %v9459
        %v10764 = vunpack.c.l.b16 %v9460
        %v10765 = vunpack.c.h.b16 %v9460
        %v10766 = vunpack.c.l.b16 %v9461
        %v10767 = vunpack.c.h.b16 %v9461
        %v10768 = vunpack.c.l.b16 %v9462
        %v10769 = vunpack.c.h.b16 %v9462
        %v10770 = vunpack.c.l.b16 %v9463
        %v10771 = vunpack.c.h.b16 %v9463
        %v10772 = vunpack.c.l.b16 %v9464
        %v10773 = vunpack.c.h.b16 %v9464
        %v10774 = vunpack.c.l.b16 %v9465
        %v10775 = vunpack.c.h.b16 %v9465
        %v10776 = vunpack.c.l.b16 %v9466
        %v10777 = vunpack.c.h.b16 %v9466
        %v10778 = vunpack.c.l.b16 %v9467
        %v10779 = vunpack.c.h.b16 %v9467
        %v10780 = vunpack.c.l.b16 %v9468
        %v10781 = vunpack.c.h.b16 %v9468
        %v10782 = vunpack.c.l.b16 %v9469
        %v10783 = vunpack.c.h.b16 %v9469
        %v10784 = vunpack.c.l.b16 %v9470
        %v10785 = vunpack.c.h.b16 %v9470
        %v10786 = vunpack.c.l.b16 %v9471
        %v10787 = vunpack.c.h.b16 %v9471
        %v10788 = vunpack.c.l.b16 %v9472
        %v10789 = vunpack.c.h.b16 %v9472
        %v10790 = vunpack.c.l.b16 %v9473
        %v10791 = vunpack.c.h.b16 %v9473
        %v10792 = vunpack.c.l.b16 %v9474
        %v10793 = vunpack.c.h.b16 %v9474
        %v10794 = vunpack.c.l.b16 %v9475
        %v10795 = vunpack.c.h.b16 %v9475
        %v10796 = vunpack.c.l.b16 %v9476
        %v10797 = vunpack.c.h.b16 %v9476
        %v10798 = vunpack.c.l.b16 %v9477
        %v10799 = vunpack.c.h.b16 %v9477
        %v10800 = vunpack.c.l.b16 %v9478
        %v10801 = vunpack.c.h.b16 %v9478
        %v10802 = vunpack.c.l.b16 %v9479
        %v10803 = vunpack.c.h.b16 %v9479
        %v10804 = vunpack.c.l.b16 %v9480
        %v10805 = vunpack.c.h.b16 %v9480
        %v10806 = vunpack.c.l.b16 %v9481
        %v10807 = vunpack.c.h.b16 %v9481
        %v10808 = vunpack.c.l.b16 %v9482
        %v10809 = vunpack.c.h.b16 %v9482
        %v10810 = vunpack.c.l.b16 %v9483
        %v10811 = vunpack.c.h.b16 %v9483
        %v10812 = vunpack.c.l.b16 %v9484
        %v10813 = vunpack.c.h.b16 %v9484
        %v10814 = vunpack.c.l.b16 %v9485
        %v10815 = vunpack.c.h.b16 %v9485
        %v10816 = vunpack.c.l.b16 %v9486
        %v10817 = vunpack.c.h.b16 %v9486
        %v10818 = vunpack.c.l.b16 %v9487
        %v10819 = vunpack.c.h.b16 %v9487
        %v10820 = vunpack.c.l.b16 %v9488
        %v10821 = vunpack.c.h.b16 %v9488
        %v10822 = vunpack.c.l.b16 %v9489
        %v10823 = vunpack.c.h.b16 %v9489
        %v10824 = vunpack.c.l.b16 %v9490
        %v10825 = vunpack.c.h.b16 %v9490
        %v10826 = vunpack.c.l.b16 %v9491
        %v10827 = vunpack.c.h.b16 %v9491
        %v10828 = vunpack.c.l.b16 %v9492
        %v10829 = vunpack.c.h.b16 %v9492
        %v10830 = vunpack.c.l.b16 %v9493
        %v10831 = vunpack.c.h.b16 %v9493
        %v10832 = vunpack.c.l.b16 %v9494
        %v10833 = vunpack.c.h.b16 %v9494
        %v10834 = vunpack.c.l.b16 %v9495
        %v10835 = vunpack.c.h.b16 %v9495
        %v10836 = vunpack.c.l.b16 %v9496
        %v10837 = vunpack.c.h.b16 %v9496
        %v10838 = vunpack.c.l.b16 %v9497
        %v10839 = vunpack.c.h.b16 %v9497
        %v10840 = vunpack.c.l.b16 %v9498
        %v10841 = vunpack.c.h.b16 %v9498
        %v10842 = vunpack.c.l.b16 %v9499
        %v10843 = vunpack.c.h.b16 %v9499
        %v10844 = vunpack.c.l.b16 %v9500
        %v10845 = vunpack.c.h.b16 %v9500
        %v10846 = vunpack.c.l.b16 %v9501
        %v10847 = vunpack.c.h.b16 %v9501
        %v10848 = vunpack.c.l.b16 %v9502
        %v10849 = vunpack.c.h.b16 %v9502
        %v10850 = vunpack.c.l.b16 %v9503
        %v10851 = vunpack.c.h.b16 %v9503
        %v10852 = vunpack.c.l.b16 %v9504
        %v10853 = vunpack.c.h.b16 %v9504
        %v10854 = vunpack.c.l.b16 %v9505
        %v10855 = vunpack.c.h.b16 %v9505
        %v10856 = vunpack.c.l.b16 %v9506
        %v10857 = vunpack.c.h.b16 %v9506
        %v10858 = vunpack.c.l.b16 %v9507
        %v10859 = vunpack.c.h.b16 %v9507
        %v10860 = vunpack.c.l.b16 %v9508
        %v10861 = vunpack.c.h.b16 %v9508
        %v10862 = vunpack.c.l.b16 %v9509
        %v10863 = vunpack.c.h.b16 %v9509
        %v10864 = vunpack.c.l.b16 %v9510
        %v10865 = vunpack.c.h.b16 %v9510
        %v10866 = vunpack.c.l.b16 %v9511
        %v10867 = vunpack.c.h.b16 %v9511
        %v10868 = vunpack.c.l.b16 %v9512
        %v10869 = vunpack.c.h.b16 %v9512
        %v10870 = vunpack.c.l.b16 %v9513
        %v10871 = vunpack.c.h.b16 %v9513
        %v10872 = vunpack.c.l.b16 %v9514
        %v10873 = vunpack.c.h.b16 %v9514
        %v10874 = vunpack.c.l.b16 %v9515
        %v10875 = vunpack.c.h.b16 %v9515
        %v10876 = vunpack.c.l.b16 %v9516
        %v10877 = vunpack.c.h.b16 %v9516
        %v10878 = vunpack.c.l.b16 %v9517
        %v10879 = vunpack.c.h.b16 %v9517
        %v10880 = vunpack.c.l.b16 %v9518
        %v10881 = vunpack.c.h.b16 %v9518
        %v10882 = vunpack.c.l.b16 %v9519
        %v10883 = vunpack.c.h.b16 %v9519
        %v10884 = vunpack.c.l.b16 %v9520
        %v10885 = vunpack.c.h.b16 %v9520
        %v10886 = vunpack.c.l.b16 %v9521
        %v10887 = vunpack.c.h.b16 %v9521
        %v10888 = vunpack.c.l.b16 %v9522
        %v10889 = vunpack.c.h.b16 %v9522
        %v10890 = vunpack.c.l.b16 %v9523
        %v10891 = vunpack.c.h.b16 %v9523
        %v10892 = vunpack.c.l.b16 %v9524
        %v10893 = vunpack.c.h.b16 %v9524
        %v10894 = vunpack.c.l.b16 %v9525
        %v10895 = vunpack.c.h.b16 %v9525
        %v10896 = vunpack.c.l.b16 %v9526
        %v10897 = vunpack.c.h.b16 %v9526
        %v10898 = vunpack.c.l.b16 %v9527
        %v10899 = vunpack.c.h.b16 %v9527
        %v10900 = vunpack.c.l.b16 %v9528
        %v10901 = vunpack.c.h.b16 %v9528
        %v10902 = vunpack.c.l.b16 %v9529
        %v10903 = vunpack.c.h.b16 %v9529
        %v10904 = vunpack.c.l.b16 %v9530
        %v10905 = vunpack.c.h.b16 %v9530
        %v10906 = vunpack.c.l.b16 %v9531
        %v10907 = vunpack.c.h.b16 %v9531
        %v10908 = vunpack.c.l.b16 %v9532
        %v10909 = vunpack.c.h.b16 %v9532
        %v10910 = vunpack.c.l.b16 %v9533
        %v10911 = vunpack.c.h.b16 %v9533
        %v10912 = vunpack.c.l.b16 %v9534
        %v10913 = vunpack.c.h.b16 %v9534
        %v10914 = vunpack.c.l.b16 %v9535
        %v10915 = vunpack.c.h.b16 %v9535
        %v10916 = vunpack.c.l.b16 %v9536
        %v10917 = vunpack.c.h.b16 %v9536
        %v10918 = vunpack.c.l.b16 %v9537
        %v10919 = vunpack.c.h.b16 %v9537
        %v10920 = vunpack.c.l.b16 %v9538
        %v10921 = vunpack.c.h.b16 %v9538
        %v10922 = vunpack.c.l.b16 %v9539
        %v10923 = vunpack.c.h.b16 %v9539
        %v10924 = vunpack.c.l.b16 %v9540
        %v10925 = vunpack.c.h.b16 %v9540
        %v10926 = vunpack.c.l.b16 %v9541
        %v10927 = vunpack.c.h.b16 %v9541
        %v10928 = vunpack.c.l.b16 %v9542
        %v10929 = vunpack.c.h.b16 %v9542
        %v10930 = vunpack.c.l.b16 %v9543
        %v10931 = vunpack.c.h.b16 %v9543
        %v10932 = vunpack.c.l.b16 %v9544
        %v10933 = vunpack.c.h.b16 %v9544
        %v10934 = vunpack.c.l.b16 %v9545
        %v10935 = vunpack.c.h.b16 %v9545
        %v10936 = vunpack.c.l.b16 %v9546
        %v10937 = vunpack.c.h.b16 %v9546
        %v10938 = vunpack.c.l.b16 %v9547
        %v10939 = vunpack.c.h.b16 %v9547
        %v10940 = vunpack.c.l.b16 %v9548
        %v10941 = vunpack.c.h.b16 %v9548
        %v10942 = vunpack.c.l.b16 %v9549
        %v10943 = vunpack.c.h.b16 %v9549
        %v10944 = vunpack.c.l.b16 %v9550
        %v10945 = vunpack.c.h.b16 %v9550
        %v10946 = vunpack.c.l.b16 %v9551
        %v10947 = vunpack.c.h.b16 %v9551
        %v10948 = vunpack.c.l.b16 %v9552
        %v10949 = vunpack.c.h.b16 %v9552
        %v10950 = vunpack.c.l.b16 %v9553
        %v10951 = vunpack.c.h.b16 %v9553
        %v10952 = vunpack.c.l.b16 %v9554
        %v10953 = vunpack.c.h.b16 %v9554
        %v10954 = vunpack.c.l.b16 %v9555
        %v10955 = vunpack.c.h.b16 %v9555
        %v10956 = vunpack.c.l.b16 %v9556
        %v10957 = vunpack.c.h.b16 %v9556
        %v10958 = vunpack.c.l.b16 %v9557
        %v10959 = vunpack.c.h.b16 %v9557
        %v10960 = vunpack.c.l.b16 %v9558
        %v10961 = vunpack.c.h.b16 %v9558
        %v10962 = vunpack.c.l.b16 %v9559
        %v10963 = vunpack.c.h.b16 %v9559
        %v10964 = vunpack.c.l.b16 %v9560
        %v10965 = vunpack.c.h.b16 %v9560
        %v10966 = vunpack.c.l.b16 %v9561
        %v10967 = vunpack.c.h.b16 %v9561
        %v10968 = vunpack.c.l.b16 %v9562
        %v10969 = vunpack.c.h.b16 %v9562
        %v10970 = vunpack.c.l.b16 %v9563
        %v10971 = vunpack.c.h.b16 %v9563
        %v10972 = vunpack.c.l.b16 %v9564
        %v10973 = vunpack.c.h.b16 %v9564
        %v10974 = vunpack.c.l.b16 %v9565
        %v10975 = vunpack.c.h.b16 %v9565
        %v10976 = vunpack.c.l.b16 %v9566
        %v10977 = vunpack.c.h.b16 %v9566
        %v10978 = vunpack.c.l.b16 %v9567
        %v10979 = vunpack.c.h.b16 %v9567
        %v10980 = vunpack.c.l.b16 %v9568
        %v10981 = vunpack.c.h.b16 %v9568
        %v10982 = vunpack.c.l.b16 %v9569
        %v10983 = vunpack.c.h.b16 %v9569
        %v10984 = vunpack.c.l.b16 %v9570
        %v10985 = vunpack.c.h.b16 %v9570
        %v10986 = vunpack.c.l.b16 %v9571
        %v10987 = vunpack.c.h.b16 %v9571
        %v10988 = vunpack.c.l.b16 %v9572
        %v10989 = vunpack.c.h.b16 %v9572
        %v10990 = vunpack.c.l.b16 %v9573
        %v10991 = vunpack.c.h.b16 %v9573
        %v10992 = vunpack.c.l.b16 %v9574
        %v10993 = vunpack.c.h.b16 %v9574
        %v10994 = vunpack.c.l.b16 %v9575
        %v10995 = vunpack.c.h.b16 %v9575
        %v10996 = vunpack.c.l.b16 %v9576
        %v10997 = vunpack.c.h.b16 %v9576
        %v10998 = vunpack.c.l.b16 %v9577
        %v10999 = vunpack.c.h.b16 %v9577
        %v11000 = vunpack.c.l.b16 %v9578
        %v11001 = vunpack.c.h.b16 %v9578
        %v11002 = vunpack.c.l.b16 %v9579
        %v11003 = vunpack.c.h.b16 %v9579
        %v11004 = vunpack.c.l.b16 %v9580
        %v11005 = vunpack.c.h.b16 %v9580
        %v11006 = vunpack.c.l.b16 %v9581
        %v11007 = vunpack.c.h.b16 %v9581
        %v11008 = vunpack.c.l.b16 %v9582
        %v11009 = vunpack.c.h.b16 %v9582
        %v11010 = vunpack.c.l.b16 %v9583
        %v11011 = vunpack.c.h.b16 %v9583
        %v11012 = vunpack.c.l.b16 %v9584
        %v11013 = vunpack.c.h.b16 %v9584
        %v11014 = vunpack.c.l.b16 %v9585
        %v11015 = vunpack.c.h.b16 %v9585
        %v11016 = vunpack.c.l.b16 %v9586
        %v11017 = vunpack.c.h.b16 %v9586
        %v11018 = vunpack.c.l.b16 %v9587
        %v11019 = vunpack.c.h.b16 %v9587
        %v11020 = vunpack.c.l.b16 %v9588
        %v11021 = vunpack.c.h.b16 %v9588
        %v11022 = vunpack.c.l.b16 %v9589
        %v11023 = vunpack.c.h.b16 %v9589
        %v11024 = vunpack.c.l.b16 %v9590
        %v11025 = vunpack.c.h.b16 %v9590
        %v11026 = vunpack.c.l.b16 %v9591
        %v11027 = vunpack.c.h.b16 %v9591
        %v11028 = vunpack.c.l.b16 %v9592
        %v11029 = vunpack.c.h.b16 %v9592
        %v11030 = vunpack.c.l.b16 %v9593
        %v11031 = vunpack.c.h.b16 %v9593
        %v11032 = vunpack.c.l.b16 %v9594
        %v11033 = vunpack.c.h.b16 %v9594
        %v11034 = vunpack.c.l.b16 %v9595
        %v11035 = vunpack.c.h.b16 %v9595
        %v11036 = vunpack.c.l.b16 %v9596
        %v11037 = vunpack.c.h.b16 %v9596
        %v11038 = vunpack.c.l.b16 %v9597
        %v11039 = vunpack.c.h.b16 %v9597
        %v11040 = vunpack.c.l.b16 %v9598
        %v11041 = vunpack.c.h.b16 %v9598
        %v11042 = vunpack.c.l.b16 %v9599
        %v11043 = vunpack.c.h.b16 %v9599
        %v11044 = vunpack.c.l.b16 %v9600
        %v11045 = vunpack.c.h.b16 %v9600
        %v11046 = vunpack.c.l.b16 %v9601
        %v11047 = vunpack.c.h.b16 %v9601
        %v11048 = vunpack.c.l.b16 %v9602
        %v11049 = vunpack.c.h.b16 %v9602
        %v11050 = vunpack.c.l.b16 %v9603
        %v11051 = vunpack.c.h.b16 %v9603
        %v11052 = vunpack.c.l.b16 %v9604
        %v11053 = vunpack.c.h.b16 %v9604
        %v11054 = vunpack.c.l.b16 %v9605
        %v11055 = vunpack.c.h.b16 %v9605
        %v11056 = vunpack.c.l.b16 %v9606
        %v11057 = vunpack.c.h.b16 %v9606
        %v11058 = vunpack.c.l.b16 %v9607
        %v11059 = vunpack.c.h.b16 %v9607
        %v11060 = vunpack.c.l.b16 %v9608
        %v11061 = vunpack.c.h.b16 %v9608
        %v11062 = vunpack.c.l.b16 %v9609
        %v11063 = vunpack.c.h.b16 %v9609
        %v11064 = vunpack.c.l.b16 %v9610
        %v11065 = vunpack.c.h.b16 %v9610
        %v11066 = vunpack.c.l.b16 %v9611
        %v11067 = vunpack.c.h.b16 %v9611
        %v11068 = vunpack.c.l.b16 %v9612
        %v11069 = vunpack.c.h.b16 %v9612
        %v11070 = vunpack.c.l.b16 %v9613
        %v11071 = vunpack.c.h.b16 %v9613
        %v11072 = vunpack.c.l.b16 %v9614
        %v11073 = vunpack.c.h.b16 %v9614
        %v11074 = vunpack.c.l.b16 %v9615
        %v11075 = vunpack.c.h.b16 %v9615
        %v11076 = vunpack.c.l.b16 %v9616
        %v11077 = vunpack.c.h.b16 %v9616
        %v11078 = vunpack.c.l.b16 %v9617
        %v11079 = vunpack.c.h.b16 %v9617
        %v11080 = vunpack.c.l.b16 %v9618
        %v11081 = vunpack.c.h.b16 %v9618
        %v11082 = vunpack.c.l.b16 %v9619
        %v11083 = vunpack.c.h.b16 %v9619
        %v11084 = vunpack.c.l.b16 %v9620
        %v11085 = vunpack.c.h.b16 %v9620
        %v11086 = vunpack.c.l.b16 %v9621
        %v11087 = vunpack.c.h.b16 %v9621
        %v11088 = vunpack.c.l.b16 %v9622
        %v11089 = vunpack.c.h.b16 %v9622
        %v11090 = vunpack.c.l.b16 %v9623
        %v11091 = vunpack.c.h.b16 %v9623
        %v11092 = vunpack.c.l.b16 %v9624
        %v11093 = vunpack.c.h.b16 %v9624
        %v11094 = vunpack.c.l.b16 %v9625
        %v11095 = vunpack.c.h.b16 %v9625
        %v11096 = vunpack.c.l.b16 %v9626
        %v11097 = vunpack.c.h.b16 %v9626
        %v11098 = vunpack.c.l.b16 %v9627
        %v11099 = vunpack.c.h.b16 %v9627
        %v11100 = vunpack.c.l.b16 %v9628
        %v11101 = vunpack.c.h.b16 %v9628
        %v11102 = vunpack.c.l.b16 %v9629
        %v11103 = vunpack.c.h.b16 %v9629
        %v11104 = vunpack.c.l.b16 %v9630
        %v11105 = vunpack.c.h.b16 %v9630
        %v11106 = vunpack.c.l.b16 %v9631
        %v11107 = vunpack.c.h.b16 %v9631
        %v11108 = vunpack.c.l.b16 %v9632
        %v11109 = vunpack.c.h.b16 %v9632
        %v11110 = vunpack.c.l.b16 %v9633
        %v11111 = vunpack.c.h.b16 %v9633
        %v11112 = vunpack.c.l.b16 %v9634
        %v11113 = vunpack.c.h.b16 %v9634
        %v11114 = vunpack.c.l.b16 %v9635
        %v11115 = vunpack.c.h.b16 %v9635
        %v11116 = vunpack.c.l.b16 %v9636
        %v11117 = vunpack.c.h.b16 %v9636
        %v11118 = vunpack.c.l.b16 %v9637
        %v11119 = vunpack.c.h.b16 %v9637
        %v11120 = vunpack.c.l.b16 %v9638
        %v11121 = vunpack.c.h.b16 %v9638
        %v11122 = vunpack.c.l.b16 %v9639
        %v11123 = vunpack.c.h.b16 %v9639
        %v11124 = vunpack.c.l.b16 %v9640
        %v11125 = vunpack.c.h.b16 %v9640
        %v11126 = vunpack.c.l.b16 %v9641
        %v11127 = vunpack.c.h.b16 %v9641
        %v11128 = vunpack.c.l.b16 %v9642
        %v11129 = vunpack.c.h.b16 %v9642
        %v11130 = vunpack.c.l.b16 %v9643
        %v11131 = vunpack.c.h.b16 %v9643
        %v11132 = vunpack.c.l.b16 %v9644
        %v11133 = vunpack.c.h.b16 %v9644
        %v11134 = vunpack.c.l.b16 %v9645
        %v11135 = vunpack.c.h.b16 %v9645
        %v11136 = vunpack.c.l.b16 %v9646
        %v11137 = vunpack.c.h.b16 %v9646
        %v11138 = vunpack.c.l.b16 %v9647
        %v11139 = vunpack.c.h.b16 %v9647
        %v11140 = vunpack.c.l.b16 %v9648
        %v11141 = vunpack.c.h.b16 %v9648
        %v11142 = vunpack.c.l.b16 %v9649
        %v11143 = vunpack.c.h.b16 %v9649
        %v11144 = vunpack.c.l.b16 %v9650
        %v11145 = vunpack.c.h.b16 %v9650
        %v11146 = vunpack.c.l.b16 %v9651
        %v11147 = vunpack.c.h.b16 %v9651
        %v11148 = vunpack.c.l.b16 %v9652
        %v11149 = vunpack.c.h.b16 %v9652
        %v11150 = vunpack.c.l.b16 %v9653
        %v11151 = vunpack.c.h.b16 %v9653
        %v11152 = vunpack.c.l.b16 %v9654
        %v11153 = vunpack.c.h.b16 %v9654
        %v11154 = vunpack.c.l.b16 %v9655
        %v11155 = vunpack.c.h.b16 %v9655
        %v11156 = vunpack.c.l.b16 %v9656
        %v11157 = vunpack.c.h.b16 %v9656
        %v11158 = vunpack.c.l.b16 %v9657
        %v11159 = vunpack.c.h.b16 %v9657
        %v11160 = vunpack.c.l.b16 %v9658
        %v11161 = vunpack.c.h.b16 %v9658
        %v11162 = vunpack.c.l.b16 %v9659
        %v11163 = vunpack.c.h.b16 %v9659
        %v11164 = vunpack.c.l.b16 %v9660
        %v11165 = vunpack.c.h.b16 %v9660
        %v11166 = vunpack.c.l.b16 %v9661
        %v11167 = vunpack.c.h.b16 %v9661
        %v11168 = vunpack.c.l.b16 %v9662
        %v11169 = vunpack.c.h.b16 %v9662
        %v11170 = vunpack.c.l.b16 %v9663
        %v11171 = vunpack.c.h.b16 %v9663
        %v11172 = vunpack.c.l.b16 %v9664
        %v11173 = vunpack.c.h.b16 %v9664
        %v11174 = vunpack.c.l.b16 %v9665
        %v11175 = vunpack.c.h.b16 %v9665
        %v11176 = vunpack.c.l.b16 %v9666
        %v11177 = vunpack.c.h.b16 %v9666
        %v11178 = vunpack.c.l.b16 %v9667
        %v11179 = vunpack.c.h.b16 %v9667
        %v11180 = vunpack.c.l.b16 %v9668
        %v11181 = vunpack.c.h.b16 %v9668
        %v11182 = vunpack.c.l.b16 %v9669
        %v11183 = vunpack.c.h.b16 %v9669
        %v11184 = vunpack.c.l.b16 %v9670
        %v11185 = vunpack.c.h.b16 %v9670
        %v11186 = vunpack.c.l.b16 %v9671
        %v11187 = vunpack.c.h.b16 %v9671
        %v11188 = vunpack.c.l.b16 %v9672
        %v11189 = vunpack.c.h.b16 %v9672
        %v11190 = vunpack.c.l.b16 %v9673
        %v11191 = vunpack.c.h.b16 %v9673
        %v11192 = vunpack.c.l.b16 %v9674
        %v11193 = vunpack.c.h.b16 %v9674
        %v11194 = vunpack.c.l.b16 %v9675
        %v11195 = vunpack.c.h.b16 %v9675
        %v11196 = vunpack.c.l.b16 %v9676
        %v11197 = vunpack.c.h.b16 %v9676
        %v11198 = vunpack.c.l.b16 %v9677
        %v11199 = vunpack.c.h.b16 %v9677
        %v11200 = vunpack.c.l.b16 %v9678
        %v11201 = vunpack.c.h.b16 %v9678
        %v11202 = vunpack.c.l.b16 %v9679
        %v11203 = vunpack.c.h.b16 %v9679
        %v11204 = vunpack.c.l.b16 %v9680
        %v11205 = vunpack.c.h.b16 %v9680
        %v11206 = vunpack.c.l.b16 %v9681
        %v11207 = vunpack.c.h.b16 %v9681
        %v11208 = vunpack.c.l.b16 %v9682
        %v11209 = vunpack.c.h.b16 %v9682
        %v11210 = vunpack.c.l.b16 %v9683
        %v11211 = vunpack.c.h.b16 %v9683
        %v11212 = vunpack.c.l.b16 %v9684
        %v11213 = vunpack.c.h.b16 %v9684
        %v11214 = vunpack.c.l.b16 %v9685
        %v11215 = vunpack.c.h.b16 %v9685
        %v11216 = vunpack.c.l.b16 %v9686
        %v11217 = vunpack.c.h.b16 %v9686
        %v11218 = vunpack.c.l.b16 %v9687
        %v11219 = vunpack.c.h.b16 %v9687
        %v11220 = vunpack.c.l.b16 %v9688
        %v11221 = vunpack.c.h.b16 %v9688
        %v11222 = vunpack.c.l.b16 %v9689
        %v11223 = vunpack.c.h.b16 %v9689
        %v11224 = vunpack.c.l.b16 %v9690
        %v11225 = vunpack.c.h.b16 %v9690
        %v11226 = vunpack.c.l.b16 %v9691
        %v11227 = vunpack.c.h.b16 %v9691
        %v11228 = vunpack.c.l.b16 %v9692
        %v11229 = vunpack.c.h.b16 %v9692
        %v11230 = vunpack.c.l.b16 %v9693
        %v11231 = vunpack.c.h.b16 %v9693
        %v11232 = vunpack.c.l.b16 %v9694
        %v11233 = vunpack.c.h.b16 %v9694
        %v11234 = vunpack.c.l.b16 %v9695
        %v11235 = vunpack.c.h.b16 %v9695
        %v11236 = vunpack.c.l.b16 %v9696
        %v11237 = vunpack.c.h.b16 %v9696
        %v11238 = vunpack.c.l.b16 %v9697
        %v11239 = vunpack.c.h.b16 %v9697
        %v11240 = vunpack.c.l.b16 %v9698
        %v11241 = vunpack.c.h.b16 %v9698
        %v11242 = vunpack.c.l.b16 %v9699
        %v11243 = vunpack.c.h.b16 %v9699
        %v11244 = vunpack.c.l.b16 %v9700
        %v11245 = vunpack.c.h.b16 %v9700
        %v11246 = vunpack.c.l.b16 %v9701
        %v11247 = vunpack.c.h.b16 %v9701
        %v11248 = vunpack.c.l.b16 %v9702
        %v11249 = vunpack.c.h.b16 %v9702
        %v11250 = vunpack.c.l.b16 %v9703
        %v11251 = vunpack.c.h.b16 %v9703
        %v11252 = vunpack.c.l.b16 %v9704
        %v11253 = vunpack.c.h.b16 %v9704
        %v11254 = vunpack.c.l.b16 %v9705
        %v11255 = vunpack.c.h.b16 %v9705
        %v11256 = vunpack.c.l.b16 %v9706
        %v11257 = vunpack.c.h.b16 %v9706
        %v11258 = vunpack.c.l.b16 %v9707
        %v11259 = vunpack.c.h.b16 %v9707
        %v11260 = vunpack.c.l.b16 %v9708
        %v11261 = vunpack.c.h.b16 %v9708
        %v11262 = vunpack.c.l.b16 %v9709
        %v11263 = vunpack.c.h.b16 %v9709
        %v11264 = vunpack.c.l.b16 %v9710
        %v11265 = vunpack.c.h.b16 %v9710
        %v11266 = vunpack.c.l.b16 %v9711
        %v11267 = vunpack.c.h.b16 %v9711
        %v11268 = vunpack.c.l.b16 %v9712
        %v11269 = vunpack.c.h.b16 %v9712
        %v11270 = vunpack.c.l.b16 %v9713
        %v11271 = vunpack.c.h.b16 %v9713
        %v11272 = vpack.c.b16 %v10252, %v10248
        %v11273 = vpack.c.b16 %v10253, %v10249
        %v11274 = vpack.c.b16 %v10254, %v10250
        %v11275 = vpack.c.b16 %v10255, %v10251
        %v11276 = vpack.c.b16 %v10260, %v10256
        %v11277 = vpack.c.b16 %v10261, %v10257
        %v11278 = vpack.c.b16 %v10262, %v10258
        %v11279 = vpack.c.b16 %v10263, %v10259
        %v11280 = vpack.c.b16 %v10268, %v10264
        %v11281 = vpack.c.b16 %v10269, %v10265
        %v11282 = vpack.c.b16 %v10270, %v10266
        %v11283 = vpack.c.b16 %v10271, %v10267
        %v11284 = vpack.c.b16 %v10276, %v10272
        %v11285 = vpack.c.b16 %v10277, %v10273
        %v11286 = vpack.c.b16 %v10278, %v10274
        %v11287 = vpack.c.b16 %v10279, %v10275
        %v11288 = vpack.c.b16 %v10284, %v10280
        %v11289 = vpack.c.b16 %v10285, %v10281
        %v11290 = vpack.c.b16 %v10286, %v10282
        %v11291 = vpack.c.b16 %v10287, %v10283
        %v11292 = vpack.c.b16 %v10292, %v10288
        %v11293 = vpack.c.b16 %v10293, %v10289
        %v11294 = vpack.c.b16 %v10294, %v10290
        %v11295 = vpack.c.b16 %v10295, %v10291
        %v11296 = vpack.c.b16 %v10300, %v10296
        %v11297 = vpack.c.b16 %v10301, %v10297
        %v11298 = vpack.c.b16 %v10302, %v10298
        %v11299 = vpack.c.b16 %v10303, %v10299
        %v11300 = vpack.c.b16 %v10308, %v10304
        %v11301 = vpack.c.b16 %v10309, %v10305
        %v11302 = vpack.c.b16 %v10310, %v10306
        %v11303 = vpack.c.b16 %v10311, %v10307
        %v11304 = vpack.c.b16 %v10316, %v10312
        %v11305 = vpack.c.b16 %v10317, %v10313
        %v11306 = vpack.c.b16 %v10318, %v10314
        %v11307 = vpack.c.b16 %v10319, %v10315
        %v11308 = vpack.c.b16 %v10324, %v10320
        %v11309 = vpack.c.b16 %v10325, %v10321
        %v11310 = vpack.c.b16 %v10326, %v10322
        %v11311 = vpack.c.b16 %v10327, %v10323
        %v11312 = vpack.c.b16 %v10332, %v10328
        %v11313 = vpack.c.b16 %v10333, %v10329
        %v11314 = vpack.c.b16 %v10334, %v10330
        %v11315 = vpack.c.b16 %v10335, %v10331
        %v11316 = vpack.c.b16 %v10340, %v10336
        %v11317 = vpack.c.b16 %v10341, %v10337
        %v11318 = vpack.c.b16 %v10342, %v10338
        %v11319 = vpack.c.b16 %v10343, %v10339
        %v11320 = vpack.c.b16 %v10348, %v10344
        %v11321 = vpack.c.b16 %v10349, %v10345
        %v11322 = vpack.c.b16 %v10350, %v10346
        %v11323 = vpack.c.b16 %v10351, %v10347
        %v11324 = vpack.c.b16 %v10356, %v10352
        %v11325 = vpack.c.b16 %v10357, %v10353
        %v11326 = vpack.c.b16 %v10358, %v10354
        %v11327 = vpack.c.b16 %v10359, %v10355
        %v11328 = vpack.c.b16 %v10364, %v10360
        %v11329 = vpack.c.b16 %v10365, %v10361
        %v11330 = vpack.c.b16 %v10366, %v10362
        %v11331 = vpack.c.b16 %v10367, %v10363
        %v11332 = vpack.c.b16 %v10372, %v10368
        %v11333 = vpack.c.b16 %v10373, %v10369
        %v11334 = vpack.c.b16 %v10374, %v10370
        %v11335 = vpack.c.b16 %v10375, %v10371
        %v11336 = vpack.c.b16 %v10380, %v10376
        %v11337 = vpack.c.b16 %v10381, %v10377
        %v11338 = vpack.c.b16 %v10382, %v10378
        %v11339 = vpack.c.b16 %v10383, %v10379
        %v11340 = vpack.c.b16 %v10388, %v10384
        %v11341 = vpack.c.b16 %v10389, %v10385
        %v11342 = vpack.c.b16 %v10390, %v10386
        %v11343 = vpack.c.b16 %v10391, %v10387
        %v11344 = vpack.c.b16 %v10396, %v10392
        %v11345 = vpack.c.b16 %v10397, %v10393
        %v11346 = vpack.c.b16 %v10398, %v10394
        %v11347 = vpack.c.b16 %v10399, %v10395
        %v11348 = vpack.c.b16 %v10404, %v10400
        %v11349 = vpack.c.b16 %v10405, %v10401
        %v11350 = vpack.c.b16 %v10406, %v10402
        %v11351 = vpack.c.b16 %v10407, %v10403
        %v11352 = vpack.c.b16 %v10412, %v10408
        %v11353 = vpack.c.b16 %v10413, %v10409
        %v11354 = vpack.c.b16 %v10414, %v10410
        %v11355 = vpack.c.b16 %v10415, %v10411
        %v11356 = vpack.c.b16 %v10420, %v10416
        %v11357 = vpack.c.b16 %v10421, %v10417
        %v11358 = vpack.c.b16 %v10422, %v10418
        %v11359 = vpack.c.b16 %v10423, %v10419
        %v11360 = vpack.c.b16 %v10428, %v10424
        %v11361 = vpack.c.b16 %v10429, %v10425
        %v11362 = vpack.c.b16 %v10430, %v10426
        %v11363 = vpack.c.b16 %v10431, %v10427
        %v11364 = vpack.c.b16 %v10436, %v10432
        %v11365 = vpack.c.b16 %v10437, %v10433
        %v11366 = vpack.c.b16 %v10438, %v10434
        %v11367 = vpack.c.b16 %v10439, %v10435
        %v11368 = vpack.c.b16 %v10444, %v10440
        %v11369 = vpack.c.b16 %v10445, %v10441
        %v11370 = vpack.c.b16 %v10446, %v10442
        %v11371 = vpack.c.b16 %v10447, %v10443
        %v11372 = vpack.c.b16 %v10452, %v10448
        %v11373 = vpack.c.b16 %v10453, %v10449
        %v11374 = vpack.c.b16 %v10454, %v10450
        %v11375 = vpack.c.b16 %v10455, %v10451
        %v11376 = vpack.c.b16 %v10460, %v10456
        %v11377 = vpack.c.b16 %v10461, %v10457
        %v11378 = vpack.c.b16 %v10462, %v10458
        %v11379 = vpack.c.b16 %v10463, %v10459
        %v11380 = vpack.c.b16 %v10468, %v10464
        %v11381 = vpack.c.b16 %v10469, %v10465
        %v11382 = vpack.c.b16 %v10470, %v10466
        %v11383 = vpack.c.b16 %v10471, %v10467
        %v11384 = vpack.c.b16 %v10476, %v10472
        %v11385 = vpack.c.b16 %v10477, %v10473
        %v11386 = vpack.c.b16 %v10478, %v10474
        %v11387 = vpack.c.b16 %v10479, %v10475
        %v11388 = vpack.c.b16 %v10484, %v10480
        %v11389 = vpack.c.b16 %v10485, %v10481
        %v11390 = vpack.c.b16 %v10486, %v10482
        %v11391 = vpack.c.b16 %v10487, %v10483
        %v11392 = vpack.c.b16 %v10492, %v10488
        %v11393 = vpack.c.b16 %v10493, %v10489
        %v11394 = vpack.c.b16 %v10494, %v10490
        %v11395 = vpack.c.b16 %v10495, %v10491
        %v11396 = vpack.c.b16 %v10500, %v10496
        %v11397 = vpack.c.b16 %v10501, %v10497
        %v11398 = vpack.c.b16 %v10502, %v10498
        %v11399 = vpack.c.b16 %v10503, %v10499
        %v11400 = vpack.c.b16 %v10508, %v10504
        %v11401 = vpack.c.b16 %v10509, %v10505
        %v11402 = vpack.c.b16 %v10510, %v10506
        %v11403 = vpack.c.b16 %v10511, %v10507
        %v11404 = vpack.c.b16 %v10516, %v10512
        %v11405 = vpack.c.b16 %v10517, %v10513
        %v11406 = vpack.c.b16 %v10518, %v10514
        %v11407 = vpack.c.b16 %v10519, %v10515
        %v11408 = vpack.c.b16 %v10524, %v10520
        %v11409 = vpack.c.b16 %v10525, %v10521
        %v11410 = vpack.c.b16 %v10526, %v10522
        %v11411 = vpack.c.b16 %v10527, %v10523
        %v11412 = vpack.c.b16 %v10532, %v10528
        %v11413 = vpack.c.b16 %v10533, %v10529
        %v11414 = vpack.c.b16 %v10534, %v10530
        %v11415 = vpack.c.b16 %v10535, %v10531
        %v11416 = vpack.c.b16 %v10540, %v10536
        %v11417 = vpack.c.b16 %v10541, %v10537
        %v11418 = vpack.c.b16 %v10542, %v10538
        %v11419 = vpack.c.b16 %v10543, %v10539
        %v11420 = vpack.c.b16 %v10548, %v10544
        %v11421 = vpack.c.b16 %v10549, %v10545
        %v11422 = vpack.c.b16 %v10550, %v10546
        %v11423 = vpack.c.b16 %v10551, %v10547
        %v11424 = vpack.c.b16 %v10556, %v10552
        %v11425 = vpack.c.b16 %v10557, %v10553
        %v11426 = vpack.c.b16 %v10558, %v10554
        %v11427 = vpack.c.b16 %v10559, %v10555
        %v11428 = vpack.c.b16 %v10564, %v10560
        %v11429 = vpack.c.b16 %v10565, %v10561
        %v11430 = vpack.c.b16 %v10566, %v10562
        %v11431 = vpack.c.b16 %v10567, %v10563
        %v11432 = vpack.c.b16 %v10572, %v10568
        %v11433 = vpack.c.b16 %v10573, %v10569
        %v11434 = vpack.c.b16 %v10574, %v10570
        %v11435 = vpack.c.b16 %v10575, %v10571
        %v11436 = vpack.c.b16 %v10580, %v10576
        %v11437 = vpack.c.b16 %v10581, %v10577
        %v11438 = vpack.c.b16 %v10582, %v10578
        %v11439 = vpack.c.b16 %v10583, %v10579
        %v11440 = vpack.c.b16 %v10588, %v10584
        %v11441 = vpack.c.b16 %v10589, %v10585
        %v11442 = vpack.c.b16 %v10590, %v10586
        %v11443 = vpack.c.b16 %v10591, %v10587
        %v11444 = vpack.c.b16 %v10596, %v10592
        %v11445 = vpack.c.b16 %v10597, %v10593
        %v11446 = vpack.c.b16 %v10598, %v10594
        %v11447 = vpack.c.b16 %v10599, %v10595
        %v11448 = vpack.c.b16 %v10604, %v10600
        %v11449 = vpack.c.b16 %v10605, %v10601
        %v11450 = vpack.c.b16 %v10606, %v10602
        %v11451 = vpack.c.b16 %v10607, %v10603
        %v11452 = vpack.c.b16 %v10612, %v10608
        %v11453 = vpack.c.b16 %v10613, %v10609
        %v11454 = vpack.c.b16 %v10614, %v10610
        %v11455 = vpack.c.b16 %v10615, %v10611
        %v11456 = vpack.c.b16 %v10620, %v10616
        %v11457 = vpack.c.b16 %v10621, %v10617
        %v11458 = vpack.c.b16 %v10622, %v10618
        %v11459 = vpack.c.b16 %v10623, %v10619
        %v11460 = vpack.c.b16 %v10628, %v10624
        %v11461 = vpack.c.b16 %v10629, %v10625
        %v11462 = vpack.c.b16 %v10630, %v10626
        %v11463 = vpack.c.b16 %v10631, %v10627
        %v11464 = vpack.c.b16 %v10636, %v10632
        %v11465 = vpack.c.b16 %v10637, %v10633
        %v11466 = vpack.c.b16 %v10638, %v10634
        %v11467 = vpack.c.b16 %v10639, %v10635
        %v11468 = vpack.c.b16 %v10644, %v10640
        %v11469 = vpack.c.b16 %v10645, %v10641
        %v11470 = vpack.c.b16 %v10646, %v10642
        %v11471 = vpack.c.b16 %v10647, %v10643
        %v11472 = vpack.c.b16 %v10652, %v10648
        %v11473 = vpack.c.b16 %v10653, %v10649
        %v11474 = vpack.c.b16 %v10654, %v10650
        %v11475 = vpack.c.b16 %v10655, %v10651
        %v11476 = vpack.c.b16 %v10660, %v10656
        %v11477 = vpack.c.b16 %v10661, %v10657
        %v11478 = vpack.c.b16 %v10662, %v10658
        %v11479 = vpack.c.b16 %v10663, %v10659
        %v11480 = vpack.c.b16 %v10668, %v10664
        %v11481 = vpack.c.b16 %v10669, %v10665
        %v11482 = vpack.c.b16 %v10670, %v10666
        %v11483 = vpack.c.b16 %v10671, %v10667
        %v11484 = vpack.c.b16 %v10676, %v10672
        %v11485 = vpack.c.b16 %v10677, %v10673
        %v11486 = vpack.c.b16 %v10678, %v10674
        %v11487 = vpack.c.b16 %v10679, %v10675
        %v11488 = vpack.c.b16 %v10684, %v10680
        %v11489 = vpack.c.b16 %v10685, %v10681
        %v11490 = vpack.c.b16 %v10686, %v10682
        %v11491 = vpack.c.b16 %v10687, %v10683
        %v11492 = vpack.c.b16 %v10692, %v10688
        %v11493 = vpack.c.b16 %v10693, %v10689
        %v11494 = vpack.c.b16 %v10694, %v10690
        %v11495 = vpack.c.b16 %v10695, %v10691
        %v11496 = vpack.c.b16 %v10700, %v10696
        %v11497 = vpack.c.b16 %v10701, %v10697
        %v11498 = vpack.c.b16 %v10702, %v10698
        %v11499 = vpack.c.b16 %v10703, %v10699
        %v11500 = vpack.c.b16 %v10708, %v10704
        %v11501 = vpack.c.b16 %v10709, %v10705
        %v11502 = vpack.c.b16 %v10710, %v10706
        %v11503 = vpack.c.b16 %v10711, %v10707
        %v11504 = vpack.c.b16 %v10716, %v10712
        %v11505 = vpack.c.b16 %v10717, %v10713
        %v11506 = vpack.c.b16 %v10718, %v10714
        %v11507 = vpack.c.b16 %v10719, %v10715
        %v11508 = vpack.c.b16 %v10724, %v10720
        %v11509 = vpack.c.b16 %v10725, %v10721
        %v11510 = vpack.c.b16 %v10726, %v10722
        %v11511 = vpack.c.b16 %v10727, %v10723
        %v11512 = vpack.c.b16 %v10732, %v10728
        %v11513 = vpack.c.b16 %v10733, %v10729
        %v11514 = vpack.c.b16 %v10734, %v10730
        %v11515 = vpack.c.b16 %v10735, %v10731
        %v11516 = vpack.c.b16 %v10740, %v10736
        %v11517 = vpack.c.b16 %v10741, %v10737
        %v11518 = vpack.c.b16 %v10742, %v10738
        %v11519 = vpack.c.b16 %v10743, %v10739
        %v11520 = vpack.c.b16 %v10748, %v10744
        %v11521 = vpack.c.b16 %v10749, %v10745
        %v11522 = vpack.c.b16 %v10750, %v10746
        %v11523 = vpack.c.b16 %v10751, %v10747
        %v11524 = vpack.c.b16 %v10756, %v10752
        %v11525 = vpack.c.b16 %v10757, %v10753
        %v11526 = vpack.c.b16 %v10758, %v10754
        %v11527 = vpack.c.b16 %v10759, %v10755
        %v11528 = vpack.c.b16 %v10764, %v10760
        %v11529 = vpack.c.b16 %v10765, %v10761
        %v11530 = vpack.c.b16 %v10766, %v10762
        %v11531 = vpack.c.b16 %v10767, %v10763
        %v11532 = vpack.c.b16 %v10772, %v10768
        %v11533 = vpack.c.b16 %v10773, %v10769
        %v11534 = vpack.c.b16 %v10774, %v10770
        %v11535 = vpack.c.b16 %v10775, %v10771
        %v11536 = vpack.c.b16 %v10780, %v10776
        %v11537 = vpack.c.b16 %v10781, %v10777
        %v11538 = vpack.c.b16 %v10782, %v10778
        %v11539 = vpack.c.b16 %v10783, %v10779
        %v11540 = vpack.c.b16 %v10788, %v10784
        %v11541 = vpack.c.b16 %v10789, %v10785
        %v11542 = vpack.c.b16 %v10790, %v10786
        %v11543 = vpack.c.b16 %v10791, %v10787
        %v11544 = vpack.c.b16 %v10796, %v10792
        %v11545 = vpack.c.b16 %v10797, %v10793
        %v11546 = vpack.c.b16 %v10798, %v10794
        %v11547 = vpack.c.b16 %v10799, %v10795
        %v11548 = vpack.c.b16 %v10804, %v10800
        %v11549 = vpack.c.b16 %v10805, %v10801
        %v11550 = vpack.c.b16 %v10806, %v10802
        %v11551 = vpack.c.b16 %v10807, %v10803
        %v11552 = vpack.c.b16 %v10812, %v10808
        %v11553 = vpack.c.b16 %v10813, %v10809
        %v11554 = vpack.c.b16 %v10814, %v10810
        %v11555 = vpack.c.b16 %v10815, %v10811
        %v11556 = vpack.c.b16 %v10820, %v10816
        %v11557 = vpack.c.b16 %v10821, %v10817
        %v11558 = vpack.c.b16 %v10822, %v10818
        %v11559 = vpack.c.b16 %v10823, %v10819
        %v11560 = vpack.c.b16 %v10828, %v10824
        %v11561 = vpack.c.b16 %v10829, %v10825
        %v11562 = vpack.c.b16 %v10830, %v10826
        %v11563 = vpack.c.b16 %v10831, %v10827
        %v11564 = vpack.c.b16 %v10836, %v10832
        %v11565 = vpack.c.b16 %v10837, %v10833
        %v11566 = vpack.c.b16 %v10838, %v10834
        %v11567 = vpack.c.b16 %v10839, %v10835
        %v11568 = vpack.c.b16 %v10844, %v10840
        %v11569 = vpack.c.b16 %v10845, %v10841
        %v11570 = vpack.c.b16 %v10846, %v10842
        %v11571 = vpack.c.b16 %v10847, %v10843
        %v11572 = vpack.c.b16 %v10852, %v10848
        %v11573 = vpack.c.b16 %v10853, %v10849
        %v11574 = vpack.c.b16 %v10854, %v10850
        %v11575 = vpack.c.b16 %v10855, %v10851
        %v11576 = vpack.c.b16 %v10860, %v10856
        %v11577 = vpack.c.b16 %v10861, %v10857
        %v11578 = vpack.c.b16 %v10862, %v10858
        %v11579 = vpack.c.b16 %v10863, %v10859
        %v11580 = vpack.c.b16 %v10868, %v10864
        %v11581 = vpack.c.b16 %v10869, %v10865
        %v11582 = vpack.c.b16 %v10870, %v10866
        %v11583 = vpack.c.b16 %v10871, %v10867
        %v11584 = vpack.c.b16 %v10876, %v10872
        %v11585 = vpack.c.b16 %v10877, %v10873
        %v11586 = vpack.c.b16 %v10878, %v10874
        %v11587 = vpack.c.b16 %v10879, %v10875
        %v11588 = vpack.c.b16 %v10884, %v10880
        %v11589 = vpack.c.b16 %v10885, %v10881
        %v11590 = vpack.c.b16 %v10886, %v10882
        %v11591 = vpack.c.b16 %v10887, %v10883
        %v11592 = vpack.c.b16 %v10892, %v10888
        %v11593 = vpack.c.b16 %v10893, %v10889
        %v11594 = vpack.c.b16 %v10894, %v10890
        %v11595 = vpack.c.b16 %v10895, %v10891
        %v11596 = vpack.c.b16 %v10900, %v10896
        %v11597 = vpack.c.b16 %v10901, %v10897
        %v11598 = vpack.c.b16 %v10902, %v10898
        %v11599 = vpack.c.b16 %v10903, %v10899
        %v11600 = vpack.c.b16 %v10908, %v10904
        %v11601 = vpack.c.b16 %v10909, %v10905
        %v11602 = vpack.c.b16 %v10910, %v10906
        %v11603 = vpack.c.b16 %v10911, %v10907
        %v11604 = vpack.c.b16 %v10916, %v10912
        %v11605 = vpack.c.b16 %v10917, %v10913
        %v11606 = vpack.c.b16 %v10918, %v10914
        %v11607 = vpack.c.b16 %v10919, %v10915
        %v11608 = vpack.c.b16 %v10924, %v10920
        %v11609 = vpack.c.b16 %v10925, %v10921
        %v11610 = vpack.c.b16 %v10926, %v10922
        %v11611 = vpack.c.b16 %v10927, %v10923
        %v11612 = vpack.c.b16 %v10932, %v10928
        %v11613 = vpack.c.b16 %v10933, %v10929
        %v11614 = vpack.c.b16 %v10934, %v10930
        %v11615 = vpack.c.b16 %v10935, %v10931
        %v11616 = vpack.c.b16 %v10940, %v10936
        %v11617 = vpack.c.b16 %v10941, %v10937
        %v11618 = vpack.c.b16 %v10942, %v10938
        %v11619 = vpack.c.b16 %v10943, %v10939
        %v11620 = vpack.c.b16 %v10948, %v10944
        %v11621 = vpack.c.b16 %v10949, %v10945
        %v11622 = vpack.c.b16 %v10950, %v10946
        %v11623 = vpack.c.b16 %v10951, %v10947
        %v11624 = vpack.c.b16 %v10956, %v10952
        %v11625 = vpack.c.b16 %v10957, %v10953
        %v11626 = vpack.c.b16 %v10958, %v10954
        %v11627 = vpack.c.b16 %v10959, %v10955
        %v11628 = vpack.c.b16 %v10964, %v10960
        %v11629 = vpack.c.b16 %v10965, %v10961
        %v11630 = vpack.c.b16 %v10966, %v10962
        %v11631 = vpack.c.b16 %v10967, %v10963
        %v11632 = vpack.c.b16 %v10972, %v10968
        %v11633 = vpack.c.b16 %v10973, %v10969
        %v11634 = vpack.c.b16 %v10974, %v10970
        %v11635 = vpack.c.b16 %v10975, %v10971
        %v11636 = vpack.c.b16 %v10980, %v10976
        %v11637 = vpack.c.b16 %v10981, %v10977
        %v11638 = vpack.c.b16 %v10982, %v10978
        %v11639 = vpack.c.b16 %v10983, %v10979
        %v11640 = vpack.c.b16 %v10988, %v10984
        %v11641 = vpack.c.b16 %v10989, %v10985
        %v11642 = vpack.c.b16 %v10990, %v10986
        %v11643 = vpack.c.b16 %v10991, %v10987
        %v11644 = vpack.c.b16 %v10996, %v10992
        %v11645 = vpack.c.b16 %v10997, %v10993
        %v11646 = vpack.c.b16 %v10998, %v10994
        %v11647 = vpack.c.b16 %v10999, %v10995
        %v11648 = vpack.c.b16 %v11004, %v11000
        %v11649 = vpack.c.b16 %v11005, %v11001
        %v11650 = vpack.c.b16 %v11006, %v11002
        %v11651 = vpack.c.b16 %v11007, %v11003
        %v11652 = vpack.c.b16 %v11012, %v11008
        %v11653 = vpack.c.b16 %v11013, %v11009
        %v11654 = vpack.c.b16 %v11014, %v11010
        %v11655 = vpack.c.b16 %v11015, %v11011
        %v11656 = vpack.c.b16 %v11020, %v11016
        %v11657 = vpack.c.b16 %v11021, %v11017
        %v11658 = vpack.c.b16 %v11022, %v11018
        %v11659 = vpack.c.b16 %v11023, %v11019
        %v11660 = vpack.c.b16 %v11028, %v11024
        %v11661 = vpack.c.b16 %v11029, %v11025
        %v11662 = vpack.c.b16 %v11030, %v11026
        %v11663 = vpack.c.b16 %v11031, %v11027
        %v11664 = vpack.c.b16 %v11036, %v11032
        %v11665 = vpack.c.b16 %v11037, %v11033
        %v11666 = vpack.c.b16 %v11038, %v11034
        %v11667 = vpack.c.b16 %v11039, %v11035
        %v11668 = vpack.c.b16 %v11044, %v11040
        %v11669 = vpack.c.b16 %v11045, %v11041
        %v11670 = vpack.c.b16 %v11046, %v11042
        %v11671 = vpack.c.b16 %v11047, %v11043
        %v11672 = vpack.c.b16 %v11052, %v11048
        %v11673 = vpack.c.b16 %v11053, %v11049
        %v11674 = vpack.c.b16 %v11054, %v11050
        %v11675 = vpack.c.b16 %v11055, %v11051
        %v11676 = vpack.c.b16 %v11060, %v11056
        %v11677 = vpack.c.b16 %v11061, %v11057
        %v11678 = vpack.c.b16 %v11062, %v11058
        %v11679 = vpack.c.b16 %v11063, %v11059
        %v11680 = vpack.c.b16 %v11068, %v11064
        %v11681 = vpack.c.b16 %v11069, %v11065
        %v11682 = vpack.c.b16 %v11070, %v11066
        %v11683 = vpack.c.b16 %v11071, %v11067
        %v11684 = vpack.c.b16 %v11076, %v11072
        %v11685 = vpack.c.b16 %v11077, %v11073
        %v11686 = vpack.c.b16 %v11078, %v11074
        %v11687 = vpack.c.b16 %v11079, %v11075
        %v11688 = vpack.c.b16 %v11084, %v11080
        %v11689 = vpack.c.b16 %v11085, %v11081
        %v11690 = vpack.c.b16 %v11086, %v11082
        %v11691 = vpack.c.b16 %v11087, %v11083
        %v11692 = vpack.c.b16 %v11092, %v11088
        %v11693 = vpack.c.b16 %v11093, %v11089
        %v11694 = vpack.c.b16 %v11094, %v11090
        %v11695 = vpack.c.b16 %v11095, %v11091
        %v11696 = vpack.c.b16 %v11100, %v11096
        %v11697 = vpack.c.b16 %v11101, %v11097
        %v11698 = vpack.c.b16 %v11102, %v11098
        %v11699 = vpack.c.b16 %v11103, %v11099
        %v11700 = vpack.c.b16 %v11108, %v11104
        %v11701 = vpack.c.b16 %v11109, %v11105
        %v11702 = vpack.c.b16 %v11110, %v11106
        %v11703 = vpack.c.b16 %v11111, %v11107
        %v11704 = vpack.c.b16 %v11116, %v11112
        %v11705 = vpack.c.b16 %v11117, %v11113
        %v11706 = vpack.c.b16 %v11118, %v11114
        %v11707 = vpack.c.b16 %v11119, %v11115
        %v11708 = vpack.c.b16 %v11124, %v11120
        %v11709 = vpack.c.b16 %v11125, %v11121
        %v11710 = vpack.c.b16 %v11126, %v11122
        %v11711 = vpack.c.b16 %v11127, %v11123
        %v11712 = vpack.c.b16 %v11132, %v11128
        %v11713 = vpack.c.b16 %v11133, %v11129
        %v11714 = vpack.c.b16 %v11134, %v11130
        %v11715 = vpack.c.b16 %v11135, %v11131
        %v11716 = vpack.c.b16 %v11140, %v11136
        %v11717 = vpack.c.b16 %v11141, %v11137
        %v11718 = vpack.c.b16 %v11142, %v11138
        %v11719 = vpack.c.b16 %v11143, %v11139
        %v11720 = vpack.c.b16 %v11148, %v11144
        %v11721 = vpack.c.b16 %v11149, %v11145
        %v11722 = vpack.c.b16 %v11150, %v11146
        %v11723 = vpack.c.b16 %v11151, %v11147
        %v11724 = vpack.c.b16 %v11156, %v11152
        %v11725 = vpack.c.b16 %v11157, %v11153
        %v11726 = vpack.c.b16 %v11158, %v11154
        %v11727 = vpack.c.b16 %v11159, %v11155
        %v11728 = vpack.c.b16 %v11164, %v11160
        %v11729 = vpack.c.b16 %v11165, %v11161
        %v11730 = vpack.c.b16 %v11166, %v11162
        %v11731 = vpack.c.b16 %v11167, %v11163
        %v11732 = vpack.c.b16 %v11172, %v11168
        %v11733 = vpack.c.b16 %v11173, %v11169
        %v11734 = vpack.c.b16 %v11174, %v11170
        %v11735 = vpack.c.b16 %v11175, %v11171
        %v11736 = vpack.c.b16 %v11180, %v11176
        %v11737 = vpack.c.b16 %v11181, %v11177
        %v11738 = vpack.c.b16 %v11182, %v11178
        %v11739 = vpack.c.b16 %v11183, %v11179
        %v11740 = vpack.c.b16 %v11188, %v11184
        %v11741 = vpack.c.b16 %v11189, %v11185
        %v11742 = vpack.c.b16 %v11190, %v11186
        %v11743 = vpack.c.b16 %v11191, %v11187
        %v11744 = vpack.c.b16 %v11196, %v11192
        %v11745 = vpack.c.b16 %v11197, %v11193
        %v11746 = vpack.c.b16 %v11198, %v11194
        %v11747 = vpack.c.b16 %v11199, %v11195
        %v11748 = vpack.c.b16 %v11204, %v11200
        %v11749 = vpack.c.b16 %v11205, %v11201
        %v11750 = vpack.c.b16 %v11206, %v11202
        %v11751 = vpack.c.b16 %v11207, %v11203
        %v11752 = vpack.c.b16 %v11212, %v11208
        %v11753 = vpack.c.b16 %v11213, %v11209
        %v11754 = vpack.c.b16 %v11214, %v11210
        %v11755 = vpack.c.b16 %v11215, %v11211
        %v11756 = vpack.c.b16 %v11220, %v11216
        %v11757 = vpack.c.b16 %v11221, %v11217
        %v11758 = vpack.c.b16 %v11222, %v11218
        %v11759 = vpack.c.b16 %v11223, %v11219
        %v11760 = vpack.c.b16 %v11228, %v11224
        %v11761 = vpack.c.b16 %v11229, %v11225
        %v11762 = vpack.c.b16 %v11230, %v11226
        %v11763 = vpack.c.b16 %v11231, %v11227
        %v11764 = vpack.c.b16 %v11236, %v11232
        %v11765 = vpack.c.b16 %v11237, %v11233
        %v11766 = vpack.c.b16 %v11238, %v11234
        %v11767 = vpack.c.b16 %v11239, %v11235
        %v11768 = vpack.c.b16 %v11244, %v11240
        %v11769 = vpack.c.b16 %v11245, %v11241
        %v11770 = vpack.c.b16 %v11246, %v11242
        %v11771 = vpack.c.b16 %v11247, %v11243
        %v11772 = vpack.c.b16 %v11252, %v11248
        %v11773 = vpack.c.b16 %v11253, %v11249
        %v11774 = vpack.c.b16 %v11254, %v11250
        %v11775 = vpack.c.b16 %v11255, %v11251
        %v11776 = vpack.c.b16 %v11260, %v11256
        %v11777 = vpack.c.b16 %v11261, %v11257
        %v11778 = vpack.c.b16 %v11262, %v11258
        %v11779 = vpack.c.b16 %v11263, %v11259
        %v11780 = vpack.c.b16 %v11268, %v11264
        %v11781 = vpack.c.b16 %v11269, %v11265
        %v11782 = vpack.c.b16 %v11270, %v11266
        %v11783 = vpack.c.b16 %v11271, %v11267
        %12296 = vmatprep.subr.bf16.mxu0 %v11301
        %12297 = vmatpush1.bf16.msra.mxu0 %v11300
        %12298 = vmatprep.subr.bf16.mxu0 %v11297
        %12299 = vmatpush1.bf16.msra.mxu0 %v11296
        %12300 = vmatprep.subr.bf16.mxu0 %v11293
        %12301 = vmatpush1.bf16.msra.mxu0 %v11292
        %12302 = vmatprep.subr.bf16.mxu0 %v11289
        %12303 = vmatpush1.bf16.msra.mxu0 %v11288
        %12304 = vmatprep.subr.bf16.mxu0 %v11285
        %12305 = vmatpush1.bf16.msra.mxu0 %v11284
        %12306 = vmatprep.subr.bf16.mxu0 %v11281
        %12307 = vmatpush1.bf16.msra.mxu0 %v11280
        %12308 = vmatprep.subr.bf16.mxu0 %v11277
        %12309 = vmatpush1.bf16.msra.mxu0 %v11276
        %12310 = vmatprep.subr.bf16.mxu0 %v11273
        %12311 = vmatpush1.bf16.msra.mxu0 %v11272
        %12312 = vmatprep.subr.bf16.mxu0 %v11333
        %12313 = vmatpush2.bf16.msra.mxu0 %v11332
        %12314 = vmatprep.subr.bf16.mxu0 %v11329
        %12315 = vmatpush2.bf16.msra.mxu0 %v11328
        %12316 = vmatprep.subr.bf16.mxu0 %v11325
        %12317 = vmatpush2.bf16.msra.mxu0 %v11324
        %12318 = vmatprep.subr.bf16.mxu0 %v11321
        %12319 = vmatpush2.bf16.msra.mxu0 %v11320
        %12320 = vmatprep.subr.bf16.mxu0 %v11317
        %12321 = vmatpush2.bf16.msra.mxu0 %v11316
        %12322 = vmatprep.subr.bf16.mxu0 %v11313
        %12323 = vmatpush2.bf16.msra.mxu0 %v11312
        %12324 = vmatprep.subr.bf16.mxu0 %v11309
        %12325 = vmatpush2.bf16.msra.mxu0 %v11308
        %12326 = vmatprep.subr.bf16.mxu0 %v11305
        %12327 = vmatpush2.bf16.msra.mxu0 %v11304
        %12328 = vmatprep.mubr.bf16.mxu0 %v9187
        %12329 = vmatmul.mubr.bf16.gmra.mxu0 %v9186
        %v12330 = vpop.f32.mrf.mxu0
        %v12331 = vadd.f32 %v9719, %v12330
        %v12332 = vpop.f32.mrf.mxu0
        %v12333 = vadd.f32 %v9723, %v12332
        %v12334 = vpop.f32.mrf.mxu0
        %v12335 = vpop.f32.mrf.mxu0
        %12336 = vdwg.mxu0
        %12337 = vmatprep.subr.bf16.mxu0 %v11365
        %12338 = vmatpush1.bf16.msra.mxu0 %v11364
        %12339 = vmatprep.subr.bf16.mxu0 %v11361
        %12340 = vmatpush1.bf16.msra.mxu0 %v11360
        %12341 = vmatprep.subr.bf16.mxu0 %v11357
        %12342 = vmatpush1.bf16.msra.mxu0 %v11356
        %12343 = vmatprep.subr.bf16.mxu0 %v11353
        %12344 = vmatpush1.bf16.msra.mxu0 %v11352
        %12345 = vmatprep.subr.bf16.mxu0 %v11349
        %12346 = vmatpush1.bf16.msra.mxu0 %v11348
        %12347 = vmatprep.subr.bf16.mxu0 %v11345
        %12348 = vmatpush1.bf16.msra.mxu0 %v11344
        %12349 = vmatprep.subr.bf16.mxu0 %v11341
        %12350 = vmatpush1.bf16.msra.mxu0 %v11340
        %12351 = vmatprep.subr.bf16.mxu0 %v11337
        %12352 = vmatpush1.bf16.msra.mxu0 %v11336
        %12353 = vmatprep.subr.bf16.mxu0 %v11397
        %12354 = vmatpush2.bf16.msra.mxu0 %v11396
        %12355 = vmatprep.subr.bf16.mxu0 %v11393
        %12356 = vmatpush2.bf16.msra.mxu0 %v11392
        %12357 = vmatprep.subr.bf16.mxu0 %v11389
        %12358 = vmatpush2.bf16.msra.mxu0 %v11388
        %12359 = vmatprep.subr.bf16.mxu0 %v11385
        %12360 = vmatpush2.bf16.msra.mxu0 %v11384
        %12361 = vmatprep.subr.bf16.mxu0 %v11381
        %12362 = vmatpush2.bf16.msra.mxu0 %v11380
        %12363 = vmatprep.subr.bf16.mxu0 %v11377
        %12364 = vmatpush2.bf16.msra.mxu0 %v11376
        %12365 = vmatprep.subr.bf16.mxu0 %v11373
        %12366 = vmatpush2.bf16.msra.mxu0 %v11372
        %12367 = vmatprep.subr.bf16.mxu0 %v11369
        %12368 = vmatpush2.bf16.msra.mxu0 %v11368
        %12369 = vmatprep.mubr.bf16.mxu0 %v9189
        %12370 = vmatmul.mubr.bf16.gmra.mxu0 %v9188
        %v12371 = vpop.f32.mrf.mxu0
        %v12372 = vadd.f32 %v12331, %v12371
        %v12373 = vpop.f32.mrf.mxu0
        %v12374 = vadd.f32 %v12333, %v12373
        %v12375 = vpop.f32.mrf.mxu0
        %v12376 = vpop.f32.mrf.mxu0
        %12377 = vdwg.mxu0
        %12378 = vmatprep.subr.bf16.mxu0 %v11429
        %12379 = vmatpush1.bf16.msra.mxu0 %v11428
        %12380 = vmatprep.subr.bf16.mxu0 %v11425
        %12381 = vmatpush1.bf16.msra.mxu0 %v11424
        %12382 = vmatprep.subr.bf16.mxu0 %v11421
        %12383 = vmatpush1.bf16.msra.mxu0 %v11420
        %12384 = vmatprep.subr.bf16.mxu0 %v11417
        %12385 = vmatpush1.bf16.msra.mxu0 %v11416
        %12386 = vmatprep.subr.bf16.mxu0 %v11413
        %12387 = vmatpush1.bf16.msra.mxu0 %v11412
        %12388 = vmatprep.subr.bf16.mxu0 %v11409
        %12389 = vmatpush1.bf16.msra.mxu0 %v11408
        %12390 = vmatprep.subr.bf16.mxu0 %v11405
        %12391 = vmatpush1.bf16.msra.mxu0 %v11404
        %12392 = vmatprep.subr.bf16.mxu0 %v11401
        %12393 = vmatpush1.bf16.msra.mxu0 %v11400
        %12394 = vmatprep.subr.bf16.mxu0 %v11461
        %12395 = vmatpush2.bf16.msra.mxu0 %v11460
        %12396 = vmatprep.subr.bf16.mxu0 %v11457
        %12397 = vmatpush2.bf16.msra.mxu0 %v11456
        %12398 = vmatprep.subr.bf16.mxu0 %v11453
        %12399 = vmatpush2.bf16.msra.mxu0 %v11452
        %12400 = vmatprep.subr.bf16.mxu0 %v11449
        %12401 = vmatpush2.bf16.msra.mxu0 %v11448
        %12402 = vmatprep.subr.bf16.mxu0 %v11445
        %12403 = vmatpush2.bf16.msra.mxu0 %v11444
        %12404 = vmatprep.subr.bf16.mxu0 %v11441
        %12405 = vmatpush2.bf16.msra.mxu0 %v11440
        %12406 = vmatprep.subr.bf16.mxu0 %v11437
        %12407 = vmatpush2.bf16.msra.mxu0 %v11436
        %12408 = vmatprep.subr.bf16.mxu0 %v11433
        %12409 = vmatpush2.bf16.msra.mxu0 %v11432
        %12410 = vmatprep.mubr.bf16.mxu0 %v9191
        %12411 = vmatmul.mubr.bf16.gmra.mxu0 %v9190
        %v12412 = vpop.f32.mrf.mxu0
        %v12413 = vadd.f32 %v12372, %v12412
        %v12414 = vpop.f32.mrf.mxu0
        %v12415 = vadd.f32 %v12374, %v12414
        %v12416 = vpop.f32.mrf.mxu0
        %v12417 = vpop.f32.mrf.mxu0
        %12418 = vdwg.mxu0
        %12419 = vmatprep.subr.bf16.mxu0 %v11493
        %12420 = vmatpush1.bf16.msra.mxu0 %v11492
        %12421 = vmatprep.subr.bf16.mxu0 %v11489
        %12422 = vmatpush1.bf16.msra.mxu0 %v11488
        %12423 = vmatprep.subr.bf16.mxu0 %v11485
        %12424 = vmatpush1.bf16.msra.mxu0 %v11484
        %12425 = vmatprep.subr.bf16.mxu0 %v11481
        %12426 = vmatpush1.bf16.msra.mxu0 %v11480
        %12427 = vmatprep.subr.bf16.mxu0 %v11477
        %12428 = vmatpush1.bf16.msra.mxu0 %v11476
        %12429 = vmatprep.subr.bf16.mxu0 %v11473
        %12430 = vmatpush1.bf16.msra.mxu0 %v11472
        %12431 = vmatprep.subr.bf16.mxu0 %v11469
        %12432 = vmatpush1.bf16.msra.mxu0 %v11468
        %12433 = vmatprep.subr.bf16.mxu0 %v11465
        %12434 = vmatpush1.bf16.msra.mxu0 %v11464
        %12435 = vmatprep.subr.bf16.mxu0 %v11525
        %12436 = vmatpush2.bf16.msra.mxu0 %v11524
        %12437 = vmatprep.subr.bf16.mxu0 %v11521
        %12438 = vmatpush2.bf16.msra.mxu0 %v11520
        %12439 = vmatprep.subr.bf16.mxu0 %v11517
        %12440 = vmatpush2.bf16.msra.mxu0 %v11516
        %12441 = vmatprep.subr.bf16.mxu0 %v11513
        %12442 = vmatpush2.bf16.msra.mxu0 %v11512
        %12443 = vmatprep.subr.bf16.mxu0 %v11509
        %12444 = vmatpush2.bf16.msra.mxu0 %v11508
        %12445 = vmatprep.subr.bf16.mxu0 %v11505
        %12446 = vmatpush2.bf16.msra.mxu0 %v11504
        %12447 = vmatprep.subr.bf16.mxu0 %v11501
        %12448 = vmatpush2.bf16.msra.mxu0 %v11500
        %12449 = vmatprep.subr.bf16.mxu0 %v11497
        %12450 = vmatpush2.bf16.msra.mxu0 %v11496
        %12451 = vmatprep.mubr.bf16.mxu0 %v9193
        %12452 = vmatmul.mubr.bf16.gmra.mxu0 %v9192
        %v12453 = vpop.f32.mrf.mxu0
        %v12454 = vadd.f32 %v12413, %v12453
        %v12455 = vpop.f32.mrf.mxu0
        %v12456 = vadd.f32 %v12415, %v12455
        %v12457 = vpop.f32.mrf.mxu0
        %v12458 = vpop.f32.mrf.mxu0
        %12459 = vdwg.mxu0
        %12460 = vmatprep.subr.bf16.mxu0 %v11557
        %12461 = vmatpush1.bf16.msra.mxu0 %v11556
        %12462 = vmatprep.subr.bf16.mxu0 %v11553
        %12463 = vmatpush1.bf16.msra.mxu0 %v11552
        %12464 = vmatprep.subr.bf16.mxu0 %v11549
        %12465 = vmatpush1.bf16.msra.mxu0 %v11548
        %12466 = vmatprep.subr.bf16.mxu0 %v11545
        %12467 = vmatpush1.bf16.msra.mxu0 %v11544
        %12468 = vmatprep.subr.bf16.mxu0 %v11541
        %12469 = vmatpush1.bf16.msra.mxu0 %v11540
        %12470 = vmatprep.subr.bf16.mxu0 %v11537
        %12471 = vmatpush1.bf16.msra.mxu0 %v11536
        %12472 = vmatprep.subr.bf16.mxu0 %v11533
        %12473 = vmatpush1.bf16.msra.mxu0 %v11532
        %12474 = vmatprep.subr.bf16.mxu0 %v11529
        %12475 = vmatpush1.bf16.msra.mxu0 %v11528
        %12476 = vmatprep.subr.bf16.mxu0 %v11589
        %12477 = vmatpush2.bf16.msra.mxu0 %v11588
        %12478 = vmatprep.subr.bf16.mxu0 %v11585
        %12479 = vmatpush2.bf16.msra.mxu0 %v11584
        %12480 = vmatprep.subr.bf16.mxu0 %v11581
        %12481 = vmatpush2.bf16.msra.mxu0 %v11580
        %12482 = vmatprep.subr.bf16.mxu0 %v11577
        %12483 = vmatpush2.bf16.msra.mxu0 %v11576
        %12484 = vmatprep.subr.bf16.mxu0 %v11573
        %12485 = vmatpush2.bf16.msra.mxu0 %v11572
        %12486 = vmatprep.subr.bf16.mxu0 %v11569
        %12487 = vmatpush2.bf16.msra.mxu0 %v11568
        %12488 = vmatprep.subr.bf16.mxu0 %v11565
        %12489 = vmatpush2.bf16.msra.mxu0 %v11564
        %12490 = vmatprep.subr.bf16.mxu0 %v11561
        %12491 = vmatpush2.bf16.msra.mxu0 %v11560
        %12492 = vmatprep.mubr.bf16.mxu0 %v9195
        %12493 = vmatmul.mubr.bf16.gmra.mxu0 %v9194
        %v12494 = vpop.f32.mrf.mxu0
        %v12495 = vadd.f32 %v12454, %v12494
        %v12496 = vpop.f32.mrf.mxu0
        %v12497 = vadd.f32 %v12456, %v12496
        %v12498 = vpop.f32.mrf.mxu0
        %v12499 = vpop.f32.mrf.mxu0
        %12500 = vdwg.mxu0
        %12501 = vmatprep.subr.bf16.mxu0 %v11621
        %12502 = vmatpush1.bf16.msra.mxu0 %v11620
        %12503 = vmatprep.subr.bf16.mxu0 %v11617
        %12504 = vmatpush1.bf16.msra.mxu0 %v11616
        %12505 = vmatprep.subr.bf16.mxu0 %v11613
        %12506 = vmatpush1.bf16.msra.mxu0 %v11612
        %12507 = vmatprep.subr.bf16.mxu0 %v11609
        %12508 = vmatpush1.bf16.msra.mxu0 %v11608
        %12509 = vmatprep.subr.bf16.mxu0 %v11605
        %12510 = vmatpush1.bf16.msra.mxu0 %v11604
        %12511 = vmatprep.subr.bf16.mxu0 %v11601
        %12512 = vmatpush1.bf16.msra.mxu0 %v11600
        %12513 = vmatprep.subr.bf16.mxu0 %v11597
        %12514 = vmatpush1.bf16.msra.mxu0 %v11596
        %12515 = vmatprep.subr.bf16.mxu0 %v11593
        %12516 = vmatpush1.bf16.msra.mxu0 %v11592
        %12517 = vmatprep.subr.bf16.mxu0 %v11653
        %12518 = vmatpush2.bf16.msra.mxu0 %v11652
        %12519 = vmatprep.subr.bf16.mxu0 %v11649
        %12520 = vmatpush2.bf16.msra.mxu0 %v11648
        %12521 = vmatprep.subr.bf16.mxu0 %v11645
        %12522 = vmatpush2.bf16.msra.mxu0 %v11644
        %12523 = vmatprep.subr.bf16.mxu0 %v11641
        %12524 = vmatpush2.bf16.msra.mxu0 %v11640
        %12525 = vmatprep.subr.bf16.mxu0 %v11637
        %12526 = vmatpush2.bf16.msra.mxu0 %v11636
        %12527 = vmatprep.subr.bf16.mxu0 %v11633
        %12528 = vmatpush2.bf16.msra.mxu0 %v11632
        %12529 = vmatprep.subr.bf16.mxu0 %v11629
        %12530 = vmatpush2.bf16.msra.mxu0 %v11628
        %12531 = vmatprep.subr.bf16.mxu0 %v11625
        %12532 = vmatpush2.bf16.msra.mxu0 %v11624
        %12533 = vmatprep.mubr.bf16.mxu0 %v9197
        %12534 = vmatmul.mubr.bf16.gmra.mxu0 %v9196
        %v12535 = vpop.f32.mrf.mxu0
        %v12536 = vadd.f32 %v12495, %v12535
        %v12537 = vpop.f32.mrf.mxu0
        %v12538 = vadd.f32 %v12497, %v12537
        %v12539 = vpop.f32.mrf.mxu0
        %v12540 = vpop.f32.mrf.mxu0
        %12541 = vdwg.mxu0
        %12542 = vmatprep.subr.bf16.mxu0 %v11685
        %12543 = vmatpush1.bf16.msra.mxu0 %v11684
        %12544 = vmatprep.subr.bf16.mxu0 %v11681
        %12545 = vmatpush1.bf16.msra.mxu0 %v11680
        %12546 = vmatprep.subr.bf16.mxu0 %v11677
        %12547 = vmatpush1.bf16.msra.mxu0 %v11676
        %12548 = vmatprep.subr.bf16.mxu0 %v11673
        %12549 = vmatpush1.bf16.msra.mxu0 %v11672
        %12550 = vmatprep.subr.bf16.mxu0 %v11669
        %12551 = vmatpush1.bf16.msra.mxu0 %v11668
        %12552 = vmatprep.subr.bf16.mxu0 %v11665
        %12553 = vmatpush1.bf16.msra.mxu0 %v11664
        %12554 = vmatprep.subr.bf16.mxu0 %v11661
        %12555 = vmatpush1.bf16.msra.mxu0 %v11660
        %12556 = vmatprep.subr.bf16.mxu0 %v11657
        %12557 = vmatpush1.bf16.msra.mxu0 %v11656
        %12558 = vmatprep.subr.bf16.mxu0 %v11717
        %12559 = vmatpush2.bf16.msra.mxu0 %v11716
        %12560 = vmatprep.subr.bf16.mxu0 %v11713
        %12561 = vmatpush2.bf16.msra.mxu0 %v11712
        %12562 = vmatprep.subr.bf16.mxu0 %v11709
        %12563 = vmatpush2.bf16.msra.mxu0 %v11708
        %12564 = vmatprep.subr.bf16.mxu0 %v11705
        %12565 = vmatpush2.bf16.msra.mxu0 %v11704
        %12566 = vmatprep.subr.bf16.mxu0 %v11701
        %12567 = vmatpush2.bf16.msra.mxu0 %v11700
        %12568 = vmatprep.subr.bf16.mxu0 %v11697
        %12569 = vmatpush2.bf16.msra.mxu0 %v11696
        %12570 = vmatprep.subr.bf16.mxu0 %v11693
        %12571 = vmatpush2.bf16.msra.mxu0 %v11692
        %12572 = vmatprep.subr.bf16.mxu0 %v11689
        %12573 = vmatpush2.bf16.msra.mxu0 %v11688
        %12574 = vmatprep.mubr.bf16.mxu0 %v9199
        %12575 = vmatmul.mubr.bf16.gmra.mxu0 %v9198
        %v12576 = vpop.f32.mrf.mxu0
        %v12577 = vadd.f32 %v12536, %v12576
        %v12578 = vpop.f32.mrf.mxu0
        %v12579 = vadd.f32 %v12538, %v12578
        %v12580 = vpop.f32.mrf.mxu0
        %v12581 = vpop.f32.mrf.mxu0
        %12582 = vdwg.mxu0
        %12583 = vmatprep.subr.bf16.mxu0 %v11749
        %12584 = vmatpush1.bf16.msra.mxu0 %v11748
        %12585 = vmatprep.subr.bf16.mxu0 %v11745
        %12586 = vmatpush1.bf16.msra.mxu0 %v11744
        %12587 = vmatprep.subr.bf16.mxu0 %v11741
        %12588 = vmatpush1.bf16.msra.mxu0 %v11740
        %12589 = vmatprep.subr.bf16.mxu0 %v11737
        %12590 = vmatpush1.bf16.msra.mxu0 %v11736
        %12591 = vmatprep.subr.bf16.mxu0 %v11733
        %12592 = vmatpush1.bf16.msra.mxu0 %v11732
        %12593 = vmatprep.subr.bf16.mxu0 %v11729
        %12594 = vmatpush1.bf16.msra.mxu0 %v11728
        %12595 = vmatprep.subr.bf16.mxu0 %v11725
        %12596 = vmatpush1.bf16.msra.mxu0 %v11724
        %12597 = vmatprep.subr.bf16.mxu0 %v11721
        %12598 = vmatpush1.bf16.msra.mxu0 %v11720
        %12599 = vmatprep.subr.bf16.mxu0 %v11781
        %12600 = vmatpush2.bf16.msra.mxu0 %v11780
        %12601 = vmatprep.subr.bf16.mxu0 %v11777
        %12602 = vmatpush2.bf16.msra.mxu0 %v11776
        %12603 = vmatprep.subr.bf16.mxu0 %v11773
        %12604 = vmatpush2.bf16.msra.mxu0 %v11772
        %12605 = vmatprep.subr.bf16.mxu0 %v11769
        %12606 = vmatpush2.bf16.msra.mxu0 %v11768
        %12607 = vmatprep.subr.bf16.mxu0 %v11765
        %12608 = vmatpush2.bf16.msra.mxu0 %v11764
        %12609 = vmatprep.subr.bf16.mxu0 %v11761
        %12610 = vmatpush2.bf16.msra.mxu0 %v11760
        %12611 = vmatprep.subr.bf16.mxu0 %v11757
        %12612 = vmatpush2.bf16.msra.mxu0 %v11756
        %12613 = vmatprep.subr.bf16.mxu0 %v11753
        %12614 = vmatpush2.bf16.msra.mxu0 %v11752
        %12615 = vmatprep.mubr.bf16.mxu0 %v9201
        %12616 = vmatmul.mubr.bf16.gmra.mxu0 %v9200
        %v12617 = vpop.f32.mrf.mxu0
        %v12618 = vadd.f32 %v12577, %v12617
        %v12619 = vpop.f32.mrf.mxu0
        %v12620 = vadd.f32 %v12579, %v12619
        %v12621 = vpop.f32.mrf.mxu0
        %v12622 = vpop.f32.mrf.mxu0
        %12623 = vdwg.mxu0
        %12624 = vmatprep.subr.bf16.mxu0 %v11303
        %12625 = vmatpush1.bf16.msra.mxu0 %v11302
        %12626 = vmatprep.subr.bf16.mxu0 %v11299
        %12627 = vmatpush1.bf16.msra.mxu0 %v11298
        %12628 = vmatprep.subr.bf16.mxu0 %v11295
        %12629 = vmatpush1.bf16.msra.mxu0 %v11294
        %12630 = vmatprep.subr.bf16.mxu0 %v11291
        %12631 = vmatpush1.bf16.msra.mxu0 %v11290
        %12632 = vmatprep.subr.bf16.mxu0 %v11287
        %12633 = vmatpush1.bf16.msra.mxu0 %v11286
        %12634 = vmatprep.subr.bf16.mxu0 %v11283
        %12635 = vmatpush1.bf16.msra.mxu0 %v11282
        %12636 = vmatprep.subr.bf16.mxu0 %v11279
        %12637 = vmatpush1.bf16.msra.mxu0 %v11278
        %12638 = vmatprep.subr.bf16.mxu0 %v11275
        %12639 = vmatpush1.bf16.msra.mxu0 %v11274
        %12640 = vmatprep.subr.bf16.mxu0 %v11335
        %12641 = vmatpush2.bf16.msra.mxu0 %v11334
        %12642 = vmatprep.subr.bf16.mxu0 %v11331
        %12643 = vmatpush2.bf16.msra.mxu0 %v11330
        %12644 = vmatprep.subr.bf16.mxu0 %v11327
        %12645 = vmatpush2.bf16.msra.mxu0 %v11326
        %12646 = vmatprep.subr.bf16.mxu0 %v11323
        %12647 = vmatpush2.bf16.msra.mxu0 %v11322
        %12648 = vmatprep.subr.bf16.mxu0 %v11319
        %12649 = vmatpush2.bf16.msra.mxu0 %v11318
        %12650 = vmatprep.subr.bf16.mxu0 %v11315
        %12651 = vmatpush2.bf16.msra.mxu0 %v11314
        %12652 = vmatprep.subr.bf16.mxu0 %v11311
        %12653 = vmatpush2.bf16.msra.mxu0 %v11310
        %12654 = vmatprep.subr.bf16.mxu0 %v11307
        %12655 = vmatpush2.bf16.msra.mxu0 %v11306
        %12656 = vmatprep.mubr.bf16.mxu0 %v9187
        %12657 = vmatmul.mubr.bf16.gmra.mxu0 %v9186
        %v12658 = vpop.f32.mrf.mxu0
        %v12659 = vadd.f32 %v9727, %v12658
        %v12660 = vpop.f32.mrf.mxu0
        %v12661 = vadd.f32 %v9731, %v12660
        %v12662 = vpop.f32.mrf.mxu0
        %v12663 = vpop.f32.mrf.mxu0
        %12664 = vdwg.mxu0
        %12665 = vmatprep.subr.bf16.mxu0 %v11367
        %12666 = vmatpush1.bf16.msra.mxu0 %v11366
        %12667 = vmatprep.subr.bf16.mxu0 %v11363
        %12668 = vmatpush1.bf16.msra.mxu0 %v11362
        %12669 = vmatprep.subr.bf16.mxu0 %v11359
        %12670 = vmatpush1.bf16.msra.mxu0 %v11358
        %12671 = vmatprep.subr.bf16.mxu0 %v11355
        %12672 = vmatpush1.bf16.msra.mxu0 %v11354
        %12673 = vmatprep.subr.bf16.mxu0 %v11351
        %12674 = vmatpush1.bf16.msra.mxu0 %v11350
        %12675 = vmatprep.subr.bf16.mxu0 %v11347
        %12676 = vmatpush1.bf16.msra.mxu0 %v11346
        %12677 = vmatprep.subr.bf16.mxu0 %v11343
        %12678 = vmatpush1.bf16.msra.mxu0 %v11342
        %12679 = vmatprep.subr.bf16.mxu0 %v11339
        %12680 = vmatpush1.bf16.msra.mxu0 %v11338
        %12681 = vmatprep.subr.bf16.mxu0 %v11399
        %12682 = vmatpush2.bf16.msra.mxu0 %v11398
        %12683 = vmatprep.subr.bf16.mxu0 %v11395
        %12684 = vmatpush2.bf16.msra.mxu0 %v11394
        %12685 = vmatprep.subr.bf16.mxu0 %v11391
        %12686 = vmatpush2.bf16.msra.mxu0 %v11390
        %12687 = vmatprep.subr.bf16.mxu0 %v11387
        %12688 = vmatpush2.bf16.msra.mxu0 %v11386
        %12689 = vmatprep.subr.bf16.mxu0 %v11383
        %12690 = vmatpush2.bf16.msra.mxu0 %v11382
        %12691 = vmatprep.subr.bf16.mxu0 %v11379
        %12692 = vmatpush2.bf16.msra.mxu0 %v11378
        %12693 = vmatprep.subr.bf16.mxu0 %v11375
        %12694 = vmatpush2.bf16.msra.mxu0 %v11374
        %12695 = vmatprep.subr.bf16.mxu0 %v11371
        %12696 = vmatpush2.bf16.msra.mxu0 %v11370
        %12697 = vmatprep.mubr.bf16.mxu0 %v9189
        %12698 = vmatmul.mubr.bf16.gmra.mxu0 %v9188
        %v12699 = vpop.f32.mrf.mxu0
        %v12700 = vadd.f32 %v12659, %v12699
        %v12701 = vpop.f32.mrf.mxu0
        %v12702 = vadd.f32 %v12661, %v12701
        %v12703 = vpop.f32.mrf.mxu0
        %v12704 = vpop.f32.mrf.mxu0
        %12705 = vdwg.mxu0
        %12706 = vmatprep.subr.bf16.mxu0 %v11431
        %12707 = vmatpush1.bf16.msra.mxu0 %v11430
        %12708 = vmatprep.subr.bf16.mxu0 %v11427
        %12709 = vmatpush1.bf16.msra.mxu0 %v11426
        %12710 = vmatprep.subr.bf16.mxu0 %v11423
        %12711 = vmatpush1.bf16.msra.mxu0 %v11422
        %12712 = vmatprep.subr.bf16.mxu0 %v11419
        %12713 = vmatpush1.bf16.msra.mxu0 %v11418
        %12714 = vmatprep.subr.bf16.mxu0 %v11415
        %12715 = vmatpush1.bf16.msra.mxu0 %v11414
        %12716 = vmatprep.subr.bf16.mxu0 %v11411
        %12717 = vmatpush1.bf16.msra.mxu0 %v11410
        %12718 = vmatprep.subr.bf16.mxu0 %v11407
        %12719 = vmatpush1.bf16.msra.mxu0 %v11406
        %12720 = vmatprep.subr.bf16.mxu0 %v11403
        %12721 = vmatpush1.bf16.msra.mxu0 %v11402
        %12722 = vmatprep.subr.bf16.mxu0 %v11463
        %12723 = vmatpush2.bf16.msra.mxu0 %v11462
        %12724 = vmatprep.subr.bf16.mxu0 %v11459
        %12725 = vmatpush2.bf16.msra.mxu0 %v11458
        %12726 = vmatprep.subr.bf16.mxu0 %v11455
        %12727 = vmatpush2.bf16.msra.mxu0 %v11454
        %12728 = vmatprep.subr.bf16.mxu0 %v11451
        %12729 = vmatpush2.bf16.msra.mxu0 %v11450
        %12730 = vmatprep.subr.bf16.mxu0 %v11447
        %12731 = vmatpush2.bf16.msra.mxu0 %v11446
        %12732 = vmatprep.subr.bf16.mxu0 %v11443
        %12733 = vmatpush2.bf16.msra.mxu0 %v11442
        %12734 = vmatprep.subr.bf16.mxu0 %v11439
        %12735 = vmatpush2.bf16.msra.mxu0 %v11438
        %12736 = vmatprep.subr.bf16.mxu0 %v11435
        %12737 = vmatpush2.bf16.msra.mxu0 %v11434
        %12738 = vmatprep.mubr.bf16.mxu0 %v9191
        %12739 = vmatmul.mubr.bf16.gmra.mxu0 %v9190
        %v12740 = vpop.f32.mrf.mxu0
        %v12741 = vadd.f32 %v12700, %v12740
        %v12742 = vpop.f32.mrf.mxu0
        %v12743 = vadd.f32 %v12702, %v12742
        %v12744 = vpop.f32.mrf.mxu0
        %v12745 = vpop.f32.mrf.mxu0
        %12746 = vdwg.mxu0
        %12747 = vmatprep.subr.bf16.mxu0 %v11495
        %12748 = vmatpush1.bf16.msra.mxu0 %v11494
        %12749 = vmatprep.subr.bf16.mxu0 %v11491
        %12750 = vmatpush1.bf16.msra.mxu0 %v11490
        %12751 = vmatprep.subr.bf16.mxu0 %v11487
        %12752 = vmatpush1.bf16.msra.mxu0 %v11486
        %12753 = vmatprep.subr.bf16.mxu0 %v11483
        %12754 = vmatpush1.bf16.msra.mxu0 %v11482
        %12755 = vmatprep.subr.bf16.mxu0 %v11479
        %12756 = vmatpush1.bf16.msra.mxu0 %v11478
        %12757 = vmatprep.subr.bf16.mxu0 %v11475
        %12758 = vmatpush1.bf16.msra.mxu0 %v11474
        %12759 = vmatprep.subr.bf16.mxu0 %v11471
        %12760 = vmatpush1.bf16.msra.mxu0 %v11470
        %12761 = vmatprep.subr.bf16.mxu0 %v11467
        %12762 = vmatpush1.bf16.msra.mxu0 %v11466
        %12763 = vmatprep.subr.bf16.mxu0 %v11527
        %12764 = vmatpush2.bf16.msra.mxu0 %v11526
        %12765 = vmatprep.subr.bf16.mxu0 %v11523
        %12766 = vmatpush2.bf16.msra.mxu0 %v11522
        %12767 = vmatprep.subr.bf16.mxu0 %v11519
        %12768 = vmatpush2.bf16.msra.mxu0 %v11518
        %12769 = vmatprep.subr.bf16.mxu0 %v11515
        %12770 = vmatpush2.bf16.msra.mxu0 %v11514
        %12771 = vmatprep.subr.bf16.mxu0 %v11511
        %12772 = vmatpush2.bf16.msra.mxu0 %v11510
        %12773 = vmatprep.subr.bf16.mxu0 %v11507
        %12774 = vmatpush2.bf16.msra.mxu0 %v11506
        %12775 = vmatprep.subr.bf16.mxu0 %v11503
        %12776 = vmatpush2.bf16.msra.mxu0 %v11502
        %12777 = vmatprep.subr.bf16.mxu0 %v11499
        %12778 = vmatpush2.bf16.msra.mxu0 %v11498
        %12779 = vmatprep.mubr.bf16.mxu0 %v9193
        %12780 = vmatmul.mubr.bf16.gmra.mxu0 %v9192
        %v12781 = vpop.f32.mrf.mxu0
        %v12782 = vadd.f32 %v12741, %v12781
        %v12783 = vpop.f32.mrf.mxu0
        %v12784 = vadd.f32 %v12743, %v12783
        %v12785 = vpop.f32.mrf.mxu0
        %v12786 = vpop.f32.mrf.mxu0
        %12787 = vdwg.mxu0
        %12788 = vmatprep.subr.bf16.mxu0 %v11559
        %12789 = vmatpush1.bf16.msra.mxu0 %v11558
        %12790 = vmatprep.subr.bf16.mxu0 %v11555
        %12791 = vmatpush1.bf16.msra.mxu0 %v11554
        %12792 = vmatprep.subr.bf16.mxu0 %v11551
        %12793 = vmatpush1.bf16.msra.mxu0 %v11550
        %12794 = vmatprep.subr.bf16.mxu0 %v11547
        %12795 = vmatpush1.bf16.msra.mxu0 %v11546
        %12796 = vmatprep.subr.bf16.mxu0 %v11543
        %12797 = vmatpush1.bf16.msra.mxu0 %v11542
        %12798 = vmatprep.subr.bf16.mxu0 %v11539
        %12799 = vmatpush1.bf16.msra.mxu0 %v11538
        %12800 = vmatprep.subr.bf16.mxu0 %v11535
        %12801 = vmatpush1.bf16.msra.mxu0 %v11534
        %12802 = vmatprep.subr.bf16.mxu0 %v11531
        %12803 = vmatpush1.bf16.msra.mxu0 %v11530
        %12804 = vmatprep.subr.bf16.mxu0 %v11591
        %12805 = vmatpush2.bf16.msra.mxu0 %v11590
        %12806 = vmatprep.subr.bf16.mxu0 %v11587
        %12807 = vmatpush2.bf16.msra.mxu0 %v11586
        %12808 = vmatprep.subr.bf16.mxu0 %v11583
        %12809 = vmatpush2.bf16.msra.mxu0 %v11582
        %12810 = vmatprep.subr.bf16.mxu0 %v11579
        %12811 = vmatpush2.bf16.msra.mxu0 %v11578
        %12812 = vmatprep.subr.bf16.mxu0 %v11575
        %12813 = vmatpush2.bf16.msra.mxu0 %v11574
        %12814 = vmatprep.subr.bf16.mxu0 %v11571
        %12815 = vmatpush2.bf16.msra.mxu0 %v11570
        %12816 = vmatprep.subr.bf16.mxu0 %v11567
        %12817 = vmatpush2.bf16.msra.mxu0 %v11566
        %12818 = vmatprep.subr.bf16.mxu0 %v11563
        %12819 = vmatpush2.bf16.msra.mxu0 %v11562
        %12820 = vmatprep.mubr.bf16.mxu0 %v9195
        %12821 = vmatmul.mubr.bf16.gmra.mxu0 %v9194
        %v12822 = vpop.f32.mrf.mxu0
        %v12823 = vadd.f32 %v12782, %v12822
        %v12824 = vpop.f32.mrf.mxu0
        %v12825 = vadd.f32 %v12784, %v12824
        %v12826 = vpop.f32.mrf.mxu0
        %v12827 = vpop.f32.mrf.mxu0
        %12828 = vdwg.mxu0
        %12829 = vmatprep.subr.bf16.mxu0 %v11623
        %12830 = vmatpush1.bf16.msra.mxu0 %v11622
        %12831 = vmatprep.subr.bf16.mxu0 %v11619
        %12832 = vmatpush1.bf16.msra.mxu0 %v11618
        %12833 = vmatprep.subr.bf16.mxu0 %v11615
        %12834 = vmatpush1.bf16.msra.mxu0 %v11614
        %12835 = vmatprep.subr.bf16.mxu0 %v11611
        %12836 = vmatpush1.bf16.msra.mxu0 %v11610
        %12837 = vmatprep.subr.bf16.mxu0 %v11607
        %12838 = vmatpush1.bf16.msra.mxu0 %v11606
        %12839 = vmatprep.subr.bf16.mxu0 %v11603
        %12840 = vmatpush1.bf16.msra.mxu0 %v11602
        %12841 = vmatprep.subr.bf16.mxu0 %v11599
        %12842 = vmatpush1.bf16.msra.mxu0 %v11598
        %12843 = vmatprep.subr.bf16.mxu0 %v11595
        %12844 = vmatpush1.bf16.msra.mxu0 %v11594
        %12845 = vmatprep.subr.bf16.mxu0 %v11655
        %12846 = vmatpush2.bf16.msra.mxu0 %v11654
        %12847 = vmatprep.subr.bf16.mxu0 %v11651
        %12848 = vmatpush2.bf16.msra.mxu0 %v11650
        %12849 = vmatprep.subr.bf16.mxu0 %v11647
        %12850 = vmatpush2.bf16.msra.mxu0 %v11646
        %12851 = vmatprep.subr.bf16.mxu0 %v11643
        %12852 = vmatpush2.bf16.msra.mxu0 %v11642
        %12853 = vmatprep.subr.bf16.mxu0 %v11639
        %12854 = vmatpush2.bf16.msra.mxu0 %v11638
        %12855 = vmatprep.subr.bf16.mxu0 %v11635
        %12856 = vmatpush2.bf16.msra.mxu0 %v11634
        %12857 = vmatprep.subr.bf16.mxu0 %v11631
        %12858 = vmatpush2.bf16.msra.mxu0 %v11630
        %12859 = vmatprep.subr.bf16.mxu0 %v11627
        %12860 = vmatpush2.bf16.msra.mxu0 %v11626
        %12861 = vmatprep.mubr.bf16.mxu0 %v9197
        %12862 = vmatmul.mubr.bf16.gmra.mxu0 %v9196
        %v12863 = vpop.f32.mrf.mxu0
        %v12864 = vadd.f32 %v12823, %v12863
        %v12865 = vpop.f32.mrf.mxu0
        %v12866 = vadd.f32 %v12825, %v12865
        %v12867 = vpop.f32.mrf.mxu0
        %v12868 = vpop.f32.mrf.mxu0
        %12869 = vdwg.mxu0
        %12870 = vmatprep.subr.bf16.mxu0 %v11687
        %12871 = vmatpush1.bf16.msra.mxu0 %v11686
        %12872 = vmatprep.subr.bf16.mxu0 %v11683
        %12873 = vmatpush1.bf16.msra.mxu0 %v11682
        %12874 = vmatprep.subr.bf16.mxu0 %v11679
        %12875 = vmatpush1.bf16.msra.mxu0 %v11678
        %12876 = vmatprep.subr.bf16.mxu0 %v11675
        %12877 = vmatpush1.bf16.msra.mxu0 %v11674
        %12878 = vmatprep.subr.bf16.mxu0 %v11671
        %12879 = vmatpush1.bf16.msra.mxu0 %v11670
        %12880 = vmatprep.subr.bf16.mxu0 %v11667
        %12881 = vmatpush1.bf16.msra.mxu0 %v11666
        %12882 = vmatprep.subr.bf16.mxu0 %v11663
        %12883 = vmatpush1.bf16.msra.mxu0 %v11662
        %12884 = vmatprep.subr.bf16.mxu0 %v11659
        %12885 = vmatpush1.bf16.msra.mxu0 %v11658
        %12886 = vmatprep.subr.bf16.mxu0 %v11719
        %12887 = vmatpush2.bf16.msra.mxu0 %v11718
        %12888 = vmatprep.subr.bf16.mxu0 %v11715
        %12889 = vmatpush2.bf16.msra.mxu0 %v11714
        %12890 = vmatprep.subr.bf16.mxu0 %v11711
        %12891 = vmatpush2.bf16.msra.mxu0 %v11710
        %12892 = vmatprep.subr.bf16.mxu0 %v11707
        %12893 = vmatpush2.bf16.msra.mxu0 %v11706
        %12894 = vmatprep.subr.bf16.mxu0 %v11703
        %12895 = vmatpush2.bf16.msra.mxu0 %v11702
        %12896 = vmatprep.subr.bf16.mxu0 %v11699
        %12897 = vmatpush2.bf16.msra.mxu0 %v11698
        %12898 = vmatprep.subr.bf16.mxu0 %v11695
        %12899 = vmatpush2.bf16.msra.mxu0 %v11694
        %12900 = vmatprep.subr.bf16.mxu0 %v11691
        %12901 = vmatpush2.bf16.msra.mxu0 %v11690
        %12902 = vmatprep.mubr.bf16.mxu0 %v9199
        %12903 = vmatmul.mubr.bf16.gmra.mxu0 %v9198
        %v12904 = vpop.f32.mrf.mxu0
        %v12905 = vadd.f32 %v12864, %v12904
        %v12906 = vpop.f32.mrf.mxu0
        %v12907 = vadd.f32 %v12866, %v12906
        %v12908 = vpop.f32.mrf.mxu0
        %v12909 = vpop.f32.mrf.mxu0
        %12910 = vdwg.mxu0
        %12911 = vmatprep.subr.bf16.mxu0 %v11751
        %12912 = vmatpush1.bf16.msra.mxu0 %v11750
        %12913 = vmatprep.subr.bf16.mxu0 %v11747
        %12914 = vmatpush1.bf16.msra.mxu0 %v11746
        %12915 = vmatprep.subr.bf16.mxu0 %v11743
        %12916 = vmatpush1.bf16.msra.mxu0 %v11742
        %12917 = vmatprep.subr.bf16.mxu0 %v11739
        %12918 = vmatpush1.bf16.msra.mxu0 %v11738
        %12919 = vmatprep.subr.bf16.mxu0 %v11735
        %12920 = vmatpush1.bf16.msra.mxu0 %v11734
        %12921 = vmatprep.subr.bf16.mxu0 %v11731
        %12922 = vmatpush1.bf16.msra.mxu0 %v11730
        %12923 = vmatprep.subr.bf16.mxu0 %v11727
        %12924 = vmatpush1.bf16.msra.mxu0 %v11726
        %12925 = vmatprep.subr.bf16.mxu0 %v11723
        %12926 = vmatpush1.bf16.msra.mxu0 %v11722
        %12927 = vmatprep.subr.bf16.mxu0 %v11783
        %12928 = vmatpush2.bf16.msra.mxu0 %v11782
        %12929 = vmatprep.subr.bf16.mxu0 %v11779
        %12930 = vmatpush2.bf16.msra.mxu0 %v11778
        %12931 = vmatprep.subr.bf16.mxu0 %v11775
        %12932 = vmatpush2.bf16.msra.mxu0 %v11774
        %12933 = vmatprep.subr.bf16.mxu0 %v11771
        %12934 = vmatpush2.bf16.msra.mxu0 %v11770
        %12935 = vmatprep.subr.bf16.mxu0 %v11767
        %12936 = vmatpush2.bf16.msra.mxu0 %v11766
        %12937 = vmatprep.subr.bf16.mxu0 %v11763
        %12938 = vmatpush2.bf16.msra.mxu0 %v11762
        %12939 = vmatprep.subr.bf16.mxu0 %v11759
        %12940 = vmatpush2.bf16.msra.mxu0 %v11758
        %12941 = vmatprep.subr.bf16.mxu0 %v11755
        %12942 = vmatpush2.bf16.msra.mxu0 %v11754
        %12943 = vmatprep.mubr.bf16.mxu0 %v9201
        %12944 = vmatmul.mubr.bf16.gmra.mxu0 %v9200
        %v12945 = vpop.f32.mrf.mxu0
        %v12946 = vadd.f32 %v12905, %v12945
        %v12947 = vpop.f32.mrf.mxu0
        %v12948 = vadd.f32 %v12907, %v12947
        %v12949 = vpop.f32.mrf.mxu0
        %v12950 = vpop.f32.mrf.mxu0
        %12951 = vdwg.mxu0
        %v12952 = vadd.f32 %v5272, %v12618
        %v12953 = vadd.f32 %v5273, %v12620
        %v12954 = vadd.f32 %v5274, %v12946
        %v12955 = vadd.f32 %v5275, %v12948
        %v12956 = vpack.c.bf16 %v12952, %v12952
        %v12957 = vpack.c.bf16 %v12953, %v12953
        %v12958 = vpack.c.bf16 %v12954, %v12954
        %v12959 = vpack.c.bf16 %v12955, %v12955
        %v12964 = vunpack.c.l.b16 %v12956
        %v12965 = vunpack.c.l.b16 %v12957
        %v12966 = vunpack.c.l.b16 %v12958
        %v12967 = vunpack.c.l.b16 %v12959
        %v12968 = vpack.c.b16 %v12965, %v12964
        %v12969 = vpack.c.b16 %v12967, %v12966
        %12972 = vst [vmem:[%s433] sm:$0xff] %v12968
        %12973 = vst [vmem:[%s433 + $0x8] sm:$0xff] %v12969
        %s12974 = sand.u32 %s313, 1
        %s12975 = scalar_lea.sflag [#allocation3], %s12974
        %s12976 = sand.u32 %s313, 1
        %s12977 = smul.addr %s12976, 16
        %s12978 = scalar_lea.vmem [#allocation2], %s12977
        // Predicated region
        $region73: #{transformer_block.1} parent=71 // pred_check
          %p12979 = pneg %p323
        $region74: #{transformer_block.1} parent=71 // pred_check_branch
          %12981 = sbr.rel (%p12979) target = $region76
        $region75: #{transformer_block.1} parent=71 // pred_region
          %s12983 = ssub.s32 256, 256
          %12984 = vsyncadd %s12975, %s12983
          %s12985 = smul.addr %s27, 4
          %s12986 = smul.addr %s12985, 64
          %s12987 = scalar_lea.hbm %s13, %s12986
          %s12989 = sshll.u32 %s12978, 4
          %s12990 = int_to_ptr.vmem [resolvable:$true] %s12989
          %12992 = dma.vmem_to_hbm [thread:$0]  %s12990, 256, %s12987, %s12975
        $region76: #{transformer_block.1} parent=71 // pred_fallthru
          _
      $region72: #{transformer_block.1} parent=5 // pred_fallthru
        _
      %p12993 = scmp.le.s32.totalorder 2, %s22
      // Predicated region
      $region77: #{transformer_block.1} parent=5 // pred_check
        %p12994 = pneg %p12993
      $region78: #{transformer_block.1} parent=5 // pred_check_branch
        %12996 = sbr.rel (%p12994) target = $region80
      $region79: #{transformer_block.1} parent=5 // pred_region
        %s12997 = ssub.s32 %s22, 2
        // Predicated region
        $region81: #{transformer_block.1} parent=79 // pred_check
          %p12998 = pneg %p329
        $region82: #{transformer_block.1} parent=79 // pred_check_branch
          %13000 = sbr.rel (%p12998) target = $region84
        $region83: #{transformer_block.1} parent=79 // pred_region
          %s13001 = sand.u32 %s314, 1
          %s13002 = scalar_lea.sflag [#allocation3], %s13001
          %s13003 = sand.u32 %s314, 1
          %s13004 = smul.addr %s13003, 16
          %s13005 = scalar_lea.vmem [#allocation2], %s13004
          %13006 = dma.done %s13002, 256
        $region84: #{transformer_block.1} parent=79 // pred_fallthru
          _
      $region80: #{transformer_block.1} parent=5 // pred_fallthru
        _
    $region6: #{transformer_block.1} parent=1 // loop_footer
      %s26 = sadd.s32 1, %s22
    $region7: #{transformer_block.1} parent=1 // loop_footer_branch
      %21 = sbr.rel target = $region3
    $region8: #{transformer_block.1} parent=1 // loop_exit
      _
    %13007 = vsyncpa [#allocation3], 1
    %s13008 = scalar_lea.sflag [#allocation3], 1
    %13009 = vsyncpa %s13008, 1

</llo_original>
